<compile_context>
chip_gen: v7x
topology: tpu7x:2x2x1
jax: 0.10.0
libtpu: 0.0.40
codegen_flags: <defaults>
</compile_context>

<pallas_src>
import functools

import numpy as np
import jax
import jax.numpy as jnp
from jax.experimental import pallas as pl
from jax.experimental.pallas import tpu as pltpu


def _round_up(x, m):
    return (x + m - 1) // m * m


# ---------------------------------------------------------------------------
# Single-step fused conv matmul: out = relu(x @ w + shift)
# Full-K / full-N block (no reduction grid axis, no scratch); grid tiles M only.
# BN scale is pre-folded into w, conv bias + BN shift pre-folded into `shift`.
# ---------------------------------------------------------------------------
def _conv_matmul_kernel(x_ref, w_ref, shift_ref, o_ref):
    acc = jnp.dot(x_ref[...], w_ref[...], preferred_element_type=jnp.float32)
    o_ref[...] = jnp.maximum(acc + shift_ref[...], 0.0).astype(o_ref.dtype)


def conv_matmul(x, w, shift, *, out_dtype=jnp.bfloat16):
    """x: (M, K) bf16, w: (K, N) bf16 (scale-folded), shift: (1, N) f32."""
    m, k = x.shape
    k2, n = w.shape
    assert k == k2 and shift.shape == (1, n)

    tm = 256 if m >= 256 else _round_up(m, 16)   # bf16 packs 16 rows per vreg
    mp = _round_up(m, tm)
    if mp != m:
        x = jnp.pad(x, ((0, mp - m), (0, 0)))

    out = pl.pallas_call(
        _conv_matmul_kernel,
        out_shape=jax.ShapeDtypeStruct((mp, n), out_dtype),
        grid=(mp // tm,),
        in_specs=[
            pl.BlockSpec((tm, k), lambda i: (i, 0)),   # full-K block
            pl.BlockSpec((k, n), lambda i: (0, 0)),    # full weight block
            pl.BlockSpec((1, n), lambda i: (0, 0)),
        ],
        out_specs=pl.BlockSpec((tm, n), lambda i: (i, 0)),
        compiler_params=pltpu.CompilerParams(
            dimension_semantics=("parallel",),
            vmem_limit_bytes=32 * 1024 * 1024,
        ),
        cost_estimate=pl.CostEstimate(
            flops=2 * mp * n * k,
            transcendentals=0,
            bytes_accessed=(mp * k + k * n) * 2 + mp * n * 2,
        ),
    )(x, w, shift)
    return out[:m]


# ---------------------------------------------------------------------------
# Fused conv3 + conv4 + AdaptiveAvgPool + fc1 + ReLU + Dropout(id) + fc2.
# im2col for conv3/conv4 is done in-kernel as gather-matmuls with precomputed
# 0/1 selection matrices (exact in bf16); pooling is a matmul with a
# precomputed averaging matrix.  Everything is whole-array VMEM resident.
# ---------------------------------------------------------------------------
def _fused_tail_kernel(n_taps, x2_ref, sel3_ref, w3_ref, shift3_ref,
                       sel4_ref, w4_ref, shift4_ref,
                       pool_ref, w1_ref, b1_ref, w2_ref, b2_ref, o_ref):
    x2 = x2_ref[...]                                        # (n*8*8, 128) bf16

    # conv3 + BN + ReLU   (gather taps via Sel_t, accumulate in f32)
    m3 = sel3_ref.shape[1]
    c3 = w3_ref.shape[2]
    acc3 = jnp.zeros((m3, c3), jnp.float32)
    for t in range(n_taps):
        slab = jnp.dot(sel3_ref[t], x2,
                       preferred_element_type=jnp.float32).astype(jnp.bfloat16)
        acc3 = acc3 + jnp.dot(slab, w3_ref[t],
                              preferred_element_type=jnp.float32)
    x3 = jnp.maximum(acc3 + shift3_ref[...], 0.0).astype(jnp.bfloat16)

    # conv4 + BN + ReLU
    m4 = sel4_ref.shape[1]
    c4 = w4_ref.shape[2]
    acc4 = jnp.zeros((m4, c4), jnp.float32)
    for t in range(n_taps):
        slab = jnp.dot(sel4_ref[t], x3,
                       preferred_element_type=jnp.float32).astype(jnp.bfloat16)
        acc4 = acc4 + jnp.dot(slab, w4_ref[t],
                              preferred_element_type=jnp.float32)
    x4 = jnp.maximum(acc4 + shift4_ref[...], 0.0).astype(jnp.bfloat16)

    # AdaptiveAvgPool2d((1,1)) + Flatten  (as a matmul with the pooling matrix)
    pooled = jnp.dot(pool_ref[...], x4, preferred_element_type=jnp.float32)

    # Linear(512,128) + ReLU
    h = jnp.dot(pooled.astype(jnp.bfloat16), w1_ref[...],
                preferred_element_type=jnp.float32) + b1_ref[...]
    h = jnp.maximum(h, 0.0)

    # Dropout(0.2): identity at inference.  Linear(128, num_classes_padded)
    out = jnp.dot(h.astype(jnp.bfloat16), w2_ref[...],
                  preferred_element_type=jnp.float32) + b2_ref[...]
    o_ref[...] = out


def fused_tail(x2_flat, prep):
    n = prep["pool"].shape[0]
    ncls_p = prep["fc2_w"].shape[1]
    vmem = pl.BlockSpec(memory_space=pltpu.MemorySpace.VMEM)
    kernel = functools.partial(_fused_tail_kernel, 9)
    return pl.pallas_call(
        kernel,
        out_shape=jax.ShapeDtypeStruct((n, ncls_p), jnp.float32),
        in_specs=[vmem] * 12,
        out_specs=vmem,
        compiler_params=pltpu.CompilerParams(
            vmem_limit_bytes=32 * 1024 * 1024),
    )(x2_flat,
      prep["sel3"], prep["conv3_w"], prep["conv3_shift"],
      prep["sel4"], prep["conv4_w"], prep["conv4_shift"],
      prep["pool"], prep["fc1_w"], prep["fc1_b"],
      prep["fc2_w"], prep["fc2_b"])


# ---------------------------------------------------------------------------
# im2col glue for conv1/conv2 (plain JAX slicing; no compute).  Patch ordering
# (ky, kx, cin) matches the HWIO weight reshape.  Done in bf16.
# ---------------------------------------------------------------------------
def im2col(x_nhwc, k=3, stride=2, pad=1):
    n, h, w, c = x_nhwc.shape
    h_out = (h + 2 * pad - k) // stride + 1
    w_out = (w + 2 * pad - k) // stride + 1
    x_pad = jnp.pad(x_nhwc, ((0, 0), (pad, pad), (pad, pad), (0, 0)))
    cols = []
    for ky in range(k):
        for kx in range(k):
            sl = x_pad[
                :,
                ky: ky + stride * (h_out - 1) + 1: stride,
                kx: kx + stride * (w_out - 1) + 1: stride,
                :,
            ]
            cols.append(sl)
    patches = jnp.concatenate(cols, axis=-1)        # (N, Ho, Wo, 9*C)
    return patches.reshape(n * h_out * w_out, k * k * c), (n, h_out, w_out)


# ---------------------------------------------------------------------------
# Raw parameter initialization (deterministic, synthetic, PyTorch-equivalent
# structure: conv HWIO + bias + BN stats; linear (in, out) + bias).
# ---------------------------------------------------------------------------
def init_conv_bn(key, cin, cout):
    k1, k2, k3, k4, k5, k6 = jax.random.split(key, 6)
    w = jax.random.normal(k1, (3, 3, cin, cout), jnp.float32) / jnp.sqrt(9.0 * cin)
    b = 0.01 * jax.random.normal(k2, (cout,), jnp.float32)
    gamma = 1.0 + 0.1 * jax.random.normal(k3, (cout,), jnp.float32)
    beta = 0.05 * jax.random.normal(k4, (cout,), jnp.float32)
    mean = 0.1 * jax.random.normal(k5, (cout,), jnp.float32)
    var = 0.5 + jax.random.uniform(k6, (cout,), jnp.float32)   # strictly > 0
    return (w, b, gamma, beta, mean, var)


def init_linear(key, cin, cout):
    k1, k2 = jax.random.split(key)
    w = jax.random.normal(k1, (cin, cout), jnp.float32) / jnp.sqrt(float(cin))
    b = 0.01 * jax.random.normal(k2, (cout,), jnp.float32)
    return (w, b)


def init_mobilefacenet(key, num_classes=2):
    keys = jax.random.split(key, 6)
    return {
        "conv1": init_conv_bn(keys[0], 3, 64),
        "conv2": init_conv_bn(keys[1], 64, 128),
        "conv3": init_conv_bn(keys[2], 128, 256),
        "conv4": init_conv_bn(keys[3], 256, 512),
        "fc1": init_linear(keys[4], 512, 128),
        "fc2": init_linear(keys[5], 128, num_classes),
    }


# ---------------------------------------------------------------------------
# One-time weight preparation (hoisted out of the forward path).
# ---------------------------------------------------------------------------
def _fold_bn(p, eps=1e-5):
    w, b, gamma, beta, mean, var = p
    scale = gamma / jnp.sqrt(var + eps)
    shift = scale * (b - mean) + beta      # conv bias folded into BN shift
    return w * scale, shift                # scale folded into weight columns


def _make_selection(n, hi, wi):
    """(9, n*ho*wo, n*hi*wi) 0/1 gather matrices for a 3x3 stride-2 pad-1 conv."""
    ho = (hi - 1) // 2 + 1
    wo = (wi - 1) // 2 + 1
    sel = np.zeros((9, n * ho * wo, n * hi * wi), np.float32)
    for t in range(9):
        ky, kx = divmod(t, 3)
        for nn in range(n):
            for i in range(ho):
                y = 2 * i + ky - 1
                if not (0 <= y < hi):
                    continue
                for j in range(wo):
                    x = 2 * j + kx - 1
                    if 0 <= x < wi:
                        sel[t, (nn * ho + i) * wo + j,
                            (nn * hi + y) * wi + x] = 1.0
    return sel, (ho, wo)


def prepare_params(params, *, batch, height, width, num_classes):
    prep = {}
    # conv1 / conv2: im2col-matmul weights (K = 9*cin, BN folded, bf16).
    for name in ("conv1", "conv2"):
        wf, shift = _fold_bn(params[name])
        prep[name + "_w"] = wf.reshape(-1, wf.shape[-1]).astype(jnp.bfloat16)
        prep[name + "_shift"] = shift[None, :].astype(jnp.float32)
    # conv3 / conv4: per-tap (ky*3+kx, cin, cout) weights for the fused kernel.
    for name in ("conv3", "conv4"):
        wf, shift = _fold_bn(params[name])
        prep[name + "_w"] = wf.reshape(9, wf.shape[2], wf.shape[3]).astype(jnp.bfloat16)
        prep[name + "_shift"] = shift[None, :].astype(jnp.float32)
    # Spatial sizes through the four stride-2 convs.
    ho1, wo1 = (height - 1) // 2 + 1, (width - 1) // 2 + 1
    ho2, wo2 = (ho1 - 1) // 2 + 1, (wo1 - 1) // 2 + 1
    sel3, (ho3, wo3) = _make_selection(batch, ho2, wo2)
    sel4, (ho4, wo4) = _make_selection(batch, ho3, wo3)
    prep["sel3"] = jnp.asarray(sel3, jnp.bfloat16)
    prep["sel4"] = jnp.asarray(sel4, jnp.bfloat16)
    pool = np.zeros((batch, batch * ho4 * wo4), np.float32)
    for nn in range(batch):
        pool[nn, nn * ho4 * wo4:(nn + 1) * ho4 * wo4] = 1.0 / float(ho4 * wo4)
    prep["pool"] = jnp.asarray(pool, jnp.bfloat16)
    # Classifier: fc2 output padded to 128 lanes (lane-dense store; sliced outside).
    w_fc1, b_fc1 = params["fc1"]
    w_fc2, b_fc2 = params["fc2"]
    ncls_p = _round_up(num_classes, 128)
    prep["fc1_w"] = w_fc1.astype(jnp.bfloat16)
    prep["fc1_b"] = b_fc1[None, :].astype(jnp.float32)
    prep["fc2_w"] = jnp.pad(w_fc2, ((0, 0), (0, ncls_p - num_classes))).astype(jnp.bfloat16)
    prep["fc2_b"] = jnp.pad(b_fc2, ((0, ncls_p - num_classes),))[None, :].astype(jnp.float32)
    return prep


# ---------------------------------------------------------------------------
# Forward pass (jitted; contains no parameter prep, only activation glue +
# three pallas_calls: conv1, conv2, fused(conv3+conv4+tail)).
# ---------------------------------------------------------------------------
def mobilefacenet_forward(prep, x_nchw, *, num_classes=2):
    x = jnp.transpose(x_nchw, (0, 2, 3, 1)).astype(jnp.bfloat16)   # NCHW -> NHWC
    # conv1 + BN + ReLU
    p1, (n, ho1, wo1) = im2col(x)
    y1 = conv_matmul(p1, prep["conv1_w"], prep["conv1_shift"])
    y1 = y1.reshape(n, ho1, wo1, prep["conv1_w"].shape[1])
    # conv2 + BN + ReLU
    p2, _ = im2col(y1)
    y2 = conv_matmul(p2, prep["conv2_w"], prep["conv2_shift"])     # (n*ho2*wo2, 128)
    # conv3 + conv4 + AdaptiveAvgPool + Flatten + fc1 + ReLU + Dropout(id) + fc2
    out = fused_tail(y2, prep)
    return out[:, :num_classes]


if __name__ == "__main__":
    key = jax.random.PRNGKey(0)
    pkey, xkey = jax.random.split(key)

    num_classes = 2
    params = init_mobilefacenet(pkey, num_classes=num_classes)
    # Small NCHW input consistent with the module (3 in-channels, 4 stride-2 convs).
    x = jax.random.normal(xkey, (2, 3, 32, 32), jnp.float32)

    # Hoisted, one-time weight prep (BN fold, reshape, pad, bf16, gather/pool mats).
    prep = prepare_params(params, batch=2, height=32, width=32,
                          num_classes=num_classes)

    fwd = jax.jit(mobilefacenet_forward)
    out = jax.block_until_ready(fwd(prep, x))
    assert out.shape == (2, num_classes), out.shape
    assert jnp.all(jnp.isfinite(out))
    print("KERNEL_OK")
</pallas_src>

<mosaic_0001>
module attributes {stable_mosaic.version = 11 : i64} {
  func.func @_conv_matmul_kernel(%arg0: i32, %arg1: memref<256x27xbf16, #tpu.memory_space<vmem>>, %arg2: memref<27x64xbf16, #tpu.memory_space<vmem>>, %arg3: memref<1x64xf32, #tpu.memory_space<vmem>>, %arg4: memref<256x64xbf16, #tpu.memory_space<vmem>>) attributes {dimension_semantics = [#tpu.dimension_semantics<parallel>], iteration_bounds = array<i64: 2>, scalar_prefetch = 0 : i64, scratch_operands = 0 : i64, tpu.core_type = #tpu.core_type<tc>, window_params = [{transform_indices = @transform_0, window_bounds = array<i64: 256, 27>}, {pipeline_mode = #tpu.pipeline_mode<synchronous>, transform_indices = @transform_1, window_bounds = array<i64: 27, 64>}, {pipeline_mode = #tpu.pipeline_mode<synchronous>, transform_indices = @transform_2, window_bounds = array<i64: 1, 64>}, {transform_indices = @transform_3, window_bounds = array<i64: 256, 64>}]} {
    %c0 = arith.constant 0 : index
    %c0_0 = arith.constant 0 : index
    %0 = vector.load %arg1[%c0, %c0_0] : memref<256x27xbf16, #tpu.memory_space<vmem>>, vector<256x27xbf16>
    %c0_1 = arith.constant 0 : index
    %c0_2 = arith.constant 0 : index
    %1 = vector.load %arg2[%c0_1, %c0_2] : memref<27x64xbf16, #tpu.memory_space<vmem>>, vector<27x64xbf16>
    %cst = arith.constant dense<0.000000e+00> : vector<256x64xf32>
    %2 = tpu.matmul %0, %1, %cst {dimension_numbers = #tpu.dot_dimension_numbers<[1], [0], [0], [1], [0, 0, 1, 1], [], []>} : vector<256x27xbf16>, vector<27x64xbf16>, vector<256x64xf32> -> vector<256x64xf32>
    %c0_3 = arith.constant 0 : index
    %c0_4 = arith.constant 0 : index
    %3 = vector.load %arg3[%c0_3, %c0_4] : memref<1x64xf32, #tpu.memory_space<vmem>>, vector<1x64xf32>
    %4 = vector.broadcast %3 : vector<1x64xf32> to vector<256x64xf32>
    %5 = arith.addf %2, %4 : vector<256x64xf32>
    %cst_5 = arith.constant 0.000000e+00 : f32
    %6 = vector.broadcast %cst_5 : f32 to vector<256x64xf32>
    %7 = arith.maximumf %5, %6 : vector<256x64xf32>
    %8 = arith.truncf %7 : vector<256x64xf32> to vector<256x64xbf16>
    %c0_6 = arith.constant 0 : index
    %c0_7 = arith.constant 0 : index
    %9 = vector.load %arg4[%c0_6, %c0_7] : memref<256x64xbf16, #tpu.memory_space<vmem>>, vector<256x64xbf16>
    tpu.vector_store %arg4[%c0_6, %c0_7], %8 {strides = array<i32>} : memref<256x64xbf16, #tpu.memory_space<vmem>>, vector<256x64xbf16>,
    return
  }
  func.func @transform_0(%arg0: i32) -> (i32, i32) {
    %c0_i32 = arith.constant 0 : i32
    %c0_i32_0 = arith.constant 0 : i32
    return %arg0, %c0_i32 : i32, i32
  }
  func.func @transform_1(%arg0: i32) -> (i32, i32) {
    %c0_i32 = arith.constant 0 : i32
    %c0_i32_0 = arith.constant 0 : i32
    %c0_i32_1 = arith.constant 0 : i32
    return %c0_i32, %c0_i32_0 : i32, i32
  }
  func.func @transform_2(%arg0: i32) -> (i32, i32) {
    %c0_i32 = arith.constant 0 : i32
    %c0_i32_0 = arith.constant 0 : i32
    %c0_i32_1 = arith.constant 0 : i32
    return %c0_i32, %c0_i32_0 : i32, i32
  }
  func.func @transform_3(%arg0: i32) -> (i32, i32) {
    %c0_i32 = arith.constant 0 : i32
    %c0_i32_0 = arith.constant 0 : i32
    return %arg0, %c0_i32 : i32, i32
  }
}

module attributes {stable_mosaic.version = 11 : i64} {
  func.func @_conv_matmul_kernel(%arg0: i32, %arg1: memref<128x576xbf16, #tpu.memory_space<vmem>>, %arg2: memref<576x128xbf16, #tpu.memory_space<vmem>>, %arg3: memref<1x128xf32, #tpu.memory_space<vmem>>, %arg4: memref<128x128xbf16, #tpu.memory_space<vmem>>) attributes {dimension_semantics = [#tpu.dimension_semantics<parallel>], iteration_bounds = array<i64: 1>, scalar_prefetch = 0 : i64, scratch_operands = 0 : i64, tpu.core_type = #tpu.core_type<tc>, window_params = [{transform_indices = @transform_0, window_bounds = array<i64: 128, 576>}, {pipeline_mode = #tpu.pipeline_mode<synchronous>, transform_indices = @transform_1, window_bounds = array<i64: 576, 128>}, {pipeline_mode = #tpu.pipeline_mode<synchronous>, transform_indices = @transform_2, window_bounds = array<i64: 1, 128>}, {transform_indices = @transform_3, window_bounds = array<i64: 128, 128>}]} {
    %c0 = arith.constant 0 : index
    %c0_0 = arith.constant 0 : index
    %0 = vector.load %arg1[%c0, %c0_0] : memref<128x576xbf16, #tpu.memory_space<vmem>>, vector<128x576xbf16>
    %c0_1 = arith.constant 0 : index
    %c0_2 = arith.constant 0 : index
    %1 = vector.load %arg2[%c0_1, %c0_2] : memref<576x128xbf16, #tpu.memory_space<vmem>>, vector<576x128xbf16>
    %cst = arith.constant dense<0.000000e+00> : vector<128x128xf32>
    %2 = tpu.matmul %0, %1, %cst {dimension_numbers = #tpu.dot_dimension_numbers<[1], [0], [0], [1], [0, 0, 1, 1], [], []>} : vector<128x576xbf16>, vector<576x128xbf16>, vector<128x128xf32> -> vector<128x128xf32>
    %c0_3 = arith.constant 0 : index
    %c0_4 = arith.constant 0 : index
    %3 = vector.load %arg3[%c0_3, %c0_4] : memref<1x128xf32, #tpu.memory_space<vmem>>, vector<1x128xf32>
    %4 = vector.broadcast %3 : vector<1x128xf32> to vector<128x128xf32>
    %5 = arith.addf %2, %4 : vector<128x128xf32>
    %cst_5 = arith.constant 0.000000e+00 : f32
    %6 = vector.broadcast %cst_5 : f32 to vector<128x128xf32>
    %7 = arith.maximumf %5, %6 : vector<128x128xf32>
    %8 = arith.truncf %7 : vector<128x128xf32> to vector<128x128xbf16>
    %c0_6 = arith.constant 0 : index
    %c0_7 = arith.constant 0 : index
    %9 = vector.load %arg4[%c0_6, %c0_7] : memref<128x128xbf16, #tpu.memory_space<vmem>>, vector<128x128xbf16>
    tpu.vector_store %arg4[%c0_6, %c0_7], %8 {strides = array<i32>} : memref<128x128xbf16, #tpu.memory_space<vmem>>, vector<128x128xbf16>,
    return
  }
  func.func @transform_0(%arg0: i32) -> (i32, i32) {
    %c0_i32 = arith.constant 0 : i32
    %c0_i32_0 = arith.constant 0 : i32
    return %arg0, %c0_i32 : i32, i32
  }
  func.func @transform_1(%arg0: i32) -> (i32, i32) {
    %c0_i32 = arith.constant 0 : i32
    %c0_i32_0 = arith.constant 0 : i32
    %c0_i32_1 = arith.constant 0 : i32
    return %c0_i32, %c0_i32_0 : i32, i32
  }
  func.func @transform_2(%arg0: i32) -> (i32, i32) {
    %c0_i32 = arith.constant 0 : i32
    %c0_i32_0 = arith.constant 0 : i32
    %c0_i32_1 = arith.constant 0 : i32
    return %c0_i32, %c0_i32_0 : i32, i32
  }
  func.func @transform_3(%arg0: i32) -> (i32, i32) {
    %c0_i32 = arith.constant 0 : i32
    %c0_i32_0 = arith.constant 0 : i32
    return %arg0, %c0_i32 : i32, i32
  }
}

module attributes {stable_mosaic.version = 11 : i64} {
  func.func @_fused_tail_kernel(%arg0: memref<128x128xbf16, #tpu.memory_space<vmem>>, %arg1: memref<9x32x128xbf16, #tpu.memory_space<vmem>>, %arg2: memref<9x128x256xbf16, #tpu.memory_space<vmem>>, %arg3: memref<1x256xf32, #tpu.memory_space<vmem>>, %arg4: memref<9x8x32xbf16, #tpu.memory_space<vmem>>, %arg5: memref<9x256x512xbf16, #tpu.memory_space<vmem>>, %arg6: memref<1x512xf32, #tpu.memory_space<vmem>>, %arg7: memref<2x8xbf16, #tpu.memory_space<vmem>>, %arg8: memref<512x128xbf16, #tpu.memory_space<vmem>>, %arg9: memref<1x128xf32, #tpu.memory_space<vmem>>, %arg10: memref<128x128xbf16, #tpu.memory_space<vmem>>, %arg11: memref<1x128xf32, #tpu.memory_space<vmem>>, %arg12: memref<2x128xf32, #tpu.memory_space<vmem>>) attributes {dimension_semantics = [], scalar_prefetch = 0 : i64, scratch_operands = 0 : i64, tpu.core_type = #tpu.core_type<tc>} {
    %c0 = arith.constant 0 : index
    %c0_0 = arith.constant 0 : index
    %0 = vector.load %arg0[%c0, %c0_0] : memref<128x128xbf16, #tpu.memory_space<vmem>>, vector<128x128xbf16>
    %cst = arith.constant 0.000000e+00 : f32
    %1 = vector.broadcast %cst : f32 to vector<32x256xf32>
    %c0_1 = arith.constant 0 : index
    %c0_2 = arith.constant 0 : index
    %c0_3 = arith.constant 0 : index
    %2 = vector.load %arg1[%c0_1, %c0_2, %c0_3] : memref<9x32x128xbf16, #tpu.memory_space<vmem>>, vector<1x32x128xbf16>
    %3 = vector.shape_cast %2 : vector<1x32x128xbf16> to vector<32x128xbf16>
    %cst_4 = arith.constant dense<0.000000e+00> : vector<32x128xf32>
    %4 = tpu.matmul %3, %0, %cst_4 {dimension_numbers = #tpu.dot_dimension_numbers<[1], [0], [0], [1], [0, 0, 1, 1], [], []>} : vector<32x128xbf16>, vector<128x128xbf16>, vector<32x128xf32> -> vector<32x128xf32>
    %5 = arith.truncf %4 : vector<32x128xf32> to vector<32x128xbf16>
    %c0_5 = arith.constant 0 : index
    %c0_6 = arith.constant 0 : index
    %c0_7 = arith.constant 0 : index
    %6 = vector.load %arg2[%c0_5, %c0_6, %c0_7] : memref<9x128x256xbf16, #tpu.memory_space<vmem>>, vector<1x128x256xbf16>
    %7 = vector.shape_cast %6 : vector<1x128x256xbf16> to vector<128x256xbf16>
    %cst_8 = arith.constant dense<0.000000e+00> : vector<32x256xf32>
    %8 = tpu.matmul %5, %7, %cst_8 {dimension_numbers = #tpu.dot_dimension_numbers<[1], [0], [0], [1], [0, 0, 1, 1], [], []>} : vector<32x128xbf16>, vector<128x256xbf16>, vector<32x256xf32> -> vector<32x256xf32>
    %9 = arith.addf %1, %8 : vector<32x256xf32>
    %c1 = arith.constant 1 : index
    %c0_9 = arith.constant 0 : index
    %c0_10 = arith.constant 0 : index
    %10 = vector.load %arg1[%c1, %c0_9, %c0_10] : memref<9x32x128xbf16, #tpu.memory_space<vmem>>, vector<1x32x128xbf16>
    %11 = vector.shape_cast %10 : vector<1x32x128xbf16> to vector<32x128xbf16>
    %cst_11 = arith.constant dense<0.000000e+00> : vector<32x128xf32>
    %12 = tpu.matmul %11, %0, %cst_11 {dimension_numbers = #tpu.dot_dimension_numbers<[1], [0], [0], [1], [0, 0, 1, 1], [], []>} : vector<32x128xbf16>, vector<128x128xbf16>, vector<32x128xf32> -> vector<32x128xf32>
    %13 = arith.truncf %12 : vector<32x128xf32> to vector<32x128xbf16>
    %c1_12 = arith.constant 1 : index
    %c0_13 = arith.constant 0 : index
    %c0_14 = arith.constant 0 : index
    %14 = vector.load %arg2[%c1_12, %c0_13, %c0_14] : memref<9x128x256xbf16, #tpu.memory_space<vmem>>, vector<1x128x256xbf16>
    %15 = vector.shape_cast %14 : vector<1x128x256xbf16> to vector<128x256xbf16>
    %cst_15 = arith.constant dense<0.000000e+00> : vector<32x256xf32>
    %16 = tpu.matmul %13, %15, %cst_15 {dimension_numbers = #tpu.dot_dimension_numbers<[1], [0], [0], [1], [0, 0, 1, 1], [], []>} : vector<32x128xbf16>, vector<128x256xbf16>, vector<32x256xf32> -> vector<32x256xf32>
    %17 = arith.addf %9, %16 : vector<32x256xf32>
    %c2 = arith.constant 2 : index
    %c0_16 = arith.constant 0 : index
    %c0_17 = arith.constant 0 : index
    %18 = vector.load %arg1[%c2, %c0_16, %c0_17] : memref<9x32x128xbf16, #tpu.memory_space<vmem>>, vector<1x32x128xbf16>
    %19 = vector.shape_cast %18 : vector<1x32x128xbf16> to vector<32x128xbf16>
    %cst_18 = arith.constant dense<0.000000e+00> : vector<32x128xf32>
    %20 = tpu.matmul %19, %0, %cst_18 {dimension_numbers = #tpu.dot_dimension_numbers<[1], [0], [0], [1], [0, 0, 1, 1], [], []>} : vector<32x128xbf16>, vector<128x128xbf16>, vector<32x128xf32> -> vector<32x128xf32>
    %21 = arith.truncf %20 : vector<32x128xf32> to vector<32x128xbf16>
    %c2_19 = arith.constant 2 : index
    %c0_20 = arith.constant 0 : index
    %c0_21 = arith.constant 0 : index
    %22 = vector.load %arg2[%c2_19, %c0_20, %c0_21] : memref<9x128x256xbf16, #tpu.memory_space<vmem>>, vector<1x128x256xbf16>
    %23 = vector.shape_cast %22 : vector<1x128x256xbf16> to vector<128x256xbf16>
    %cst_22 = arith.constant dense<0.000000e+00> : vector<32x256xf32>
    %24 = tpu.matmul %21, %23, %cst_22 {dimension_numbers = #tpu.dot_dimension_numbers<[1], [0], [0], [1], [0, 0, 1, 1], [], []>} : vector<32x128xbf16>, vector<128x256xbf16>, vector<32x256xf32> -> vector<32x256xf32>
    %25 = arith.addf %17, %24 : vector<32x256xf32>
    %c3 = arith.constant 3 : index
    %c0_23 = arith.constant 0 : index
    %c0_24 = arith.constant 0 : index
    %26 = vector.load %arg1[%c3, %c0_23, %c0_24] : memref<9x32x128xbf16, #tpu.memory_space<vmem>>, vector<1x32x128xbf16>
    %27 = vector.shape_cast %26 : vector<1x32x128xbf16> to vector<32x128xbf16>
    %cst_25 = arith.constant dense<0.000000e+00> : vector<32x128xf32>
    %28 = tpu.matmul %27, %0, %cst_25 {dimension_numbers = #tpu.dot_dimension_numbers<[1], [0], [0], [1], [0, 0, 1, 1], [], []>} : vector<32x128xbf16>, vector<128x128xbf16>, vector<32x128xf32> -> vector<32x128xf32>
    %29 = arith.truncf %28 : vector<32x128xf32> to vector<32x128xbf16>
    %c3_26 = arith.constant 3 : index
    %c0_27 = arith.constant 0 : index
    %c0_28 = arith.constant 0 : index
    %30 = vector.load %arg2[%c3_26, %c0_27, %c0_28] : memref<9x128x256xbf16, #tpu.memory_space<vmem>>, vector<1x128x256xbf16>
    %31 = vector.shape_cast %30 : vector<1x128x256xbf16> to vector<128x256xbf16>
    %cst_29 = arith.constant dense<0.000000e+00> : vector<32x256xf32>
    %32 = tpu.matmul %29, %31, %cst_29 {dimension_numbers = #tpu.dot_dimension_numbers<[1], [0], [0], [1], [0, 0, 1, 1], [], []>} : vector<32x128xbf16>, vector<128x256xbf16>, vector<32x256xf32> -> vector<32x256xf32>
    %33 = arith.addf %25, %32 : vector<32x256xf32>
    %c4 = arith.constant 4 : index
    %c0_30 = arith.constant 0 : index
    %c0_31 = arith.constant 0 : index
    %34 = vector.load %arg1[%c4, %c0_30, %c0_31] : memref<9x32x128xbf16, #tpu.memory_space<vmem>>, vector<1x32x128xbf16>
    %35 = vector.shape_cast %34 : vector<1x32x128xbf16> to vector<32x128xbf16>
    %cst_32 = arith.constant dense<0.000000e+00> : vector<32x128xf32>
    %36 = tpu.matmul %35, %0, %cst_32 {dimension_numbers = #tpu.dot_dimension_numbers<[1], [0], [0], [1], [0, 0, 1, 1], [], []>} : vector<32x128xbf16>, vector<128x128xbf16>, vector<32x128xf32> -> vector<32x128xf32>
    %37 = arith.truncf %36 : vector<32x128xf32> to vector<32x128xbf16>
    %c4_33 = arith.constant 4 : index
    %c0_34 = arith.constant 0 : index
    %c0_35 = arith.constant 0 : index
    %38 = vector.load %arg2[%c4_33, %c0_34, %c0_35] : memref<9x128x256xbf16, #tpu.memory_space<vmem>>, vector<1x128x256xbf16>
    %39 = vector.shape_cast %38 : vector<1x128x256xbf16> to vector<128x256xbf16>
    %cst_36 = arith.constant dense<0.000000e+00> : vector<32x256xf32>
    %40 = tpu.matmul %37, %39, %cst_36 {dimension_numbers = #tpu.dot_dimension_numbers<[1], [0], [0], [1], [0, 0, 1, 1], [], []>} : vector<32x128xbf16>, vector<128x256xbf16>, vector<32x256xf32> -> vector<32x256xf32>
    %41 = arith.addf %33, %40 : vector<32x256xf32>
    %c5 = arith.constant 5 : index
    %c0_37 = arith.constant 0 : index
    %c0_38 = arith.constant 0 : index
    %42 = vector.load %arg1[%c5, %c0_37, %c0_38] : memref<9x32x128xbf16, #tpu.memory_space<vmem>>, vector<1x32x128xbf16>
    %43 = vector.shape_cast %42 : vector<1x32x128xbf16> to vector<32x128xbf16>
    %cst_39 = arith.constant dense<0.000000e+00> : vector<32x128xf32>
    %44 = tpu.matmul %43, %0, %cst_39 {dimension_numbers = #tpu.dot_dimension_numbers<[1], [0], [0], [1], [0, 0, 1, 1], [], []>} : vector<32x128xbf16>, vector<128x128xbf16>, vector<32x128xf32> -> vector<32x128xf32>
    %45 = arith.truncf %44 : vector<32x128xf32> to vector<32x128xbf16>
    %c5_40 = arith.constant 5 : index
    %c0_41 = arith.constant 0 : index
    %c0_42 = arith.constant 0 : index
    %46 = vector.load %arg2[%c5_40, %c0_41, %c0_42] : memref<9x128x256xbf16, #tpu.memory_space<vmem>>, vector<1x128x256xbf16>
    %47 = vector.shape_cast %46 : vector<1x128x256xbf16> to vector<128x256xbf16>
    %cst_43 = arith.constant dense<0.000000e+00> : vector<32x256xf32>
    %48 = tpu.matmul %45, %47, %cst_43 {dimension_numbers = #tpu.dot_dimension_numbers<[1], [0], [0], [1], [0, 0, 1, 1], [], []>} : vector<32x128xbf16>, vector<128x256xbf16>, vector<32x256xf32> -> vector<32x256xf32>
    %49 = arith.addf %41, %48 : vector<32x256xf32>
    %c6 = arith.constant 6 : index
    %c0_44 = arith.constant 0 : index
    %c0_45 = arith.constant 0 : index
    %50 = vector.load %arg1[%c6, %c0_44, %c0_45] : memref<9x32x128xbf16, #tpu.memory_space<vmem>>, vector<1x32x128xbf16>
    %51 = vector.shape_cast %50 : vector<1x32x128xbf16> to vector<32x128xbf16>
    %cst_46 = arith.constant dense<0.000000e+00> : vector<32x128xf32>
    %52 = tpu.matmul %51, %0, %cst_46 {dimension_numbers = #tpu.dot_dimension_numbers<[1], [0], [0], [1], [0, 0, 1, 1], [], []>} : vector<32x128xbf16>, vector<128x128xbf16>, vector<32x128xf32> -> vector<32x128xf32>
    %53 = arith.truncf %52 : vector<32x128xf32> to vector<32x128xbf16>
    %c6_47 = arith.constant 6 : index
    %c0_48 = arith.constant 0 : index
    %c0_49 = arith.constant 0 : index
    %54 = vector.load %arg2[%c6_47, %c0_48, %c0_49] : memref<9x128x256xbf16, #tpu.memory_space<vmem>>, vector<1x128x256xbf16>
    %55 = vector.shape_cast %54 : vector<1x128x256xbf16> to vector<128x256xbf16>
    %cst_50 = arith.constant dense<0.000000e+00> : vector<32x256xf32>
    %56 = tpu.matmul %53, %55, %cst_50 {dimension_numbers = #tpu.dot_dimension_numbers<[1], [0], [0], [1], [0, 0, 1, 1], [], []>} : vector<32x128xbf16>, vector<128x256xbf16>, vector<32x256xf32> -> vector<32x256xf32>
    %57 = arith.addf %49, %56 : vector<32x256xf32>
    %c7 = arith.constant 7 : index
    %c0_51 = arith.constant 0 : index
    %c0_52 = arith.constant 0 : index
    %58 = vector.load %arg1[%c7, %c0_51, %c0_52] : memref<9x32x128xbf16, #tpu.memory_space<vmem>>, vector<1x32x128xbf16>
    %59 = vector.shape_cast %58 : vector<1x32x128xbf16> to vector<32x128xbf16>
    %cst_53 = arith.constant dense<0.000000e+00> : vector<32x128xf32>
    %60 = tpu.matmul %59, %0, %cst_53 {dimension_numbers = #tpu.dot_dimension_numbers<[1], [0], [0], [1], [0, 0, 1, 1], [], []>} : vector<32x128xbf16>, vector<128x128xbf16>, vector<32x128xf32> -> vector<32x128xf32>
    %61 = arith.truncf %60 : vector<32x128xf32> to vector<32x128xbf16>
    %c7_54 = arith.constant 7 : index
    %c0_55 = arith.constant 0 : index
    %c0_56 = arith.constant 0 : index
    %62 = vector.load %arg2[%c7_54, %c0_55, %c0_56] : memref<9x128x256xbf16, #tpu.memory_space<vmem>>, vector<1x128x256xbf16>
    %63 = vector.shape_cast %62 : vector<1x128x256xbf16> to vector<128x256xbf16>
    %cst_57 = arith.constant dense<0.000000e+00> : vector<32x256xf32>
    %64 = tpu.matmul %61, %63, %cst_57 {dimension_numbers = #tpu.dot_dimension_numbers<[1], [0], [0], [1], [0, 0, 1, 1], [], []>} : vector<32x128xbf16>, vector<128x256xbf16>, vector<32x256xf32> -> vector<32x256xf32>
    %65 = arith.addf %57, %64 : vector<32x256xf32>
    %c8 = arith.constant 8 : index
    %c0_58 = arith.constant 0 : index
    %c0_59 = arith.constant 0 : index
    %66 = vector.load %arg1[%c8, %c0_58, %c0_59] : memref<9x32x128xbf16, #tpu.memory_space<vmem>>, vector<1x32x128xbf16>
    %67 = vector.shape_cast %66 : vector<1x32x128xbf16> to vector<32x128xbf16>
    %cst_60 = arith.constant dense<0.000000e+00> : vector<32x128xf32>
    %68 = tpu.matmul %67, %0, %cst_60 {dimension_numbers = #tpu.dot_dimension_numbers<[1], [0], [0], [1], [0, 0, 1, 1], [], []>} : vector<32x128xbf16>, vector<128x128xbf16>, vector<32x128xf32> -> vector<32x128xf32>
    %69 = arith.truncf %68 : vector<32x128xf32> to vector<32x128xbf16>
    %c8_61 = arith.constant 8 : index
    %c0_62 = arith.constant 0 : index
    %c0_63 = arith.constant 0 : index
    %70 = vector.load %arg2[%c8_61, %c0_62, %c0_63] : memref<9x128x256xbf16, #tpu.memory_space<vmem>>, vector<1x128x256xbf16>
    %71 = vector.shape_cast %70 : vector<1x128x256xbf16> to vector<128x256xbf16>
    %cst_64 = arith.constant dense<0.000000e+00> : vector<32x256xf32>
    %72 = tpu.matmul %69, %71, %cst_64 {dimension_numbers = #tpu.dot_dimension_numbers<[1], [0], [0], [1], [0, 0, 1, 1], [], []>} : vector<32x128xbf16>, vector<128x256xbf16>, vector<32x256xf32> -> vector<32x256xf32>
    %73 = arith.addf %65, %72 : vector<32x256xf32>
    %c0_65 = arith.constant 0 : index
    %c0_66 = arith.constant 0 : index
    %74 = vector.load %arg3[%c0_65, %c0_66] : memref<1x256xf32, #tpu.memory_space<vmem>>, vector<1x256xf32>
    %75 = vector.broadcast %74 : vector<1x256xf32> to vector<32x256xf32>
    %76 = arith.addf %73, %75 : vector<32x256xf32>
    %cst_67 = arith.constant 0.000000e+00 : f32
    %77 = vector.broadcast %cst_67 : f32 to vector<32x256xf32>
    %78 = arith.maximumf %76, %77 : vector<32x256xf32>
    %79 = arith.truncf %78 : vector<32x256xf32> to vector<32x256xbf16>
    %cst_68 = arith.constant 0.000000e+00 : f32
    %80 = vector.broadcast %cst_68 : f32 to vector<8x512xf32>
    %c0_69 = arith.constant 0 : index
    %c0_70 = arith.constant 0 : index
    %c0_71 = arith.constant 0 : index
    %81 = vector.load %arg4[%c0_69, %c0_70, %c0_71] : memref<9x8x32xbf16, #tpu.memory_space<vmem>>, vector<1x8x32xbf16>
    %82 = vector.shape_cast %81 : vector<1x8x32xbf16> to vector<8x32xbf16>
    %cst_72 = arith.constant dense<0.000000e+00> : vector<8x256xf32>
    %83 = tpu.matmul %82, %79, %cst_72 {dimension_numbers = #tpu.dot_dimension_numbers<[1], [0], [0], [1], [0, 0, 1, 1], [], []>} : vector<8x32xbf16>, vector<32x256xbf16>, vector<8x256xf32> -> vector<8x256xf32>
    %84 = arith.truncf %83 : vector<8x256xf32> to vector<8x256xbf16>
    %c0_73 = arith.constant 0 : index
    %c0_74 = arith.constant 0 : index
    %c0_75 = arith.constant 0 : index
    %85 = vector.load %arg5[%c0_73, %c0_74, %c0_75] : memref<9x256x512xbf16, #tpu.memory_space<vmem>>, vector<1x256x512xbf16>
    %86 = vector.shape_cast %85 : vector<1x256x512xbf16> to vector<256x512xbf16>
    %cst_76 = arith.constant dense<0.000000e+00> : vector<8x512xf32>
    %87 = tpu.matmul %84, %86, %cst_76 {dimension_numbers = #tpu.dot_dimension_numbers<[1], [0], [0], [1], [0, 0, 1, 1], [], []>} : vector<8x256xbf16>, vector<256x512xbf16>, vector<8x512xf32> -> vector<8x512xf32>
    %88 = arith.addf %80, %87 : vector<8x512xf32>
    %c1_77 = arith.constant 1 : index
    %c0_78 = arith.constant 0 : index
    %c0_79 = arith.constant 0 : index
    %89 = vector.load %arg4[%c1_77, %c0_78, %c0_79] : memref<9x8x32xbf16, #tpu.memory_space<vmem>>, vector<1x8x32xbf16>
    %90 = vector.shape_cast %89 : vector<1x8x32xbf16> to vector<8x32xbf16>
    %cst_80 = arith.constant dense<0.000000e+00> : vector<8x256xf32>
    %91 = tpu.matmul %90, %79, %cst_80 {dimension_numbers = #tpu.dot_dimension_numbers<[1], [0], [0], [1], [0, 0, 1, 1], [], []>} : vector<8x32xbf16>, vector<32x256xbf16>, vector<8x256xf32> -> vector<8x256xf32>
    %92 = arith.truncf %91 : vector<8x256xf32> to vector<8x256xbf16>
    %c1_81 = arith.constant 1 : index
    %c0_82 = arith.constant 0 : index
    %c0_83 = arith.constant 0 : index
    %93 = vector.load %arg5[%c1_81, %c0_82, %c0_83] : memref<9x256x512xbf16, #tpu.memory_space<vmem>>, vector<1x256x512xbf16>
    %94 = vector.shape_cast %93 : vector<1x256x512xbf16> to vector<256x512xbf16>
    %cst_84 = arith.constant dense<0.000000e+00> : vector<8x512xf32>
    %95 = tpu.matmul %92, %94, %cst_84 {dimension_numbers = #tpu.dot_dimension_numbers<[1], [0], [0], [1], [0, 0, 1, 1], [], []>} : vector<8x256xbf16>, vector<256x512xbf16>, vector<8x512xf32> -> vector<8x512xf32>
    %96 = arith.addf %88, %95 : vector<8x512xf32>
    %c2_85 = arith.constant 2 : index
    %c0_86 = arith.constant 0 : index
    %c0_87 = arith.constant 0 : index
    %97 = vector.load %arg4[%c2_85, %c0_86, %c0_87] : memref<9x8x32xbf16, #tpu.memory_space<vmem>>, vector<1x8x32xbf16>
    %98 = vector.shape_cast %97 : vector<1x8x32xbf16> to vector<8x32xbf16>
    %cst_88 = arith.constant dense<0.000000e+00> : vector<8x256xf32>
    %99 = tpu.matmul %98, %79, %cst_88 {dimension_numbers = #tpu.dot_dimension_numbers<[1], [0], [0], [1], [0, 0, 1, 1], [], []>} : vector<8x32xbf16>, vector<32x256xbf16>, vector<8x256xf32> -> vector<8x256xf32>
    %100 = arith.truncf %99 : vector<8x256xf32> to vector<8x256xbf16>
    %c2_89 = arith.constant 2 : index
    %c0_90 = arith.constant 0 : index
    %c0_91 = arith.constant 0 : index
    %101 = vector.load %arg5[%c2_89, %c0_90, %c0_91] : memref<9x256x512xbf16, #tpu.memory_space<vmem>>, vector<1x256x512xbf16>
    %102 = vector.shape_cast %101 : vector<1x256x512xbf16> to vector<256x512xbf16>
    %cst_92 = arith.constant dense<0.000000e+00> : vector<8x512xf32>
    %103 = tpu.matmul %100, %102, %cst_92 {dimension_numbers = #tpu.dot_dimension_numbers<[1], [0], [0], [1], [0, 0, 1, 1], [], []>} : vector<8x256xbf16>, vector<256x512xbf16>, vector<8x512xf32> -> vector<8x512xf32>
    %104 = arith.addf %96, %103 : vector<8x512xf32>
    %c3_93 = arith.constant 3 : index
    %c0_94 = arith.constant 0 : index
    %c0_95 = arith.constant 0 : index
    %105 = vector.load %arg4[%c3_93, %c0_94, %c0_95] : memref<9x8x32xbf16, #tpu.memory_space<vmem>>, vector<1x8x32xbf16>
    %106 = vector.shape_cast %105 : vector<1x8x32xbf16> to vector<8x32xbf16>
    %cst_96 = arith.constant dense<0.000000e+00> : vector<8x256xf32>
    %107 = tpu.matmul %106, %79, %cst_96 {dimension_numbers = #tpu.dot_dimension_numbers<[1], [0], [0], [1], [0, 0, 1, 1], [], []>} : vector<8x32xbf16>, vector<32x256xbf16>, vector<8x256xf32> -> vector<8x256xf32>
    %108 = arith.truncf %107 : vector<8x256xf32> to vector<8x256xbf16>
    %c3_97 = arith.constant 3 : index
    %c0_98 = arith.constant 0 : index
    %c0_99 = arith.constant 0 : index
    %109 = vector.load %arg5[%c3_97, %c0_98, %c0_99] : memref<9x256x512xbf16, #tpu.memory_space<vmem>>, vector<1x256x512xbf16>
    %110 = vector.shape_cast %109 : vector<1x256x512xbf16> to vector<256x512xbf16>
    %cst_100 = arith.constant dense<0.000000e+00> : vector<8x512xf32>
    %111 = tpu.matmul %108, %110, %cst_100 {dimension_numbers = #tpu.dot_dimension_numbers<[1], [0], [0], [1], [0, 0, 1, 1], [], []>} : vector<8x256xbf16>, vector<256x512xbf16>, vector<8x512xf32> -> vector<8x512xf32>
    %112 = arith.addf %104, %111 : vector<8x512xf32>
    %c4_101 = arith.constant 4 : index
    %c0_102 = arith.constant 0 : index
    %c0_103 = arith.constant 0 : index
    %113 = vector.load %arg4[%c4_101, %c0_102, %c0_103] : memref<9x8x32xbf16, #tpu.memory_space<vmem>>, vector<1x8x32xbf16>
    %114 = vector.shape_cast %113 : vector<1x8x32xbf16> to vector<8x32xbf16>
    %cst_104 = arith.constant dense<0.000000e+00> : vector<8x256xf32>
    %115 = tpu.matmul %114, %79, %cst_104 {dimension_numbers = #tpu.dot_dimension_numbers<[1], [0], [0], [1], [0, 0, 1, 1], [], []>} : vector<8x32xbf16>, vector<32x256xbf16>, vector<8x256xf32> -> vector<8x256xf32>
    %116 = arith.truncf %115 : vector<8x256xf32> to vector<8x256xbf16>
    %c4_105 = arith.constant 4 : index
    %c0_106 = arith.constant 0 : index
    %c0_107 = arith.constant 0 : index
    %117 = vector.load %arg5[%c4_105, %c0_106, %c0_107] : memref<9x256x512xbf16, #tpu.memory_space<vmem>>, vector<1x256x512xbf16>
    %118 = vector.shape_cast %117 : vector<1x256x512xbf16> to vector<256x512xbf16>
    %cst_108 = arith.constant dense<0.000000e+00> : vector<8x512xf32>
    %119 = tpu.matmul %116, %118, %cst_108 {dimension_numbers = #tpu.dot_dimension_numbers<[1], [0], [0], [1], [0, 0, 1, 1], [], []>} : vector<8x256xbf16>, vector<256x512xbf16>, vector<8x512xf32> -> vector<8x512xf32>
    %120 = arith.addf %112, %119 : vector<8x512xf32>
    %c5_109 = arith.constant 5 : index
    %c0_110 = arith.constant 0 : index
    %c0_111 = arith.constant 0 : index
    %121 = vector.load %arg4[%c5_109, %c0_110, %c0_111] : memref<9x8x32xbf16, #tpu.memory_space<vmem>>, vector<1x8x32xbf16>
    %122 = vector.shape_cast %121 : vector<1x8x32xbf16> to vector<8x32xbf16>
    %cst_112 = arith.constant dense<0.000000e+00> : vector<8x256xf32>
    %123 = tpu.matmul %122, %79, %cst_112 {dimension_numbers = #tpu.dot_dimension_numbers<[1], [0], [0], [1], [0, 0, 1, 1], [], []>} : vector<8x32xbf16>, vector<32x256xbf16>, vector<8x256xf32> -> vector<8x256xf32>
    %124 = arith.truncf %123 : vector<8x256xf32> to vector<8x256xbf16>
    %c5_113 = arith.constant 5 : index
    %c0_114 = arith.constant 0 : index
    %c0_115 = arith.constant 0 : index
    %125 = vector.load %arg5[%c5_113, %c0_114, %c0_115] : memref<9x256x512xbf16, #tpu.memory_space<vmem>>, vector<1x256x512xbf16>
    %126 = vector.shape_cast %125 : vector<1x256x512xbf16> to vector<256x512xbf16>
    %cst_116 = arith.constant dense<0.000000e+00> : vector<8x512xf32>
    %127 = tpu.matmul %124, %126, %cst_116 {dimension_numbers = #tpu.dot_dimension_numbers<[1], [0], [0], [1], [0, 0, 1, 1], [], []>} : vector<8x256xbf16>, vector<256x512xbf16>, vector<8x512xf32> -> vector<8x512xf32>
    %128 = arith.addf %120, %127 : vector<8x512xf32>
    %c6_117 = arith.constant 6 : index
    %c0_118 = arith.constant 0 : index
    %c0_119 = arith.constant 0 : index
    %129 = vector.load %arg4[%c6_117, %c0_118, %c0_119] : memref<9x8x32xbf16, #tpu.memory_space<vmem>>, vector<1x8x32xbf16>
    %130 = vector.shape_cast %129 : vector<1x8x32xbf16> to vector<8x32xbf16>
    %cst_120 = arith.constant dense<0.000000e+00> : vector<8x256xf32>
    %131 = tpu.matmul %130, %79, %cst_120 {dimension_numbers = #tpu.dot_dimension_numbers<[1], [0], [0], [1], [0, 0, 1, 1], [], []>} : vector<8x32xbf16>, vector<32x256xbf16>, vector<8x256xf32> -> vector<8x256xf32>
    %132 = arith.truncf %131 : vector<8x256xf32> to vector<8x256xbf16>
    %c6_121 = arith.constant 6 : index
    %c0_122 = arith.constant 0 : index
    %c0_123 = arith.constant 0 : index
    %133 = vector.load %arg5[%c6_121, %c0_122, %c0_123] : memref<9x256x512xbf16, #tpu.memory_space<vmem>>, vector<1x256x512xbf16>
    %134 = vector.shape_cast %133 : vector<1x256x512xbf16> to vector<256x512xbf16>
    %cst_124 = arith.constant dense<0.000000e+00> : vector<8x512xf32>
    %135 = tpu.matmul %132, %134, %cst_124 {dimension_numbers = #tpu.dot_dimension_numbers<[1], [0], [0], [1], [0, 0, 1, 1], [], []>} : vector<8x256xbf16>, vector<256x512xbf16>, vector<8x512xf32> -> vector<8x512xf32>
    %136 = arith.addf %128, %135 : vector<8x512xf32>
    %c7_125 = arith.constant 7 : index
    %c0_126 = arith.constant 0 : index
    %c0_127 = arith.constant 0 : index
    %137 = vector.load %arg4[%c7_125, %c0_126, %c0_127] : memref<9x8x32xbf16, #tpu.memory_space<vmem>>, vector<1x8x32xbf16>
    %138 = vector.shape_cast %137 : vector<1x8x32xbf16> to vector<8x32xbf16>
    %cst_128 = arith.constant dense<0.000000e+00> : vector<8x256xf32>
    %139 = tpu.matmul %138, %79, %cst_128 {dimension_numbers = #tpu.dot_dimension_numbers<[1], [0], [0], [1], [0, 0, 1, 1], [], []>} : vector<8x32xbf16>, vector<32x256xbf16>, vector<8x256xf32> -> vector<8x256xf32>
    %140 = arith.truncf %139 : vector<8x256xf32> to vector<8x256xbf16>
    %c7_129 = arith.constant 7 : index
    %c0_130 = arith.constant 0 : index
    %c0_131 = arith.constant 0 : index
    %141 = vector.load %arg5[%c7_129, %c0_130, %c0_131] : memref<9x256x512xbf16, #tpu.memory_space<vmem>>, vector<1x256x512xbf16>
    %142 = vector.shape_cast %141 : vector<1x256x512xbf16> to vector<256x512xbf16>
    %cst_132 = arith.constant dense<0.000000e+00> : vector<8x512xf32>
    %143 = tpu.matmul %140, %142, %cst_132 {dimension_numbers = #tpu.dot_dimension_numbers<[1], [0], [0], [1], [0, 0, 1, 1], [], []>} : vector<8x256xbf16>, vector<256x512xbf16>, vector<8x512xf32> -> vector<8x512xf32>
    %144 = arith.addf %136, %143 : vector<8x512xf32>
    %c8_133 = arith.constant 8 : index
    %c0_134 = arith.constant 0 : index
    %c0_135 = arith.constant 0 : index
    %145 = vector.load %arg4[%c8_133, %c0_134, %c0_135] : memref<9x8x32xbf16, #tpu.memory_space<vmem>>, vector<1x8x32xbf16>
    %146 = vector.shape_cast %145 : vector<1x8x32xbf16> to vector<8x32xbf16>
    %cst_136 = arith.constant dense<0.000000e+00> : vector<8x256xf32>
    %147 = tpu.matmul %146, %79, %cst_136 {dimension_numbers = #tpu.dot_dimension_numbers<[1], [0], [0], [1], [0, 0, 1, 1], [], []>} : vector<8x32xbf16>, vector<32x256xbf16>, vector<8x256xf32> -> vector<8x256xf32>
    %148 = arith.truncf %147 : vector<8x256xf32> to vector<8x256xbf16>
    %c8_137 = arith.constant 8 : index
    %c0_138 = arith.constant 0 : index
    %c0_139 = arith.constant 0 : index
    %149 = vector.load %arg5[%c8_137, %c0_138, %c0_139] : memref<9x256x512xbf16, #tpu.memory_space<vmem>>, vector<1x256x512xbf16>
    %150 = vector.shape_cast %149 : vector<1x256x512xbf16> to vector<256x512xbf16>
    %cst_140 = arith.constant dense<0.000000e+00> : vector<8x512xf32>
    %151 = tpu.matmul %148, %150, %cst_140 {dimension_numbers = #tpu.dot_dimension_numbers<[1], [0], [0], [1], [0, 0, 1, 1], [], []>} : vector<8x256xbf16>, vector<256x512xbf16>, vector<8x512xf32> -> vector<8x512xf32>
    %152 = arith.addf %144, %151 : vector<8x512xf32>
    %c0_141 = arith.constant 0 : index
    %c0_142 = arith.constant 0 : index
    %153 = vector.load %arg6[%c0_141, %c0_142] : memref<1x512xf32, #tpu.memory_space<vmem>>, vector<1x512xf32>
    %154 = vector.broadcast %153 : vector<1x512xf32> to vector<8x512xf32>
    %155 = arith.addf %152, %154 : vector<8x512xf32>
    %cst_143 = arith.constant 0.000000e+00 : f32
    %156 = vector.broadcast %cst_143 : f32 to vector<8x512xf32>
    %157 = arith.maximumf %155, %156 : vector<8x512xf32>
    %158 = arith.truncf %157 : vector<8x512xf32> to vector<8x512xbf16>
    %c0_144 = arith.constant 0 : index
    %c0_145 = arith.constant 0 : index
    %159 = vector.load %arg7[%c0_144, %c0_145] : memref<2x8xbf16, #tpu.memory_space<vmem>>, vector<2x8xbf16>
    %cst_146 = arith.constant dense<0.000000e+00> : vector<2x512xf32>
    %160 = tpu.matmul %159, %158, %cst_146 {dimension_numbers = #tpu.dot_dimension_numbers<[1], [0], [0], [1], [0, 0, 1, 1], [], []>} : vector<2x8xbf16>, vector<8x512xbf16>, vector<2x512xf32> -> vector<2x512xf32>
    %161 = arith.truncf %160 : vector<2x512xf32> to vector<2x512xbf16>
    %c0_147 = arith.constant 0 : index
    %c0_148 = arith.constant 0 : index
    %162 = vector.load %arg8[%c0_147, %c0_148] : memref<512x128xbf16, #tpu.memory_space<vmem>>, vector<512x128xbf16>
    %cst_149 = arith.constant dense<0.000000e+00> : vector<2x128xf32>
    %163 = tpu.matmul %161, %162, %cst_149 {dimension_numbers = #tpu.dot_dimension_numbers<[1], [0], [0], [1], [0, 0, 1, 1], [], []>} : vector<2x512xbf16>, vector<512x128xbf16>, vector<2x128xf32> -> vector<2x128xf32>
    %c0_150 = arith.constant 0 : index
    %c0_151 = arith.constant 0 : index
    %164 = vector.load %arg9[%c0_150, %c0_151] : memref<1x128xf32, #tpu.memory_space<vmem>>, vector<1x128xf32>
    %165 = vector.broadcast %164 : vector<1x128xf32> to vector<2x128xf32>
    %166 = arith.addf %163, %165 : vector<2x128xf32>
    %cst_152 = arith.constant 0.000000e+00 : f32
    %167 = vector.broadcast %cst_152 : f32 to vector<2x128xf32>
    %168 = arith.maximumf %166, %167 : vector<2x128xf32>
    %169 = arith.truncf %168 : vector<2x128xf32> to vector<2x128xbf16>
    %c0_153 = arith.constant 0 : index
    %c0_154 = arith.constant 0 : index
    %170 = vector.load %arg10[%c0_153, %c0_154] : memref<128x128xbf16, #tpu.memory_space<vmem>>, vector<128x128xbf16>
    %cst_155 = arith.constant dense<0.000000e+00> : vector<2x128xf32>
    %171 = tpu.matmul %169, %170, %cst_155 {dimension_numbers = #tpu.dot_dimension_numbers<[1], [0], [0], [1], [0, 0, 1, 1], [], []>} : vector<2x128xbf16>, vector<128x128xbf16>, vector<2x128xf32> -> vector<2x128xf32>
    %c0_156 = arith.constant 0 : index
    %c0_157 = arith.constant 0 : index
    %172 = vector.load %arg11[%c0_156, %c0_157] : memref<1x128xf32, #tpu.memory_space<vmem>>, vector<1x128xf32>
    %173 = vector.broadcast %172 : vector<1x128xf32> to vector<2x128xf32>
    %174 = arith.addf %171, %173 : vector<2x128xf32>
    %c0_158 = arith.constant 0 : index
    %c0_159 = arith.constant 0 : index
    %175 = vector.load %arg12[%c0_158, %c0_159] : memref<2x128xf32, #tpu.memory_space<vmem>>, vector<2x128xf32>
    tpu.vector_store %arg12[%c0_158, %c0_159], %174 {strides = array<i32>} : memref<2x128xf32, #tpu.memory_space<vmem>>, vector<2x128xf32>,
    return
  }
}

</mosaic_0001>

<llo_original>
// kernel: mobilefacenet_forward.3
$region0: #{mobilefacenet_forward.3}
  #allocation0 [shape = 'u32[]', space=smem, size = 0x4, offset = 0x4, fixed_abs, tag = 'smem constant byte address 0x4 - core index']
  #allocation1 [shape = 'u32[144,128]{1,0:T(1,128)}', space=vmem, size = 0x12000, scoped, tag = 'internal scratch']
  %s0 = inlined_call_operand.vmem [shape: bf16[512,27], index: 0, kind: input, shape index: {}]
  %s1 = inlined_call_operand.hbm [shape: bf16[27,64], index: 1, kind: input, shape index: {}]
  %s2 = inlined_call_operand.hbm [shape: f32[1,64], index: 2, kind: input, shape index: {}]
  %s3 = inlined_call_operand.vmem [shape: bf16[512,64], index: 3, kind: output, shape index: {}]
  %s4 = sld [smem:[#allocation0]]
  $region53: #{mobilefacenet_forward.3} parent=0
    _
  %s6 = ssub.s32 1, %s4
  %s7 = scalar_select 0, %s6, %s4
  $region1: #{mobilefacenet_forward.3} parent=0
    #allocation2 [shape = 'u8[8192]{0}', space=vmem, size = 0x2000, scoped, tag = 'input window, operand 1, single buffered']
    #allocation3 [shape = 's32[2]{0}', space=sflag, size = 0x8, scoped, tag = 'scoped memory for mobilefacenet_forward.3']
    #allocation4 [shape = 'u8[512]{0}', space=vmem, size = 0x400, scoped, tag = 'input window, operand 2, single buffered']
    #allocation5 [shape = 's32[1]{0}', space=sflag, size = 0x4, scoped, tag = 'scoped memory for mobilefacenet_forward.3']
    %8 = vsyncpa [#allocation3], 0
    %9 = vsyncpa [#allocation5], 0
    loop: start=0, step=1, limit=4
    $region2: #{mobilefacenet_forward.3} parent=1 // loop_pre_header
      _
    $region3: #{mobilefacenet_forward.3} parent=1 // loop_header
      %s11 = sphi 0, %s15
      %p12 = scmp.ge.s32.totalorder %s11, 4
      %s21 = sphi 0, %s23
      %s24 = sphi 0, %s21
      %s25 = sphi 0, %s24
      %s41 = sphi 0, %s25
      %s45 = sphi 0, %s45
      %s47 = sphi 0, %s45
      %s48 = sphi 0, %s47
      %s62 = sphi 0, %s48
      %s66 = sphi 0, %s66
      %s68 = sphi 0, %s66
      %s69 = sphi 0, %s68
      %s83 = sphi 0, %s69
      %s89 = sphi 0, %s91
      %s92 = sphi 0, %s89
      %s93 = sphi 0, %s92
      %s109 = sphi 0, %s93
    $region4: #{mobilefacenet_forward.3} parent=1 // loop_header_branch
      %14 = sbr.rel (%p12) target = $region8
    $region5: #{mobilefacenet_forward.3} parent=1 // loop_body
      %s16 = ssub.s32 %s11, 1
      %s17 = ssub.s32 %s11, 2
      %s18 = sadd.s32 %s11, 1
      %s19 = ssub.s32 %s11, %s18
      %p20 = scmp.eq.s32.totalorder %s19, 0
      %s22 = sadd.s32 %s21, 1
      %s23 = scalar_select %p20, %s21, %s22
      %p26 = pneg %p20
      %p27 = scmp.eq.s32.totalorder %s11, 1
      %p28 = por %p26, %p27
      %p29 = scmp.ne.s32.totalorder %s21, %s24
      %p30 = scmp.eq.s32.totalorder %s11, 0
      %p31 = por %p29, %p30
      %p32 = scmp.ne.s32.totalorder %s21, %s24
      %p33 = scmp.eq.s32.totalorder %s16, 1
      %p34 = por %p32, %p33
      %p35 = scmp.ne.s32.totalorder %s24, %s25
      %p36 = scmp.eq.s32.totalorder %s16, 0
      %p37 = por %p35, %p36
      %p38 = scmp.ne.s32.totalorder %s24, %s25
      %p39 = scmp.eq.s32.totalorder %s17, 1
      %p40 = por %p38, %p39
      %p42 = scmp.ne.s32.totalorder %s25, %s41
      %p43 = scmp.eq.s32.totalorder %s17, 0
      %p44 = por %p42, %p43
      %s46 = sadd.s32 %s45, 1
      %p49 = scmp.eq.s32.totalorder %s11, 1
      %p50 = scmp.ne.s32.totalorder %s45, %s47
      %p51 = scmp.eq.s32.totalorder %s11, 0
      %p52 = por %p50, %p51
      %p53 = scmp.ne.s32.totalorder %s45, %s47
      %p54 = scmp.eq.s32.totalorder %s16, 1
      %p55 = por %p53, %p54
      %p56 = scmp.ne.s32.totalorder %s47, %s48
      %p57 = scmp.eq.s32.totalorder %s16, 0
      %p58 = por %p56, %p57
      %p59 = scmp.ne.s32.totalorder %s47, %s48
      %p60 = scmp.eq.s32.totalorder %s17, 1
      %p61 = por %p59, %p60
      %p63 = scmp.ne.s32.totalorder %s48, %s62
      %p64 = scmp.eq.s32.totalorder %s17, 0
      %p65 = por %p63, %p64
      %s67 = sadd.s32 %s66, 1
      %p70 = scmp.eq.s32.totalorder %s11, 1
      %p71 = scmp.ne.s32.totalorder %s66, %s68
      %p72 = scmp.eq.s32.totalorder %s11, 0
      %p73 = por %p71, %p72
      %p74 = scmp.ne.s32.totalorder %s66, %s68
      %p75 = scmp.eq.s32.totalorder %s16, 1
      %p76 = por %p74, %p75
      %p77 = scmp.ne.s32.totalorder %s68, %s69
      %p78 = scmp.eq.s32.totalorder %s16, 0
      %p79 = por %p77, %p78
      %p80 = scmp.ne.s32.totalorder %s68, %s69
      %p81 = scmp.eq.s32.totalorder %s17, 1
      %p82 = por %p80, %p81
      %p84 = scmp.ne.s32.totalorder %s69, %s83
      %p85 = scmp.eq.s32.totalorder %s17, 0
      %p86 = por %p84, %p85
      %s87 = ssub.s32 %s11, %s18
      %p88 = scmp.eq.s32.totalorder %s87, 0
      %s90 = sadd.s32 %s89, 1
      %s91 = scalar_select %p88, %s89, %s90
      %p94 = pneg %p88
      %p95 = scmp.eq.s32.totalorder %s11, 1
      %p96 = por %p94, %p95
      %p97 = scmp.ne.s32.totalorder %s89, %s92
      %p98 = scmp.eq.s32.totalorder %s11, 0
      %p99 = por %p97, %p98
      %p100 = scmp.ne.s32.totalorder %s89, %s92
      %p101 = scmp.eq.s32.totalorder %s16, 1
      %p102 = por %p100, %p101
      %p103 = scmp.ne.s32.totalorder %s92, %s93
      %p104 = scmp.eq.s32.totalorder %s16, 0
      %p105 = por %p103, %p104
      %p106 = scmp.ne.s32.totalorder %s92, %s93
      %p107 = scmp.eq.s32.totalorder %s17, 1
      %p108 = por %p106, %p107
      %p110 = scmp.ne.s32.totalorder %s93, %s109
      %p111 = scmp.eq.s32.totalorder %s17, 0
      %p112 = por %p110, %p111
      %p113 = scmp.le.s32.totalorder 1, %s11
      %p114 = scmp.lt.s32.totalorder %s11, 3
      %p115 = pnand %p113, %p114
      %p116 = pneg %p115
      // Predicated region
      $region9: #{mobilefacenet_forward.3} parent=5 // pred_check
        _
      $region10: #{mobilefacenet_forward.3} parent=5 // pred_check_branch
        %118 = sbr.rel (%p115) target = $region12
      $region11: #{mobilefacenet_forward.3} parent=5 // pred_region
        %s119 = ssub.s32 %s11, 1
        // Predicated region
        $region13: #{mobilefacenet_forward.3} parent=11 // pred_check
          %p120 = pneg %p58
        $region14: #{mobilefacenet_forward.3} parent=11 // pred_check_branch
          %122 = sbr.rel (%p120) target = $region16
        $region15: #{mobilefacenet_forward.3} parent=11 // pred_region
          %s124 = ssub.s32 256, 256
          %125 = vsyncadd [#allocation3], %s124
          %s126 = sshll.u32 [#allocation2], 4
          %s127 = int_to_ptr.vmem [resolvable:$true] %s126
          %132 = dma.hbm_to_vmem [thread:$0]  %s1, 256, %s127, [#allocation3], 64, 64, 4
        $region16: #{mobilefacenet_forward.3} parent=11 // pred_fallthru
          _
        // Predicated region
        $region17: #{mobilefacenet_forward.3} parent=11 // pred_check
          %p133 = pneg %p79
        $region18: #{mobilefacenet_forward.3} parent=11 // pred_check_branch
          %135 = sbr.rel (%p133) target = $region20
        $region19: #{mobilefacenet_forward.3} parent=11 // pred_region
          %s137 = ssub.s32 16, 16
          %138 = vsyncadd [#allocation5], %s137
          %s140 = sshll.u32 [#allocation4], 4
          %s141 = int_to_ptr.vmem [resolvable:$true] %s140
          %143 = dma.hbm_to_vmem [thread:$0]  %s2, 16, %s141, [#allocation5]
        $region20: #{mobilefacenet_forward.3} parent=11 // pred_fallthru
          _
      $region12: #{mobilefacenet_forward.3} parent=5 // pred_fallthru
        _
      %p144 = scmp.lt.s32.totalorder %s11, 2
      // Predicated region
      $region21: #{mobilefacenet_forward.3} parent=5 // pred_check
        %p145 = pneg %p144
      $region22: #{mobilefacenet_forward.3} parent=5 // pred_check_branch
        %147 = sbr.rel (%p145) target = $region24
      $region23: #{mobilefacenet_forward.3} parent=5 // pred_region
        // Predicated region
        $region25: #{mobilefacenet_forward.3} parent=23 // pred_check
          %p148 = pneg %p31
        $region26: #{mobilefacenet_forward.3} parent=23 // pred_check_branch
          %150 = sbr.rel (%p148) target = $region28
        $region27: #{mobilefacenet_forward.3} parent=23 // pred_region
          %s151 = smul.u32 32, %s11
          %p152 = scmp.lt.s32.totalorder %s151, 63
          %s153 = scalar_select %p152, %s151, 63
          %s154 = smul.addr %s153, 4
          %s155 = scalar_lea.vmem %s0, %s154
          %s156 = smul.u32 32, %s11
        $region28: #{mobilefacenet_forward.3} parent=23 // pred_fallthru
          _
      $region24: #{mobilefacenet_forward.3} parent=5 // pred_fallthru
        _
      %p157 = scmp.le.s32.totalorder 1, %s11
      %p158 = scmp.lt.s32.totalorder %s11, 3
      %p159 = pnand %p157, %p158
      %p160 = pneg %p159
      // Predicated region
      $region29: #{mobilefacenet_forward.3} parent=5 // pred_check
        _
      $region30: #{mobilefacenet_forward.3} parent=5 // pred_check_branch
        %162 = sbr.rel (%p159) target = $region32
      $region31: #{mobilefacenet_forward.3} parent=5 // pred_region
        %s163 = ssub.s32 %s11, 1
        // Predicated region
        $region33: #{mobilefacenet_forward.3} parent=31 // pred_check
          %p164 = pneg %p58
        $region34: #{mobilefacenet_forward.3} parent=31 // pred_check_branch
          %166 = sbr.rel (%p164) target = $region36
        $region35: #{mobilefacenet_forward.3} parent=31 // pred_region
          %167 = dma.done [#allocation3], 256
        $region36: #{mobilefacenet_forward.3} parent=31 // pred_fallthru
          _
        // Predicated region
        $region37: #{mobilefacenet_forward.3} parent=31 // pred_check
          %p168 = pneg %p79
        $region38: #{mobilefacenet_forward.3} parent=31 // pred_check_branch
          %170 = sbr.rel (%p168) target = $region40
        $region39: #{mobilefacenet_forward.3} parent=31 // pred_region
          %171 = dma.done [#allocation5], 16
        $region40: #{mobilefacenet_forward.3} parent=31 // pred_fallthru
          _
        %s172 = smul.u32 32, %s16
        %p173 = scmp.lt.s32.totalorder %s172, 63
        %s174 = scalar_select %p173, %s172, 63
        %s175 = smul.addr %s174, 4
        %s176 = scalar_lea.vmem %s0, %s175
        %p177 = pneg %p37
        %p178 = pneg %p34
        %p179 = pneg %p58
        %p180 = pneg %p55
        %p181 = pneg %p79
        %p182 = pneg %p76
        %p183 = pneg %p105
        %p184 = pneg %p102
        %s185 = smul.u32 32, %s16
        %p186 = scmp.lt.s32.totalorder %s185, 63
        %s187 = scalar_select %p186, %s185, 63
        %s188 = smul.addr %s187, 4
        %s189 = scalar_lea.vmem %s3, %s188
        %s190 = smul.u32 32, %s16
        %p191 = scmp.lt.s32.totalorder %s190, 63
        %s192 = scalar_select %p191, %s190, 63
        %s193 = smul.addr %s192, 4
        %s194 = scalar_lea.vmem %s0, %s193
        %s195 = smul.u32 32, %s16
        %s196 = smul.u32 32, %s16
        %p197 = scmp.lt.s32.totalorder %s196, 63
        %s198 = scalar_select %p197, %s196, 63
        %s199 = smul.addr %s198, 4
        %s200 = scalar_lea.vmem %s3, %s199
        %s201 = smul.u32 32, %s16
        %v203 = vld [vmem:[%s194] sm:$0xf]
        %v204 = vld [vmem:[%s194 + $0x4] sm:$0xf]
        %v205 = vld [vmem:[%s194 + $0x8] sm:$0xf]
        %v206 = vld [vmem:[%s194 + $0xc] sm:$0xf]
        %v207 = vld [vmem:[%s194 + $0x10] sm:$0xf]
        %v208 = vld [vmem:[%s194 + $0x14] sm:$0xf]
        %v209 = vld [vmem:[%s194 + $0x18] sm:$0xf]
        %v210 = vld [vmem:[%s194 + $0x1c] sm:$0xf]
        %v211 = vld [vmem:[%s194 + $0x20] sm:$0xf]
        %v212 = vld [vmem:[%s194 + $0x24] sm:$0xf]
        %v213 = vld [vmem:[%s194 + $0x28] sm:$0xf]
        %v214 = vld [vmem:[%s194 + $0x2c] sm:$0xf]
        %v215 = vld [vmem:[%s194 + $0x30] sm:$0xf]
        %v216 = vld [vmem:[%s194 + $0x34] sm:$0xf]
        %v217 = vld [vmem:[%s194 + $0x38] sm:$0xf]
        %v218 = vld [vmem:[%s194 + $0x3c] sm:$0xf]
        %v219 = vld [vmem:[%s194 + $0x40] sm:$0xf]
        %v220 = vld [vmem:[%s194 + $0x44] sm:$0xf]
        %v221 = vld [vmem:[%s194 + $0x48] sm:$0xf]
        %v222 = vld [vmem:[%s194 + $0x4c] sm:$0xf]
        %v223 = vld [vmem:[%s194 + $0x50] sm:$0xf]
        %v224 = vld [vmem:[%s194 + $0x54] sm:$0xf]
        %v225 = vld [vmem:[%s194 + $0x58] sm:$0xf]
        %v226 = vld [vmem:[%s194 + $0x5c] sm:$0xf]
        %v227 = vld [vmem:[%s194 + $0x60] sm:$0xf]
        %v228 = vld [vmem:[%s194 + $0x64] sm:$0xf]
        %v229 = vld [vmem:[%s194 + $0x68] sm:$0xf]
        %v230 = vld [vmem:[%s194 + $0x6c] sm:$0xf]
        %v231 = vld [vmem:[%s194 + $0x70] sm:$0xf]
        %v232 = vld [vmem:[%s194 + $0x74] sm:$0xf]
        %v233 = vld [vmem:[%s194 + $0x78] sm:$0xf]
        %v234 = vld [vmem:[%s194 + $0x7c] sm:$0xf]
        %v235 = vld [vmem:[#allocation2] sm:$0xf]
        %v236 = vld [vmem:[#allocation2 + $0x4] sm:$0xf]
        %v237 = vld [vmem:[#allocation2 + $0x8] sm:$0xf]
        %v238 = vld [vmem:[#allocation2 + $0xc] sm:$0x3]
        %v239 = vld [vmem:[#allocation4] sm:$0x1]
        %v241 = vlaneseq
        %v242 = vshrl.u32 %v241, 7
        %v243 = vsub.s32 0, %v242
        %v244 = vrot.slane %v239, %v243
        %v278 = vunpack.c.l.b16 %v203
        %v279 = vunpack.c.l.b16 %v204
        %v280 = vunpack.c.l.b16 %v205
        %v281 = vunpack.c.l.b16 %v206
        %v282 = vunpack.c.l.b16 %v207
        %v283 = vunpack.c.l.b16 %v208
        %v284 = vunpack.c.l.b16 %v209
        %v285 = vunpack.c.l.b16 %v210
        %v286 = vunpack.c.l.b16 %v211
        %v287 = vunpack.c.l.b16 %v212
        %v288 = vunpack.c.l.b16 %v213
        %v289 = vunpack.c.l.b16 %v214
        %v290 = vunpack.c.l.b16 %v215
        %v291 = vunpack.c.l.b16 %v216
        %v292 = vunpack.c.l.b16 %v217
        %v293 = vunpack.c.l.b16 %v218
        %v294 = vunpack.c.l.b16 %v219
        %v295 = vunpack.c.l.b16 %v220
        %v296 = vunpack.c.l.b16 %v221
        %v297 = vunpack.c.l.b16 %v222
        %v298 = vunpack.c.l.b16 %v223
        %v299 = vunpack.c.l.b16 %v224
        %v300 = vunpack.c.l.b16 %v225
        %v301 = vunpack.c.l.b16 %v226
        %v302 = vunpack.c.l.b16 %v227
        %v303 = vunpack.c.l.b16 %v228
        %v304 = vunpack.c.l.b16 %v229
        %v305 = vunpack.c.l.b16 %v230
        %v306 = vunpack.c.l.b16 %v231
        %v307 = vunpack.c.l.b16 %v232
        %v308 = vunpack.c.l.b16 %v233
        %v309 = vunpack.c.l.b16 %v234
        %v310 = vpack.c.b16 %v279, %v278
        %v311 = vpack.c.b16 %v281, %v280
        %v312 = vpack.c.b16 %v283, %v282
        %v313 = vpack.c.b16 %v285, %v284
        %v314 = vpack.c.b16 %v287, %v286
        %v315 = vpack.c.b16 %v289, %v288
        %v316 = vpack.c.b16 %v291, %v290
        %v317 = vpack.c.b16 %v293, %v292
        %v318 = vpack.c.b16 %v295, %v294
        %v319 = vpack.c.b16 %v297, %v296
        %v320 = vpack.c.b16 %v299, %v298
        %v321 = vpack.c.b16 %v301, %v300
        %v322 = vpack.c.b16 %v303, %v302
        %v323 = vpack.c.b16 %v305, %v304
        %v324 = vpack.c.b16 %v307, %v306
        %v325 = vpack.c.b16 %v309, %v308
        %v330 = vunpack.c.l.b16 %v235
        %v331 = vunpack.c.l.b16 %v236
        %v332 = vunpack.c.l.b16 %v237
        %v333 = vunpack.c.l.b16 %v238
        %v334 = vpack.c.b16 %v331, %v330
        %v335 = vpack.c.b16 %v333, %v332
        %vm337 = vcmask 220160
        %v339 = vsel %vm337, %v310, 0
        %v342 = vsel %vm337, %v311, 0
        %v345 = vsel %vm337, %v312, 0
        %v348 = vsel %vm337, %v313, 0
        %v351 = vsel %vm337, %v314, 0
        %v354 = vsel %vm337, %v315, 0
        %v357 = vsel %vm337, %v316, 0
        %v360 = vsel %vm337, %v317, 0
        %v363 = vsel %vm337, %v318, 0
        %v366 = vsel %vm337, %v319, 0
        %v369 = vsel %vm337, %v320, 0
        %v372 = vsel %vm337, %v321, 0
        %v375 = vsel %vm337, %v322, 0
        %v378 = vsel %vm337, %v323, 0
        %v381 = vsel %vm337, %v324, 0
        %v384 = vsel %vm337, %v325, 0
        %vm386 = vcmask 1044480
        %vm387 = vcmask 1045504
        %v388 = vsel %vm386, 4294967295, 65535
        %v389 = vsel %vm387, %v388, 0
        %v391 = vand.u32 %v335, %v389
        %393 = vmatprep.subr.bf16.mxu0 0
        %394 = vmatpush1.bf16.msra.mxu0 %v334
        %395 = vmatprep.subr.bf16.mxu0 0
        %396 = vmatpush1.bf16.msra.mxu0 %v391
        %397 = vmatprep.subr.bf16.mxu0 0
        %398 = vmatpush1.bf16.msra.mxu0 0
        %399 = vmatprep.subr.bf16.mxu0 0
        %400 = vmatpush1.bf16.msra.mxu0 0
        %401 = vmatprep.subr.bf16.mxu0 0
        %402 = vmatpush1.bf16.msra.mxu0 0
        %403 = vmatprep.subr.bf16.mxu0 0
        %404 = vmatpush1.bf16.msra.mxu0 0
        %405 = vmatprep.subr.bf16.mxu0 0
        %406 = vmatpush1.bf16.msra.mxu0 0
        %407 = vmatprep.subr.bf16.mxu0 0
        %408 = vmatpush1.bf16.msra.mxu0 0
        %409 = vmatprep.subr.bf16.mxu0 0
        %410 = vmatpush1.bf16.msra.mxu0 0
        %411 = vmatprep.subr.bf16.mxu0 0
        %412 = vmatpush1.bf16.msra.mxu0 0
        %413 = vmatprep.subr.bf16.mxu0 0
        %414 = vmatpush1.bf16.msra.mxu0 0
        %415 = vmatprep.subr.bf16.mxu0 0
        %416 = vmatpush1.bf16.msra.mxu0 0
        %417 = vmatprep.subr.bf16.mxu0 0
        %418 = vmatpush1.bf16.msra.mxu0 0
        %419 = vmatprep.subr.bf16.mxu0 0
        %420 = vmatpush1.bf16.msra.mxu0 0
        %421 = vmatprep.subr.bf16.mxu0 0
        %422 = vmatpush1.bf16.msra.mxu0 0
        %423 = vmatprep.subr.bf16.mxu0 0
        %424 = vmatpush1.bf16.msra.mxu0 0
        %425 = vmatprep.mubr.bf16.mxu0 0
        %426 = vmatmul.mubr.bf16.gmra.mrb[0].mxu0 %v339
        %v427 = vpop.f32.mrb[0].mxu0
        %v428 = vadd.f32 %v244, %v427
        %v429 = vpop.f32.mrb[0].mxu0
        %v430 = vpop.f32.mrb[0].mxu0
        %v431 = vadd.f32 %v244, %v430
        %v432 = vpop.f32.mrb[0].mxu0
        %433 = vmatprep.mubr.bf16.mxu0 0
        %434 = vmatmul.mubr.bf16.gmra.mrb[0].mxu0 %v342
        %v435 = vpop.f32.mrb[0].mxu0
        %v436 = vadd.f32 %v244, %v435
        %v437 = vpop.f32.mrb[0].mxu0
        %v438 = vpop.f32.mrb[0].mxu0
        %v439 = vadd.f32 %v244, %v438
        %v440 = vpop.f32.mrb[0].mxu0
        %441 = vmatprep.mubr.bf16.mxu0 0
        %442 = vmatmul.mubr.bf16.gmra.mrb[0].mxu0 %v345
        %v443 = vpop.f32.mrb[0].mxu0
        %v444 = vadd.f32 %v244, %v443
        %v445 = vpop.f32.mrb[0].mxu0
        %v446 = vpop.f32.mrb[0].mxu0
        %v447 = vadd.f32 %v244, %v446
        %v448 = vpop.f32.mrb[0].mxu0
        %449 = vmatprep.mubr.bf16.mxu0 0
        %450 = vmatmul.mubr.bf16.gmra.mrb[0].mxu0 %v348
        %v451 = vpop.f32.mrb[0].mxu0
        %v452 = vadd.f32 %v244, %v451
        %v453 = vpop.f32.mrb[0].mxu0
        %v454 = vpop.f32.mrb[0].mxu0
        %v455 = vadd.f32 %v244, %v454
        %v456 = vpop.f32.mrb[0].mxu0
        %457 = vmatprep.mubr.bf16.mxu0 0
        %458 = vmatmul.mubr.bf16.gmra.mrb[0].mxu0 %v351
        %v459 = vpop.f32.mrb[0].mxu0
        %v460 = vadd.f32 %v244, %v459
        %v461 = vpop.f32.mrb[0].mxu0
        %v462 = vpop.f32.mrb[0].mxu0
        %v463 = vadd.f32 %v244, %v462
        %v464 = vpop.f32.mrb[0].mxu0
        %465 = vmatprep.mubr.bf16.mxu0 0
        %466 = vmatmul.mubr.bf16.gmra.mrb[0].mxu0 %v354
        %v467 = vpop.f32.mrb[0].mxu0
        %v468 = vadd.f32 %v244, %v467
        %v469 = vpop.f32.mrb[0].mxu0
        %v470 = vpop.f32.mrb[0].mxu0
        %v471 = vadd.f32 %v244, %v470
        %v472 = vpop.f32.mrb[0].mxu0
        %473 = vmatprep.mubr.bf16.mxu0 0
        %474 = vmatmul.mubr.bf16.gmra.mrb[0].mxu0 %v357
        %v475 = vpop.f32.mrb[0].mxu0
        %v476 = vadd.f32 %v244, %v475
        %v477 = vpop.f32.mrb[0].mxu0
        %v478 = vpop.f32.mrb[0].mxu0
        %v479 = vadd.f32 %v244, %v478
        %v480 = vpop.f32.mrb[0].mxu0
        %481 = vmatprep.mubr.bf16.mxu0 0
        %482 = vmatmul.mubr.bf16.gmra.mrb[0].mxu0 %v360
        %v483 = vpop.f32.mrb[0].mxu0
        %v484 = vadd.f32 %v244, %v483
        %v485 = vpop.f32.mrb[0].mxu0
        %v486 = vpop.f32.mrb[0].mxu0
        %v487 = vadd.f32 %v244, %v486
        %v488 = vpop.f32.mrb[0].mxu0
        %489 = vmatprep.mubr.bf16.mxu0 0
        %490 = vmatmul.mubr.bf16.gmra.mrb[0].mxu0 %v363
        %v491 = vpop.f32.mrb[0].mxu0
        %v492 = vadd.f32 %v244, %v491
        %v493 = vpop.f32.mrb[0].mxu0
        %v494 = vpop.f32.mrb[0].mxu0
        %v495 = vadd.f32 %v244, %v494
        %v496 = vpop.f32.mrb[0].mxu0
        %497 = vmatprep.mubr.bf16.mxu0 0
        %498 = vmatmul.mubr.bf16.gmra.mrb[0].mxu0 %v366
        %v499 = vpop.f32.mrb[0].mxu0
        %v500 = vadd.f32 %v244, %v499
        %v501 = vpop.f32.mrb[0].mxu0
        %v502 = vpop.f32.mrb[0].mxu0
        %v503 = vadd.f32 %v244, %v502
        %v504 = vpop.f32.mrb[0].mxu0
        %505 = vmatprep.mubr.bf16.mxu0 0
        %506 = vmatmul.mubr.bf16.gmra.mrb[0].mxu0 %v369
        %v507 = vpop.f32.mrb[0].mxu0
        %v508 = vadd.f32 %v244, %v507
        %v509 = vpop.f32.mrb[0].mxu0
        %v510 = vpop.f32.mrb[0].mxu0
        %v511 = vadd.f32 %v244, %v510
        %v512 = vpop.f32.mrb[0].mxu0
        %513 = vmatprep.mubr.bf16.mxu0 0
        %514 = vmatmul.mubr.bf16.gmra.mrb[0].mxu0 %v372
        %v515 = vpop.f32.mrb[0].mxu0
        %v516 = vadd.f32 %v244, %v515
        %v517 = vpop.f32.mrb[0].mxu0
        %v518 = vpop.f32.mrb[0].mxu0
        %v519 = vadd.f32 %v244, %v518
        %v520 = vpop.f32.mrb[0].mxu0
        %521 = vmatprep.mubr.bf16.mxu0 0
        %522 = vmatmul.mubr.bf16.gmra.mrb[0].mxu0 %v375
        %v523 = vpop.f32.mrb[0].mxu0
        %v524 = vadd.f32 %v244, %v523
        %v525 = vpop.f32.mrb[0].mxu0
        %v526 = vpop.f32.mrb[0].mxu0
        %v527 = vadd.f32 %v244, %v526
        %v528 = vpop.f32.mrb[0].mxu0
        %529 = vmatprep.mubr.bf16.mxu0 0
        %530 = vmatmul.mubr.bf16.gmra.mrb[0].mxu0 %v378
        %v531 = vpop.f32.mrb[0].mxu0
        %v532 = vadd.f32 %v244, %v531
        %v533 = vpop.f32.mrb[0].mxu0
        %v534 = vpop.f32.mrb[0].mxu0
        %v535 = vadd.f32 %v244, %v534
        %v536 = vpop.f32.mrb[0].mxu0
        %537 = vmatprep.mubr.bf16.mxu0 0
        %538 = vmatmul.mubr.bf16.gmra.mrb[0].mxu0 %v381
        %v539 = vpop.f32.mrb[0].mxu0
        %v540 = vadd.f32 %v244, %v539
        %v541 = vpop.f32.mrb[0].mxu0
        %v542 = vpop.f32.mrb[0].mxu0
        %v543 = vadd.f32 %v244, %v542
        %v544 = vpop.f32.mrb[0].mxu0
        %545 = vmatprep.mubr.bf16.mxu0 0
        %546 = vmatmul.mubr.bf16.gmra.mrb[0].mxu0 %v384
        %v547 = vpop.f32.mrb[0].mxu0
        %v548 = vadd.f32 %v244, %v547
        %v549 = vpop.f32.mrb[0].mxu0
        %v550 = vpop.f32.mrb[0].mxu0
        %v551 = vadd.f32 %v244, %v550
        %v552 = vpop.f32.mrb[0].mxu0
        %553 = vdwg.mxu0
        %v554 = vmax.f32 %v428, 0.0
        %v555 = vmax.f32 %v431, 0.0
        %v556 = vmax.f32 %v436, 0.0
        %v557 = vmax.f32 %v439, 0.0
        %v558 = vmax.f32 %v444, 0.0
        %v559 = vmax.f32 %v447, 0.0
        %v560 = vmax.f32 %v452, 0.0
        %v561 = vmax.f32 %v455, 0.0
        %v562 = vmax.f32 %v460, 0.0
        %v563 = vmax.f32 %v463, 0.0
        %v564 = vmax.f32 %v468, 0.0
        %v565 = vmax.f32 %v471, 0.0
        %v566 = vmax.f32 %v476, 0.0
        %v567 = vmax.f32 %v479, 0.0
        %v568 = vmax.f32 %v484, 0.0
        %v569 = vmax.f32 %v487, 0.0
        %v570 = vmax.f32 %v492, 0.0
        %v571 = vmax.f32 %v495, 0.0
        %v572 = vmax.f32 %v500, 0.0
        %v573 = vmax.f32 %v503, 0.0
        %v574 = vmax.f32 %v508, 0.0
        %v575 = vmax.f32 %v511, 0.0
        %v576 = vmax.f32 %v516, 0.0
        %v577 = vmax.f32 %v519, 0.0
        %v578 = vmax.f32 %v524, 0.0
        %v579 = vmax.f32 %v527, 0.0
        %v580 = vmax.f32 %v532, 0.0
        %v581 = vmax.f32 %v535, 0.0
        %v582 = vmax.f32 %v540, 0.0
        %v583 = vmax.f32 %v543, 0.0
        %v584 = vmax.f32 %v548, 0.0
        %v585 = vmax.f32 %v551, 0.0
        %v586 = vpack.c.bf16 %v555, %v554
        %v587 = vpack.c.bf16 %v557, %v556
        %v588 = vpack.c.bf16 %v559, %v558
        %v589 = vpack.c.bf16 %v561, %v560
        %v590 = vpack.c.bf16 %v563, %v562
        %v591 = vpack.c.bf16 %v565, %v564
        %v592 = vpack.c.bf16 %v567, %v566
        %v593 = vpack.c.bf16 %v569, %v568
        %v594 = vpack.c.bf16 %v571, %v570
        %v595 = vpack.c.bf16 %v573, %v572
        %v596 = vpack.c.bf16 %v575, %v574
        %v597 = vpack.c.bf16 %v577, %v576
        %v598 = vpack.c.bf16 %v579, %v578
        %v599 = vpack.c.bf16 %v581, %v580
        %v600 = vpack.c.bf16 %v583, %v582
        %v601 = vpack.c.bf16 %v585, %v584
        %v618 = vunpack.c.l.b16 %v586
        %v619 = vunpack.c.h.b16 %v586
        %v620 = vunpack.c.l.b16 %v587
        %v621 = vunpack.c.h.b16 %v587
        %v622 = vunpack.c.l.b16 %v588
        %v623 = vunpack.c.h.b16 %v588
        %v624 = vunpack.c.l.b16 %v589
        %v625 = vunpack.c.h.b16 %v589
        %v626 = vunpack.c.l.b16 %v590
        %v627 = vunpack.c.h.b16 %v590
        %v628 = vunpack.c.l.b16 %v591
        %v629 = vunpack.c.h.b16 %v591
        %v630 = vunpack.c.l.b16 %v592
        %v631 = vunpack.c.h.b16 %v592
        %v632 = vunpack.c.l.b16 %v593
        %v633 = vunpack.c.h.b16 %v593
        %v634 = vunpack.c.l.b16 %v594
        %v635 = vunpack.c.h.b16 %v594
        %v636 = vunpack.c.l.b16 %v595
        %v637 = vunpack.c.h.b16 %v595
        %v638 = vunpack.c.l.b16 %v596
        %v639 = vunpack.c.h.b16 %v596
        %v640 = vunpack.c.l.b16 %v597
        %v641 = vunpack.c.h.b16 %v597
        %v642 = vunpack.c.l.b16 %v598
        %v643 = vunpack.c.h.b16 %v598
        %v644 = vunpack.c.l.b16 %v599
        %v645 = vunpack.c.h.b16 %v599
        %v646 = vunpack.c.l.b16 %v600
        %v647 = vunpack.c.h.b16 %v600
        %v648 = vunpack.c.l.b16 %v601
        %v649 = vunpack.c.h.b16 %v601
        %v650 = vpack.c.b16 %v618, %v618
        %v651 = vpack.c.b16 %v619, %v619
        %v652 = vpack.c.b16 %v620, %v620
        %v653 = vpack.c.b16 %v621, %v621
        %v654 = vpack.c.b16 %v622, %v622
        %v655 = vpack.c.b16 %v623, %v623
        %v656 = vpack.c.b16 %v624, %v624
        %v657 = vpack.c.b16 %v625, %v625
        %v658 = vpack.c.b16 %v626, %v626
        %v659 = vpack.c.b16 %v627, %v627
        %v660 = vpack.c.b16 %v628, %v628
        %v661 = vpack.c.b16 %v629, %v629
        %v662 = vpack.c.b16 %v630, %v630
        %v663 = vpack.c.b16 %v631, %v631
        %v664 = vpack.c.b16 %v632, %v632
        %v665 = vpack.c.b16 %v633, %v633
        %v666 = vpack.c.b16 %v634, %v634
        %v667 = vpack.c.b16 %v635, %v635
        %v668 = vpack.c.b16 %v636, %v636
        %v669 = vpack.c.b16 %v637, %v637
        %v670 = vpack.c.b16 %v638, %v638
        %v671 = vpack.c.b16 %v639, %v639
        %v672 = vpack.c.b16 %v640, %v640
        %v673 = vpack.c.b16 %v641, %v641
        %v674 = vpack.c.b16 %v642, %v642
        %v675 = vpack.c.b16 %v643, %v643
        %v676 = vpack.c.b16 %v644, %v644
        %v677 = vpack.c.b16 %v645, %v645
        %v678 = vpack.c.b16 %v646, %v646
        %v679 = vpack.c.b16 %v647, %v647
        %v680 = vpack.c.b16 %v648, %v648
        %v681 = vpack.c.b16 %v649, %v649
        %vm714 = vcmask 519168
        %715 = vst.msk [vmem:[%s200] sm:$0xf] %vm714, %v650
        %716 = vst.msk [vmem:[%s200 + $0x4] sm:$0xf] %vm714, %v651
        %717 = vst.msk [vmem:[%s200 + $0x8] sm:$0xf] %vm714, %v652
        %718 = vst.msk [vmem:[%s200 + $0xc] sm:$0xf] %vm714, %v653
        %719 = vst.msk [vmem:[%s200 + $0x10] sm:$0xf] %vm714, %v654
        %720 = vst.msk [vmem:[%s200 + $0x14] sm:$0xf] %vm714, %v655
        %721 = vst.msk [vmem:[%s200 + $0x18] sm:$0xf] %vm714, %v656
        %722 = vst.msk [vmem:[%s200 + $0x1c] sm:$0xf] %vm714, %v657
        %723 = vst.msk [vmem:[%s200 + $0x20] sm:$0xf] %vm714, %v658
        %724 = vst.msk [vmem:[%s200 + $0x24] sm:$0xf] %vm714, %v659
        %725 = vst.msk [vmem:[%s200 + $0x28] sm:$0xf] %vm714, %v660
        %726 = vst.msk [vmem:[%s200 + $0x2c] sm:$0xf] %vm714, %v661
        %727 = vst.msk [vmem:[%s200 + $0x30] sm:$0xf] %vm714, %v662
        %728 = vst.msk [vmem:[%s200 + $0x34] sm:$0xf] %vm714, %v663
        %729 = vst.msk [vmem:[%s200 + $0x38] sm:$0xf] %vm714, %v664
        %730 = vst.msk [vmem:[%s200 + $0x3c] sm:$0xf] %vm714, %v665
        %731 = vst.msk [vmem:[%s200 + $0x40] sm:$0xf] %vm714, %v666
        %732 = vst.msk [vmem:[%s200 + $0x44] sm:$0xf] %vm714, %v667
        %733 = vst.msk [vmem:[%s200 + $0x48] sm:$0xf] %vm714, %v668
        %734 = vst.msk [vmem:[%s200 + $0x4c] sm:$0xf] %vm714, %v669
        %735 = vst.msk [vmem:[%s200 + $0x50] sm:$0xf] %vm714, %v670
        %736 = vst.msk [vmem:[%s200 + $0x54] sm:$0xf] %vm714, %v671
        %737 = vst.msk [vmem:[%s200 + $0x58] sm:$0xf] %vm714, %v672
        %738 = vst.msk [vmem:[%s200 + $0x5c] sm:$0xf] %vm714, %v673
        %739 = vst.msk [vmem:[%s200 + $0x60] sm:$0xf] %vm714, %v674
        %740 = vst.msk [vmem:[%s200 + $0x64] sm:$0xf] %vm714, %v675
        %741 = vst.msk [vmem:[%s200 + $0x68] sm:$0xf] %vm714, %v676
        %742 = vst.msk [vmem:[%s200 + $0x6c] sm:$0xf] %vm714, %v677
        %743 = vst.msk [vmem:[%s200 + $0x70] sm:$0xf] %vm714, %v678
        %744 = vst.msk [vmem:[%s200 + $0x74] sm:$0xf] %vm714, %v679
        %745 = vst.msk [vmem:[%s200 + $0x78] sm:$0xf] %vm714, %v680
        %746 = vst.msk [vmem:[%s200 + $0x7c] sm:$0xf] %vm714, %v681
        %s747 = smul.u32 32, %s16
        %p748 = scmp.lt.s32.totalorder %s747, 63
        %s749 = scalar_select %p748, %s747, 63
        %s750 = smul.addr %s749, 4
        %s751 = scalar_lea.vmem %s3, %s750
        // Predicated region
        $region41: #{mobilefacenet_forward.3} parent=31 // pred_check
          %p752 = pneg %p102
        $region42: #{mobilefacenet_forward.3} parent=31 // pred_check_branch
          %754 = sbr.rel (%p752) target = $region44
        $region43: #{mobilefacenet_forward.3} parent=31 // pred_region
          %s755 = smul.u32 32, %s16
        $region44: #{mobilefacenet_forward.3} parent=31 // pred_fallthru
          _
      $region32: #{mobilefacenet_forward.3} parent=5 // pred_fallthru
        _
      %p756 = scmp.le.s32.totalorder 2, %s11
      // Predicated region
      $region45: #{mobilefacenet_forward.3} parent=5 // pred_check
        %p757 = pneg %p756
      $region46: #{mobilefacenet_forward.3} parent=5 // pred_check_branch
        %759 = sbr.rel (%p757) target = $region48
      $region47: #{mobilefacenet_forward.3} parent=5 // pred_region
        %s760 = ssub.s32 %s11, 2
        // Predicated region
        $region49: #{mobilefacenet_forward.3} parent=47 // pred_check
          %p761 = pneg %p108
        $region50: #{mobilefacenet_forward.3} parent=47 // pred_check_branch
          %763 = sbr.rel (%p761) target = $region52
        $region51: #{mobilefacenet_forward.3} parent=47 // pred_region
          %s764 = smul.u32 32, %s17
          %p765 = scmp.lt.s32.totalorder %s764, 63
          %s766 = scalar_select %p765, %s764, 63
          %s767 = smul.addr %s766, 4
          %s768 = scalar_lea.vmem %s3, %s767
        $region52: #{mobilefacenet_forward.3} parent=47 // pred_fallthru
          _
      $region48: #{mobilefacenet_forward.3} parent=5 // pred_fallthru
        _
    $region6: #{mobilefacenet_forward.3} parent=1 // loop_footer
      %s15 = sadd.s32 1, %s11
    $region7: #{mobilefacenet_forward.3} parent=1 // loop_footer_branch
      %10 = sbr.rel target = $region3
    $region8: #{mobilefacenet_forward.3} parent=1 // loop_exit
      _
    %769 = vsyncpa [#allocation3], 1
    %s770 = scalar_lea.sflag [#allocation3], 1
    %771 = vsyncpa %s770, 1
    %772 = vsyncpa [#allocation5], 1

// kernel: mobilefacenet_forward.4
$region0: #{mobilefacenet_forward.4}
  #allocation0 [shape = 'u32[]', space=smem, size = 0x4, offset = 0x4, fixed_abs, tag = 'smem constant byte address 0x4 - core index']
  #allocation1 [shape = 'u32[144,128]{1,0:T(1,128)}', space=vmem, size = 0x12000, scoped, tag = 'internal scratch']
  %s0 = inlined_call_operand.vmem [shape: bf16[128,576], index: 0, kind: input, shape index: {}]
  %s1 = inlined_call_operand.vmem [shape: bf16[576,128], index: 1, kind: input, shape index: {}]
  %s2 = inlined_call_operand.vmem [shape: f32[1,128], index: 2, kind: input, shape index: {}]
  %s3 = inlined_call_operand.vmem [shape: bf16[128,128], index: 3, kind: output, shape index: {}]
  %s4 = sld [smem:[#allocation0]]
  $region22: #{mobilefacenet_forward.4} parent=0
    _
  %s6 = ssub.s32 1, %s4
  %s7 = scalar_select 0, %s6, %s4
  // Predicated region
  $region2: #{mobilefacenet_forward.4} parent=0 // pred_check
    _
  $region3: #{mobilefacenet_forward.4} parent=0 // pred_check_branch
    %9 = sbr.rel (0) target = $region5
  $region4: #{mobilefacenet_forward.4} parent=0 // pred_region
    _
  $region5: #{mobilefacenet_forward.4} parent=0 // pred_fallthru
    _
  // Predicated region
  $region6: #{mobilefacenet_forward.4} parent=0 // pred_check
    _
  $region7: #{mobilefacenet_forward.4} parent=0 // pred_check_branch
    %11 = sbr.rel (0) target = $region9
  $region8: #{mobilefacenet_forward.4} parent=0 // pred_region
    _
  $region9: #{mobilefacenet_forward.4} parent=0 // pred_fallthru
    _
  // Predicated region
  $region10: #{mobilefacenet_forward.4} parent=0 // pred_check
    _
  $region11: #{mobilefacenet_forward.4} parent=0 // pred_check_branch
    %13 = sbr.rel (0) target = $region13
  $region12: #{mobilefacenet_forward.4} parent=0 // pred_region
    _
  $region13: #{mobilefacenet_forward.4} parent=0 // pred_fallthru
    _
  %v15 = vld [vmem:[%s0] sm:$0xff]
  %v16 = vld [vmem:[%s0 + $0x8] sm:$0xff]
  %v17 = vld [vmem:[%s0 + $0x10] sm:$0xf]
  %v18 = vld [vmem:[%s0 + $0x14] sm:$0xff]
  %v19 = vld [vmem:[%s0 + $0x1c] sm:$0xff]
  %v20 = vld [vmem:[%s0 + $0x24] sm:$0xf]
  %v21 = vld [vmem:[%s0 + $0x28] sm:$0xff]
  %v22 = vld [vmem:[%s0 + $0x30] sm:$0xff]
  %v23 = vld [vmem:[%s0 + $0x38] sm:$0xf]
  %v24 = vld [vmem:[%s0 + $0x3c] sm:$0xff]
  %v25 = vld [vmem:[%s0 + $0x44] sm:$0xff]
  %v26 = vld [vmem:[%s0 + $0x4c] sm:$0xf]
  %v27 = vld [vmem:[%s0 + $0x50] sm:$0xff]
  %v28 = vld [vmem:[%s0 + $0x58] sm:$0xff]
  %v29 = vld [vmem:[%s0 + $0x60] sm:$0xf]
  %v30 = vld [vmem:[%s0 + $0x64] sm:$0xff]
  %v31 = vld [vmem:[%s0 + $0x6c] sm:$0xff]
  %v32 = vld [vmem:[%s0 + $0x74] sm:$0xf]
  %v33 = vld [vmem:[%s0 + $0x78] sm:$0xff]
  %v34 = vld [vmem:[%s0 + $0x80] sm:$0xff]
  %v35 = vld [vmem:[%s0 + $0x88] sm:$0xf]
  %v36 = vld [vmem:[%s0 + $0x8c] sm:$0xff]
  %v37 = vld [vmem:[%s0 + $0x94] sm:$0xff]
  %v38 = vld [vmem:[%s0 + $0x9c] sm:$0xf]
  %v39 = vld [vmem:[%s0 + $0xa0] sm:$0xff]
  %v40 = vld [vmem:[%s0 + $0xa8] sm:$0xff]
  %v41 = vld [vmem:[%s0 + $0xb0] sm:$0xf]
  %v42 = vld [vmem:[%s0 + $0xb4] sm:$0xff]
  %v43 = vld [vmem:[%s0 + $0xbc] sm:$0xff]
  %v44 = vld [vmem:[%s0 + $0xc4] sm:$0xf]
  %v45 = vld [vmem:[%s0 + $0xc8] sm:$0xff]
  %v46 = vld [vmem:[%s0 + $0xd0] sm:$0xff]
  %v47 = vld [vmem:[%s0 + $0xd8] sm:$0xf]
  %v48 = vld [vmem:[%s0 + $0xdc] sm:$0xff]
  %v49 = vld [vmem:[%s0 + $0xe4] sm:$0xff]
  %v50 = vld [vmem:[%s0 + $0xec] sm:$0xf]
  %v51 = vld [vmem:[%s0 + $0xf0] sm:$0xff]
  %v52 = vld [vmem:[%s0 + $0xf8] sm:$0xff]
  %v53 = vld [vmem:[%s0 + $0x100] sm:$0xf]
  %v54 = vld [vmem:[%s0 + $0x104] sm:$0xff]
  %v55 = vld [vmem:[%s0 + $0x10c] sm:$0xff]
  %v56 = vld [vmem:[%s0 + $0x114] sm:$0xf]
  %v57 = vld [vmem:[%s0 + $0x118] sm:$0xff]
  %v58 = vld [vmem:[%s0 + $0x120] sm:$0xff]
  %v59 = vld [vmem:[%s0 + $0x128] sm:$0xf]
  %v60 = vld [vmem:[%s0 + $0x12c] sm:$0xff]
  %v61 = vld [vmem:[%s0 + $0x134] sm:$0xff]
  %v62 = vld [vmem:[%s0 + $0x13c] sm:$0xf]
  %v63 = vld [vmem:[%s1] sm:$0xf]
  %v64 = vld [vmem:[%s1 + $0x4] sm:$0xf]
  %v65 = vld [vmem:[%s1 + $0x8] sm:$0xf]
  %v66 = vld [vmem:[%s1 + $0xc] sm:$0xf]
  %v67 = vld [vmem:[%s1 + $0x10] sm:$0xf]
  %v68 = vld [vmem:[%s1 + $0x14] sm:$0xf]
  %v69 = vld [vmem:[%s1 + $0x18] sm:$0xf]
  %v70 = vld [vmem:[%s1 + $0x1c] sm:$0xf]
  %v71 = vld [vmem:[%s1 + $0x20] sm:$0xf]
  %v72 = vld [vmem:[%s1 + $0x24] sm:$0xf]
  %v73 = vld [vmem:[%s1 + $0x28] sm:$0xf]
  %v74 = vld [vmem:[%s1 + $0x2c] sm:$0xf]
  %v75 = vld [vmem:[%s1 + $0x30] sm:$0xf]
  %v76 = vld [vmem:[%s1 + $0x34] sm:$0xf]
  %v77 = vld [vmem:[%s1 + $0x38] sm:$0xf]
  %v78 = vld [vmem:[%s1 + $0x3c] sm:$0xf]
  %v79 = vld [vmem:[%s1 + $0x40] sm:$0xf]
  %v80 = vld [vmem:[%s1 + $0x44] sm:$0xf]
  %v81 = vld [vmem:[%s1 + $0x48] sm:$0xf]
  %v82 = vld [vmem:[%s1 + $0x4c] sm:$0xf]
  %v83 = vld [vmem:[%s1 + $0x50] sm:$0xf]
  %v84 = vld [vmem:[%s1 + $0x54] sm:$0xf]
  %v85 = vld [vmem:[%s1 + $0x58] sm:$0xf]
  %v86 = vld [vmem:[%s1 + $0x5c] sm:$0xf]
  %v87 = vld [vmem:[%s1 + $0x60] sm:$0xf]
  %v88 = vld [vmem:[%s1 + $0x64] sm:$0xf]
  %v89 = vld [vmem:[%s1 + $0x68] sm:$0xf]
  %v90 = vld [vmem:[%s1 + $0x6c] sm:$0xf]
  %v91 = vld [vmem:[%s1 + $0x70] sm:$0xf]
  %v92 = vld [vmem:[%s1 + $0x74] sm:$0xf]
  %v93 = vld [vmem:[%s1 + $0x78] sm:$0xf]
  %v94 = vld [vmem:[%s1 + $0x7c] sm:$0xf]
  %v95 = vld [vmem:[%s1 + $0x80] sm:$0xf]
  %v96 = vld [vmem:[%s1 + $0x84] sm:$0xf]
  %v97 = vld [vmem:[%s1 + $0x88] sm:$0xf]
  %v98 = vld [vmem:[%s1 + $0x8c] sm:$0xf]
  %v99 = vld [vmem:[%s1 + $0x90] sm:$0xf]
  %v100 = vld [vmem:[%s1 + $0x94] sm:$0xf]
  %v101 = vld [vmem:[%s1 + $0x98] sm:$0xf]
  %v102 = vld [vmem:[%s1 + $0x9c] sm:$0xf]
  %v103 = vld [vmem:[%s1 + $0xa0] sm:$0xf]
  %v104 = vld [vmem:[%s1 + $0xa4] sm:$0xf]
  %v105 = vld [vmem:[%s1 + $0xa8] sm:$0xf]
  %v106 = vld [vmem:[%s1 + $0xac] sm:$0xf]
  %v107 = vld [vmem:[%s1 + $0xb0] sm:$0xf]
  %v108 = vld [vmem:[%s1 + $0xb4] sm:$0xf]
  %v109 = vld [vmem:[%s1 + $0xb8] sm:$0xf]
  %v110 = vld [vmem:[%s1 + $0xbc] sm:$0xf]
  %v111 = vld [vmem:[%s1 + $0xc0] sm:$0xf]
  %v112 = vld [vmem:[%s1 + $0xc4] sm:$0xf]
  %v113 = vld [vmem:[%s1 + $0xc8] sm:$0xf]
  %v114 = vld [vmem:[%s1 + $0xcc] sm:$0xf]
  %v115 = vld [vmem:[%s1 + $0xd0] sm:$0xf]
  %v116 = vld [vmem:[%s1 + $0xd4] sm:$0xf]
  %v117 = vld [vmem:[%s1 + $0xd8] sm:$0xf]
  %v118 = vld [vmem:[%s1 + $0xdc] sm:$0xf]
  %v119 = vld [vmem:[%s1 + $0xe0] sm:$0xf]
  %v120 = vld [vmem:[%s1 + $0xe4] sm:$0xf]
  %v121 = vld [vmem:[%s1 + $0xe8] sm:$0xf]
  %v122 = vld [vmem:[%s1 + $0xec] sm:$0xf]
  %v123 = vld [vmem:[%s1 + $0xf0] sm:$0xf]
  %v124 = vld [vmem:[%s1 + $0xf4] sm:$0xf]
  %v125 = vld [vmem:[%s1 + $0xf8] sm:$0xf]
  %v126 = vld [vmem:[%s1 + $0xfc] sm:$0xf]
  %v127 = vld [vmem:[%s1 + $0x100] sm:$0xf]
  %v128 = vld [vmem:[%s1 + $0x104] sm:$0xf]
  %v129 = vld [vmem:[%s1 + $0x108] sm:$0xf]
  %v130 = vld [vmem:[%s1 + $0x10c] sm:$0xf]
  %v131 = vld [vmem:[%s1 + $0x110] sm:$0xf]
  %v132 = vld [vmem:[%s1 + $0x114] sm:$0xf]
  %v133 = vld [vmem:[%s1 + $0x118] sm:$0xf]
  %v134 = vld [vmem:[%s1 + $0x11c] sm:$0xf]
  %v135 = vld [vmem:[%s2] sm:$0x1]
  %v137 = vlaneseq
  %v138 = vshrl.u32 %v137, 7
  %v139 = vsub.s32 0, %v138
  %v140 = vrot.slane %v135, %v139
  %v190 = vunpack.c.l.b16 %v15
  %v191 = vunpack.c.h.b16 %v15
  %v192 = vunpack.c.l.b16 %v16
  %v193 = vunpack.c.h.b16 %v16
  %v194 = vunpack.c.l.b16 %v17
  %v195 = vunpack.c.l.b16 %v18
  %v196 = vunpack.c.h.b16 %v18
  %v197 = vunpack.c.l.b16 %v19
  %v198 = vunpack.c.h.b16 %v19
  %v199 = vunpack.c.l.b16 %v20
  %v200 = vunpack.c.l.b16 %v21
  %v201 = vunpack.c.h.b16 %v21
  %v202 = vunpack.c.l.b16 %v22
  %v203 = vunpack.c.h.b16 %v22
  %v204 = vunpack.c.l.b16 %v23
  %v205 = vunpack.c.l.b16 %v24
  %v206 = vunpack.c.h.b16 %v24
  %v207 = vunpack.c.l.b16 %v25
  %v208 = vunpack.c.h.b16 %v25
  %v209 = vunpack.c.l.b16 %v26
  %v210 = vunpack.c.l.b16 %v27
  %v211 = vunpack.c.h.b16 %v27
  %v212 = vunpack.c.l.b16 %v28
  %v213 = vunpack.c.h.b16 %v28
  %v214 = vunpack.c.l.b16 %v29
  %v215 = vunpack.c.l.b16 %v30
  %v216 = vunpack.c.h.b16 %v30
  %v217 = vunpack.c.l.b16 %v31
  %v218 = vunpack.c.h.b16 %v31
  %v219 = vunpack.c.l.b16 %v32
  %v220 = vunpack.c.l.b16 %v33
  %v221 = vunpack.c.h.b16 %v33
  %v222 = vunpack.c.l.b16 %v34
  %v223 = vunpack.c.h.b16 %v34
  %v224 = vunpack.c.l.b16 %v35
  %v225 = vunpack.c.l.b16 %v36
  %v226 = vunpack.c.h.b16 %v36
  %v227 = vunpack.c.l.b16 %v37
  %v228 = vunpack.c.h.b16 %v37
  %v229 = vunpack.c.l.b16 %v38
  %v230 = vunpack.c.l.b16 %v39
  %v231 = vunpack.c.h.b16 %v39
  %v232 = vunpack.c.l.b16 %v40
  %v233 = vunpack.c.h.b16 %v40
  %v234 = vunpack.c.l.b16 %v41
  %v235 = vunpack.c.l.b16 %v42
  %v236 = vunpack.c.h.b16 %v42
  %v237 = vunpack.c.l.b16 %v43
  %v238 = vunpack.c.h.b16 %v43
  %v239 = vunpack.c.l.b16 %v44
  %v240 = vunpack.c.l.b16 %v45
  %v241 = vunpack.c.h.b16 %v45
  %v242 = vunpack.c.l.b16 %v46
  %v243 = vunpack.c.h.b16 %v46
  %v244 = vunpack.c.l.b16 %v47
  %v245 = vunpack.c.l.b16 %v48
  %v246 = vunpack.c.h.b16 %v48
  %v247 = vunpack.c.l.b16 %v49
  %v248 = vunpack.c.h.b16 %v49
  %v249 = vunpack.c.l.b16 %v50
  %v250 = vunpack.c.l.b16 %v51
  %v251 = vunpack.c.h.b16 %v51
  %v252 = vunpack.c.l.b16 %v52
  %v253 = vunpack.c.h.b16 %v52
  %v254 = vunpack.c.l.b16 %v53
  %v255 = vunpack.c.l.b16 %v54
  %v256 = vunpack.c.h.b16 %v54
  %v257 = vunpack.c.l.b16 %v55
  %v258 = vunpack.c.h.b16 %v55
  %v259 = vunpack.c.l.b16 %v56
  %v260 = vunpack.c.l.b16 %v57
  %v261 = vunpack.c.h.b16 %v57
  %v262 = vunpack.c.l.b16 %v58
  %v263 = vunpack.c.h.b16 %v58
  %v264 = vunpack.c.l.b16 %v59
  %v265 = vunpack.c.l.b16 %v60
  %v266 = vunpack.c.h.b16 %v60
  %v267 = vunpack.c.l.b16 %v61
  %v268 = vunpack.c.h.b16 %v61
  %v269 = vunpack.c.l.b16 %v62
  %v270 = vpack.c.b16 %v195, %v190
  %v271 = vpack.c.b16 %v196, %v191
  %v272 = vpack.c.b16 %v197, %v192
  %v273 = vpack.c.b16 %v198, %v193
  %v274 = vpack.c.b16 %v199, %v194
  %v275 = vpack.c.b16 %v205, %v200
  %v276 = vpack.c.b16 %v206, %v201
  %v277 = vpack.c.b16 %v207, %v202
  %v278 = vpack.c.b16 %v208, %v203
  %v279 = vpack.c.b16 %v209, %v204
  %v280 = vpack.c.b16 %v215, %v210
  %v281 = vpack.c.b16 %v216, %v211
  %v282 = vpack.c.b16 %v217, %v212
  %v283 = vpack.c.b16 %v218, %v213
  %v284 = vpack.c.b16 %v219, %v214
  %v285 = vpack.c.b16 %v225, %v220
  %v286 = vpack.c.b16 %v226, %v221
  %v287 = vpack.c.b16 %v227, %v222
  %v288 = vpack.c.b16 %v228, %v223
  %v289 = vpack.c.b16 %v229, %v224
  %v290 = vpack.c.b16 %v235, %v230
  %v291 = vpack.c.b16 %v236, %v231
  %v292 = vpack.c.b16 %v237, %v232
  %v293 = vpack.c.b16 %v238, %v233
  %v294 = vpack.c.b16 %v239, %v234
  %v295 = vpack.c.b16 %v245, %v240
  %v296 = vpack.c.b16 %v246, %v241
  %v297 = vpack.c.b16 %v247, %v242
  %v298 = vpack.c.b16 %v248, %v243
  %v299 = vpack.c.b16 %v249, %v244
  %v300 = vpack.c.b16 %v255, %v250
  %v301 = vpack.c.b16 %v256, %v251
  %v302 = vpack.c.b16 %v257, %v252
  %v303 = vpack.c.b16 %v258, %v253
  %v304 = vpack.c.b16 %v259, %v254
  %v305 = vpack.c.b16 %v265, %v260
  %v306 = vpack.c.b16 %v266, %v261
  %v307 = vpack.c.b16 %v267, %v262
  %v308 = vpack.c.b16 %v268, %v263
  %v309 = vpack.c.b16 %v269, %v264
  %v414 = vunpack.c.l.b16 %v63
  %v415 = vunpack.c.l.b16 %v64
  %v416 = vunpack.c.l.b16 %v65
  %v417 = vunpack.c.l.b16 %v66
  %v418 = vunpack.c.l.b16 %v67
  %v419 = vunpack.c.l.b16 %v68
  %v420 = vunpack.c.l.b16 %v69
  %v421 = vunpack.c.l.b16 %v70
  %v422 = vunpack.c.l.b16 %v71
  %v423 = vunpack.c.l.b16 %v72
  %v424 = vunpack.c.l.b16 %v73
  %v425 = vunpack.c.l.b16 %v74
  %v426 = vunpack.c.l.b16 %v75
  %v427 = vunpack.c.l.b16 %v76
  %v428 = vunpack.c.l.b16 %v77
  %v429 = vunpack.c.l.b16 %v78
  %v430 = vunpack.c.l.b16 %v79
  %v431 = vunpack.c.l.b16 %v80
  %v432 = vunpack.c.l.b16 %v81
  %v433 = vunpack.c.l.b16 %v82
  %v434 = vunpack.c.l.b16 %v83
  %v435 = vunpack.c.l.b16 %v84
  %v436 = vunpack.c.l.b16 %v85
  %v437 = vunpack.c.l.b16 %v86
  %v438 = vunpack.c.l.b16 %v87
  %v439 = vunpack.c.l.b16 %v88
  %v440 = vunpack.c.l.b16 %v89
  %v441 = vunpack.c.l.b16 %v90
  %v442 = vunpack.c.l.b16 %v91
  %v443 = vunpack.c.l.b16 %v92
  %v444 = vunpack.c.l.b16 %v93
  %v445 = vunpack.c.l.b16 %v94
  %v446 = vunpack.c.l.b16 %v95
  %v447 = vunpack.c.l.b16 %v96
  %v448 = vunpack.c.l.b16 %v97
  %v449 = vunpack.c.l.b16 %v98
  %v450 = vunpack.c.l.b16 %v99
  %v451 = vunpack.c.l.b16 %v100
  %v452 = vunpack.c.l.b16 %v101
  %v453 = vunpack.c.l.b16 %v102
  %v454 = vunpack.c.l.b16 %v103
  %v455 = vunpack.c.l.b16 %v104
  %v456 = vunpack.c.l.b16 %v105
  %v457 = vunpack.c.l.b16 %v106
  %v458 = vunpack.c.l.b16 %v107
  %v459 = vunpack.c.l.b16 %v108
  %v460 = vunpack.c.l.b16 %v109
  %v461 = vunpack.c.l.b16 %v110
  %v462 = vunpack.c.l.b16 %v111
  %v463 = vunpack.c.l.b16 %v112
  %v464 = vunpack.c.l.b16 %v113
  %v465 = vunpack.c.l.b16 %v114
  %v466 = vunpack.c.l.b16 %v115
  %v467 = vunpack.c.l.b16 %v116
  %v468 = vunpack.c.l.b16 %v117
  %v469 = vunpack.c.l.b16 %v118
  %v470 = vunpack.c.l.b16 %v119
  %v471 = vunpack.c.l.b16 %v120
  %v472 = vunpack.c.l.b16 %v121
  %v473 = vunpack.c.l.b16 %v122
  %v474 = vunpack.c.l.b16 %v123
  %v475 = vunpack.c.l.b16 %v124
  %v476 = vunpack.c.l.b16 %v125
  %v477 = vunpack.c.l.b16 %v126
  %v478 = vunpack.c.l.b16 %v127
  %v479 = vunpack.c.l.b16 %v128
  %v480 = vunpack.c.l.b16 %v129
  %v481 = vunpack.c.l.b16 %v130
  %v482 = vunpack.c.l.b16 %v131
  %v483 = vunpack.c.l.b16 %v132
  %v484 = vunpack.c.l.b16 %v133
  %v485 = vunpack.c.l.b16 %v134
  %v486 = vpack.c.b16 %v415, %v414
  %v487 = vpack.c.b16 %v417, %v416
  %v488 = vpack.c.b16 %v419, %v418
  %v489 = vpack.c.b16 %v421, %v420
  %v490 = vpack.c.b16 %v423, %v422
  %v491 = vpack.c.b16 %v425, %v424
  %v492 = vpack.c.b16 %v427, %v426
  %v493 = vpack.c.b16 %v429, %v428
  %v494 = vpack.c.b16 %v431, %v430
  %v495 = vpack.c.b16 %v433, %v432
  %v496 = vpack.c.b16 %v435, %v434
  %v497 = vpack.c.b16 %v437, %v436
  %v498 = vpack.c.b16 %v439, %v438
  %v499 = vpack.c.b16 %v441, %v440
  %v500 = vpack.c.b16 %v443, %v442
  %v501 = vpack.c.b16 %v445, %v444
  %v502 = vpack.c.b16 %v447, %v446
  %v503 = vpack.c.b16 %v449, %v448
  %v504 = vpack.c.b16 %v451, %v450
  %v505 = vpack.c.b16 %v453, %v452
  %v506 = vpack.c.b16 %v455, %v454
  %v507 = vpack.c.b16 %v457, %v456
  %v508 = vpack.c.b16 %v459, %v458
  %v509 = vpack.c.b16 %v461, %v460
  %v510 = vpack.c.b16 %v463, %v462
  %v511 = vpack.c.b16 %v465, %v464
  %v512 = vpack.c.b16 %v467, %v466
  %v513 = vpack.c.b16 %v469, %v468
  %v514 = vpack.c.b16 %v471, %v470
  %v515 = vpack.c.b16 %v473, %v472
  %v516 = vpack.c.b16 %v475, %v474
  %v517 = vpack.c.b16 %v477, %v476
  %v518 = vpack.c.b16 %v479, %v478
  %v519 = vpack.c.b16 %v481, %v480
  %v520 = vpack.c.b16 %v483, %v482
  %v521 = vpack.c.b16 %v485, %v484
  %vm558 = vcmask 523264
  %v560 = vsel %vm558, %v274, 0
  %v563 = vsel %vm558, %v279, 0
  %v566 = vsel %vm558, %v284, 0
  %v569 = vsel %vm558, %v289, 0
  %v572 = vsel %vm558, %v294, 0
  %v575 = vsel %vm558, %v299, 0
  %v578 = vsel %vm558, %v304, 0
  %v581 = vsel %vm558, %v309, 0
  %583 = vmatprep.subr.bf16.mxu0 0
  %584 = vmatpush1.bf16.msra.mxu0 %v486
  %585 = vmatprep.subr.bf16.mxu0 0
  %586 = vmatpush1.bf16.msra.mxu0 %v487
  %587 = vmatprep.subr.bf16.mxu0 0
  %588 = vmatpush1.bf16.msra.mxu0 %v488
  %589 = vmatprep.subr.bf16.mxu0 0
  %590 = vmatpush1.bf16.msra.mxu0 %v489
  %591 = vmatprep.subr.bf16.mxu0 0
  %592 = vmatpush1.bf16.msra.mxu0 %v490
  %593 = vmatprep.subr.bf16.mxu0 0
  %594 = vmatpush1.bf16.msra.mxu0 %v491
  %595 = vmatprep.subr.bf16.mxu0 0
  %596 = vmatpush1.bf16.msra.mxu0 %v492
  %597 = vmatprep.subr.bf16.mxu0 0
  %598 = vmatpush1.bf16.msra.mxu0 %v493
  %599 = vmatprep.subr.bf16.mxu0 0
  %600 = vmatpush1.bf16.msra.mxu0 %v494
  %601 = vmatprep.subr.bf16.mxu0 0
  %602 = vmatpush1.bf16.msra.mxu0 %v495
  %603 = vmatprep.subr.bf16.mxu0 0
  %604 = vmatpush1.bf16.msra.mxu0 %v496
  %605 = vmatprep.subr.bf16.mxu0 0
  %606 = vmatpush1.bf16.msra.mxu0 %v497
  %607 = vmatprep.subr.bf16.mxu0 0
  %608 = vmatpush1.bf16.msra.mxu0 %v498
  %609 = vmatprep.subr.bf16.mxu0 0
  %610 = vmatpush1.bf16.msra.mxu0 %v499
  %611 = vmatprep.subr.bf16.mxu0 0
  %612 = vmatpush1.bf16.msra.mxu0 %v500
  %613 = vmatprep.subr.bf16.mxu0 0
  %614 = vmatpush1.bf16.msra.mxu0 %v501
  %615 = vmatprep.mubr.bf16.mxu0 %v271
  %616 = vmatmul.mubr.bf16.gmra.mrb[0].mxu0 %v270
  %v617 = vpop.f32.mrb[0].mxu0
  %v618 = vadd.f32 %v140, %v617
  %v619 = vpop.f32.mrb[0].mxu0
  %v620 = vpop.f32.mrb[0].mxu0
  %v621 = vadd.f32 %v140, %v620
  %v622 = vpop.f32.mrb[0].mxu0
  %623 = vmatprep.mubr.bf16.mxu0 %v276
  %624 = vmatmul.mubr.bf16.gmra.mrb[0].mxu0 %v275
  %v625 = vpop.f32.mrb[0].mxu0
  %v626 = vadd.f32 %v140, %v625
  %v627 = vpop.f32.mrb[0].mxu0
  %v628 = vpop.f32.mrb[0].mxu0
  %v629 = vadd.f32 %v140, %v628
  %v630 = vpop.f32.mrb[0].mxu0
  %631 = vmatprep.mubr.bf16.mxu0 %v281
  %632 = vmatmul.mubr.bf16.gmra.mrb[0].mxu0 %v280
  %v633 = vpop.f32.mrb[0].mxu0
  %v634 = vadd.f32 %v140, %v633
  %v635 = vpop.f32.mrb[0].mxu0
  %v636 = vpop.f32.mrb[0].mxu0
  %v637 = vadd.f32 %v140, %v636
  %v638 = vpop.f32.mrb[0].mxu0
  %639 = vmatprep.mubr.bf16.mxu0 %v286
  %640 = vmatmul.mubr.bf16.gmra.mrb[0].mxu0 %v285
  %v641 = vpop.f32.mrb[0].mxu0
  %v642 = vadd.f32 %v140, %v641
  %v643 = vpop.f32.mrb[0].mxu0
  %v644 = vpop.f32.mrb[0].mxu0
  %v645 = vadd.f32 %v140, %v644
  %v646 = vpop.f32.mrb[0].mxu0
  %647 = vmatprep.mubr.bf16.mxu0 %v291
  %648 = vmatmul.mubr.bf16.gmra.mrb[0].mxu0 %v290
  %v649 = vpop.f32.mrb[0].mxu0
  %v650 = vadd.f32 %v140, %v649
  %v651 = vpop.f32.mrb[0].mxu0
  %v652 = vpop.f32.mrb[0].mxu0
  %v653 = vadd.f32 %v140, %v652
  %v654 = vpop.f32.mrb[0].mxu0
  %655 = vmatprep.mubr.bf16.mxu0 %v296
  %656 = vmatmul.mubr.bf16.gmra.mrb[0].mxu0 %v295
  %v657 = vpop.f32.mrb[0].mxu0
  %v658 = vadd.f32 %v140, %v657
  %v659 = vpop.f32.mrb[0].mxu0
  %v660 = vpop.f32.mrb[0].mxu0
  %v661 = vadd.f32 %v140, %v660
  %v662 = vpop.f32.mrb[0].mxu0
  %663 = vmatprep.mubr.bf16.mxu0 %v301
  %664 = vmatmul.mubr.bf16.gmra.mrb[0].mxu0 %v300
  %v665 = vpop.f32.mrb[0].mxu0
  %v666 = vadd.f32 %v140, %v665
  %v667 = vpop.f32.mrb[0].mxu0
  %v668 = vpop.f32.mrb[0].mxu0
  %v669 = vadd.f32 %v140, %v668
  %v670 = vpop.f32.mrb[0].mxu0
  %671 = vmatprep.mubr.bf16.mxu0 %v306
  %672 = vmatmul.mubr.bf16.gmra.mrb[0].mxu0 %v305
  %v673 = vpop.f32.mrb[0].mxu0
  %v674 = vadd.f32 %v140, %v673
  %v675 = vpop.f32.mrb[0].mxu0
  %v676 = vpop.f32.mrb[0].mxu0
  %v677 = vadd.f32 %v140, %v676
  %v678 = vpop.f32.mrb[0].mxu0
  %679 = vdwg.mxu0
  %680 = vmatprep.subr.bf16.mxu0 0
  %681 = vmatpush1.bf16.msra.mxu0 %v502
  %682 = vmatprep.subr.bf16.mxu0 0
  %683 = vmatpush1.bf16.msra.mxu0 %v503
  %684 = vmatprep.subr.bf16.mxu0 0
  %685 = vmatpush1.bf16.msra.mxu0 %v504
  %686 = vmatprep.subr.bf16.mxu0 0
  %687 = vmatpush1.bf16.msra.mxu0 %v505
  %688 = vmatprep.subr.bf16.mxu0 0
  %689 = vmatpush1.bf16.msra.mxu0 %v506
  %690 = vmatprep.subr.bf16.mxu0 0
  %691 = vmatpush1.bf16.msra.mxu0 %v507
  %692 = vmatprep.subr.bf16.mxu0 0
  %693 = vmatpush1.bf16.msra.mxu0 %v508
  %694 = vmatprep.subr.bf16.mxu0 0
  %695 = vmatpush1.bf16.msra.mxu0 %v509
  %696 = vmatprep.subr.bf16.mxu0 0
  %697 = vmatpush1.bf16.msra.mxu0 %v510
  %698 = vmatprep.subr.bf16.mxu0 0
  %699 = vmatpush1.bf16.msra.mxu0 %v511
  %700 = vmatprep.subr.bf16.mxu0 0
  %701 = vmatpush1.bf16.msra.mxu0 %v512
  %702 = vmatprep.subr.bf16.mxu0 0
  %703 = vmatpush1.bf16.msra.mxu0 %v513
  %704 = vmatprep.subr.bf16.mxu0 0
  %705 = vmatpush1.bf16.msra.mxu0 %v514
  %706 = vmatprep.subr.bf16.mxu0 0
  %707 = vmatpush1.bf16.msra.mxu0 %v515
  %708 = vmatprep.subr.bf16.mxu0 0
  %709 = vmatpush1.bf16.msra.mxu0 %v516
  %710 = vmatprep.subr.bf16.mxu0 0
  %711 = vmatpush1.bf16.msra.mxu0 %v517
  %712 = vmatprep.mubr.bf16.mxu0 %v273
  %713 = vmatmul.mubr.bf16.gmra.mrb[0].mxu0 %v272
  %v714 = vpop.f32.mrb[0].mxu0
  %v715 = vadd.f32 %v618, %v714
  %v716 = vpop.f32.mrb[0].mxu0
  %v717 = vpop.f32.mrb[0].mxu0
  %v718 = vadd.f32 %v621, %v717
  %v719 = vpop.f32.mrb[0].mxu0
  %720 = vmatprep.mubr.bf16.mxu0 %v278
  %721 = vmatmul.mubr.bf16.gmra.mrb[0].mxu0 %v277
  %v722 = vpop.f32.mrb[0].mxu0
  %v723 = vadd.f32 %v626, %v722
  %v724 = vpop.f32.mrb[0].mxu0
  %v725 = vpop.f32.mrb[0].mxu0
  %v726 = vadd.f32 %v629, %v725
  %v727 = vpop.f32.mrb[0].mxu0
  %728 = vmatprep.mubr.bf16.mxu0 %v283
  %729 = vmatmul.mubr.bf16.gmra.mrb[0].mxu0 %v282
  %v730 = vpop.f32.mrb[0].mxu0
  %v731 = vadd.f32 %v634, %v730
  %v732 = vpop.f32.mrb[0].mxu0
  %v733 = vpop.f32.mrb[0].mxu0
  %v734 = vadd.f32 %v637, %v733
  %v735 = vpop.f32.mrb[0].mxu0
  %736 = vmatprep.mubr.bf16.mxu0 %v288
  %737 = vmatmul.mubr.bf16.gmra.mrb[0].mxu0 %v287
  %v738 = vpop.f32.mrb[0].mxu0
  %v739 = vadd.f32 %v642, %v738
  %v740 = vpop.f32.mrb[0].mxu0
  %v741 = vpop.f32.mrb[0].mxu0
  %v742 = vadd.f32 %v645, %v741
  %v743 = vpop.f32.mrb[0].mxu0
  %744 = vmatprep.mubr.bf16.mxu0 %v293
  %745 = vmatmul.mubr.bf16.gmra.mrb[0].mxu0 %v292
  %v746 = vpop.f32.mrb[0].mxu0
  %v747 = vadd.f32 %v650, %v746
  %v748 = vpop.f32.mrb[0].mxu0
  %v749 = vpop.f32.mrb[0].mxu0
  %v750 = vadd.f32 %v653, %v749
  %v751 = vpop.f32.mrb[0].mxu0
  %752 = vmatprep.mubr.bf16.mxu0 %v298
  %753 = vmatmul.mubr.bf16.gmra.mrb[0].mxu0 %v297
  %v754 = vpop.f32.mrb[0].mxu0
  %v755 = vadd.f32 %v658, %v754
  %v756 = vpop.f32.mrb[0].mxu0
  %v757 = vpop.f32.mrb[0].mxu0
  %v758 = vadd.f32 %v661, %v757
  %v759 = vpop.f32.mrb[0].mxu0
  %760 = vmatprep.mubr.bf16.mxu0 %v303
  %761 = vmatmul.mubr.bf16.gmra.mrb[0].mxu0 %v302
  %v762 = vpop.f32.mrb[0].mxu0
  %v763 = vadd.f32 %v666, %v762
  %v764 = vpop.f32.mrb[0].mxu0
  %v765 = vpop.f32.mrb[0].mxu0
  %v766 = vadd.f32 %v669, %v765
  %v767 = vpop.f32.mrb[0].mxu0
  %768 = vmatprep.mubr.bf16.mxu0 %v308
  %769 = vmatmul.mubr.bf16.gmra.mrb[0].mxu0 %v307
  %v770 = vpop.f32.mrb[0].mxu0
  %v771 = vadd.f32 %v674, %v770
  %v772 = vpop.f32.mrb[0].mxu0
  %v773 = vpop.f32.mrb[0].mxu0
  %v774 = vadd.f32 %v677, %v773
  %v775 = vpop.f32.mrb[0].mxu0
  %776 = vdwg.mxu0
  %777 = vmatprep.subr.bf16.mxu0 0
  %778 = vmatpush1.bf16.msra.mxu0 %v518
  %779 = vmatprep.subr.bf16.mxu0 0
  %780 = vmatpush1.bf16.msra.mxu0 %v519
  %781 = vmatprep.subr.bf16.mxu0 0
  %782 = vmatpush1.bf16.msra.mxu0 %v520
  %783 = vmatprep.subr.bf16.mxu0 0
  %784 = vmatpush1.bf16.msra.mxu0 %v521
  %785 = vmatprep.subr.bf16.mxu0 0
  %786 = vmatpush1.bf16.msra.mxu0 0
  %787 = vmatprep.subr.bf16.mxu0 0
  %788 = vmatpush1.bf16.msra.mxu0 0
  %789 = vmatprep.subr.bf16.mxu0 0
  %790 = vmatpush1.bf16.msra.mxu0 0
  %791 = vmatprep.subr.bf16.mxu0 0
  %792 = vmatpush1.bf16.msra.mxu0 0
  %793 = vmatprep.subr.bf16.mxu0 0
  %794 = vmatpush1.bf16.msra.mxu0 0
  %795 = vmatprep.subr.bf16.mxu0 0
  %796 = vmatpush1.bf16.msra.mxu0 0
  %797 = vmatprep.subr.bf16.mxu0 0
  %798 = vmatpush1.bf16.msra.mxu0 0
  %799 = vmatprep.subr.bf16.mxu0 0
  %800 = vmatpush1.bf16.msra.mxu0 0
  %801 = vmatprep.subr.bf16.mxu0 0
  %802 = vmatpush1.bf16.msra.mxu0 0
  %803 = vmatprep.subr.bf16.mxu0 0
  %804 = vmatpush1.bf16.msra.mxu0 0
  %805 = vmatprep.subr.bf16.mxu0 0
  %806 = vmatpush1.bf16.msra.mxu0 0
  %807 = vmatprep.subr.bf16.mxu0 0
  %808 = vmatpush1.bf16.msra.mxu0 0
  %809 = vmatprep.mubr.bf16.mxu0 0
  %810 = vmatmul.mubr.bf16.gmra.mrb[0].mxu0 %v560
  %v811 = vpop.f32.mrb[0].mxu0
  %v812 = vadd.f32 %v715, %v811
  %v813 = vpop.f32.mrb[0].mxu0
  %v814 = vpop.f32.mrb[0].mxu0
  %v815 = vadd.f32 %v718, %v814
  %v816 = vpop.f32.mrb[0].mxu0
  %817 = vmatprep.mubr.bf16.mxu0 0
  %818 = vmatmul.mubr.bf16.gmra.mrb[0].mxu0 %v563
  %v819 = vpop.f32.mrb[0].mxu0
  %v820 = vadd.f32 %v723, %v819
  %v821 = vpop.f32.mrb[0].mxu0
  %v822 = vpop.f32.mrb[0].mxu0
  %v823 = vadd.f32 %v726, %v822
  %v824 = vpop.f32.mrb[0].mxu0
  %825 = vmatprep.mubr.bf16.mxu0 0
  %826 = vmatmul.mubr.bf16.gmra.mrb[0].mxu0 %v566
  %v827 = vpop.f32.mrb[0].mxu0
  %v828 = vadd.f32 %v731, %v827
  %v829 = vpop.f32.mrb[0].mxu0
  %v830 = vpop.f32.mrb[0].mxu0
  %v831 = vadd.f32 %v734, %v830
  %v832 = vpop.f32.mrb[0].mxu0
  %833 = vmatprep.mubr.bf16.mxu0 0
  %834 = vmatmul.mubr.bf16.gmra.mrb[0].mxu0 %v569
  %v835 = vpop.f32.mrb[0].mxu0
  %v836 = vadd.f32 %v739, %v835
  %v837 = vpop.f32.mrb[0].mxu0
  %v838 = vpop.f32.mrb[0].mxu0
  %v839 = vadd.f32 %v742, %v838
  %v840 = vpop.f32.mrb[0].mxu0
  %841 = vmatprep.mubr.bf16.mxu0 0
  %842 = vmatmul.mubr.bf16.gmra.mrb[0].mxu0 %v572
  %v843 = vpop.f32.mrb[0].mxu0
  %v844 = vadd.f32 %v747, %v843
  %v845 = vpop.f32.mrb[0].mxu0
  %v846 = vpop.f32.mrb[0].mxu0
  %v847 = vadd.f32 %v750, %v846
  %v848 = vpop.f32.mrb[0].mxu0
  %849 = vmatprep.mubr.bf16.mxu0 0
  %850 = vmatmul.mubr.bf16.gmra.mrb[0].mxu0 %v575
  %v851 = vpop.f32.mrb[0].mxu0
  %v852 = vadd.f32 %v755, %v851
  %v853 = vpop.f32.mrb[0].mxu0
  %v854 = vpop.f32.mrb[0].mxu0
  %v855 = vadd.f32 %v758, %v854
  %v856 = vpop.f32.mrb[0].mxu0
  %857 = vmatprep.mubr.bf16.mxu0 0
  %858 = vmatmul.mubr.bf16.gmra.mrb[0].mxu0 %v578
  %v859 = vpop.f32.mrb[0].mxu0
  %v860 = vadd.f32 %v763, %v859
  %v861 = vpop.f32.mrb[0].mxu0
  %v862 = vpop.f32.mrb[0].mxu0
  %v863 = vadd.f32 %v766, %v862
  %v864 = vpop.f32.mrb[0].mxu0
  %865 = vmatprep.mubr.bf16.mxu0 0
  %866 = vmatmul.mubr.bf16.gmra.mrb[0].mxu0 %v581
  %v867 = vpop.f32.mrb[0].mxu0
  %v868 = vadd.f32 %v771, %v867
  %v869 = vpop.f32.mrb[0].mxu0
  %v870 = vpop.f32.mrb[0].mxu0
  %v871 = vadd.f32 %v774, %v870
  %v872 = vpop.f32.mrb[0].mxu0
  %873 = vdwg.mxu0
  %v874 = vmax.f32 %v812, 0.0
  %v875 = vmax.f32 %v815, 0.0
  %v876 = vmax.f32 %v820, 0.0
  %v877 = vmax.f32 %v823, 0.0
  %v878 = vmax.f32 %v828, 0.0
  %v879 = vmax.f32 %v831, 0.0
  %v880 = vmax.f32 %v836, 0.0
  %v881 = vmax.f32 %v839, 0.0
  %v882 = vmax.f32 %v844, 0.0
  %v883 = vmax.f32 %v847, 0.0
  %v884 = vmax.f32 %v852, 0.0
  %v885 = vmax.f32 %v855, 0.0
  %v886 = vmax.f32 %v860, 0.0
  %v887 = vmax.f32 %v863, 0.0
  %v888 = vmax.f32 %v868, 0.0
  %v889 = vmax.f32 %v871, 0.0
  %v890 = vpack.c.bf16 %v875, %v874
  %v891 = vpack.c.bf16 %v877, %v876
  %v892 = vpack.c.bf16 %v879, %v878
  %v893 = vpack.c.bf16 %v881, %v880
  %v894 = vpack.c.bf16 %v883, %v882
  %v895 = vpack.c.bf16 %v885, %v884
  %v896 = vpack.c.bf16 %v887, %v886
  %v897 = vpack.c.bf16 %v889, %v888
  %v906 = vunpack.c.l.b16 %v890
  %v907 = vunpack.c.h.b16 %v890
  %v908 = vunpack.c.l.b16 %v891
  %v909 = vunpack.c.h.b16 %v891
  %v910 = vunpack.c.l.b16 %v892
  %v911 = vunpack.c.h.b16 %v892
  %v912 = vunpack.c.l.b16 %v893
  %v913 = vunpack.c.h.b16 %v893
  %v914 = vunpack.c.l.b16 %v894
  %v915 = vunpack.c.h.b16 %v894
  %v916 = vunpack.c.l.b16 %v895
  %v917 = vunpack.c.h.b16 %v895
  %v918 = vunpack.c.l.b16 %v896
  %v919 = vunpack.c.h.b16 %v896
  %v920 = vunpack.c.l.b16 %v897
  %v921 = vunpack.c.h.b16 %v897
  %v922 = vpack.c.b16 %v906, %v906
  %v923 = vpack.c.b16 %v907, %v907
  %v924 = vpack.c.b16 %v908, %v908
  %v925 = vpack.c.b16 %v909, %v909
  %v926 = vpack.c.b16 %v910, %v910
  %v927 = vpack.c.b16 %v911, %v911
  %v928 = vpack.c.b16 %v912, %v912
  %v929 = vpack.c.b16 %v913, %v913
  %v930 = vpack.c.b16 %v914, %v914
  %v931 = vpack.c.b16 %v915, %v915
  %v932 = vpack.c.b16 %v916, %v916
  %v933 = vpack.c.b16 %v917, %v917
  %v934 = vpack.c.b16 %v918, %v918
  %v935 = vpack.c.b16 %v919, %v919
  %v936 = vpack.c.b16 %v920, %v920
  %v937 = vpack.c.b16 %v921, %v921
  %954 = vst [vmem:[%s3] sm:$0xf] %v922
  %955 = vst [vmem:[%s3 + $0x4] sm:$0xf] %v923
  %956 = vst [vmem:[%s3 + $0x8] sm:$0xf] %v924
  %957 = vst [vmem:[%s3 + $0xc] sm:$0xf] %v925
  %958 = vst [vmem:[%s3 + $0x10] sm:$0xf] %v926
  %959 = vst [vmem:[%s3 + $0x14] sm:$0xf] %v927
  %960 = vst [vmem:[%s3 + $0x18] sm:$0xf] %v928
  %961 = vst [vmem:[%s3 + $0x1c] sm:$0xf] %v929
  %962 = vst [vmem:[%s3 + $0x20] sm:$0xf] %v930
  %963 = vst [vmem:[%s3 + $0x24] sm:$0xf] %v931
  %964 = vst [vmem:[%s3 + $0x28] sm:$0xf] %v932
  %965 = vst [vmem:[%s3 + $0x2c] sm:$0xf] %v933
  %966 = vst [vmem:[%s3 + $0x30] sm:$0xf] %v934
  %967 = vst [vmem:[%s3 + $0x34] sm:$0xf] %v935
  %968 = vst [vmem:[%s3 + $0x38] sm:$0xf] %v936
  %969 = vst [vmem:[%s3 + $0x3c] sm:$0xf] %v937
  // Predicated region
  $region14: #{mobilefacenet_forward.4} parent=0 // pred_check
    _
  $region15: #{mobilefacenet_forward.4} parent=0 // pred_check_branch
    %971 = sbr.rel (0) target = $region17
  $region16: #{mobilefacenet_forward.4} parent=0 // pred_region
    _
  $region17: #{mobilefacenet_forward.4} parent=0 // pred_fallthru
    _
  // Predicated region
  $region18: #{mobilefacenet_forward.4} parent=0 // pred_check
    _
  $region19: #{mobilefacenet_forward.4} parent=0 // pred_check_branch
    %973 = sbr.rel (0) target = $region21
  $region20: #{mobilefacenet_forward.4} parent=0 // pred_region
    _
  $region21: #{mobilefacenet_forward.4} parent=0 // pred_fallthru
    _

// kernel: mobilefacenet_forward.5
$region0: #{mobilefacenet_forward.5}
  #allocation0 [shape = 'u32[]', space=smem, size = 0x4, offset = 0x4, fixed_abs, tag = 'smem constant byte address 0x4 - core index']
  #allocation1 [shape = 'u32[144,128]{1,0:T(1,128)}', space=vmem, size = 0x12000, scoped, tag = 'internal scratch']
  %s0 = inlined_call_operand.vmem [shape: bf16[128,128], index: 0, kind: input, shape index: {}]
  %s1 = inlined_call_operand.vmem [shape: bf16[9,32,128], index: 1, kind: input, shape index: {}]
  %s2 = inlined_call_operand.vmem [shape: bf16[9,128,256], index: 2, kind: input, shape index: {}]
  %s3 = inlined_call_operand.vmem [shape: f32[1,256], index: 3, kind: input, shape index: {}]
  %s4 = inlined_call_operand.vmem [shape: bf16[9,8,32], index: 4, kind: input, shape index: {}]
  %s5 = inlined_call_operand.vmem [shape: bf16[9,256,512], index: 5, kind: input, shape index: {}]
  %s6 = inlined_call_operand.vmem [shape: f32[1,512], index: 6, kind: input, shape index: {}]
  %s7 = inlined_call_operand.vmem [shape: bf16[2,8], index: 7, kind: input, shape index: {}]
  %s8 = inlined_call_operand.vmem [shape: bf16[512,128], index: 8, kind: input, shape index: {}]
  %s9 = inlined_call_operand.vmem [shape: f32[1,128], index: 9, kind: input, shape index: {}]
  %s10 = inlined_call_operand.vmem [shape: bf16[128,128], index: 10, kind: input, shape index: {}]
  %s11 = inlined_call_operand.vmem [shape: f32[1,128], index: 11, kind: input, shape index: {}]
  %s12 = inlined_call_operand.hbm [shape: f32[2,128], index: 12, kind: output, shape index: {}]
  %s13 = sld [smem:[#allocation0]]
  $region58: #{mobilefacenet_forward.5} parent=0
    _
  %s15 = ssub.s32 1, %s13
  %s16 = scalar_select 0, %s15, %s13
  $region1: #{mobilefacenet_forward.5} parent=0
    #allocation2 [shape = 'u8[1024]{0}', space=vmem, size = 0x400, scoped, tag = 'output window, operand 0, single buffered']
    #allocation3 [shape = 's32[1]{0}', space=sflag, size = 0x4, scoped, tag = 'scoped memory for mobilefacenet_forward.5']
    %17 = vsyncpa [#allocation3], 0
    // Predicated region
    $region2: #{mobilefacenet_forward.5} parent=1 // pred_check
      _
    $region3: #{mobilefacenet_forward.5} parent=1 // pred_check_branch
      %19 = sbr.rel (0) target = $region5
    $region4: #{mobilefacenet_forward.5} parent=1 // pred_region
      _
    $region5: #{mobilefacenet_forward.5} parent=1 // pred_fallthru
      _
    // Predicated region
    $region6: #{mobilefacenet_forward.5} parent=1 // pred_check
      _
    $region7: #{mobilefacenet_forward.5} parent=1 // pred_check_branch
      %21 = sbr.rel (0) target = $region9
    $region8: #{mobilefacenet_forward.5} parent=1 // pred_region
      _
    $region9: #{mobilefacenet_forward.5} parent=1 // pred_fallthru
      _
    // Predicated region
    $region10: #{mobilefacenet_forward.5} parent=1 // pred_check
      _
    $region11: #{mobilefacenet_forward.5} parent=1 // pred_check_branch
      %23 = sbr.rel (0) target = $region13
    $region12: #{mobilefacenet_forward.5} parent=1 // pred_region
      _
    $region13: #{mobilefacenet_forward.5} parent=1 // pred_fallthru
      _
    // Predicated region
    $region14: #{mobilefacenet_forward.5} parent=1 // pred_check
      _
    $region15: #{mobilefacenet_forward.5} parent=1 // pred_check_branch
      %25 = sbr.rel (0) target = $region17
    $region16: #{mobilefacenet_forward.5} parent=1 // pred_region
      _
    $region17: #{mobilefacenet_forward.5} parent=1 // pred_fallthru
      _
    // Predicated region
    $region18: #{mobilefacenet_forward.5} parent=1 // pred_check
      _
    $region19: #{mobilefacenet_forward.5} parent=1 // pred_check_branch
      %27 = sbr.rel (0) target = $region21
    $region20: #{mobilefacenet_forward.5} parent=1 // pred_region
      _
    $region21: #{mobilefacenet_forward.5} parent=1 // pred_fallthru
      _
    // Predicated region
    $region22: #{mobilefacenet_forward.5} parent=1 // pred_check
      _
    $region23: #{mobilefacenet_forward.5} parent=1 // pred_check_branch
      %29 = sbr.rel (0) target = $region25
    $region24: #{mobilefacenet_forward.5} parent=1 // pred_region
      _
    $region25: #{mobilefacenet_forward.5} parent=1 // pred_fallthru
      _
    // Predicated region
    $region26: #{mobilefacenet_forward.5} parent=1 // pred_check
      _
    $region27: #{mobilefacenet_forward.5} parent=1 // pred_check_branch
      %31 = sbr.rel (0) target = $region29
    $region28: #{mobilefacenet_forward.5} parent=1 // pred_region
      _
    $region29: #{mobilefacenet_forward.5} parent=1 // pred_fallthru
      _
    // Predicated region
    $region30: #{mobilefacenet_forward.5} parent=1 // pred_check
      _
    $region31: #{mobilefacenet_forward.5} parent=1 // pred_check_branch
      %33 = sbr.rel (0) target = $region33
    $region32: #{mobilefacenet_forward.5} parent=1 // pred_region
      _
    $region33: #{mobilefacenet_forward.5} parent=1 // pred_fallthru
      _
    // Predicated region
    $region34: #{mobilefacenet_forward.5} parent=1 // pred_check
      _
    $region35: #{mobilefacenet_forward.5} parent=1 // pred_check_branch
      %35 = sbr.rel (0) target = $region37
    $region36: #{mobilefacenet_forward.5} parent=1 // pred_region
      _
    $region37: #{mobilefacenet_forward.5} parent=1 // pred_fallthru
      _
    // Predicated region
    $region38: #{mobilefacenet_forward.5} parent=1 // pred_check
      _
    $region39: #{mobilefacenet_forward.5} parent=1 // pred_check_branch
      %37 = sbr.rel (0) target = $region41
    $region40: #{mobilefacenet_forward.5} parent=1 // pred_region
      _
    $region41: #{mobilefacenet_forward.5} parent=1 // pred_fallthru
      _
    // Predicated region
    $region42: #{mobilefacenet_forward.5} parent=1 // pred_check
      _
    $region43: #{mobilefacenet_forward.5} parent=1 // pred_check_branch
      %39 = sbr.rel (0) target = $region45
    $region44: #{mobilefacenet_forward.5} parent=1 // pred_region
      _
    $region45: #{mobilefacenet_forward.5} parent=1 // pred_fallthru
      _
    // Predicated region
    $region46: #{mobilefacenet_forward.5} parent=1 // pred_check
      _
    $region47: #{mobilefacenet_forward.5} parent=1 // pred_check_branch
      %41 = sbr.rel (0) target = $region49
    $region48: #{mobilefacenet_forward.5} parent=1 // pred_region
      _
    $region49: #{mobilefacenet_forward.5} parent=1 // pred_fallthru
      _
    %v43 = vld [vmem:[%s0] sm:$0xf]
    %v44 = vld [vmem:[%s0 + $0x4] sm:$0xf]
    %v45 = vld [vmem:[%s0 + $0x8] sm:$0xf]
    %v46 = vld [vmem:[%s0 + $0xc] sm:$0xf]
    %v47 = vld [vmem:[%s0 + $0x10] sm:$0xf]
    %v48 = vld [vmem:[%s0 + $0x14] sm:$0xf]
    %v49 = vld [vmem:[%s0 + $0x18] sm:$0xf]
    %v50 = vld [vmem:[%s0 + $0x1c] sm:$0xf]
    %v51 = vld [vmem:[%s0 + $0x20] sm:$0xf]
    %v52 = vld [vmem:[%s0 + $0x24] sm:$0xf]
    %v53 = vld [vmem:[%s0 + $0x28] sm:$0xf]
    %v54 = vld [vmem:[%s0 + $0x2c] sm:$0xf]
    %v55 = vld [vmem:[%s0 + $0x30] sm:$0xf]
    %v56 = vld [vmem:[%s0 + $0x34] sm:$0xf]
    %v57 = vld [vmem:[%s0 + $0x38] sm:$0xf]
    %v58 = vld [vmem:[%s0 + $0x3c] sm:$0xf]
    %v59 = vld [vmem:[%s1] sm:$0xf]
    %v60 = vld [vmem:[%s1 + $0x4] sm:$0xf]
    %v61 = vld [vmem:[%s1 + $0x8] sm:$0xf]
    %v62 = vld [vmem:[%s1 + $0xc] sm:$0xf]
    %v67 = vunpack.c.l.b16 %v59
    %v68 = vunpack.c.l.b16 %v60
    %v69 = vunpack.c.l.b16 %v61
    %v70 = vunpack.c.l.b16 %v62
    %v71 = vpack.c.b16 %v68, %v67
    %v72 = vpack.c.b16 %v70, %v69
    %v91 = vunpack.c.l.b16 %v43
    %v92 = vunpack.c.l.b16 %v44
    %v93 = vunpack.c.l.b16 %v45
    %v94 = vunpack.c.l.b16 %v46
    %v95 = vunpack.c.l.b16 %v47
    %v96 = vunpack.c.l.b16 %v48
    %v97 = vunpack.c.l.b16 %v49
    %v98 = vunpack.c.l.b16 %v50
    %v99 = vunpack.c.l.b16 %v51
    %v100 = vunpack.c.l.b16 %v52
    %v101 = vunpack.c.l.b16 %v53
    %v102 = vunpack.c.l.b16 %v54
    %v103 = vunpack.c.l.b16 %v55
    %v104 = vunpack.c.l.b16 %v56
    %v105 = vunpack.c.l.b16 %v57
    %v106 = vunpack.c.l.b16 %v58
    %v107 = vpack.c.b16 %v92, %v91
    %v108 = vpack.c.b16 %v94, %v93
    %v109 = vpack.c.b16 %v96, %v95
    %v110 = vpack.c.b16 %v98, %v97
    %v111 = vpack.c.b16 %v100, %v99
    %v112 = vpack.c.b16 %v102, %v101
    %v113 = vpack.c.b16 %v104, %v103
    %v114 = vpack.c.b16 %v106, %v105
    %123 = vmatprep.subr.bf16.mxu0 0
    %124 = vmatpush1.bf16.msra.mxu0 %v107
    %125 = vmatprep.subr.bf16.mxu0 0
    %126 = vmatpush1.bf16.msra.mxu0 %v108
    %127 = vmatprep.subr.bf16.mxu0 0
    %128 = vmatpush1.bf16.msra.mxu0 %v109
    %129 = vmatprep.subr.bf16.mxu0 0
    %130 = vmatpush1.bf16.msra.mxu0 %v110
    %131 = vmatprep.subr.bf16.mxu0 0
    %132 = vmatpush1.bf16.msra.mxu0 %v111
    %133 = vmatprep.subr.bf16.mxu0 0
    %134 = vmatpush1.bf16.msra.mxu0 %v112
    %135 = vmatprep.subr.bf16.mxu0 0
    %136 = vmatpush1.bf16.msra.mxu0 %v113
    %137 = vmatprep.subr.bf16.mxu0 0
    %138 = vmatpush1.bf16.msra.mxu0 %v114
    %139 = vmatprep.subr.bf16.mxu0 0
    %140 = vmatpush1.bf16.msra.mxu0 0
    %141 = vmatprep.subr.bf16.mxu0 0
    %142 = vmatpush1.bf16.msra.mxu0 0
    %143 = vmatprep.subr.bf16.mxu0 0
    %144 = vmatpush1.bf16.msra.mxu0 0
    %145 = vmatprep.subr.bf16.mxu0 0
    %146 = vmatpush1.bf16.msra.mxu0 0
    %147 = vmatprep.subr.bf16.mxu0 0
    %148 = vmatpush1.bf16.msra.mxu0 0
    %149 = vmatprep.subr.bf16.mxu0 0
    %150 = vmatpush1.bf16.msra.mxu0 0
    %151 = vmatprep.subr.bf16.mxu0 0
    %152 = vmatpush1.bf16.msra.mxu0 0
    %153 = vmatprep.subr.bf16.mxu0 0
    %154 = vmatpush1.bf16.msra.mxu0 0
    %155 = vmatprep.mubr.bf16.mxu0 0
    %156 = vmatmul.mubr.bf16.gmra.mrb[0].mxu0 %v71
    %v157 = vpop.f32.mrb[0].mxu0
    %v158 = vadd.f32 0.0, %v157
    %v159 = vpop.f32.mrb[0].mxu0
    %v160 = vpop.f32.mrb[0].mxu0
    %v161 = vadd.f32 0.0, %v160
    %v162 = vpop.f32.mrb[0].mxu0
    %163 = vmatprep.mubr.bf16.mxu0 0
    %164 = vmatmul.mubr.bf16.gmra.mrb[0].mxu0 %v72
    %v165 = vpop.f32.mrb[0].mxu0
    %v166 = vadd.f32 0.0, %v165
    %v167 = vpop.f32.mrb[0].mxu0
    %v168 = vpop.f32.mrb[0].mxu0
    %v169 = vadd.f32 0.0, %v168
    %v170 = vpop.f32.mrb[0].mxu0
    %171 = vdwg.mxu0
    %v172 = vpack.c.bf16 %v161, %v158
    %v173 = vpack.c.bf16 %v169, %v166
    %v174 = vld [vmem:[%s2] sm:$0xff]
    %v175 = vld [vmem:[%s2 + $0x8] sm:$0xff]
    %v176 = vld [vmem:[%s2 + $0x10] sm:$0xff]
    %v177 = vld [vmem:[%s2 + $0x18] sm:$0xff]
    %v178 = vld [vmem:[%s2 + $0x20] sm:$0xff]
    %v179 = vld [vmem:[%s2 + $0x28] sm:$0xff]
    %v180 = vld [vmem:[%s2 + $0x30] sm:$0xff]
    %v181 = vld [vmem:[%s2 + $0x38] sm:$0xff]
    %v182 = vld [vmem:[%s2 + $0x40] sm:$0xff]
    %v183 = vld [vmem:[%s2 + $0x48] sm:$0xff]
    %v184 = vld [vmem:[%s2 + $0x50] sm:$0xff]
    %v185 = vld [vmem:[%s2 + $0x58] sm:$0xff]
    %v186 = vld [vmem:[%s2 + $0x60] sm:$0xff]
    %v187 = vld [vmem:[%s2 + $0x68] sm:$0xff]
    %v188 = vld [vmem:[%s2 + $0x70] sm:$0xff]
    %v189 = vld [vmem:[%s2 + $0x78] sm:$0xff]
    %s190 = scalar_lea.vmem %s1, 16
    %v191 = vld [vmem:[%s190] sm:$0xf]
    %v192 = vld [vmem:[%s190 + $0x4] sm:$0xf]
    %v193 = vld [vmem:[%s190 + $0x8] sm:$0xf]
    %v194 = vld [vmem:[%s190 + $0xc] sm:$0xf]
    %v199 = vunpack.c.l.b16 %v191
    %v200 = vunpack.c.l.b16 %v192
    %v201 = vunpack.c.l.b16 %v193
    %v202 = vunpack.c.l.b16 %v194
    %v203 = vpack.c.b16 %v200, %v199
    %v204 = vpack.c.b16 %v202, %v201
    %207 = vmatprep.subr.bf16.mxu0 0
    %208 = vmatpush1.bf16.msra.mxu0 %v107
    %209 = vmatprep.subr.bf16.mxu0 0
    %210 = vmatpush1.bf16.msra.mxu0 %v108
    %211 = vmatprep.subr.bf16.mxu0 0
    %212 = vmatpush1.bf16.msra.mxu0 %v109
    %213 = vmatprep.subr.bf16.mxu0 0
    %214 = vmatpush1.bf16.msra.mxu0 %v110
    %215 = vmatprep.subr.bf16.mxu0 0
    %216 = vmatpush1.bf16.msra.mxu0 %v111
    %217 = vmatprep.subr.bf16.mxu0 0
    %218 = vmatpush1.bf16.msra.mxu0 %v112
    %219 = vmatprep.subr.bf16.mxu0 0
    %220 = vmatpush1.bf16.msra.mxu0 %v113
    %221 = vmatprep.subr.bf16.mxu0 0
    %222 = vmatpush1.bf16.msra.mxu0 %v114
    %223 = vmatprep.subr.bf16.mxu0 0
    %224 = vmatpush1.bf16.msra.mxu0 0
    %225 = vmatprep.subr.bf16.mxu0 0
    %226 = vmatpush1.bf16.msra.mxu0 0
    %227 = vmatprep.subr.bf16.mxu0 0
    %228 = vmatpush1.bf16.msra.mxu0 0
    %229 = vmatprep.subr.bf16.mxu0 0
    %230 = vmatpush1.bf16.msra.mxu0 0
    %231 = vmatprep.subr.bf16.mxu0 0
    %232 = vmatpush1.bf16.msra.mxu0 0
    %233 = vmatprep.subr.bf16.mxu0 0
    %234 = vmatpush1.bf16.msra.mxu0 0
    %235 = vmatprep.subr.bf16.mxu0 0
    %236 = vmatpush1.bf16.msra.mxu0 0
    %237 = vmatprep.subr.bf16.mxu0 0
    %238 = vmatpush1.bf16.msra.mxu0 0
    %239 = vmatprep.mubr.bf16.mxu0 0
    %240 = vmatmul.mubr.bf16.gmra.mrb[0].mxu0 %v203
    %v241 = vpop.f32.mrb[0].mxu0
    %v242 = vadd.f32 0.0, %v241
    %v243 = vpop.f32.mrb[0].mxu0
    %v244 = vpop.f32.mrb[0].mxu0
    %v245 = vadd.f32 0.0, %v244
    %v246 = vpop.f32.mrb[0].mxu0
    %247 = vmatprep.mubr.bf16.mxu0 0
    %248 = vmatmul.mubr.bf16.gmra.mrb[0].mxu0 %v204
    %v249 = vpop.f32.mrb[0].mxu0
    %v250 = vadd.f32 0.0, %v249
    %v251 = vpop.f32.mrb[0].mxu0
    %v252 = vpop.f32.mrb[0].mxu0
    %v253 = vadd.f32 0.0, %v252
    %v254 = vpop.f32.mrb[0].mxu0
    %255 = vdwg.mxu0
    %v256 = vpack.c.bf16 %v245, %v242
    %v257 = vpack.c.bf16 %v253, %v250
    %s258 = scalar_lea.vmem %s2, 128
    %v259 = vld [vmem:[%s258] sm:$0xff]
    %v260 = vld [vmem:[%s258 + $0x8] sm:$0xff]
    %v261 = vld [vmem:[%s258 + $0x10] sm:$0xff]
    %v262 = vld [vmem:[%s258 + $0x18] sm:$0xff]
    %v263 = vld [vmem:[%s258 + $0x20] sm:$0xff]
    %v264 = vld [vmem:[%s258 + $0x28] sm:$0xff]
    %v265 = vld [vmem:[%s258 + $0x30] sm:$0xff]
    %v266 = vld [vmem:[%s258 + $0x38] sm:$0xff]
    %v267 = vld [vmem:[%s258 + $0x40] sm:$0xff]
    %v268 = vld [vmem:[%s258 + $0x48] sm:$0xff]
    %v269 = vld [vmem:[%s258 + $0x50] sm:$0xff]
    %v270 = vld [vmem:[%s258 + $0x58] sm:$0xff]
    %v271 = vld [vmem:[%s258 + $0x60] sm:$0xff]
    %v272 = vld [vmem:[%s258 + $0x68] sm:$0xff]
    %v273 = vld [vmem:[%s258 + $0x70] sm:$0xff]
    %v274 = vld [vmem:[%s258 + $0x78] sm:$0xff]
    %v291 = vunpack.c.l.b16 %v259
    %v292 = vunpack.c.h.b16 %v259
    %v293 = vunpack.c.l.b16 %v260
    %v294 = vunpack.c.h.b16 %v260
    %v295 = vunpack.c.l.b16 %v261
    %v296 = vunpack.c.h.b16 %v261
    %v297 = vunpack.c.l.b16 %v262
    %v298 = vunpack.c.h.b16 %v262
    %v299 = vunpack.c.l.b16 %v263
    %v300 = vunpack.c.h.b16 %v263
    %v301 = vunpack.c.l.b16 %v264
    %v302 = vunpack.c.h.b16 %v264
    %v303 = vunpack.c.l.b16 %v265
    %v304 = vunpack.c.h.b16 %v265
    %v305 = vunpack.c.l.b16 %v266
    %v306 = vunpack.c.h.b16 %v266
    %v307 = vunpack.c.l.b16 %v267
    %v308 = vunpack.c.h.b16 %v267
    %v309 = vunpack.c.l.b16 %v268
    %v310 = vunpack.c.h.b16 %v268
    %v311 = vunpack.c.l.b16 %v269
    %v312 = vunpack.c.h.b16 %v269
    %v313 = vunpack.c.l.b16 %v270
    %v314 = vunpack.c.h.b16 %v270
    %v315 = vunpack.c.l.b16 %v271
    %v316 = vunpack.c.h.b16 %v271
    %v317 = vunpack.c.l.b16 %v272
    %v318 = vunpack.c.h.b16 %v272
    %v319 = vunpack.c.l.b16 %v273
    %v320 = vunpack.c.h.b16 %v273
    %v321 = vunpack.c.l.b16 %v274
    %v322 = vunpack.c.h.b16 %v274
    %v323 = vpack.c.b16 %v293, %v291
    %v324 = vpack.c.b16 %v294, %v292
    %v325 = vpack.c.b16 %v297, %v295
    %v326 = vpack.c.b16 %v298, %v296
    %v327 = vpack.c.b16 %v301, %v299
    %v328 = vpack.c.b16 %v302, %v300
    %v329 = vpack.c.b16 %v305, %v303
    %v330 = vpack.c.b16 %v306, %v304
    %v331 = vpack.c.b16 %v309, %v307
    %v332 = vpack.c.b16 %v310, %v308
    %v333 = vpack.c.b16 %v313, %v311
    %v334 = vpack.c.b16 %v314, %v312
    %v335 = vpack.c.b16 %v317, %v315
    %v336 = vpack.c.b16 %v318, %v316
    %v337 = vpack.c.b16 %v321, %v319
    %v338 = vpack.c.b16 %v322, %v320
    %355 = vmatprep.subr.bf16.mxu0 %v324
    %356 = vmatpush1.bf16.msra.mxu0 %v323
    %357 = vmatprep.subr.bf16.mxu0 %v326
    %358 = vmatpush1.bf16.msra.mxu0 %v325
    %359 = vmatprep.subr.bf16.mxu0 %v328
    %360 = vmatpush1.bf16.msra.mxu0 %v327
    %361 = vmatprep.subr.bf16.mxu0 %v330
    %362 = vmatpush1.bf16.msra.mxu0 %v329
    %363 = vmatprep.subr.bf16.mxu0 %v332
    %364 = vmatpush1.bf16.msra.mxu0 %v331
    %365 = vmatprep.subr.bf16.mxu0 %v334
    %366 = vmatpush1.bf16.msra.mxu0 %v333
    %367 = vmatprep.subr.bf16.mxu0 %v336
    %368 = vmatpush1.bf16.msra.mxu0 %v335
    %369 = vmatprep.subr.bf16.mxu0 %v338
    %370 = vmatpush1.bf16.msra.mxu0 %v337
    %371 = vmatprep.subr.bf16.mxu0 0
    %372 = vmatpush1.bf16.msra.mxu0 0
    %373 = vmatprep.subr.bf16.mxu0 0
    %374 = vmatpush1.bf16.msra.mxu0 0
    %375 = vmatprep.subr.bf16.mxu0 0
    %376 = vmatpush1.bf16.msra.mxu0 0
    %377 = vmatprep.subr.bf16.mxu0 0
    %378 = vmatpush1.bf16.msra.mxu0 0
    %379 = vmatprep.subr.bf16.mxu0 0
    %380 = vmatpush1.bf16.msra.mxu0 0
    %381 = vmatprep.subr.bf16.mxu0 0
    %382 = vmatpush1.bf16.msra.mxu0 0
    %383 = vmatprep.subr.bf16.mxu0 0
    %384 = vmatpush1.bf16.msra.mxu0 0
    %385 = vmatprep.subr.bf16.mxu0 0
    %386 = vmatpush1.bf16.msra.mxu0 0
    %387 = vmatprep.mubr.bf16.mxu0 0
    %388 = vmatmul.mubr.bf16.gmra.mrb[0].mxu0 %v256
    %v389 = vpop.f32.mrb[0].mxu0
    %v390 = vadd.f32 0.0, %v389
    %v391 = vpop.f32.mrb[0].mxu0
    %v392 = vadd.f32 0.0, %v391
    %v393 = vpop.f32.mrb[0].mxu0
    %v394 = vadd.f32 0.0, %v393
    %v395 = vpop.f32.mrb[0].mxu0
    %v396 = vadd.f32 0.0, %v395
    %397 = vmatprep.mubr.bf16.mxu0 0
    %398 = vmatmul.mubr.bf16.gmra.mrb[0].mxu0 %v257
    %v399 = vpop.f32.mrb[0].mxu0
    %v400 = vadd.f32 0.0, %v399
    %v401 = vpop.f32.mrb[0].mxu0
    %v402 = vadd.f32 0.0, %v401
    %v403 = vpop.f32.mrb[0].mxu0
    %v404 = vadd.f32 0.0, %v403
    %v405 = vpop.f32.mrb[0].mxu0
    %v406 = vadd.f32 0.0, %v405
    %407 = vdwg.mxu0
    %v424 = vunpack.c.l.b16 %v174
    %v425 = vunpack.c.h.b16 %v174
    %v426 = vunpack.c.l.b16 %v175
    %v427 = vunpack.c.h.b16 %v175
    %v428 = vunpack.c.l.b16 %v176
    %v429 = vunpack.c.h.b16 %v176
    %v430 = vunpack.c.l.b16 %v177
    %v431 = vunpack.c.h.b16 %v177
    %v432 = vunpack.c.l.b16 %v178
    %v433 = vunpack.c.h.b16 %v178
    %v434 = vunpack.c.l.b16 %v179
    %v435 = vunpack.c.h.b16 %v179
    %v436 = vunpack.c.l.b16 %v180
    %v437 = vunpack.c.h.b16 %v180
    %v438 = vunpack.c.l.b16 %v181
    %v439 = vunpack.c.h.b16 %v181
    %v440 = vunpack.c.l.b16 %v182
    %v441 = vunpack.c.h.b16 %v182
    %v442 = vunpack.c.l.b16 %v183
    %v443 = vunpack.c.h.b16 %v183
    %v444 = vunpack.c.l.b16 %v184
    %v445 = vunpack.c.h.b16 %v184
    %v446 = vunpack.c.l.b16 %v185
    %v447 = vunpack.c.h.b16 %v185
    %v448 = vunpack.c.l.b16 %v186
    %v449 = vunpack.c.h.b16 %v186
    %v450 = vunpack.c.l.b16 %v187
    %v451 = vunpack.c.h.b16 %v187
    %v452 = vunpack.c.l.b16 %v188
    %v453 = vunpack.c.h.b16 %v188
    %v454 = vunpack.c.l.b16 %v189
    %v455 = vunpack.c.h.b16 %v189
    %v456 = vpack.c.b16 %v426, %v424
    %v457 = vpack.c.b16 %v427, %v425
    %v458 = vpack.c.b16 %v430, %v428
    %v459 = vpack.c.b16 %v431, %v429
    %v460 = vpack.c.b16 %v434, %v432
    %v461 = vpack.c.b16 %v435, %v433
    %v462 = vpack.c.b16 %v438, %v436
    %v463 = vpack.c.b16 %v439, %v437
    %v464 = vpack.c.b16 %v442, %v440
    %v465 = vpack.c.b16 %v443, %v441
    %v466 = vpack.c.b16 %v446, %v444
    %v467 = vpack.c.b16 %v447, %v445
    %v468 = vpack.c.b16 %v450, %v448
    %v469 = vpack.c.b16 %v451, %v449
    %v470 = vpack.c.b16 %v454, %v452
    %v471 = vpack.c.b16 %v455, %v453
    %488 = vmatprep.subr.bf16.mxu0 %v457
    %489 = vmatpush1.bf16.msra.mxu0 %v456
    %490 = vmatprep.subr.bf16.mxu0 %v459
    %491 = vmatpush1.bf16.msra.mxu0 %v458
    %492 = vmatprep.subr.bf16.mxu0 %v461
    %493 = vmatpush1.bf16.msra.mxu0 %v460
    %494 = vmatprep.subr.bf16.mxu0 %v463
    %495 = vmatpush1.bf16.msra.mxu0 %v462
    %496 = vmatprep.subr.bf16.mxu0 %v465
    %497 = vmatpush1.bf16.msra.mxu0 %v464
    %498 = vmatprep.subr.bf16.mxu0 %v467
    %499 = vmatpush1.bf16.msra.mxu0 %v466
    %500 = vmatprep.subr.bf16.mxu0 %v469
    %501 = vmatpush1.bf16.msra.mxu0 %v468
    %502 = vmatprep.subr.bf16.mxu0 %v471
    %503 = vmatpush1.bf16.msra.mxu0 %v470
    %504 = vmatprep.subr.bf16.mxu0 0
    %505 = vmatpush1.bf16.msra.mxu0 0
    %506 = vmatprep.subr.bf16.mxu0 0
    %507 = vmatpush1.bf16.msra.mxu0 0
    %508 = vmatprep.subr.bf16.mxu0 0
    %509 = vmatpush1.bf16.msra.mxu0 0
    %510 = vmatprep.subr.bf16.mxu0 0
    %511 = vmatpush1.bf16.msra.mxu0 0
    %512 = vmatprep.subr.bf16.mxu0 0
    %513 = vmatpush1.bf16.msra.mxu0 0
    %514 = vmatprep.subr.bf16.mxu0 0
    %515 = vmatpush1.bf16.msra.mxu0 0
    %516 = vmatprep.subr.bf16.mxu0 0
    %517 = vmatpush1.bf16.msra.mxu0 0
    %518 = vmatprep.subr.bf16.mxu0 0
    %519 = vmatpush1.bf16.msra.mxu0 0
    %520 = vmatprep.mubr.bf16.mxu0 0
    %521 = vmatmul.mubr.bf16.gmra.mrb[0].mxu0 %v172
    %v522 = vpop.f32.mrb[0].mxu0
    %v523 = vadd.f32 %v390, %v522
    %v524 = vpop.f32.mrb[0].mxu0
    %v525 = vadd.f32 %v392, %v524
    %v526 = vpop.f32.mrb[0].mxu0
    %v527 = vadd.f32 %v394, %v526
    %v528 = vpop.f32.mrb[0].mxu0
    %v529 = vadd.f32 %v396, %v528
    %530 = vmatprep.mubr.bf16.mxu0 0
    %531 = vmatmul.mubr.bf16.gmra.mrb[0].mxu0 %v173
    %v532 = vpop.f32.mrb[0].mxu0
    %v533 = vadd.f32 %v400, %v532
    %v534 = vpop.f32.mrb[0].mxu0
    %v535 = vadd.f32 %v402, %v534
    %v536 = vpop.f32.mrb[0].mxu0
    %v537 = vadd.f32 %v404, %v536
    %v538 = vpop.f32.mrb[0].mxu0
    %v539 = vadd.f32 %v406, %v538
    %540 = vdwg.mxu0
    %s541 = scalar_lea.vmem %s1, 32
    %v542 = vld [vmem:[%s541] sm:$0xf]
    %v543 = vld [vmem:[%s541 + $0x4] sm:$0xf]
    %v544 = vld [vmem:[%s541 + $0x8] sm:$0xf]
    %v545 = vld [vmem:[%s541 + $0xc] sm:$0xf]
    %v550 = vunpack.c.l.b16 %v542
    %v551 = vunpack.c.l.b16 %v543
    %v552 = vunpack.c.l.b16 %v544
    %v553 = vunpack.c.l.b16 %v545
    %v554 = vpack.c.b16 %v551, %v550
    %v555 = vpack.c.b16 %v553, %v552
    %558 = vmatprep.subr.bf16.mxu0 0
    %559 = vmatpush1.bf16.msra.mxu0 %v107
    %560 = vmatprep.subr.bf16.mxu0 0
    %561 = vmatpush1.bf16.msra.mxu0 %v108
    %562 = vmatprep.subr.bf16.mxu0 0
    %563 = vmatpush1.bf16.msra.mxu0 %v109
    %564 = vmatprep.subr.bf16.mxu0 0
    %565 = vmatpush1.bf16.msra.mxu0 %v110
    %566 = vmatprep.subr.bf16.mxu0 0
    %567 = vmatpush1.bf16.msra.mxu0 %v111
    %568 = vmatprep.subr.bf16.mxu0 0
    %569 = vmatpush1.bf16.msra.mxu0 %v112
    %570 = vmatprep.subr.bf16.mxu0 0
    %571 = vmatpush1.bf16.msra.mxu0 %v113
    %572 = vmatprep.subr.bf16.mxu0 0
    %573 = vmatpush1.bf16.msra.mxu0 %v114
    %574 = vmatprep.subr.bf16.mxu0 0
    %575 = vmatpush1.bf16.msra.mxu0 0
    %576 = vmatprep.subr.bf16.mxu0 0
    %577 = vmatpush1.bf16.msra.mxu0 0
    %578 = vmatprep.subr.bf16.mxu0 0
    %579 = vmatpush1.bf16.msra.mxu0 0
    %580 = vmatprep.subr.bf16.mxu0 0
    %581 = vmatpush1.bf16.msra.mxu0 0
    %582 = vmatprep.subr.bf16.mxu0 0
    %583 = vmatpush1.bf16.msra.mxu0 0
    %584 = vmatprep.subr.bf16.mxu0 0
    %585 = vmatpush1.bf16.msra.mxu0 0
    %586 = vmatprep.subr.bf16.mxu0 0
    %587 = vmatpush1.bf16.msra.mxu0 0
    %588 = vmatprep.subr.bf16.mxu0 0
    %589 = vmatpush1.bf16.msra.mxu0 0
    %590 = vmatprep.mubr.bf16.mxu0 0
    %591 = vmatmul.mubr.bf16.gmra.mrb[0].mxu0 %v554
    %v592 = vpop.f32.mrb[0].mxu0
    %v593 = vadd.f32 0.0, %v592
    %v594 = vpop.f32.mrb[0].mxu0
    %v595 = vpop.f32.mrb[0].mxu0
    %v596 = vadd.f32 0.0, %v595
    %v597 = vpop.f32.mrb[0].mxu0
    %598 = vmatprep.mubr.bf16.mxu0 0
    %599 = vmatmul.mubr.bf16.gmra.mrb[0].mxu0 %v555
    %v600 = vpop.f32.mrb[0].mxu0
    %v601 = vadd.f32 0.0, %v600
    %v602 = vpop.f32.mrb[0].mxu0
    %v603 = vpop.f32.mrb[0].mxu0
    %v604 = vadd.f32 0.0, %v603
    %v605 = vpop.f32.mrb[0].mxu0
    %606 = vdwg.mxu0
    %v607 = vpack.c.bf16 %v596, %v593
    %v608 = vpack.c.bf16 %v604, %v601
    %s609 = scalar_lea.vmem %s2, 256
    %v610 = vld [vmem:[%s609] sm:$0xff]
    %v611 = vld [vmem:[%s609 + $0x8] sm:$0xff]
    %v612 = vld [vmem:[%s609 + $0x10] sm:$0xff]
    %v613 = vld [vmem:[%s609 + $0x18] sm:$0xff]
    %v614 = vld [vmem:[%s609 + $0x20] sm:$0xff]
    %v615 = vld [vmem:[%s609 + $0x28] sm:$0xff]
    %v616 = vld [vmem:[%s609 + $0x30] sm:$0xff]
    %v617 = vld [vmem:[%s609 + $0x38] sm:$0xff]
    %v618 = vld [vmem:[%s609 + $0x40] sm:$0xff]
    %v619 = vld [vmem:[%s609 + $0x48] sm:$0xff]
    %v620 = vld [vmem:[%s609 + $0x50] sm:$0xff]
    %v621 = vld [vmem:[%s609 + $0x58] sm:$0xff]
    %v622 = vld [vmem:[%s609 + $0x60] sm:$0xff]
    %v623 = vld [vmem:[%s609 + $0x68] sm:$0xff]
    %v624 = vld [vmem:[%s609 + $0x70] sm:$0xff]
    %v625 = vld [vmem:[%s609 + $0x78] sm:$0xff]
    %v642 = vunpack.c.l.b16 %v610
    %v643 = vunpack.c.h.b16 %v610
    %v644 = vunpack.c.l.b16 %v611
    %v645 = vunpack.c.h.b16 %v611
    %v646 = vunpack.c.l.b16 %v612
    %v647 = vunpack.c.h.b16 %v612
    %v648 = vunpack.c.l.b16 %v613
    %v649 = vunpack.c.h.b16 %v613
    %v650 = vunpack.c.l.b16 %v614
    %v651 = vunpack.c.h.b16 %v614
    %v652 = vunpack.c.l.b16 %v615
    %v653 = vunpack.c.h.b16 %v615
    %v654 = vunpack.c.l.b16 %v616
    %v655 = vunpack.c.h.b16 %v616
    %v656 = vunpack.c.l.b16 %v617
    %v657 = vunpack.c.h.b16 %v617
    %v658 = vunpack.c.l.b16 %v618
    %v659 = vunpack.c.h.b16 %v618
    %v660 = vunpack.c.l.b16 %v619
    %v661 = vunpack.c.h.b16 %v619
    %v662 = vunpack.c.l.b16 %v620
    %v663 = vunpack.c.h.b16 %v620
    %v664 = vunpack.c.l.b16 %v621
    %v665 = vunpack.c.h.b16 %v621
    %v666 = vunpack.c.l.b16 %v622
    %v667 = vunpack.c.h.b16 %v622
    %v668 = vunpack.c.l.b16 %v623
    %v669 = vunpack.c.h.b16 %v623
    %v670 = vunpack.c.l.b16 %v624
    %v671 = vunpack.c.h.b16 %v624
    %v672 = vunpack.c.l.b16 %v625
    %v673 = vunpack.c.h.b16 %v625
    %v674 = vpack.c.b16 %v644, %v642
    %v675 = vpack.c.b16 %v645, %v643
    %v676 = vpack.c.b16 %v648, %v646
    %v677 = vpack.c.b16 %v649, %v647
    %v678 = vpack.c.b16 %v652, %v650
    %v679 = vpack.c.b16 %v653, %v651
    %v680 = vpack.c.b16 %v656, %v654
    %v681 = vpack.c.b16 %v657, %v655
    %v682 = vpack.c.b16 %v660, %v658
    %v683 = vpack.c.b16 %v661, %v659
    %v684 = vpack.c.b16 %v664, %v662
    %v685 = vpack.c.b16 %v665, %v663
    %v686 = vpack.c.b16 %v668, %v666
    %v687 = vpack.c.b16 %v669, %v667
    %v688 = vpack.c.b16 %v672, %v670
    %v689 = vpack.c.b16 %v673, %v671
    %706 = vmatprep.subr.bf16.mxu0 %v675
    %707 = vmatpush1.bf16.msra.mxu0 %v674
    %708 = vmatprep.subr.bf16.mxu0 %v677
    %709 = vmatpush1.bf16.msra.mxu0 %v676
    %710 = vmatprep.subr.bf16.mxu0 %v679
    %711 = vmatpush1.bf16.msra.mxu0 %v678
    %712 = vmatprep.subr.bf16.mxu0 %v681
    %713 = vmatpush1.bf16.msra.mxu0 %v680
    %714 = vmatprep.subr.bf16.mxu0 %v683
    %715 = vmatpush1.bf16.msra.mxu0 %v682
    %716 = vmatprep.subr.bf16.mxu0 %v685
    %717 = vmatpush1.bf16.msra.mxu0 %v684
    %718 = vmatprep.subr.bf16.mxu0 %v687
    %719 = vmatpush1.bf16.msra.mxu0 %v686
    %720 = vmatprep.subr.bf16.mxu0 %v689
    %721 = vmatpush1.bf16.msra.mxu0 %v688
    %722 = vmatprep.subr.bf16.mxu0 0
    %723 = vmatpush1.bf16.msra.mxu0 0
    %724 = vmatprep.subr.bf16.mxu0 0
    %725 = vmatpush1.bf16.msra.mxu0 0
    %726 = vmatprep.subr.bf16.mxu0 0
    %727 = vmatpush1.bf16.msra.mxu0 0
    %728 = vmatprep.subr.bf16.mxu0 0
    %729 = vmatpush1.bf16.msra.mxu0 0
    %730 = vmatprep.subr.bf16.mxu0 0
    %731 = vmatpush1.bf16.msra.mxu0 0
    %732 = vmatprep.subr.bf16.mxu0 0
    %733 = vmatpush1.bf16.msra.mxu0 0
    %734 = vmatprep.subr.bf16.mxu0 0
    %735 = vmatpush1.bf16.msra.mxu0 0
    %736 = vmatprep.subr.bf16.mxu0 0
    %737 = vmatpush1.bf16.msra.mxu0 0
    %738 = vmatprep.mubr.bf16.mxu0 0
    %739 = vmatmul.mubr.bf16.gmra.mrb[0].mxu0 %v607
    %v740 = vpop.f32.mrb[0].mxu0
    %v741 = vadd.f32 0.0, %v740
    %v742 = vpop.f32.mrb[0].mxu0
    %v743 = vadd.f32 0.0, %v742
    %v744 = vpop.f32.mrb[0].mxu0
    %v745 = vadd.f32 0.0, %v744
    %v746 = vpop.f32.mrb[0].mxu0
    %v747 = vadd.f32 0.0, %v746
    %748 = vmatprep.mubr.bf16.mxu0 0
    %749 = vmatmul.mubr.bf16.gmra.mrb[0].mxu0 %v608
    %v750 = vpop.f32.mrb[0].mxu0
    %v751 = vadd.f32 0.0, %v750
    %v752 = vpop.f32.mrb[0].mxu0
    %v753 = vadd.f32 0.0, %v752
    %v754 = vpop.f32.mrb[0].mxu0
    %v755 = vadd.f32 0.0, %v754
    %v756 = vpop.f32.mrb[0].mxu0
    %v757 = vadd.f32 0.0, %v756
    %758 = vdwg.mxu0
    %v759 = vadd.f32 %v523, %v741
    %v760 = vadd.f32 %v525, %v743
    %v761 = vadd.f32 %v527, %v745
    %v762 = vadd.f32 %v529, %v747
    %v763 = vadd.f32 %v533, %v751
    %v764 = vadd.f32 %v535, %v753
    %v765 = vadd.f32 %v537, %v755
    %v766 = vadd.f32 %v539, %v757
    %s767 = scalar_lea.vmem %s1, 48
    %v768 = vld [vmem:[%s767] sm:$0xf]
    %v769 = vld [vmem:[%s767 + $0x4] sm:$0xf]
    %v770 = vld [vmem:[%s767 + $0x8] sm:$0xf]
    %v771 = vld [vmem:[%s767 + $0xc] sm:$0xf]
    %v776 = vunpack.c.l.b16 %v768
    %v777 = vunpack.c.l.b16 %v769
    %v778 = vunpack.c.l.b16 %v770
    %v779 = vunpack.c.l.b16 %v771
    %v780 = vpack.c.b16 %v777, %v776
    %v781 = vpack.c.b16 %v779, %v778
    %784 = vmatprep.subr.bf16.mxu0 0
    %785 = vmatpush1.bf16.msra.mxu0 %v107
    %786 = vmatprep.subr.bf16.mxu0 0
    %787 = vmatpush1.bf16.msra.mxu0 %v108
    %788 = vmatprep.subr.bf16.mxu0 0
    %789 = vmatpush1.bf16.msra.mxu0 %v109
    %790 = vmatprep.subr.bf16.mxu0 0
    %791 = vmatpush1.bf16.msra.mxu0 %v110
    %792 = vmatprep.subr.bf16.mxu0 0
    %793 = vmatpush1.bf16.msra.mxu0 %v111
    %794 = vmatprep.subr.bf16.mxu0 0
    %795 = vmatpush1.bf16.msra.mxu0 %v112
    %796 = vmatprep.subr.bf16.mxu0 0
    %797 = vmatpush1.bf16.msra.mxu0 %v113
    %798 = vmatprep.subr.bf16.mxu0 0
    %799 = vmatpush1.bf16.msra.mxu0 %v114
    %800 = vmatprep.subr.bf16.mxu0 0
    %801 = vmatpush1.bf16.msra.mxu0 0
    %802 = vmatprep.subr.bf16.mxu0 0
    %803 = vmatpush1.bf16.msra.mxu0 0
    %804 = vmatprep.subr.bf16.mxu0 0
    %805 = vmatpush1.bf16.msra.mxu0 0
    %806 = vmatprep.subr.bf16.mxu0 0
    %807 = vmatpush1.bf16.msra.mxu0 0
    %808 = vmatprep.subr.bf16.mxu0 0
    %809 = vmatpush1.bf16.msra.mxu0 0
    %810 = vmatprep.subr.bf16.mxu0 0
    %811 = vmatpush1.bf16.msra.mxu0 0
    %812 = vmatprep.subr.bf16.mxu0 0
    %813 = vmatpush1.bf16.msra.mxu0 0
    %814 = vmatprep.subr.bf16.mxu0 0
    %815 = vmatpush1.bf16.msra.mxu0 0
    %816 = vmatprep.mubr.bf16.mxu0 0
    %817 = vmatmul.mubr.bf16.gmra.mrb[0].mxu0 %v780
    %v818 = vpop.f32.mrb[0].mxu0
    %v819 = vadd.f32 0.0, %v818
    %v820 = vpop.f32.mrb[0].mxu0
    %v821 = vpop.f32.mrb[0].mxu0
    %v822 = vadd.f32 0.0, %v821
    %v823 = vpop.f32.mrb[0].mxu0
    %824 = vmatprep.mubr.bf16.mxu0 0
    %825 = vmatmul.mubr.bf16.gmra.mrb[0].mxu0 %v781
    %v826 = vpop.f32.mrb[0].mxu0
    %v827 = vadd.f32 0.0, %v826
    %v828 = vpop.f32.mrb[0].mxu0
    %v829 = vpop.f32.mrb[0].mxu0
    %v830 = vadd.f32 0.0, %v829
    %v831 = vpop.f32.mrb[0].mxu0
    %832 = vdwg.mxu0
    %v833 = vpack.c.bf16 %v822, %v819
    %v834 = vpack.c.bf16 %v830, %v827
    %s835 = scalar_lea.vmem %s2, 384
    %v836 = vld [vmem:[%s835] sm:$0xff]
    %v837 = vld [vmem:[%s835 + $0x8] sm:$0xff]
    %v838 = vld [vmem:[%s835 + $0x10] sm:$0xff]
    %v839 = vld [vmem:[%s835 + $0x18] sm:$0xff]
    %v840 = vld [vmem:[%s835 + $0x20] sm:$0xff]
    %v841 = vld [vmem:[%s835 + $0x28] sm:$0xff]
    %v842 = vld [vmem:[%s835 + $0x30] sm:$0xff]
    %v843 = vld [vmem:[%s835 + $0x38] sm:$0xff]
    %v844 = vld [vmem:[%s835 + $0x40] sm:$0xff]
    %v845 = vld [vmem:[%s835 + $0x48] sm:$0xff]
    %v846 = vld [vmem:[%s835 + $0x50] sm:$0xff]
    %v847 = vld [vmem:[%s835 + $0x58] sm:$0xff]
    %v848 = vld [vmem:[%s835 + $0x60] sm:$0xff]
    %v849 = vld [vmem:[%s835 + $0x68] sm:$0xff]
    %v850 = vld [vmem:[%s835 + $0x70] sm:$0xff]
    %v851 = vld [vmem:[%s835 + $0x78] sm:$0xff]
    %v868 = vunpack.c.l.b16 %v836
    %v869 = vunpack.c.h.b16 %v836
    %v870 = vunpack.c.l.b16 %v837
    %v871 = vunpack.c.h.b16 %v837
    %v872 = vunpack.c.l.b16 %v838
    %v873 = vunpack.c.h.b16 %v838
    %v874 = vunpack.c.l.b16 %v839
    %v875 = vunpack.c.h.b16 %v839
    %v876 = vunpack.c.l.b16 %v840
    %v877 = vunpack.c.h.b16 %v840
    %v878 = vunpack.c.l.b16 %v841
    %v879 = vunpack.c.h.b16 %v841
    %v880 = vunpack.c.l.b16 %v842
    %v881 = vunpack.c.h.b16 %v842
    %v882 = vunpack.c.l.b16 %v843
    %v883 = vunpack.c.h.b16 %v843
    %v884 = vunpack.c.l.b16 %v844
    %v885 = vunpack.c.h.b16 %v844
    %v886 = vunpack.c.l.b16 %v845
    %v887 = vunpack.c.h.b16 %v845
    %v888 = vunpack.c.l.b16 %v846
    %v889 = vunpack.c.h.b16 %v846
    %v890 = vunpack.c.l.b16 %v847
    %v891 = vunpack.c.h.b16 %v847
    %v892 = vunpack.c.l.b16 %v848
    %v893 = vunpack.c.h.b16 %v848
    %v894 = vunpack.c.l.b16 %v849
    %v895 = vunpack.c.h.b16 %v849
    %v896 = vunpack.c.l.b16 %v850
    %v897 = vunpack.c.h.b16 %v850
    %v898 = vunpack.c.l.b16 %v851
    %v899 = vunpack.c.h.b16 %v851
    %v900 = vpack.c.b16 %v870, %v868
    %v901 = vpack.c.b16 %v871, %v869
    %v902 = vpack.c.b16 %v874, %v872
    %v903 = vpack.c.b16 %v875, %v873
    %v904 = vpack.c.b16 %v878, %v876
    %v905 = vpack.c.b16 %v879, %v877
    %v906 = vpack.c.b16 %v882, %v880
    %v907 = vpack.c.b16 %v883, %v881
    %v908 = vpack.c.b16 %v886, %v884
    %v909 = vpack.c.b16 %v887, %v885
    %v910 = vpack.c.b16 %v890, %v888
    %v911 = vpack.c.b16 %v891, %v889
    %v912 = vpack.c.b16 %v894, %v892
    %v913 = vpack.c.b16 %v895, %v893
    %v914 = vpack.c.b16 %v898, %v896
    %v915 = vpack.c.b16 %v899, %v897
    %932 = vmatprep.subr.bf16.mxu0 %v901
    %933 = vmatpush1.bf16.msra.mxu0 %v900
    %934 = vmatprep.subr.bf16.mxu0 %v903
    %935 = vmatpush1.bf16.msra.mxu0 %v902
    %936 = vmatprep.subr.bf16.mxu0 %v905
    %937 = vmatpush1.bf16.msra.mxu0 %v904
    %938 = vmatprep.subr.bf16.mxu0 %v907
    %939 = vmatpush1.bf16.msra.mxu0 %v906
    %940 = vmatprep.subr.bf16.mxu0 %v909
    %941 = vmatpush1.bf16.msra.mxu0 %v908
    %942 = vmatprep.subr.bf16.mxu0 %v911
    %943 = vmatpush1.bf16.msra.mxu0 %v910
    %944 = vmatprep.subr.bf16.mxu0 %v913
    %945 = vmatpush1.bf16.msra.mxu0 %v912
    %946 = vmatprep.subr.bf16.mxu0 %v915
    %947 = vmatpush1.bf16.msra.mxu0 %v914
    %948 = vmatprep.subr.bf16.mxu0 0
    %949 = vmatpush1.bf16.msra.mxu0 0
    %950 = vmatprep.subr.bf16.mxu0 0
    %951 = vmatpush1.bf16.msra.mxu0 0
    %952 = vmatprep.subr.bf16.mxu0 0
    %953 = vmatpush1.bf16.msra.mxu0 0
    %954 = vmatprep.subr.bf16.mxu0 0
    %955 = vmatpush1.bf16.msra.mxu0 0
    %956 = vmatprep.subr.bf16.mxu0 0
    %957 = vmatpush1.bf16.msra.mxu0 0
    %958 = vmatprep.subr.bf16.mxu0 0
    %959 = vmatpush1.bf16.msra.mxu0 0
    %960 = vmatprep.subr.bf16.mxu0 0
    %961 = vmatpush1.bf16.msra.mxu0 0
    %962 = vmatprep.subr.bf16.mxu0 0
    %963 = vmatpush1.bf16.msra.mxu0 0
    %964 = vmatprep.mubr.bf16.mxu0 0
    %965 = vmatmul.mubr.bf16.gmra.mrb[0].mxu0 %v833
    %v966 = vpop.f32.mrb[0].mxu0
    %v967 = vadd.f32 0.0, %v966
    %v968 = vpop.f32.mrb[0].mxu0
    %v969 = vadd.f32 0.0, %v968
    %v970 = vpop.f32.mrb[0].mxu0
    %v971 = vadd.f32 0.0, %v970
    %v972 = vpop.f32.mrb[0].mxu0
    %v973 = vadd.f32 0.0, %v972
    %974 = vmatprep.mubr.bf16.mxu0 0
    %975 = vmatmul.mubr.bf16.gmra.mrb[0].mxu0 %v834
    %v976 = vpop.f32.mrb[0].mxu0
    %v977 = vadd.f32 0.0, %v976
    %v978 = vpop.f32.mrb[0].mxu0
    %v979 = vadd.f32 0.0, %v978
    %v980 = vpop.f32.mrb[0].mxu0
    %v981 = vadd.f32 0.0, %v980
    %v982 = vpop.f32.mrb[0].mxu0
    %v983 = vadd.f32 0.0, %v982
    %984 = vdwg.mxu0
    %v985 = vadd.f32 %v759, %v967
    %v986 = vadd.f32 %v760, %v969
    %v987 = vadd.f32 %v761, %v971
    %v988 = vadd.f32 %v762, %v973
    %v989 = vadd.f32 %v763, %v977
    %v990 = vadd.f32 %v764, %v979
    %v991 = vadd.f32 %v765, %v981
    %v992 = vadd.f32 %v766, %v983
    %s993 = scalar_lea.vmem %s1, 64
    %v994 = vld [vmem:[%s993] sm:$0xf]
    %v995 = vld [vmem:[%s993 + $0x4] sm:$0xf]
    %v996 = vld [vmem:[%s993 + $0x8] sm:$0xf]
    %v997 = vld [vmem:[%s993 + $0xc] sm:$0xf]
    %v1002 = vunpack.c.l.b16 %v994
    %v1003 = vunpack.c.l.b16 %v995
    %v1004 = vunpack.c.l.b16 %v996
    %v1005 = vunpack.c.l.b16 %v997
    %v1006 = vpack.c.b16 %v1003, %v1002
    %v1007 = vpack.c.b16 %v1005, %v1004
    %1010 = vmatprep.subr.bf16.mxu0 0
    %1011 = vmatpush1.bf16.msra.mxu0 %v107
    %1012 = vmatprep.subr.bf16.mxu0 0
    %1013 = vmatpush1.bf16.msra.mxu0 %v108
    %1014 = vmatprep.subr.bf16.mxu0 0
    %1015 = vmatpush1.bf16.msra.mxu0 %v109
    %1016 = vmatprep.subr.bf16.mxu0 0
    %1017 = vmatpush1.bf16.msra.mxu0 %v110
    %1018 = vmatprep.subr.bf16.mxu0 0
    %1019 = vmatpush1.bf16.msra.mxu0 %v111
    %1020 = vmatprep.subr.bf16.mxu0 0
    %1021 = vmatpush1.bf16.msra.mxu0 %v112
    %1022 = vmatprep.subr.bf16.mxu0 0
    %1023 = vmatpush1.bf16.msra.mxu0 %v113
    %1024 = vmatprep.subr.bf16.mxu0 0
    %1025 = vmatpush1.bf16.msra.mxu0 %v114
    %1026 = vmatprep.subr.bf16.mxu0 0
    %1027 = vmatpush1.bf16.msra.mxu0 0
    %1028 = vmatprep.subr.bf16.mxu0 0
    %1029 = vmatpush1.bf16.msra.mxu0 0
    %1030 = vmatprep.subr.bf16.mxu0 0
    %1031 = vmatpush1.bf16.msra.mxu0 0
    %1032 = vmatprep.subr.bf16.mxu0 0
    %1033 = vmatpush1.bf16.msra.mxu0 0
    %1034 = vmatprep.subr.bf16.mxu0 0
    %1035 = vmatpush1.bf16.msra.mxu0 0
    %1036 = vmatprep.subr.bf16.mxu0 0
    %1037 = vmatpush1.bf16.msra.mxu0 0
    %1038 = vmatprep.subr.bf16.mxu0 0
    %1039 = vmatpush1.bf16.msra.mxu0 0
    %1040 = vmatprep.subr.bf16.mxu0 0
    %1041 = vmatpush1.bf16.msra.mxu0 0
    %1042 = vmatprep.mubr.bf16.mxu0 0
    %1043 = vmatmul.mubr.bf16.gmra.mrb[0].mxu0 %v1006
    %v1044 = vpop.f32.mrb[0].mxu0
    %v1045 = vadd.f32 0.0, %v1044
    %v1046 = vpop.f32.mrb[0].mxu0
    %v1047 = vpop.f32.mrb[0].mxu0
    %v1048 = vadd.f32 0.0, %v1047
    %v1049 = vpop.f32.mrb[0].mxu0
    %1050 = vmatprep.mubr.bf16.mxu0 0
    %1051 = vmatmul.mubr.bf16.gmra.mrb[0].mxu0 %v1007
    %v1052 = vpop.f32.mrb[0].mxu0
    %v1053 = vadd.f32 0.0, %v1052
    %v1054 = vpop.f32.mrb[0].mxu0
    %v1055 = vpop.f32.mrb[0].mxu0
    %v1056 = vadd.f32 0.0, %v1055
    %v1057 = vpop.f32.mrb[0].mxu0
    %1058 = vdwg.mxu0
    %v1059 = vpack.c.bf16 %v1048, %v1045
    %v1060 = vpack.c.bf16 %v1056, %v1053
    %s1061 = scalar_lea.vmem %s2, 512
    %v1062 = vld [vmem:[%s1061] sm:$0xff]
    %v1063 = vld [vmem:[%s1061 + $0x8] sm:$0xff]
    %v1064 = vld [vmem:[%s1061 + $0x10] sm:$0xff]
    %v1065 = vld [vmem:[%s1061 + $0x18] sm:$0xff]
    %v1066 = vld [vmem:[%s1061 + $0x20] sm:$0xff]
    %v1067 = vld [vmem:[%s1061 + $0x28] sm:$0xff]
    %v1068 = vld [vmem:[%s1061 + $0x30] sm:$0xff]
    %v1069 = vld [vmem:[%s1061 + $0x38] sm:$0xff]
    %v1070 = vld [vmem:[%s1061 + $0x40] sm:$0xff]
    %v1071 = vld [vmem:[%s1061 + $0x48] sm:$0xff]
    %v1072 = vld [vmem:[%s1061 + $0x50] sm:$0xff]
    %v1073 = vld [vmem:[%s1061 + $0x58] sm:$0xff]
    %v1074 = vld [vmem:[%s1061 + $0x60] sm:$0xff]
    %v1075 = vld [vmem:[%s1061 + $0x68] sm:$0xff]
    %v1076 = vld [vmem:[%s1061 + $0x70] sm:$0xff]
    %v1077 = vld [vmem:[%s1061 + $0x78] sm:$0xff]
    %v1094 = vunpack.c.l.b16 %v1062
    %v1095 = vunpack.c.h.b16 %v1062
    %v1096 = vunpack.c.l.b16 %v1063
    %v1097 = vunpack.c.h.b16 %v1063
    %v1098 = vunpack.c.l.b16 %v1064
    %v1099 = vunpack.c.h.b16 %v1064
    %v1100 = vunpack.c.l.b16 %v1065
    %v1101 = vunpack.c.h.b16 %v1065
    %v1102 = vunpack.c.l.b16 %v1066
    %v1103 = vunpack.c.h.b16 %v1066
    %v1104 = vunpack.c.l.b16 %v1067
    %v1105 = vunpack.c.h.b16 %v1067
    %v1106 = vunpack.c.l.b16 %v1068
    %v1107 = vunpack.c.h.b16 %v1068
    %v1108 = vunpack.c.l.b16 %v1069
    %v1109 = vunpack.c.h.b16 %v1069
    %v1110 = vunpack.c.l.b16 %v1070
    %v1111 = vunpack.c.h.b16 %v1070
    %v1112 = vunpack.c.l.b16 %v1071
    %v1113 = vunpack.c.h.b16 %v1071
    %v1114 = vunpack.c.l.b16 %v1072
    %v1115 = vunpack.c.h.b16 %v1072
    %v1116 = vunpack.c.l.b16 %v1073
    %v1117 = vunpack.c.h.b16 %v1073
    %v1118 = vunpack.c.l.b16 %v1074
    %v1119 = vunpack.c.h.b16 %v1074
    %v1120 = vunpack.c.l.b16 %v1075
    %v1121 = vunpack.c.h.b16 %v1075
    %v1122 = vunpack.c.l.b16 %v1076
    %v1123 = vunpack.c.h.b16 %v1076
    %v1124 = vunpack.c.l.b16 %v1077
    %v1125 = vunpack.c.h.b16 %v1077
    %v1126 = vpack.c.b16 %v1096, %v1094
    %v1127 = vpack.c.b16 %v1097, %v1095
    %v1128 = vpack.c.b16 %v1100, %v1098
    %v1129 = vpack.c.b16 %v1101, %v1099
    %v1130 = vpack.c.b16 %v1104, %v1102
    %v1131 = vpack.c.b16 %v1105, %v1103
    %v1132 = vpack.c.b16 %v1108, %v1106
    %v1133 = vpack.c.b16 %v1109, %v1107
    %v1134 = vpack.c.b16 %v1112, %v1110
    %v1135 = vpack.c.b16 %v1113, %v1111
    %v1136 = vpack.c.b16 %v1116, %v1114
    %v1137 = vpack.c.b16 %v1117, %v1115
    %v1138 = vpack.c.b16 %v1120, %v1118
    %v1139 = vpack.c.b16 %v1121, %v1119
    %v1140 = vpack.c.b16 %v1124, %v1122
    %v1141 = vpack.c.b16 %v1125, %v1123
    %1158 = vmatprep.subr.bf16.mxu0 %v1127
    %1159 = vmatpush1.bf16.msra.mxu0 %v1126
    %1160 = vmatprep.subr.bf16.mxu0 %v1129
    %1161 = vmatpush1.bf16.msra.mxu0 %v1128
    %1162 = vmatprep.subr.bf16.mxu0 %v1131
    %1163 = vmatpush1.bf16.msra.mxu0 %v1130
    %1164 = vmatprep.subr.bf16.mxu0 %v1133
    %1165 = vmatpush1.bf16.msra.mxu0 %v1132
    %1166 = vmatprep.subr.bf16.mxu0 %v1135
    %1167 = vmatpush1.bf16.msra.mxu0 %v1134
    %1168 = vmatprep.subr.bf16.mxu0 %v1137
    %1169 = vmatpush1.bf16.msra.mxu0 %v1136
    %1170 = vmatprep.subr.bf16.mxu0 %v1139
    %1171 = vmatpush1.bf16.msra.mxu0 %v1138
    %1172 = vmatprep.subr.bf16.mxu0 %v1141
    %1173 = vmatpush1.bf16.msra.mxu0 %v1140
    %1174 = vmatprep.subr.bf16.mxu0 0
    %1175 = vmatpush1.bf16.msra.mxu0 0
    %1176 = vmatprep.subr.bf16.mxu0 0
    %1177 = vmatpush1.bf16.msra.mxu0 0
    %1178 = vmatprep.subr.bf16.mxu0 0
    %1179 = vmatpush1.bf16.msra.mxu0 0
    %1180 = vmatprep.subr.bf16.mxu0 0
    %1181 = vmatpush1.bf16.msra.mxu0 0
    %1182 = vmatprep.subr.bf16.mxu0 0
    %1183 = vmatpush1.bf16.msra.mxu0 0
    %1184 = vmatprep.subr.bf16.mxu0 0
    %1185 = vmatpush1.bf16.msra.mxu0 0
    %1186 = vmatprep.subr.bf16.mxu0 0
    %1187 = vmatpush1.bf16.msra.mxu0 0
    %1188 = vmatprep.subr.bf16.mxu0 0
    %1189 = vmatpush1.bf16.msra.mxu0 0
    %1190 = vmatprep.mubr.bf16.mxu0 0
    %1191 = vmatmul.mubr.bf16.gmra.mrb[0].mxu0 %v1059
    %v1192 = vpop.f32.mrb[0].mxu0
    %v1193 = vadd.f32 0.0, %v1192
    %v1194 = vpop.f32.mrb[0].mxu0
    %v1195 = vadd.f32 0.0, %v1194
    %v1196 = vpop.f32.mrb[0].mxu0
    %v1197 = vadd.f32 0.0, %v1196
    %v1198 = vpop.f32.mrb[0].mxu0
    %v1199 = vadd.f32 0.0, %v1198
    %1200 = vmatprep.mubr.bf16.mxu0 0
    %1201 = vmatmul.mubr.bf16.gmra.mrb[0].mxu0 %v1060
    %v1202 = vpop.f32.mrb[0].mxu0
    %v1203 = vadd.f32 0.0, %v1202
    %v1204 = vpop.f32.mrb[0].mxu0
    %v1205 = vadd.f32 0.0, %v1204
    %v1206 = vpop.f32.mrb[0].mxu0
    %v1207 = vadd.f32 0.0, %v1206
    %v1208 = vpop.f32.mrb[0].mxu0
    %v1209 = vadd.f32 0.0, %v1208
    %1210 = vdwg.mxu0
    %v1211 = vadd.f32 %v985, %v1193
    %v1212 = vadd.f32 %v986, %v1195
    %v1213 = vadd.f32 %v987, %v1197
    %v1214 = vadd.f32 %v988, %v1199
    %v1215 = vadd.f32 %v989, %v1203
    %v1216 = vadd.f32 %v990, %v1205
    %v1217 = vadd.f32 %v991, %v1207
    %v1218 = vadd.f32 %v992, %v1209
    %s1219 = scalar_lea.vmem %s1, 80
    %v1220 = vld [vmem:[%s1219] sm:$0xf]
    %v1221 = vld [vmem:[%s1219 + $0x4] sm:$0xf]
    %v1222 = vld [vmem:[%s1219 + $0x8] sm:$0xf]
    %v1223 = vld [vmem:[%s1219 + $0xc] sm:$0xf]
    %v1228 = vunpack.c.l.b16 %v1220
    %v1229 = vunpack.c.l.b16 %v1221
    %v1230 = vunpack.c.l.b16 %v1222
    %v1231 = vunpack.c.l.b16 %v1223
    %v1232 = vpack.c.b16 %v1229, %v1228
    %v1233 = vpack.c.b16 %v1231, %v1230
    %1236 = vmatprep.subr.bf16.mxu0 0
    %1237 = vmatpush1.bf16.msra.mxu0 %v107
    %1238 = vmatprep.subr.bf16.mxu0 0
    %1239 = vmatpush1.bf16.msra.mxu0 %v108
    %1240 = vmatprep.subr.bf16.mxu0 0
    %1241 = vmatpush1.bf16.msra.mxu0 %v109
    %1242 = vmatprep.subr.bf16.mxu0 0
    %1243 = vmatpush1.bf16.msra.mxu0 %v110
    %1244 = vmatprep.subr.bf16.mxu0 0
    %1245 = vmatpush1.bf16.msra.mxu0 %v111
    %1246 = vmatprep.subr.bf16.mxu0 0
    %1247 = vmatpush1.bf16.msra.mxu0 %v112
    %1248 = vmatprep.subr.bf16.mxu0 0
    %1249 = vmatpush1.bf16.msra.mxu0 %v113
    %1250 = vmatprep.subr.bf16.mxu0 0
    %1251 = vmatpush1.bf16.msra.mxu0 %v114
    %1252 = vmatprep.subr.bf16.mxu0 0
    %1253 = vmatpush1.bf16.msra.mxu0 0
    %1254 = vmatprep.subr.bf16.mxu0 0
    %1255 = vmatpush1.bf16.msra.mxu0 0
    %1256 = vmatprep.subr.bf16.mxu0 0
    %1257 = vmatpush1.bf16.msra.mxu0 0
    %1258 = vmatprep.subr.bf16.mxu0 0
    %1259 = vmatpush1.bf16.msra.mxu0 0
    %1260 = vmatprep.subr.bf16.mxu0 0
    %1261 = vmatpush1.bf16.msra.mxu0 0
    %1262 = vmatprep.subr.bf16.mxu0 0
    %1263 = vmatpush1.bf16.msra.mxu0 0
    %1264 = vmatprep.subr.bf16.mxu0 0
    %1265 = vmatpush1.bf16.msra.mxu0 0
    %1266 = vmatprep.subr.bf16.mxu0 0
    %1267 = vmatpush1.bf16.msra.mxu0 0
    %1268 = vmatprep.mubr.bf16.mxu0 0
    %1269 = vmatmul.mubr.bf16.gmra.mrb[0].mxu0 %v1232
    %v1270 = vpop.f32.mrb[0].mxu0
    %v1271 = vadd.f32 0.0, %v1270
    %v1272 = vpop.f32.mrb[0].mxu0
    %v1273 = vpop.f32.mrb[0].mxu0
    %v1274 = vadd.f32 0.0, %v1273
    %v1275 = vpop.f32.mrb[0].mxu0
    %1276 = vmatprep.mubr.bf16.mxu0 0
    %1277 = vmatmul.mubr.bf16.gmra.mrb[0].mxu0 %v1233
    %v1278 = vpop.f32.mrb[0].mxu0
    %v1279 = vadd.f32 0.0, %v1278
    %v1280 = vpop.f32.mrb[0].mxu0
    %v1281 = vpop.f32.mrb[0].mxu0
    %v1282 = vadd.f32 0.0, %v1281
    %v1283 = vpop.f32.mrb[0].mxu0
    %1284 = vdwg.mxu0
    %v1285 = vpack.c.bf16 %v1274, %v1271
    %v1286 = vpack.c.bf16 %v1282, %v1279
    %s1287 = scalar_lea.vmem %s2, 640
    %v1288 = vld [vmem:[%s1287] sm:$0xff]
    %v1289 = vld [vmem:[%s1287 + $0x8] sm:$0xff]
    %v1290 = vld [vmem:[%s1287 + $0x10] sm:$0xff]
    %v1291 = vld [vmem:[%s1287 + $0x18] sm:$0xff]
    %v1292 = vld [vmem:[%s1287 + $0x20] sm:$0xff]
    %v1293 = vld [vmem:[%s1287 + $0x28] sm:$0xff]
    %v1294 = vld [vmem:[%s1287 + $0x30] sm:$0xff]
    %v1295 = vld [vmem:[%s1287 + $0x38] sm:$0xff]
    %v1296 = vld [vmem:[%s1287 + $0x40] sm:$0xff]
    %v1297 = vld [vmem:[%s1287 + $0x48] sm:$0xff]
    %v1298 = vld [vmem:[%s1287 + $0x50] sm:$0xff]
    %v1299 = vld [vmem:[%s1287 + $0x58] sm:$0xff]
    %v1300 = vld [vmem:[%s1287 + $0x60] sm:$0xff]
    %v1301 = vld [vmem:[%s1287 + $0x68] sm:$0xff]
    %v1302 = vld [vmem:[%s1287 + $0x70] sm:$0xff]
    %v1303 = vld [vmem:[%s1287 + $0x78] sm:$0xff]
    %v1320 = vunpack.c.l.b16 %v1288
    %v1321 = vunpack.c.h.b16 %v1288
    %v1322 = vunpack.c.l.b16 %v1289
    %v1323 = vunpack.c.h.b16 %v1289
    %v1324 = vunpack.c.l.b16 %v1290
    %v1325 = vunpack.c.h.b16 %v1290
    %v1326 = vunpack.c.l.b16 %v1291
    %v1327 = vunpack.c.h.b16 %v1291
    %v1328 = vunpack.c.l.b16 %v1292
    %v1329 = vunpack.c.h.b16 %v1292
    %v1330 = vunpack.c.l.b16 %v1293
    %v1331 = vunpack.c.h.b16 %v1293
    %v1332 = vunpack.c.l.b16 %v1294
    %v1333 = vunpack.c.h.b16 %v1294
    %v1334 = vunpack.c.l.b16 %v1295
    %v1335 = vunpack.c.h.b16 %v1295
    %v1336 = vunpack.c.l.b16 %v1296
    %v1337 = vunpack.c.h.b16 %v1296
    %v1338 = vunpack.c.l.b16 %v1297
    %v1339 = vunpack.c.h.b16 %v1297
    %v1340 = vunpack.c.l.b16 %v1298
    %v1341 = vunpack.c.h.b16 %v1298
    %v1342 = vunpack.c.l.b16 %v1299
    %v1343 = vunpack.c.h.b16 %v1299
    %v1344 = vunpack.c.l.b16 %v1300
    %v1345 = vunpack.c.h.b16 %v1300
    %v1346 = vunpack.c.l.b16 %v1301
    %v1347 = vunpack.c.h.b16 %v1301
    %v1348 = vunpack.c.l.b16 %v1302
    %v1349 = vunpack.c.h.b16 %v1302
    %v1350 = vunpack.c.l.b16 %v1303
    %v1351 = vunpack.c.h.b16 %v1303
    %v1352 = vpack.c.b16 %v1322, %v1320
    %v1353 = vpack.c.b16 %v1323, %v1321
    %v1354 = vpack.c.b16 %v1326, %v1324
    %v1355 = vpack.c.b16 %v1327, %v1325
    %v1356 = vpack.c.b16 %v1330, %v1328
    %v1357 = vpack.c.b16 %v1331, %v1329
    %v1358 = vpack.c.b16 %v1334, %v1332
    %v1359 = vpack.c.b16 %v1335, %v1333
    %v1360 = vpack.c.b16 %v1338, %v1336
    %v1361 = vpack.c.b16 %v1339, %v1337
    %v1362 = vpack.c.b16 %v1342, %v1340
    %v1363 = vpack.c.b16 %v1343, %v1341
    %v1364 = vpack.c.b16 %v1346, %v1344
    %v1365 = vpack.c.b16 %v1347, %v1345
    %v1366 = vpack.c.b16 %v1350, %v1348
    %v1367 = vpack.c.b16 %v1351, %v1349
    %1384 = vmatprep.subr.bf16.mxu0 %v1353
    %1385 = vmatpush1.bf16.msra.mxu0 %v1352
    %1386 = vmatprep.subr.bf16.mxu0 %v1355
    %1387 = vmatpush1.bf16.msra.mxu0 %v1354
    %1388 = vmatprep.subr.bf16.mxu0 %v1357
    %1389 = vmatpush1.bf16.msra.mxu0 %v1356
    %1390 = vmatprep.subr.bf16.mxu0 %v1359
    %1391 = vmatpush1.bf16.msra.mxu0 %v1358
    %1392 = vmatprep.subr.bf16.mxu0 %v1361
    %1393 = vmatpush1.bf16.msra.mxu0 %v1360
    %1394 = vmatprep.subr.bf16.mxu0 %v1363
    %1395 = vmatpush1.bf16.msra.mxu0 %v1362
    %1396 = vmatprep.subr.bf16.mxu0 %v1365
    %1397 = vmatpush1.bf16.msra.mxu0 %v1364
    %1398 = vmatprep.subr.bf16.mxu0 %v1367
    %1399 = vmatpush1.bf16.msra.mxu0 %v1366
    %1400 = vmatprep.subr.bf16.mxu0 0
    %1401 = vmatpush1.bf16.msra.mxu0 0
    %1402 = vmatprep.subr.bf16.mxu0 0
    %1403 = vmatpush1.bf16.msra.mxu0 0
    %1404 = vmatprep.subr.bf16.mxu0 0
    %1405 = vmatpush1.bf16.msra.mxu0 0
    %1406 = vmatprep.subr.bf16.mxu0 0
    %1407 = vmatpush1.bf16.msra.mxu0 0
    %1408 = vmatprep.subr.bf16.mxu0 0
    %1409 = vmatpush1.bf16.msra.mxu0 0
    %1410 = vmatprep.subr.bf16.mxu0 0
    %1411 = vmatpush1.bf16.msra.mxu0 0
    %1412 = vmatprep.subr.bf16.mxu0 0
    %1413 = vmatpush1.bf16.msra.mxu0 0
    %1414 = vmatprep.subr.bf16.mxu0 0
    %1415 = vmatpush1.bf16.msra.mxu0 0
    %1416 = vmatprep.mubr.bf16.mxu0 0
    %1417 = vmatmul.mubr.bf16.gmra.mrb[0].mxu0 %v1285
    %v1418 = vpop.f32.mrb[0].mxu0
    %v1419 = vadd.f32 0.0, %v1418
    %v1420 = vpop.f32.mrb[0].mxu0
    %v1421 = vadd.f32 0.0, %v1420
    %v1422 = vpop.f32.mrb[0].mxu0
    %v1423 = vadd.f32 0.0, %v1422
    %v1424 = vpop.f32.mrb[0].mxu0
    %v1425 = vadd.f32 0.0, %v1424
    %1426 = vmatprep.mubr.bf16.mxu0 0
    %1427 = vmatmul.mubr.bf16.gmra.mrb[0].mxu0 %v1286
    %v1428 = vpop.f32.mrb[0].mxu0
    %v1429 = vadd.f32 0.0, %v1428
    %v1430 = vpop.f32.mrb[0].mxu0
    %v1431 = vadd.f32 0.0, %v1430
    %v1432 = vpop.f32.mrb[0].mxu0
    %v1433 = vadd.f32 0.0, %v1432
    %v1434 = vpop.f32.mrb[0].mxu0
    %v1435 = vadd.f32 0.0, %v1434
    %1436 = vdwg.mxu0
    %v1437 = vadd.f32 %v1211, %v1419
    %v1438 = vadd.f32 %v1212, %v1421
    %v1439 = vadd.f32 %v1213, %v1423
    %v1440 = vadd.f32 %v1214, %v1425
    %v1441 = vadd.f32 %v1215, %v1429
    %v1442 = vadd.f32 %v1216, %v1431
    %v1443 = vadd.f32 %v1217, %v1433
    %v1444 = vadd.f32 %v1218, %v1435
    %s1445 = scalar_lea.vmem %s1, 96
    %v1446 = vld [vmem:[%s1445] sm:$0xf]
    %v1447 = vld [vmem:[%s1445 + $0x4] sm:$0xf]
    %v1448 = vld [vmem:[%s1445 + $0x8] sm:$0xf]
    %v1449 = vld [vmem:[%s1445 + $0xc] sm:$0xf]
    %v1454 = vunpack.c.l.b16 %v1446
    %v1455 = vunpack.c.l.b16 %v1447
    %v1456 = vunpack.c.l.b16 %v1448
    %v1457 = vunpack.c.l.b16 %v1449
    %v1458 = vpack.c.b16 %v1455, %v1454
    %v1459 = vpack.c.b16 %v1457, %v1456
    %1462 = vmatprep.subr.bf16.mxu0 0
    %1463 = vmatpush1.bf16.msra.mxu0 %v107
    %1464 = vmatprep.subr.bf16.mxu0 0
    %1465 = vmatpush1.bf16.msra.mxu0 %v108
    %1466 = vmatprep.subr.bf16.mxu0 0
    %1467 = vmatpush1.bf16.msra.mxu0 %v109
    %1468 = vmatprep.subr.bf16.mxu0 0
    %1469 = vmatpush1.bf16.msra.mxu0 %v110
    %1470 = vmatprep.subr.bf16.mxu0 0
    %1471 = vmatpush1.bf16.msra.mxu0 %v111
    %1472 = vmatprep.subr.bf16.mxu0 0
    %1473 = vmatpush1.bf16.msra.mxu0 %v112
    %1474 = vmatprep.subr.bf16.mxu0 0
    %1475 = vmatpush1.bf16.msra.mxu0 %v113
    %1476 = vmatprep.subr.bf16.mxu0 0
    %1477 = vmatpush1.bf16.msra.mxu0 %v114
    %1478 = vmatprep.subr.bf16.mxu0 0
    %1479 = vmatpush1.bf16.msra.mxu0 0
    %1480 = vmatprep.subr.bf16.mxu0 0
    %1481 = vmatpush1.bf16.msra.mxu0 0
    %1482 = vmatprep.subr.bf16.mxu0 0
    %1483 = vmatpush1.bf16.msra.mxu0 0
    %1484 = vmatprep.subr.bf16.mxu0 0
    %1485 = vmatpush1.bf16.msra.mxu0 0
    %1486 = vmatprep.subr.bf16.mxu0 0
    %1487 = vmatpush1.bf16.msra.mxu0 0
    %1488 = vmatprep.subr.bf16.mxu0 0
    %1489 = vmatpush1.bf16.msra.mxu0 0
    %1490 = vmatprep.subr.bf16.mxu0 0
    %1491 = vmatpush1.bf16.msra.mxu0 0
    %1492 = vmatprep.subr.bf16.mxu0 0
    %1493 = vmatpush1.bf16.msra.mxu0 0
    %1494 = vmatprep.mubr.bf16.mxu0 0
    %1495 = vmatmul.mubr.bf16.gmra.mrb[0].mxu0 %v1458
    %v1496 = vpop.f32.mrb[0].mxu0
    %v1497 = vadd.f32 0.0, %v1496
    %v1498 = vpop.f32.mrb[0].mxu0
    %v1499 = vpop.f32.mrb[0].mxu0
    %v1500 = vadd.f32 0.0, %v1499
    %v1501 = vpop.f32.mrb[0].mxu0
    %1502 = vmatprep.mubr.bf16.mxu0 0
    %1503 = vmatmul.mubr.bf16.gmra.mrb[0].mxu0 %v1459
    %v1504 = vpop.f32.mrb[0].mxu0
    %v1505 = vadd.f32 0.0, %v1504
    %v1506 = vpop.f32.mrb[0].mxu0
    %v1507 = vpop.f32.mrb[0].mxu0
    %v1508 = vadd.f32 0.0, %v1507
    %v1509 = vpop.f32.mrb[0].mxu0
    %1510 = vdwg.mxu0
    %v1511 = vpack.c.bf16 %v1500, %v1497
    %v1512 = vpack.c.bf16 %v1508, %v1505
    %s1513 = scalar_lea.vmem %s2, 768
    %v1514 = vld [vmem:[%s1513] sm:$0xff]
    %v1515 = vld [vmem:[%s1513 + $0x8] sm:$0xff]
    %v1516 = vld [vmem:[%s1513 + $0x10] sm:$0xff]
    %v1517 = vld [vmem:[%s1513 + $0x18] sm:$0xff]
    %v1518 = vld [vmem:[%s1513 + $0x20] sm:$0xff]
    %v1519 = vld [vmem:[%s1513 + $0x28] sm:$0xff]
    %v1520 = vld [vmem:[%s1513 + $0x30] sm:$0xff]
    %v1521 = vld [vmem:[%s1513 + $0x38] sm:$0xff]
    %v1522 = vld [vmem:[%s1513 + $0x40] sm:$0xff]
    %v1523 = vld [vmem:[%s1513 + $0x48] sm:$0xff]
    %v1524 = vld [vmem:[%s1513 + $0x50] sm:$0xff]
    %v1525 = vld [vmem:[%s1513 + $0x58] sm:$0xff]
    %v1526 = vld [vmem:[%s1513 + $0x60] sm:$0xff]
    %v1527 = vld [vmem:[%s1513 + $0x68] sm:$0xff]
    %v1528 = vld [vmem:[%s1513 + $0x70] sm:$0xff]
    %v1529 = vld [vmem:[%s1513 + $0x78] sm:$0xff]
    %v1546 = vunpack.c.l.b16 %v1514
    %v1547 = vunpack.c.h.b16 %v1514
    %v1548 = vunpack.c.l.b16 %v1515
    %v1549 = vunpack.c.h.b16 %v1515
    %v1550 = vunpack.c.l.b16 %v1516
    %v1551 = vunpack.c.h.b16 %v1516
    %v1552 = vunpack.c.l.b16 %v1517
    %v1553 = vunpack.c.h.b16 %v1517
    %v1554 = vunpack.c.l.b16 %v1518
    %v1555 = vunpack.c.h.b16 %v1518
    %v1556 = vunpack.c.l.b16 %v1519
    %v1557 = vunpack.c.h.b16 %v1519
    %v1558 = vunpack.c.l.b16 %v1520
    %v1559 = vunpack.c.h.b16 %v1520
    %v1560 = vunpack.c.l.b16 %v1521
    %v1561 = vunpack.c.h.b16 %v1521
    %v1562 = vunpack.c.l.b16 %v1522
    %v1563 = vunpack.c.h.b16 %v1522
    %v1564 = vunpack.c.l.b16 %v1523
    %v1565 = vunpack.c.h.b16 %v1523
    %v1566 = vunpack.c.l.b16 %v1524
    %v1567 = vunpack.c.h.b16 %v1524
    %v1568 = vunpack.c.l.b16 %v1525
    %v1569 = vunpack.c.h.b16 %v1525
    %v1570 = vunpack.c.l.b16 %v1526
    %v1571 = vunpack.c.h.b16 %v1526
    %v1572 = vunpack.c.l.b16 %v1527
    %v1573 = vunpack.c.h.b16 %v1527
    %v1574 = vunpack.c.l.b16 %v1528
    %v1575 = vunpack.c.h.b16 %v1528
    %v1576 = vunpack.c.l.b16 %v1529
    %v1577 = vunpack.c.h.b16 %v1529
    %v1578 = vpack.c.b16 %v1548, %v1546
    %v1579 = vpack.c.b16 %v1549, %v1547
    %v1580 = vpack.c.b16 %v1552, %v1550
    %v1581 = vpack.c.b16 %v1553, %v1551
    %v1582 = vpack.c.b16 %v1556, %v1554
    %v1583 = vpack.c.b16 %v1557, %v1555
    %v1584 = vpack.c.b16 %v1560, %v1558
    %v1585 = vpack.c.b16 %v1561, %v1559
    %v1586 = vpack.c.b16 %v1564, %v1562
    %v1587 = vpack.c.b16 %v1565, %v1563
    %v1588 = vpack.c.b16 %v1568, %v1566
    %v1589 = vpack.c.b16 %v1569, %v1567
    %v1590 = vpack.c.b16 %v1572, %v1570
    %v1591 = vpack.c.b16 %v1573, %v1571
    %v1592 = vpack.c.b16 %v1576, %v1574
    %v1593 = vpack.c.b16 %v1577, %v1575
    %1610 = vmatprep.subr.bf16.mxu0 %v1579
    %1611 = vmatpush1.bf16.msra.mxu0 %v1578
    %1612 = vmatprep.subr.bf16.mxu0 %v1581
    %1613 = vmatpush1.bf16.msra.mxu0 %v1580
    %1614 = vmatprep.subr.bf16.mxu0 %v1583
    %1615 = vmatpush1.bf16.msra.mxu0 %v1582
    %1616 = vmatprep.subr.bf16.mxu0 %v1585
    %1617 = vmatpush1.bf16.msra.mxu0 %v1584
    %1618 = vmatprep.subr.bf16.mxu0 %v1587
    %1619 = vmatpush1.bf16.msra.mxu0 %v1586
    %1620 = vmatprep.subr.bf16.mxu0 %v1589
    %1621 = vmatpush1.bf16.msra.mxu0 %v1588
    %1622 = vmatprep.subr.bf16.mxu0 %v1591
    %1623 = vmatpush1.bf16.msra.mxu0 %v1590
    %1624 = vmatprep.subr.bf16.mxu0 %v1593
    %1625 = vmatpush1.bf16.msra.mxu0 %v1592
    %1626 = vmatprep.subr.bf16.mxu0 0
    %1627 = vmatpush1.bf16.msra.mxu0 0
    %1628 = vmatprep.subr.bf16.mxu0 0
    %1629 = vmatpush1.bf16.msra.mxu0 0
    %1630 = vmatprep.subr.bf16.mxu0 0
    %1631 = vmatpush1.bf16.msra.mxu0 0
    %1632 = vmatprep.subr.bf16.mxu0 0
    %1633 = vmatpush1.bf16.msra.mxu0 0
    %1634 = vmatprep.subr.bf16.mxu0 0
    %1635 = vmatpush1.bf16.msra.mxu0 0
    %1636 = vmatprep.subr.bf16.mxu0 0
    %1637 = vmatpush1.bf16.msra.mxu0 0
    %1638 = vmatprep.subr.bf16.mxu0 0
    %1639 = vmatpush1.bf16.msra.mxu0 0
    %1640 = vmatprep.subr.bf16.mxu0 0
    %1641 = vmatpush1.bf16.msra.mxu0 0
    %1642 = vmatprep.mubr.bf16.mxu0 0
    %1643 = vmatmul.mubr.bf16.gmra.mrb[0].mxu0 %v1511
    %v1644 = vpop.f32.mrb[0].mxu0
    %v1645 = vadd.f32 0.0, %v1644
    %v1646 = vpop.f32.mrb[0].mxu0
    %v1647 = vadd.f32 0.0, %v1646
    %v1648 = vpop.f32.mrb[0].mxu0
    %v1649 = vadd.f32 0.0, %v1648
    %v1650 = vpop.f32.mrb[0].mxu0
    %v1651 = vadd.f32 0.0, %v1650
    %1652 = vmatprep.mubr.bf16.mxu0 0
    %1653 = vmatmul.mubr.bf16.gmra.mrb[0].mxu0 %v1512
    %v1654 = vpop.f32.mrb[0].mxu0
    %v1655 = vadd.f32 0.0, %v1654
    %v1656 = vpop.f32.mrb[0].mxu0
    %v1657 = vadd.f32 0.0, %v1656
    %v1658 = vpop.f32.mrb[0].mxu0
    %v1659 = vadd.f32 0.0, %v1658
    %v1660 = vpop.f32.mrb[0].mxu0
    %v1661 = vadd.f32 0.0, %v1660
    %1662 = vdwg.mxu0
    %v1663 = vadd.f32 %v1437, %v1645
    %v1664 = vadd.f32 %v1438, %v1647
    %v1665 = vadd.f32 %v1439, %v1649
    %v1666 = vadd.f32 %v1440, %v1651
    %v1667 = vadd.f32 %v1441, %v1655
    %v1668 = vadd.f32 %v1442, %v1657
    %v1669 = vadd.f32 %v1443, %v1659
    %v1670 = vadd.f32 %v1444, %v1661
    %s1671 = scalar_lea.vmem %s1, 112
    %v1672 = vld [vmem:[%s1671] sm:$0xf]
    %v1673 = vld [vmem:[%s1671 + $0x4] sm:$0xf]
    %v1674 = vld [vmem:[%s1671 + $0x8] sm:$0xf]
    %v1675 = vld [vmem:[%s1671 + $0xc] sm:$0xf]
    %v1680 = vunpack.c.l.b16 %v1672
    %v1681 = vunpack.c.l.b16 %v1673
    %v1682 = vunpack.c.l.b16 %v1674
    %v1683 = vunpack.c.l.b16 %v1675
    %v1684 = vpack.c.b16 %v1681, %v1680
    %v1685 = vpack.c.b16 %v1683, %v1682
    %1688 = vmatprep.subr.bf16.mxu0 0
    %1689 = vmatpush1.bf16.msra.mxu0 %v107
    %1690 = vmatprep.subr.bf16.mxu0 0
    %1691 = vmatpush1.bf16.msra.mxu0 %v108
    %1692 = vmatprep.subr.bf16.mxu0 0
    %1693 = vmatpush1.bf16.msra.mxu0 %v109
    %1694 = vmatprep.subr.bf16.mxu0 0
    %1695 = vmatpush1.bf16.msra.mxu0 %v110
    %1696 = vmatprep.subr.bf16.mxu0 0
    %1697 = vmatpush1.bf16.msra.mxu0 %v111
    %1698 = vmatprep.subr.bf16.mxu0 0
    %1699 = vmatpush1.bf16.msra.mxu0 %v112
    %1700 = vmatprep.subr.bf16.mxu0 0
    %1701 = vmatpush1.bf16.msra.mxu0 %v113
    %1702 = vmatprep.subr.bf16.mxu0 0
    %1703 = vmatpush1.bf16.msra.mxu0 %v114
    %1704 = vmatprep.subr.bf16.mxu0 0
    %1705 = vmatpush1.bf16.msra.mxu0 0
    %1706 = vmatprep.subr.bf16.mxu0 0
    %1707 = vmatpush1.bf16.msra.mxu0 0
    %1708 = vmatprep.subr.bf16.mxu0 0
    %1709 = vmatpush1.bf16.msra.mxu0 0
    %1710 = vmatprep.subr.bf16.mxu0 0
    %1711 = vmatpush1.bf16.msra.mxu0 0
    %1712 = vmatprep.subr.bf16.mxu0 0
    %1713 = vmatpush1.bf16.msra.mxu0 0
    %1714 = vmatprep.subr.bf16.mxu0 0
    %1715 = vmatpush1.bf16.msra.mxu0 0
    %1716 = vmatprep.subr.bf16.mxu0 0
    %1717 = vmatpush1.bf16.msra.mxu0 0
    %1718 = vmatprep.subr.bf16.mxu0 0
    %1719 = vmatpush1.bf16.msra.mxu0 0
    %1720 = vmatprep.mubr.bf16.mxu0 0
    %1721 = vmatmul.mubr.bf16.gmra.mrb[0].mxu0 %v1684
    %v1722 = vpop.f32.mrb[0].mxu0
    %v1723 = vadd.f32 0.0, %v1722
    %v1724 = vpop.f32.mrb[0].mxu0
    %v1725 = vpop.f32.mrb[0].mxu0
    %v1726 = vadd.f32 0.0, %v1725
    %v1727 = vpop.f32.mrb[0].mxu0
    %1728 = vmatprep.mubr.bf16.mxu0 0
    %1729 = vmatmul.mubr.bf16.gmra.mrb[0].mxu0 %v1685
    %v1730 = vpop.f32.mrb[0].mxu0
    %v1731 = vadd.f32 0.0, %v1730
    %v1732 = vpop.f32.mrb[0].mxu0
    %v1733 = vpop.f32.mrb[0].mxu0
    %v1734 = vadd.f32 0.0, %v1733
    %v1735 = vpop.f32.mrb[0].mxu0
    %1736 = vdwg.mxu0
    %v1737 = vpack.c.bf16 %v1726, %v1723
    %v1738 = vpack.c.bf16 %v1734, %v1731
    %s1739 = scalar_lea.vmem %s2, 896
    %v1740 = vld [vmem:[%s1739] sm:$0xff]
    %v1741 = vld [vmem:[%s1739 + $0x8] sm:$0xff]
    %v1742 = vld [vmem:[%s1739 + $0x10] sm:$0xff]
    %v1743 = vld [vmem:[%s1739 + $0x18] sm:$0xff]
    %v1744 = vld [vmem:[%s1739 + $0x20] sm:$0xff]
    %v1745 = vld [vmem:[%s1739 + $0x28] sm:$0xff]
    %v1746 = vld [vmem:[%s1739 + $0x30] sm:$0xff]
    %v1747 = vld [vmem:[%s1739 + $0x38] sm:$0xff]
    %v1748 = vld [vmem:[%s1739 + $0x40] sm:$0xff]
    %v1749 = vld [vmem:[%s1739 + $0x48] sm:$0xff]
    %v1750 = vld [vmem:[%s1739 + $0x50] sm:$0xff]
    %v1751 = vld [vmem:[%s1739 + $0x58] sm:$0xff]
    %v1752 = vld [vmem:[%s1739 + $0x60] sm:$0xff]
    %v1753 = vld [vmem:[%s1739 + $0x68] sm:$0xff]
    %v1754 = vld [vmem:[%s1739 + $0x70] sm:$0xff]
    %v1755 = vld [vmem:[%s1739 + $0x78] sm:$0xff]
    %v1772 = vunpack.c.l.b16 %v1740
    %v1773 = vunpack.c.h.b16 %v1740
    %v1774 = vunpack.c.l.b16 %v1741
    %v1775 = vunpack.c.h.b16 %v1741
    %v1776 = vunpack.c.l.b16 %v1742
    %v1777 = vunpack.c.h.b16 %v1742
    %v1778 = vunpack.c.l.b16 %v1743
    %v1779 = vunpack.c.h.b16 %v1743
    %v1780 = vunpack.c.l.b16 %v1744
    %v1781 = vunpack.c.h.b16 %v1744
    %v1782 = vunpack.c.l.b16 %v1745
    %v1783 = vunpack.c.h.b16 %v1745
    %v1784 = vunpack.c.l.b16 %v1746
    %v1785 = vunpack.c.h.b16 %v1746
    %v1786 = vunpack.c.l.b16 %v1747
    %v1787 = vunpack.c.h.b16 %v1747
    %v1788 = vunpack.c.l.b16 %v1748
    %v1789 = vunpack.c.h.b16 %v1748
    %v1790 = vunpack.c.l.b16 %v1749
    %v1791 = vunpack.c.h.b16 %v1749
    %v1792 = vunpack.c.l.b16 %v1750
    %v1793 = vunpack.c.h.b16 %v1750
    %v1794 = vunpack.c.l.b16 %v1751
    %v1795 = vunpack.c.h.b16 %v1751
    %v1796 = vunpack.c.l.b16 %v1752
    %v1797 = vunpack.c.h.b16 %v1752
    %v1798 = vunpack.c.l.b16 %v1753
    %v1799 = vunpack.c.h.b16 %v1753
    %v1800 = vunpack.c.l.b16 %v1754
    %v1801 = vunpack.c.h.b16 %v1754
    %v1802 = vunpack.c.l.b16 %v1755
    %v1803 = vunpack.c.h.b16 %v1755
    %v1804 = vpack.c.b16 %v1774, %v1772
    %v1805 = vpack.c.b16 %v1775, %v1773
    %v1806 = vpack.c.b16 %v1778, %v1776
    %v1807 = vpack.c.b16 %v1779, %v1777
    %v1808 = vpack.c.b16 %v1782, %v1780
    %v1809 = vpack.c.b16 %v1783, %v1781
    %v1810 = vpack.c.b16 %v1786, %v1784
    %v1811 = vpack.c.b16 %v1787, %v1785
    %v1812 = vpack.c.b16 %v1790, %v1788
    %v1813 = vpack.c.b16 %v1791, %v1789
    %v1814 = vpack.c.b16 %v1794, %v1792
    %v1815 = vpack.c.b16 %v1795, %v1793
    %v1816 = vpack.c.b16 %v1798, %v1796
    %v1817 = vpack.c.b16 %v1799, %v1797
    %v1818 = vpack.c.b16 %v1802, %v1800
    %v1819 = vpack.c.b16 %v1803, %v1801
    %1836 = vmatprep.subr.bf16.mxu0 %v1805
    %1837 = vmatpush1.bf16.msra.mxu0 %v1804
    %1838 = vmatprep.subr.bf16.mxu0 %v1807
    %1839 = vmatpush1.bf16.msra.mxu0 %v1806
    %1840 = vmatprep.subr.bf16.mxu0 %v1809
    %1841 = vmatpush1.bf16.msra.mxu0 %v1808
    %1842 = vmatprep.subr.bf16.mxu0 %v1811
    %1843 = vmatpush1.bf16.msra.mxu0 %v1810
    %1844 = vmatprep.subr.bf16.mxu0 %v1813
    %1845 = vmatpush1.bf16.msra.mxu0 %v1812
    %1846 = vmatprep.subr.bf16.mxu0 %v1815
    %1847 = vmatpush1.bf16.msra.mxu0 %v1814
    %1848 = vmatprep.subr.bf16.mxu0 %v1817
    %1849 = vmatpush1.bf16.msra.mxu0 %v1816
    %1850 = vmatprep.subr.bf16.mxu0 %v1819
    %1851 = vmatpush1.bf16.msra.mxu0 %v1818
    %1852 = vmatprep.subr.bf16.mxu0 0
    %1853 = vmatpush1.bf16.msra.mxu0 0
    %1854 = vmatprep.subr.bf16.mxu0 0
    %1855 = vmatpush1.bf16.msra.mxu0 0
    %1856 = vmatprep.subr.bf16.mxu0 0
    %1857 = vmatpush1.bf16.msra.mxu0 0
    %1858 = vmatprep.subr.bf16.mxu0 0
    %1859 = vmatpush1.bf16.msra.mxu0 0
    %1860 = vmatprep.subr.bf16.mxu0 0
    %1861 = vmatpush1.bf16.msra.mxu0 0
    %1862 = vmatprep.subr.bf16.mxu0 0
    %1863 = vmatpush1.bf16.msra.mxu0 0
    %1864 = vmatprep.subr.bf16.mxu0 0
    %1865 = vmatpush1.bf16.msra.mxu0 0
    %1866 = vmatprep.subr.bf16.mxu0 0
    %1867 = vmatpush1.bf16.msra.mxu0 0
    %1868 = vmatprep.mubr.bf16.mxu0 0
    %1869 = vmatmul.mubr.bf16.gmra.mrb[0].mxu0 %v1737
    %v1870 = vpop.f32.mrb[0].mxu0
    %v1871 = vadd.f32 0.0, %v1870
    %v1872 = vpop.f32.mrb[0].mxu0
    %v1873 = vadd.f32 0.0, %v1872
    %v1874 = vpop.f32.mrb[0].mxu0
    %v1875 = vadd.f32 0.0, %v1874
    %v1876 = vpop.f32.mrb[0].mxu0
    %v1877 = vadd.f32 0.0, %v1876
    %1878 = vmatprep.mubr.bf16.mxu0 0
    %1879 = vmatmul.mubr.bf16.gmra.mrb[0].mxu0 %v1738
    %v1880 = vpop.f32.mrb[0].mxu0
    %v1881 = vadd.f32 0.0, %v1880
    %v1882 = vpop.f32.mrb[0].mxu0
    %v1883 = vadd.f32 0.0, %v1882
    %v1884 = vpop.f32.mrb[0].mxu0
    %v1885 = vadd.f32 0.0, %v1884
    %v1886 = vpop.f32.mrb[0].mxu0
    %v1887 = vadd.f32 0.0, %v1886
    %1888 = vdwg.mxu0
    %v1889 = vadd.f32 %v1663, %v1871
    %v1890 = vadd.f32 %v1664, %v1873
    %v1891 = vadd.f32 %v1665, %v1875
    %v1892 = vadd.f32 %v1666, %v1877
    %v1893 = vadd.f32 %v1667, %v1881
    %v1894 = vadd.f32 %v1668, %v1883
    %v1895 = vadd.f32 %v1669, %v1885
    %v1896 = vadd.f32 %v1670, %v1887
    %s1897 = scalar_lea.vmem %s1, 128
    %v1898 = vld [vmem:[%s1897] sm:$0xf]
    %v1899 = vld [vmem:[%s1897 + $0x4] sm:$0xf]
    %v1900 = vld [vmem:[%s1897 + $0x8] sm:$0xf]
    %v1901 = vld [vmem:[%s1897 + $0xc] sm:$0xf]
    %v1906 = vunpack.c.l.b16 %v1898
    %v1907 = vunpack.c.l.b16 %v1899
    %v1908 = vunpack.c.l.b16 %v1900
    %v1909 = vunpack.c.l.b16 %v1901
    %v1910 = vpack.c.b16 %v1907, %v1906
    %v1911 = vpack.c.b16 %v1909, %v1908
    %1914 = vmatprep.subr.bf16.mxu0 0
    %1915 = vmatpush1.bf16.msra.mxu0 %v107
    %1916 = vmatprep.subr.bf16.mxu0 0
    %1917 = vmatpush1.bf16.msra.mxu0 %v108
    %1918 = vmatprep.subr.bf16.mxu0 0
    %1919 = vmatpush1.bf16.msra.mxu0 %v109
    %1920 = vmatprep.subr.bf16.mxu0 0
    %1921 = vmatpush1.bf16.msra.mxu0 %v110
    %1922 = vmatprep.subr.bf16.mxu0 0
    %1923 = vmatpush1.bf16.msra.mxu0 %v111
    %1924 = vmatprep.subr.bf16.mxu0 0
    %1925 = vmatpush1.bf16.msra.mxu0 %v112
    %1926 = vmatprep.subr.bf16.mxu0 0
    %1927 = vmatpush1.bf16.msra.mxu0 %v113
    %1928 = vmatprep.subr.bf16.mxu0 0
    %1929 = vmatpush1.bf16.msra.mxu0 %v114
    %1930 = vmatprep.subr.bf16.mxu0 0
    %1931 = vmatpush1.bf16.msra.mxu0 0
    %1932 = vmatprep.subr.bf16.mxu0 0
    %1933 = vmatpush1.bf16.msra.mxu0 0
    %1934 = vmatprep.subr.bf16.mxu0 0
    %1935 = vmatpush1.bf16.msra.mxu0 0
    %1936 = vmatprep.subr.bf16.mxu0 0
    %1937 = vmatpush1.bf16.msra.mxu0 0
    %1938 = vmatprep.subr.bf16.mxu0 0
    %1939 = vmatpush1.bf16.msra.mxu0 0
    %1940 = vmatprep.subr.bf16.mxu0 0
    %1941 = vmatpush1.bf16.msra.mxu0 0
    %1942 = vmatprep.subr.bf16.mxu0 0
    %1943 = vmatpush1.bf16.msra.mxu0 0
    %1944 = vmatprep.subr.bf16.mxu0 0
    %1945 = vmatpush1.bf16.msra.mxu0 0
    %1946 = vmatprep.mubr.bf16.mxu0 0
    %1947 = vmatmul.mubr.bf16.gmra.mrb[0].mxu0 %v1910
    %v1948 = vpop.f32.mrb[0].mxu0
    %v1949 = vadd.f32 0.0, %v1948
    %v1950 = vpop.f32.mrb[0].mxu0
    %v1951 = vpop.f32.mrb[0].mxu0
    %v1952 = vadd.f32 0.0, %v1951
    %v1953 = vpop.f32.mrb[0].mxu0
    %1954 = vmatprep.mubr.bf16.mxu0 0
    %1955 = vmatmul.mubr.bf16.gmra.mrb[0].mxu0 %v1911
    %v1956 = vpop.f32.mrb[0].mxu0
    %v1957 = vadd.f32 0.0, %v1956
    %v1958 = vpop.f32.mrb[0].mxu0
    %v1959 = vpop.f32.mrb[0].mxu0
    %v1960 = vadd.f32 0.0, %v1959
    %v1961 = vpop.f32.mrb[0].mxu0
    %1962 = vdwg.mxu0
    %v1963 = vpack.c.bf16 %v1952, %v1949
    %v1964 = vpack.c.bf16 %v1960, %v1957
    %s1965 = scalar_lea.vmem %s2, 1024
    %v1966 = vld [vmem:[%s1965] sm:$0xff]
    %v1967 = vld [vmem:[%s1965 + $0x8] sm:$0xff]
    %v1968 = vld [vmem:[%s1965 + $0x10] sm:$0xff]
    %v1969 = vld [vmem:[%s1965 + $0x18] sm:$0xff]
    %v1970 = vld [vmem:[%s1965 + $0x20] sm:$0xff]
    %v1971 = vld [vmem:[%s1965 + $0x28] sm:$0xff]
    %v1972 = vld [vmem:[%s1965 + $0x30] sm:$0xff]
    %v1973 = vld [vmem:[%s1965 + $0x38] sm:$0xff]
    %v1974 = vld [vmem:[%s1965 + $0x40] sm:$0xff]
    %v1975 = vld [vmem:[%s1965 + $0x48] sm:$0xff]
    %v1976 = vld [vmem:[%s1965 + $0x50] sm:$0xff]
    %v1977 = vld [vmem:[%s1965 + $0x58] sm:$0xff]
    %v1978 = vld [vmem:[%s1965 + $0x60] sm:$0xff]
    %v1979 = vld [vmem:[%s1965 + $0x68] sm:$0xff]
    %v1980 = vld [vmem:[%s1965 + $0x70] sm:$0xff]
    %v1981 = vld [vmem:[%s1965 + $0x78] sm:$0xff]
    %v1998 = vunpack.c.l.b16 %v1966
    %v1999 = vunpack.c.h.b16 %v1966
    %v2000 = vunpack.c.l.b16 %v1967
    %v2001 = vunpack.c.h.b16 %v1967
    %v2002 = vunpack.c.l.b16 %v1968
    %v2003 = vunpack.c.h.b16 %v1968
    %v2004 = vunpack.c.l.b16 %v1969
    %v2005 = vunpack.c.h.b16 %v1969
    %v2006 = vunpack.c.l.b16 %v1970
    %v2007 = vunpack.c.h.b16 %v1970
    %v2008 = vunpack.c.l.b16 %v1971
    %v2009 = vunpack.c.h.b16 %v1971
    %v2010 = vunpack.c.l.b16 %v1972
    %v2011 = vunpack.c.h.b16 %v1972
    %v2012 = vunpack.c.l.b16 %v1973
    %v2013 = vunpack.c.h.b16 %v1973
    %v2014 = vunpack.c.l.b16 %v1974
    %v2015 = vunpack.c.h.b16 %v1974
    %v2016 = vunpack.c.l.b16 %v1975
    %v2017 = vunpack.c.h.b16 %v1975
    %v2018 = vunpack.c.l.b16 %v1976
    %v2019 = vunpack.c.h.b16 %v1976
    %v2020 = vunpack.c.l.b16 %v1977
    %v2021 = vunpack.c.h.b16 %v1977
    %v2022 = vunpack.c.l.b16 %v1978
    %v2023 = vunpack.c.h.b16 %v1978
    %v2024 = vunpack.c.l.b16 %v1979
    %v2025 = vunpack.c.h.b16 %v1979
    %v2026 = vunpack.c.l.b16 %v1980
    %v2027 = vunpack.c.h.b16 %v1980
    %v2028 = vunpack.c.l.b16 %v1981
    %v2029 = vunpack.c.h.b16 %v1981
    %v2030 = vpack.c.b16 %v2000, %v1998
    %v2031 = vpack.c.b16 %v2001, %v1999
    %v2032 = vpack.c.b16 %v2004, %v2002
    %v2033 = vpack.c.b16 %v2005, %v2003
    %v2034 = vpack.c.b16 %v2008, %v2006
    %v2035 = vpack.c.b16 %v2009, %v2007
    %v2036 = vpack.c.b16 %v2012, %v2010
    %v2037 = vpack.c.b16 %v2013, %v2011
    %v2038 = vpack.c.b16 %v2016, %v2014
    %v2039 = vpack.c.b16 %v2017, %v2015
    %v2040 = vpack.c.b16 %v2020, %v2018
    %v2041 = vpack.c.b16 %v2021, %v2019
    %v2042 = vpack.c.b16 %v2024, %v2022
    %v2043 = vpack.c.b16 %v2025, %v2023
    %v2044 = vpack.c.b16 %v2028, %v2026
    %v2045 = vpack.c.b16 %v2029, %v2027
    %2062 = vmatprep.subr.bf16.mxu0 %v2031
    %2063 = vmatpush1.bf16.msra.mxu0 %v2030
    %2064 = vmatprep.subr.bf16.mxu0 %v2033
    %2065 = vmatpush1.bf16.msra.mxu0 %v2032
    %2066 = vmatprep.subr.bf16.mxu0 %v2035
    %2067 = vmatpush1.bf16.msra.mxu0 %v2034
    %2068 = vmatprep.subr.bf16.mxu0 %v2037
    %2069 = vmatpush1.bf16.msra.mxu0 %v2036
    %2070 = vmatprep.subr.bf16.mxu0 %v2039
    %2071 = vmatpush1.bf16.msra.mxu0 %v2038
    %2072 = vmatprep.subr.bf16.mxu0 %v2041
    %2073 = vmatpush1.bf16.msra.mxu0 %v2040
    %2074 = vmatprep.subr.bf16.mxu0 %v2043
    %2075 = vmatpush1.bf16.msra.mxu0 %v2042
    %2076 = vmatprep.subr.bf16.mxu0 %v2045
    %2077 = vmatpush1.bf16.msra.mxu0 %v2044
    %2078 = vmatprep.subr.bf16.mxu0 0
    %2079 = vmatpush1.bf16.msra.mxu0 0
    %2080 = vmatprep.subr.bf16.mxu0 0
    %2081 = vmatpush1.bf16.msra.mxu0 0
    %2082 = vmatprep.subr.bf16.mxu0 0
    %2083 = vmatpush1.bf16.msra.mxu0 0
    %2084 = vmatprep.subr.bf16.mxu0 0
    %2085 = vmatpush1.bf16.msra.mxu0 0
    %2086 = vmatprep.subr.bf16.mxu0 0
    %2087 = vmatpush1.bf16.msra.mxu0 0
    %2088 = vmatprep.subr.bf16.mxu0 0
    %2089 = vmatpush1.bf16.msra.mxu0 0
    %2090 = vmatprep.subr.bf16.mxu0 0
    %2091 = vmatpush1.bf16.msra.mxu0 0
    %2092 = vmatprep.subr.bf16.mxu0 0
    %2093 = vmatpush1.bf16.msra.mxu0 0
    %2094 = vmatprep.mubr.bf16.mxu0 0
    %2095 = vmatmul.mubr.bf16.gmra.mrb[0].mxu0 %v1963
    %v2096 = vpop.f32.mrb[0].mxu0
    %v2097 = vadd.f32 0.0, %v2096
    %v2098 = vpop.f32.mrb[0].mxu0
    %v2099 = vadd.f32 0.0, %v2098
    %v2100 = vpop.f32.mrb[0].mxu0
    %v2101 = vadd.f32 0.0, %v2100
    %v2102 = vpop.f32.mrb[0].mxu0
    %v2103 = vadd.f32 0.0, %v2102
    %2104 = vmatprep.mubr.bf16.mxu0 0
    %2105 = vmatmul.mubr.bf16.gmra.mrb[0].mxu0 %v1964
    %v2106 = vpop.f32.mrb[0].mxu0
    %v2107 = vadd.f32 0.0, %v2106
    %v2108 = vpop.f32.mrb[0].mxu0
    %v2109 = vadd.f32 0.0, %v2108
    %v2110 = vpop.f32.mrb[0].mxu0
    %v2111 = vadd.f32 0.0, %v2110
    %v2112 = vpop.f32.mrb[0].mxu0
    %v2113 = vadd.f32 0.0, %v2112
    %2114 = vdwg.mxu0
    %v2115 = vadd.f32 %v1889, %v2097
    %v2116 = vadd.f32 %v1890, %v2099
    %v2117 = vadd.f32 %v1891, %v2101
    %v2118 = vadd.f32 %v1892, %v2103
    %v2119 = vadd.f32 %v1893, %v2107
    %v2120 = vadd.f32 %v1894, %v2109
    %v2121 = vadd.f32 %v1895, %v2111
    %v2122 = vadd.f32 %v1896, %v2113
    %v2123 = vld [vmem:[%s3] sm:$0x3]
    %v2125 = vlaneseq
    %v2126 = vshrl.u32 %v2125, 7
    %v2127 = vsub.s32 0, %v2126
    %v2128 = vrot.slane %v2123, %v2127
    %v2129 = vlaneseq
    %v2130 = vshrl.u32 %v2129, 7
    %v2131 = vsub.s32 1, %v2130
    %v2132 = vrot.slane %v2123, %v2131
    %v2135 = vadd.f32 %v2115, %v2128
    %v2136 = vadd.f32 %v2116, %v2132
    %v2137 = vadd.f32 %v2117, %v2128
    %v2138 = vadd.f32 %v2118, %v2132
    %v2139 = vadd.f32 %v2119, %v2128
    %v2140 = vadd.f32 %v2120, %v2132
    %v2141 = vadd.f32 %v2121, %v2128
    %v2142 = vadd.f32 %v2122, %v2132
    %v2143 = vmax.f32 %v2135, 0.0
    %v2144 = vmax.f32 %v2136, 0.0
    %v2145 = vmax.f32 %v2137, 0.0
    %v2146 = vmax.f32 %v2138, 0.0
    %v2147 = vmax.f32 %v2139, 0.0
    %v2148 = vmax.f32 %v2140, 0.0
    %v2149 = vmax.f32 %v2141, 0.0
    %v2150 = vmax.f32 %v2142, 0.0
    %v2151 = vpack.c.bf16 %v2145, %v2143
    %v2152 = vpack.c.bf16 %v2146, %v2144
    %v2153 = vpack.c.bf16 %v2149, %v2147
    %v2154 = vpack.c.bf16 %v2150, %v2148
    %v2155 = vld [vmem:[%s4] sm:$0xf]
    %vm2156 = vcmask 261120
    %v2158 = vsel %vm2156, %v2155, 0
    %2160 = vmatprep.subr.bf16.mxu0 %v2152
    %2161 = vmatpush1.bf16.msra.mxu0 %v2151
    %2162 = vmatprep.subr.bf16.mxu0 %v2154
    %2163 = vmatpush1.bf16.msra.mxu0 %v2153
    %2164 = vmatprep.subr.bf16.mxu0 0
    %2165 = vmatpush1.bf16.msra.mxu0 0
    %2166 = vmatprep.subr.bf16.mxu0 0
    %2167 = vmatpush1.bf16.msra.mxu0 0
    %2168 = vmatprep.subr.bf16.mxu0 0
    %2169 = vmatpush1.bf16.msra.mxu0 0
    %2170 = vmatprep.subr.bf16.mxu0 0
    %2171 = vmatpush1.bf16.msra.mxu0 0
    %2172 = vmatprep.subr.bf16.mxu0 0
    %2173 = vmatpush1.bf16.msra.mxu0 0
    %2174 = vmatprep.subr.bf16.mxu0 0
    %2175 = vmatpush1.bf16.msra.mxu0 0
    %2176 = vmatprep.subr.bf16.mxu0 0
    %2177 = vmatpush1.bf16.msra.mxu0 0
    %2178 = vmatprep.subr.bf16.mxu0 0
    %2179 = vmatpush1.bf16.msra.mxu0 0
    %2180 = vmatprep.subr.bf16.mxu0 0
    %2181 = vmatpush1.bf16.msra.mxu0 0
    %2182 = vmatprep.subr.bf16.mxu0 0
    %2183 = vmatpush1.bf16.msra.mxu0 0
    %2184 = vmatprep.subr.bf16.mxu0 0
    %2185 = vmatpush1.bf16.msra.mxu0 0
    %2186 = vmatprep.subr.bf16.mxu0 0
    %2187 = vmatpush1.bf16.msra.mxu0 0
    %2188 = vmatprep.subr.bf16.mxu0 0
    %2189 = vmatpush1.bf16.msra.mxu0 0
    %2190 = vmatprep.subr.bf16.mxu0 0
    %2191 = vmatpush1.bf16.msra.mxu0 0
    %2192 = vmatprep.mubr.bf16.mxu0 0
    %2193 = vmatmul.mubr.bf16.gmra.mrb[0].mxu0 %v2158
    %v2194 = vpop.f32.mrb[0].mxu0
    %v2195 = vadd.f32 0.0, %v2194
    %v2196 = vpop.f32.mrb[0].mxu0
    %v2197 = vadd.f32 0.0, %v2196
    %v2198 = vpop.f32.mrb[0].mxu0
    %v2199 = vpop.f32.mrb[0].mxu0
    %2200 = vdwg.mxu0
    %v2201 = vpack.c.bf16 %v2195, %v2195
    %v2202 = vpack.c.bf16 %v2197, %v2197
    %v2203 = vld [vmem:[%s5] sm:$0xff]
    %v2204 = vld [vmem:[%s5 + $0x8] sm:$0xff]
    %v2205 = vld [vmem:[%s5 + $0x10] sm:$0xff]
    %v2206 = vld [vmem:[%s5 + $0x18] sm:$0xff]
    %v2207 = vld [vmem:[%s5 + $0x20] sm:$0xff]
    %v2208 = vld [vmem:[%s5 + $0x28] sm:$0xff]
    %v2209 = vld [vmem:[%s5 + $0x30] sm:$0xff]
    %v2210 = vld [vmem:[%s5 + $0x38] sm:$0xff]
    %v2211 = vld [vmem:[%s5 + $0x40] sm:$0xff]
    %v2212 = vld [vmem:[%s5 + $0x48] sm:$0xff]
    %v2213 = vld [vmem:[%s5 + $0x50] sm:$0xff]
    %v2214 = vld [vmem:[%s5 + $0x58] sm:$0xff]
    %v2215 = vld [vmem:[%s5 + $0x60] sm:$0xff]
    %v2216 = vld [vmem:[%s5 + $0x68] sm:$0xff]
    %v2217 = vld [vmem:[%s5 + $0x70] sm:$0xff]
    %v2218 = vld [vmem:[%s5 + $0x78] sm:$0xff]
    %v2219 = vld [vmem:[%s5 + $0x80] sm:$0xff]
    %v2220 = vld [vmem:[%s5 + $0x88] sm:$0xff]
    %v2221 = vld [vmem:[%s5 + $0x90] sm:$0xff]
    %v2222 = vld [vmem:[%s5 + $0x98] sm:$0xff]
    %v2223 = vld [vmem:[%s5 + $0xa0] sm:$0xff]
    %v2224 = vld [vmem:[%s5 + $0xa8] sm:$0xff]
    %v2225 = vld [vmem:[%s5 + $0xb0] sm:$0xff]
    %v2226 = vld [vmem:[%s5 + $0xb8] sm:$0xff]
    %v2227 = vld [vmem:[%s5 + $0xc0] sm:$0xff]
    %v2228 = vld [vmem:[%s5 + $0xc8] sm:$0xff]
    %v2229 = vld [vmem:[%s5 + $0xd0] sm:$0xff]
    %v2230 = vld [vmem:[%s5 + $0xd8] sm:$0xff]
    %v2231 = vld [vmem:[%s5 + $0xe0] sm:$0xff]
    %v2232 = vld [vmem:[%s5 + $0xe8] sm:$0xff]
    %v2233 = vld [vmem:[%s5 + $0xf0] sm:$0xff]
    %v2234 = vld [vmem:[%s5 + $0xf8] sm:$0xff]
    %v2235 = vld [vmem:[%s5 + $0x100] sm:$0xff]
    %v2236 = vld [vmem:[%s5 + $0x108] sm:$0xff]
    %v2237 = vld [vmem:[%s5 + $0x110] sm:$0xff]
    %v2238 = vld [vmem:[%s5 + $0x118] sm:$0xff]
    %v2239 = vld [vmem:[%s5 + $0x120] sm:$0xff]
    %v2240 = vld [vmem:[%s5 + $0x128] sm:$0xff]
    %v2241 = vld [vmem:[%s5 + $0x130] sm:$0xff]
    %v2242 = vld [vmem:[%s5 + $0x138] sm:$0xff]
    %v2243 = vld [vmem:[%s5 + $0x140] sm:$0xff]
    %v2244 = vld [vmem:[%s5 + $0x148] sm:$0xff]
    %v2245 = vld [vmem:[%s5 + $0x150] sm:$0xff]
    %v2246 = vld [vmem:[%s5 + $0x158] sm:$0xff]
    %v2247 = vld [vmem:[%s5 + $0x160] sm:$0xff]
    %v2248 = vld [vmem:[%s5 + $0x168] sm:$0xff]
    %v2249 = vld [vmem:[%s5 + $0x170] sm:$0xff]
    %v2250 = vld [vmem:[%s5 + $0x178] sm:$0xff]
    %v2251 = vld [vmem:[%s5 + $0x180] sm:$0xff]
    %v2252 = vld [vmem:[%s5 + $0x188] sm:$0xff]
    %v2253 = vld [vmem:[%s5 + $0x190] sm:$0xff]
    %v2254 = vld [vmem:[%s5 + $0x198] sm:$0xff]
    %v2255 = vld [vmem:[%s5 + $0x1a0] sm:$0xff]
    %v2256 = vld [vmem:[%s5 + $0x1a8] sm:$0xff]
    %v2257 = vld [vmem:[%s5 + $0x1b0] sm:$0xff]
    %v2258 = vld [vmem:[%s5 + $0x1b8] sm:$0xff]
    %v2259 = vld [vmem:[%s5 + $0x1c0] sm:$0xff]
    %v2260 = vld [vmem:[%s5 + $0x1c8] sm:$0xff]
    %v2261 = vld [vmem:[%s5 + $0x1d0] sm:$0xff]
    %v2262 = vld [vmem:[%s5 + $0x1d8] sm:$0xff]
    %v2263 = vld [vmem:[%s5 + $0x1e0] sm:$0xff]
    %v2264 = vld [vmem:[%s5 + $0x1e8] sm:$0xff]
    %v2265 = vld [vmem:[%s5 + $0x1f0] sm:$0xff]
    %v2266 = vld [vmem:[%s5 + $0x1f8] sm:$0xff]
    %s2267 = scalar_lea.vmem %s4, 4
    %v2268 = vld [vmem:[%s2267] sm:$0xf]
    %v2270 = vsel %vm2156, %v2268, 0
    %2272 = vmatprep.subr.bf16.mxu0 %v2152
    %2273 = vmatpush1.bf16.msra.mxu0 %v2151
    %2274 = vmatprep.subr.bf16.mxu0 %v2154
    %2275 = vmatpush1.bf16.msra.mxu0 %v2153
    %2276 = vmatprep.subr.bf16.mxu0 0
    %2277 = vmatpush1.bf16.msra.mxu0 0
    %2278 = vmatprep.subr.bf16.mxu0 0
    %2279 = vmatpush1.bf16.msra.mxu0 0
    %2280 = vmatprep.subr.bf16.mxu0 0
    %2281 = vmatpush1.bf16.msra.mxu0 0
    %2282 = vmatprep.subr.bf16.mxu0 0
    %2283 = vmatpush1.bf16.msra.mxu0 0
    %2284 = vmatprep.subr.bf16.mxu0 0
    %2285 = vmatpush1.bf16.msra.mxu0 0
    %2286 = vmatprep.subr.bf16.mxu0 0
    %2287 = vmatpush1.bf16.msra.mxu0 0
    %2288 = vmatprep.subr.bf16.mxu0 0
    %2289 = vmatpush1.bf16.msra.mxu0 0
    %2290 = vmatprep.subr.bf16.mxu0 0
    %2291 = vmatpush1.bf16.msra.mxu0 0
    %2292 = vmatprep.subr.bf16.mxu0 0
    %2293 = vmatpush1.bf16.msra.mxu0 0
    %2294 = vmatprep.subr.bf16.mxu0 0
    %2295 = vmatpush1.bf16.msra.mxu0 0
    %2296 = vmatprep.subr.bf16.mxu0 0
    %2297 = vmatpush1.bf16.msra.mxu0 0
    %2298 = vmatprep.subr.bf16.mxu0 0
    %2299 = vmatpush1.bf16.msra.mxu0 0
    %2300 = vmatprep.subr.bf16.mxu0 0
    %2301 = vmatpush1.bf16.msra.mxu0 0
    %2302 = vmatprep.subr.bf16.mxu0 0
    %2303 = vmatpush1.bf16.msra.mxu0 0
    %2304 = vmatprep.mubr.bf16.mxu0 0
    %2305 = vmatmul.mubr.bf16.gmra.mrb[0].mxu0 %v2270
    %v2306 = vpop.f32.mrb[0].mxu0
    %v2307 = vadd.f32 0.0, %v2306
    %v2308 = vpop.f32.mrb[0].mxu0
    %v2309 = vadd.f32 0.0, %v2308
    %v2310 = vpop.f32.mrb[0].mxu0
    %v2311 = vpop.f32.mrb[0].mxu0
    %2312 = vdwg.mxu0
    %v2313 = vpack.c.bf16 %v2307, %v2307
    %v2314 = vpack.c.bf16 %v2309, %v2309
    %s2315 = scalar_lea.vmem %s5, 512
    %v2316 = vld [vmem:[%s2315] sm:$0xff]
    %v2317 = vld [vmem:[%s2315 + $0x8] sm:$0xff]
    %v2318 = vld [vmem:[%s2315 + $0x10] sm:$0xff]
    %v2319 = vld [vmem:[%s2315 + $0x18] sm:$0xff]
    %v2320 = vld [vmem:[%s2315 + $0x20] sm:$0xff]
    %v2321 = vld [vmem:[%s2315 + $0x28] sm:$0xff]
    %v2322 = vld [vmem:[%s2315 + $0x30] sm:$0xff]
    %v2323 = vld [vmem:[%s2315 + $0x38] sm:$0xff]
    %v2324 = vld [vmem:[%s2315 + $0x40] sm:$0xff]
    %v2325 = vld [vmem:[%s2315 + $0x48] sm:$0xff]
    %v2326 = vld [vmem:[%s2315 + $0x50] sm:$0xff]
    %v2327 = vld [vmem:[%s2315 + $0x58] sm:$0xff]
    %v2328 = vld [vmem:[%s2315 + $0x60] sm:$0xff]
    %v2329 = vld [vmem:[%s2315 + $0x68] sm:$0xff]
    %v2330 = vld [vmem:[%s2315 + $0x70] sm:$0xff]
    %v2331 = vld [vmem:[%s2315 + $0x78] sm:$0xff]
    %v2332 = vld [vmem:[%s2315 + $0x80] sm:$0xff]
    %v2333 = vld [vmem:[%s2315 + $0x88] sm:$0xff]
    %v2334 = vld [vmem:[%s2315 + $0x90] sm:$0xff]
    %v2335 = vld [vmem:[%s2315 + $0x98] sm:$0xff]
    %v2336 = vld [vmem:[%s2315 + $0xa0] sm:$0xff]
    %v2337 = vld [vmem:[%s2315 + $0xa8] sm:$0xff]
    %v2338 = vld [vmem:[%s2315 + $0xb0] sm:$0xff]
    %v2339 = vld [vmem:[%s2315 + $0xb8] sm:$0xff]
    %v2340 = vld [vmem:[%s2315 + $0xc0] sm:$0xff]
    %v2341 = vld [vmem:[%s2315 + $0xc8] sm:$0xff]
    %v2342 = vld [vmem:[%s2315 + $0xd0] sm:$0xff]
    %v2343 = vld [vmem:[%s2315 + $0xd8] sm:$0xff]
    %v2344 = vld [vmem:[%s2315 + $0xe0] sm:$0xff]
    %v2345 = vld [vmem:[%s2315 + $0xe8] sm:$0xff]
    %v2346 = vld [vmem:[%s2315 + $0xf0] sm:$0xff]
    %v2347 = vld [vmem:[%s2315 + $0xf8] sm:$0xff]
    %v2348 = vld [vmem:[%s2315 + $0x100] sm:$0xff]
    %v2349 = vld [vmem:[%s2315 + $0x108] sm:$0xff]
    %v2350 = vld [vmem:[%s2315 + $0x110] sm:$0xff]
    %v2351 = vld [vmem:[%s2315 + $0x118] sm:$0xff]
    %v2352 = vld [vmem:[%s2315 + $0x120] sm:$0xff]
    %v2353 = vld [vmem:[%s2315 + $0x128] sm:$0xff]
    %v2354 = vld [vmem:[%s2315 + $0x130] sm:$0xff]
    %v2355 = vld [vmem:[%s2315 + $0x138] sm:$0xff]
    %v2356 = vld [vmem:[%s2315 + $0x140] sm:$0xff]
    %v2357 = vld [vmem:[%s2315 + $0x148] sm:$0xff]
    %v2358 = vld [vmem:[%s2315 + $0x150] sm:$0xff]
    %v2359 = vld [vmem:[%s2315 + $0x158] sm:$0xff]
    %v2360 = vld [vmem:[%s2315 + $0x160] sm:$0xff]
    %v2361 = vld [vmem:[%s2315 + $0x168] sm:$0xff]
    %v2362 = vld [vmem:[%s2315 + $0x170] sm:$0xff]
    %v2363 = vld [vmem:[%s2315 + $0x178] sm:$0xff]
    %v2364 = vld [vmem:[%s2315 + $0x180] sm:$0xff]
    %v2365 = vld [vmem:[%s2315 + $0x188] sm:$0xff]
    %v2366 = vld [vmem:[%s2315 + $0x190] sm:$0xff]
    %v2367 = vld [vmem:[%s2315 + $0x198] sm:$0xff]
    %v2368 = vld [vmem:[%s2315 + $0x1a0] sm:$0xff]
    %v2369 = vld [vmem:[%s2315 + $0x1a8] sm:$0xff]
    %v2370 = vld [vmem:[%s2315 + $0x1b0] sm:$0xff]
    %v2371 = vld [vmem:[%s2315 + $0x1b8] sm:$0xff]
    %v2372 = vld [vmem:[%s2315 + $0x1c0] sm:$0xff]
    %v2373 = vld [vmem:[%s2315 + $0x1c8] sm:$0xff]
    %v2374 = vld [vmem:[%s2315 + $0x1d0] sm:$0xff]
    %v2375 = vld [vmem:[%s2315 + $0x1d8] sm:$0xff]
    %v2376 = vld [vmem:[%s2315 + $0x1e0] sm:$0xff]
    %v2377 = vld [vmem:[%s2315 + $0x1e8] sm:$0xff]
    %v2378 = vld [vmem:[%s2315 + $0x1f0] sm:$0xff]
    %v2379 = vld [vmem:[%s2315 + $0x1f8] sm:$0xff]
    %v2444 = vunpack.c.l.b16 %v2316
    %v2445 = vunpack.c.h.b16 %v2316
    %v2446 = vunpack.c.l.b16 %v2317
    %v2447 = vunpack.c.h.b16 %v2317
    %v2448 = vunpack.c.l.b16 %v2318
    %v2449 = vunpack.c.h.b16 %v2318
    %v2450 = vunpack.c.l.b16 %v2319
    %v2451 = vunpack.c.h.b16 %v2319
    %v2452 = vunpack.c.l.b16 %v2320
    %v2453 = vunpack.c.h.b16 %v2320
    %v2454 = vunpack.c.l.b16 %v2321
    %v2455 = vunpack.c.h.b16 %v2321
    %v2456 = vunpack.c.l.b16 %v2322
    %v2457 = vunpack.c.h.b16 %v2322
    %v2458 = vunpack.c.l.b16 %v2323
    %v2459 = vunpack.c.h.b16 %v2323
    %v2460 = vunpack.c.l.b16 %v2324
    %v2461 = vunpack.c.h.b16 %v2324
    %v2462 = vunpack.c.l.b16 %v2325
    %v2463 = vunpack.c.h.b16 %v2325
    %v2464 = vunpack.c.l.b16 %v2326
    %v2465 = vunpack.c.h.b16 %v2326
    %v2466 = vunpack.c.l.b16 %v2327
    %v2467 = vunpack.c.h.b16 %v2327
    %v2468 = vunpack.c.l.b16 %v2328
    %v2469 = vunpack.c.h.b16 %v2328
    %v2470 = vunpack.c.l.b16 %v2329
    %v2471 = vunpack.c.h.b16 %v2329
    %v2472 = vunpack.c.l.b16 %v2330
    %v2473 = vunpack.c.h.b16 %v2330
    %v2474 = vunpack.c.l.b16 %v2331
    %v2475 = vunpack.c.h.b16 %v2331
    %v2476 = vunpack.c.l.b16 %v2332
    %v2477 = vunpack.c.h.b16 %v2332
    %v2478 = vunpack.c.l.b16 %v2333
    %v2479 = vunpack.c.h.b16 %v2333
    %v2480 = vunpack.c.l.b16 %v2334
    %v2481 = vunpack.c.h.b16 %v2334
    %v2482 = vunpack.c.l.b16 %v2335
    %v2483 = vunpack.c.h.b16 %v2335
    %v2484 = vunpack.c.l.b16 %v2336
    %v2485 = vunpack.c.h.b16 %v2336
    %v2486 = vunpack.c.l.b16 %v2337
    %v2487 = vunpack.c.h.b16 %v2337
    %v2488 = vunpack.c.l.b16 %v2338
    %v2489 = vunpack.c.h.b16 %v2338
    %v2490 = vunpack.c.l.b16 %v2339
    %v2491 = vunpack.c.h.b16 %v2339
    %v2492 = vunpack.c.l.b16 %v2340
    %v2493 = vunpack.c.h.b16 %v2340
    %v2494 = vunpack.c.l.b16 %v2341
    %v2495 = vunpack.c.h.b16 %v2341
    %v2496 = vunpack.c.l.b16 %v2342
    %v2497 = vunpack.c.h.b16 %v2342
    %v2498 = vunpack.c.l.b16 %v2343
    %v2499 = vunpack.c.h.b16 %v2343
    %v2500 = vunpack.c.l.b16 %v2344
    %v2501 = vunpack.c.h.b16 %v2344
    %v2502 = vunpack.c.l.b16 %v2345
    %v2503 = vunpack.c.h.b16 %v2345
    %v2504 = vunpack.c.l.b16 %v2346
    %v2505 = vunpack.c.h.b16 %v2346
    %v2506 = vunpack.c.l.b16 %v2347
    %v2507 = vunpack.c.h.b16 %v2347
    %v2508 = vunpack.c.l.b16 %v2348
    %v2509 = vunpack.c.h.b16 %v2348
    %v2510 = vunpack.c.l.b16 %v2349
    %v2511 = vunpack.c.h.b16 %v2349
    %v2512 = vunpack.c.l.b16 %v2350
    %v2513 = vunpack.c.h.b16 %v2350
    %v2514 = vunpack.c.l.b16 %v2351
    %v2515 = vunpack.c.h.b16 %v2351
    %v2516 = vunpack.c.l.b16 %v2352
    %v2517 = vunpack.c.h.b16 %v2352
    %v2518 = vunpack.c.l.b16 %v2353
    %v2519 = vunpack.c.h.b16 %v2353
    %v2520 = vunpack.c.l.b16 %v2354
    %v2521 = vunpack.c.h.b16 %v2354
    %v2522 = vunpack.c.l.b16 %v2355
    %v2523 = vunpack.c.h.b16 %v2355
    %v2524 = vunpack.c.l.b16 %v2356
    %v2525 = vunpack.c.h.b16 %v2356
    %v2526 = vunpack.c.l.b16 %v2357
    %v2527 = vunpack.c.h.b16 %v2357
    %v2528 = vunpack.c.l.b16 %v2358
    %v2529 = vunpack.c.h.b16 %v2358
    %v2530 = vunpack.c.l.b16 %v2359
    %v2531 = vunpack.c.h.b16 %v2359
    %v2532 = vunpack.c.l.b16 %v2360
    %v2533 = vunpack.c.h.b16 %v2360
    %v2534 = vunpack.c.l.b16 %v2361
    %v2535 = vunpack.c.h.b16 %v2361
    %v2536 = vunpack.c.l.b16 %v2362
    %v2537 = vunpack.c.h.b16 %v2362
    %v2538 = vunpack.c.l.b16 %v2363
    %v2539 = vunpack.c.h.b16 %v2363
    %v2540 = vunpack.c.l.b16 %v2364
    %v2541 = vunpack.c.h.b16 %v2364
    %v2542 = vunpack.c.l.b16 %v2365
    %v2543 = vunpack.c.h.b16 %v2365
    %v2544 = vunpack.c.l.b16 %v2366
    %v2545 = vunpack.c.h.b16 %v2366
    %v2546 = vunpack.c.l.b16 %v2367
    %v2547 = vunpack.c.h.b16 %v2367
    %v2548 = vunpack.c.l.b16 %v2368
    %v2549 = vunpack.c.h.b16 %v2368
    %v2550 = vunpack.c.l.b16 %v2369
    %v2551 = vunpack.c.h.b16 %v2369
    %v2552 = vunpack.c.l.b16 %v2370
    %v2553 = vunpack.c.h.b16 %v2370
    %v2554 = vunpack.c.l.b16 %v2371
    %v2555 = vunpack.c.h.b16 %v2371
    %v2556 = vunpack.c.l.b16 %v2372
    %v2557 = vunpack.c.h.b16 %v2372
    %v2558 = vunpack.c.l.b16 %v2373
    %v2559 = vunpack.c.h.b16 %v2373
    %v2560 = vunpack.c.l.b16 %v2374
    %v2561 = vunpack.c.h.b16 %v2374
    %v2562 = vunpack.c.l.b16 %v2375
    %v2563 = vunpack.c.h.b16 %v2375
    %v2564 = vunpack.c.l.b16 %v2376
    %v2565 = vunpack.c.h.b16 %v2376
    %v2566 = vunpack.c.l.b16 %v2377
    %v2567 = vunpack.c.h.b16 %v2377
    %v2568 = vunpack.c.l.b16 %v2378
    %v2569 = vunpack.c.h.b16 %v2378
    %v2570 = vunpack.c.l.b16 %v2379
    %v2571 = vunpack.c.h.b16 %v2379
    %v2572 = vpack.c.b16 %v2448, %v2444
    %v2573 = vpack.c.b16 %v2449, %v2445
    %v2574 = vpack.c.b16 %v2450, %v2446
    %v2575 = vpack.c.b16 %v2451, %v2447
    %v2576 = vpack.c.b16 %v2456, %v2452
    %v2577 = vpack.c.b16 %v2457, %v2453
    %v2578 = vpack.c.b16 %v2458, %v2454
    %v2579 = vpack.c.b16 %v2459, %v2455
    %v2580 = vpack.c.b16 %v2464, %v2460
    %v2581 = vpack.c.b16 %v2465, %v2461
    %v2582 = vpack.c.b16 %v2466, %v2462
    %v2583 = vpack.c.b16 %v2467, %v2463
    %v2584 = vpack.c.b16 %v2472, %v2468
    %v2585 = vpack.c.b16 %v2473, %v2469
    %v2586 = vpack.c.b16 %v2474, %v2470
    %v2587 = vpack.c.b16 %v2475, %v2471
    %v2588 = vpack.c.b16 %v2480, %v2476
    %v2589 = vpack.c.b16 %v2481, %v2477
    %v2590 = vpack.c.b16 %v2482, %v2478
    %v2591 = vpack.c.b16 %v2483, %v2479
    %v2592 = vpack.c.b16 %v2488, %v2484
    %v2593 = vpack.c.b16 %v2489, %v2485
    %v2594 = vpack.c.b16 %v2490, %v2486
    %v2595 = vpack.c.b16 %v2491, %v2487
    %v2596 = vpack.c.b16 %v2496, %v2492
    %v2597 = vpack.c.b16 %v2497, %v2493
    %v2598 = vpack.c.b16 %v2498, %v2494
    %v2599 = vpack.c.b16 %v2499, %v2495
    %v2600 = vpack.c.b16 %v2504, %v2500
    %v2601 = vpack.c.b16 %v2505, %v2501
    %v2602 = vpack.c.b16 %v2506, %v2502
    %v2603 = vpack.c.b16 %v2507, %v2503
    %v2604 = vpack.c.b16 %v2512, %v2508
    %v2605 = vpack.c.b16 %v2513, %v2509
    %v2606 = vpack.c.b16 %v2514, %v2510
    %v2607 = vpack.c.b16 %v2515, %v2511
    %v2608 = vpack.c.b16 %v2520, %v2516
    %v2609 = vpack.c.b16 %v2521, %v2517
    %v2610 = vpack.c.b16 %v2522, %v2518
    %v2611 = vpack.c.b16 %v2523, %v2519
    %v2612 = vpack.c.b16 %v2528, %v2524
    %v2613 = vpack.c.b16 %v2529, %v2525
    %v2614 = vpack.c.b16 %v2530, %v2526
    %v2615 = vpack.c.b16 %v2531, %v2527
    %v2616 = vpack.c.b16 %v2536, %v2532
    %v2617 = vpack.c.b16 %v2537, %v2533
    %v2618 = vpack.c.b16 %v2538, %v2534
    %v2619 = vpack.c.b16 %v2539, %v2535
    %v2620 = vpack.c.b16 %v2544, %v2540
    %v2621 = vpack.c.b16 %v2545, %v2541
    %v2622 = vpack.c.b16 %v2546, %v2542
    %v2623 = vpack.c.b16 %v2547, %v2543
    %v2624 = vpack.c.b16 %v2552, %v2548
    %v2625 = vpack.c.b16 %v2553, %v2549
    %v2626 = vpack.c.b16 %v2554, %v2550
    %v2627 = vpack.c.b16 %v2555, %v2551
    %v2628 = vpack.c.b16 %v2560, %v2556
    %v2629 = vpack.c.b16 %v2561, %v2557
    %v2630 = vpack.c.b16 %v2562, %v2558
    %v2631 = vpack.c.b16 %v2563, %v2559
    %v2632 = vpack.c.b16 %v2568, %v2564
    %v2633 = vpack.c.b16 %v2569, %v2565
    %v2634 = vpack.c.b16 %v2570, %v2566
    %v2635 = vpack.c.b16 %v2571, %v2567
    %2700 = vmatprep.subr.bf16.mxu0 %v2573
    %2701 = vmatpush1.bf16.msra.mxu0 %v2572
    %2702 = vmatprep.subr.bf16.mxu0 %v2577
    %2703 = vmatpush1.bf16.msra.mxu0 %v2576
    %2704 = vmatprep.subr.bf16.mxu0 %v2581
    %2705 = vmatpush1.bf16.msra.mxu0 %v2580
    %2706 = vmatprep.subr.bf16.mxu0 %v2585
    %2707 = vmatpush1.bf16.msra.mxu0 %v2584
    %2708 = vmatprep.subr.bf16.mxu0 %v2589
    %2709 = vmatpush1.bf16.msra.mxu0 %v2588
    %2710 = vmatprep.subr.bf16.mxu0 %v2593
    %2711 = vmatpush1.bf16.msra.mxu0 %v2592
    %2712 = vmatprep.subr.bf16.mxu0 %v2597
    %2713 = vmatpush1.bf16.msra.mxu0 %v2596
    %2714 = vmatprep.subr.bf16.mxu0 %v2601
    %2715 = vmatpush1.bf16.msra.mxu0 %v2600
    %2716 = vmatprep.subr.bf16.mxu0 %v2605
    %2717 = vmatpush1.bf16.msra.mxu0 %v2604
    %2718 = vmatprep.subr.bf16.mxu0 %v2609
    %2719 = vmatpush1.bf16.msra.mxu0 %v2608
    %2720 = vmatprep.subr.bf16.mxu0 %v2613
    %2721 = vmatpush1.bf16.msra.mxu0 %v2612
    %2722 = vmatprep.subr.bf16.mxu0 %v2617
    %2723 = vmatpush1.bf16.msra.mxu0 %v2616
    %2724 = vmatprep.subr.bf16.mxu0 %v2621
    %2725 = vmatpush1.bf16.msra.mxu0 %v2620
    %2726 = vmatprep.subr.bf16.mxu0 %v2625
    %2727 = vmatpush1.bf16.msra.mxu0 %v2624
    %2728 = vmatprep.subr.bf16.mxu0 %v2629
    %2729 = vmatpush1.bf16.msra.mxu0 %v2628
    %2730 = vmatprep.subr.bf16.mxu0 %v2633
    %2731 = vmatpush1.bf16.msra.mxu0 %v2632
    %2732 = vmatprep.mubr.bf16.mxu0 %v2314
    %2733 = vmatmul.mubr.bf16.gmra.mrb[0].mxu0 %v2313
    %v2734 = vpop.f32.mrb[0].mxu0
    %v2735 = vadd.f32 0.0, %v2734
    %v2736 = vpop.f32.mrb[0].mxu0
    %v2737 = vadd.f32 0.0, %v2736
    %v2738 = vpop.f32.mrb[0].mxu0
    %v2739 = vpop.f32.mrb[0].mxu0
    %2740 = vdwg.mxu0
    %2741 = vmatprep.subr.bf16.mxu0 %v2575
    %2742 = vmatpush1.bf16.msra.mxu0 %v2574
    %2743 = vmatprep.subr.bf16.mxu0 %v2579
    %2744 = vmatpush1.bf16.msra.mxu0 %v2578
    %2745 = vmatprep.subr.bf16.mxu0 %v2583
    %2746 = vmatpush1.bf16.msra.mxu0 %v2582
    %2747 = vmatprep.subr.bf16.mxu0 %v2587
    %2748 = vmatpush1.bf16.msra.mxu0 %v2586
    %2749 = vmatprep.subr.bf16.mxu0 %v2591
    %2750 = vmatpush1.bf16.msra.mxu0 %v2590
    %2751 = vmatprep.subr.bf16.mxu0 %v2595
    %2752 = vmatpush1.bf16.msra.mxu0 %v2594
    %2753 = vmatprep.subr.bf16.mxu0 %v2599
    %2754 = vmatpush1.bf16.msra.mxu0 %v2598
    %2755 = vmatprep.subr.bf16.mxu0 %v2603
    %2756 = vmatpush1.bf16.msra.mxu0 %v2602
    %2757 = vmatprep.subr.bf16.mxu0 %v2607
    %2758 = vmatpush1.bf16.msra.mxu0 %v2606
    %2759 = vmatprep.subr.bf16.mxu0 %v2611
    %2760 = vmatpush1.bf16.msra.mxu0 %v2610
    %2761 = vmatprep.subr.bf16.mxu0 %v2615
    %2762 = vmatpush1.bf16.msra.mxu0 %v2614
    %2763 = vmatprep.subr.bf16.mxu0 %v2619
    %2764 = vmatpush1.bf16.msra.mxu0 %v2618
    %2765 = vmatprep.subr.bf16.mxu0 %v2623
    %2766 = vmatpush1.bf16.msra.mxu0 %v2622
    %2767 = vmatprep.subr.bf16.mxu0 %v2627
    %2768 = vmatpush1.bf16.msra.mxu0 %v2626
    %2769 = vmatprep.subr.bf16.mxu0 %v2631
    %2770 = vmatpush1.bf16.msra.mxu0 %v2630
    %2771 = vmatprep.subr.bf16.mxu0 %v2635
    %2772 = vmatpush1.bf16.msra.mxu0 %v2634
    %2773 = vmatprep.mubr.bf16.mxu0 %v2314
    %2774 = vmatmul.mubr.bf16.gmra.mrb[0].mxu0 %v2313
    %v2775 = vpop.f32.mrb[0].mxu0
    %v2776 = vadd.f32 0.0, %v2775
    %v2777 = vpop.f32.mrb[0].mxu0
    %v2778 = vadd.f32 0.0, %v2777
    %v2779 = vpop.f32.mrb[0].mxu0
    %v2780 = vpop.f32.mrb[0].mxu0
    %2781 = vdwg.mxu0
    %v2846 = vunpack.c.l.b16 %v2203
    %v2847 = vunpack.c.h.b16 %v2203
    %v2848 = vunpack.c.l.b16 %v2204
    %v2849 = vunpack.c.h.b16 %v2204
    %v2850 = vunpack.c.l.b16 %v2205
    %v2851 = vunpack.c.h.b16 %v2205
    %v2852 = vunpack.c.l.b16 %v2206
    %v2853 = vunpack.c.h.b16 %v2206
    %v2854 = vunpack.c.l.b16 %v2207
    %v2855 = vunpack.c.h.b16 %v2207
    %v2856 = vunpack.c.l.b16 %v2208
    %v2857 = vunpack.c.h.b16 %v2208
    %v2858 = vunpack.c.l.b16 %v2209
    %v2859 = vunpack.c.h.b16 %v2209
    %v2860 = vunpack.c.l.b16 %v2210
    %v2861 = vunpack.c.h.b16 %v2210
    %v2862 = vunpack.c.l.b16 %v2211
    %v2863 = vunpack.c.h.b16 %v2211
    %v2864 = vunpack.c.l.b16 %v2212
    %v2865 = vunpack.c.h.b16 %v2212
    %v2866 = vunpack.c.l.b16 %v2213
    %v2867 = vunpack.c.h.b16 %v2213
    %v2868 = vunpack.c.l.b16 %v2214
    %v2869 = vunpack.c.h.b16 %v2214
    %v2870 = vunpack.c.l.b16 %v2215
    %v2871 = vunpack.c.h.b16 %v2215
    %v2872 = vunpack.c.l.b16 %v2216
    %v2873 = vunpack.c.h.b16 %v2216
    %v2874 = vunpack.c.l.b16 %v2217
    %v2875 = vunpack.c.h.b16 %v2217
    %v2876 = vunpack.c.l.b16 %v2218
    %v2877 = vunpack.c.h.b16 %v2218
    %v2878 = vunpack.c.l.b16 %v2219
    %v2879 = vunpack.c.h.b16 %v2219
    %v2880 = vunpack.c.l.b16 %v2220
    %v2881 = vunpack.c.h.b16 %v2220
    %v2882 = vunpack.c.l.b16 %v2221
    %v2883 = vunpack.c.h.b16 %v2221
    %v2884 = vunpack.c.l.b16 %v2222
    %v2885 = vunpack.c.h.b16 %v2222
    %v2886 = vunpack.c.l.b16 %v2223
    %v2887 = vunpack.c.h.b16 %v2223
    %v2888 = vunpack.c.l.b16 %v2224
    %v2889 = vunpack.c.h.b16 %v2224
    %v2890 = vunpack.c.l.b16 %v2225
    %v2891 = vunpack.c.h.b16 %v2225
    %v2892 = vunpack.c.l.b16 %v2226
    %v2893 = vunpack.c.h.b16 %v2226
    %v2894 = vunpack.c.l.b16 %v2227
    %v2895 = vunpack.c.h.b16 %v2227
    %v2896 = vunpack.c.l.b16 %v2228
    %v2897 = vunpack.c.h.b16 %v2228
    %v2898 = vunpack.c.l.b16 %v2229
    %v2899 = vunpack.c.h.b16 %v2229
    %v2900 = vunpack.c.l.b16 %v2230
    %v2901 = vunpack.c.h.b16 %v2230
    %v2902 = vunpack.c.l.b16 %v2231
    %v2903 = vunpack.c.h.b16 %v2231
    %v2904 = vunpack.c.l.b16 %v2232
    %v2905 = vunpack.c.h.b16 %v2232
    %v2906 = vunpack.c.l.b16 %v2233
    %v2907 = vunpack.c.h.b16 %v2233
    %v2908 = vunpack.c.l.b16 %v2234
    %v2909 = vunpack.c.h.b16 %v2234
    %v2910 = vunpack.c.l.b16 %v2235
    %v2911 = vunpack.c.h.b16 %v2235
    %v2912 = vunpack.c.l.b16 %v2236
    %v2913 = vunpack.c.h.b16 %v2236
    %v2914 = vunpack.c.l.b16 %v2237
    %v2915 = vunpack.c.h.b16 %v2237
    %v2916 = vunpack.c.l.b16 %v2238
    %v2917 = vunpack.c.h.b16 %v2238
    %v2918 = vunpack.c.l.b16 %v2239
    %v2919 = vunpack.c.h.b16 %v2239
    %v2920 = vunpack.c.l.b16 %v2240
    %v2921 = vunpack.c.h.b16 %v2240
    %v2922 = vunpack.c.l.b16 %v2241
    %v2923 = vunpack.c.h.b16 %v2241
    %v2924 = vunpack.c.l.b16 %v2242
    %v2925 = vunpack.c.h.b16 %v2242
    %v2926 = vunpack.c.l.b16 %v2243
    %v2927 = vunpack.c.h.b16 %v2243
    %v2928 = vunpack.c.l.b16 %v2244
    %v2929 = vunpack.c.h.b16 %v2244
    %v2930 = vunpack.c.l.b16 %v2245
    %v2931 = vunpack.c.h.b16 %v2245
    %v2932 = vunpack.c.l.b16 %v2246
    %v2933 = vunpack.c.h.b16 %v2246
    %v2934 = vunpack.c.l.b16 %v2247
    %v2935 = vunpack.c.h.b16 %v2247
    %v2936 = vunpack.c.l.b16 %v2248
    %v2937 = vunpack.c.h.b16 %v2248
    %v2938 = vunpack.c.l.b16 %v2249
    %v2939 = vunpack.c.h.b16 %v2249
    %v2940 = vunpack.c.l.b16 %v2250
    %v2941 = vunpack.c.h.b16 %v2250
    %v2942 = vunpack.c.l.b16 %v2251
    %v2943 = vunpack.c.h.b16 %v2251
    %v2944 = vunpack.c.l.b16 %v2252
    %v2945 = vunpack.c.h.b16 %v2252
    %v2946 = vunpack.c.l.b16 %v2253
    %v2947 = vunpack.c.h.b16 %v2253
    %v2948 = vunpack.c.l.b16 %v2254
    %v2949 = vunpack.c.h.b16 %v2254
    %v2950 = vunpack.c.l.b16 %v2255
    %v2951 = vunpack.c.h.b16 %v2255
    %v2952 = vunpack.c.l.b16 %v2256
    %v2953 = vunpack.c.h.b16 %v2256
    %v2954 = vunpack.c.l.b16 %v2257
    %v2955 = vunpack.c.h.b16 %v2257
    %v2956 = vunpack.c.l.b16 %v2258
    %v2957 = vunpack.c.h.b16 %v2258
    %v2958 = vunpack.c.l.b16 %v2259
    %v2959 = vunpack.c.h.b16 %v2259
    %v2960 = vunpack.c.l.b16 %v2260
    %v2961 = vunpack.c.h.b16 %v2260
    %v2962 = vunpack.c.l.b16 %v2261
    %v2963 = vunpack.c.h.b16 %v2261
    %v2964 = vunpack.c.l.b16 %v2262
    %v2965 = vunpack.c.h.b16 %v2262
    %v2966 = vunpack.c.l.b16 %v2263
    %v2967 = vunpack.c.h.b16 %v2263
    %v2968 = vunpack.c.l.b16 %v2264
    %v2969 = vunpack.c.h.b16 %v2264
    %v2970 = vunpack.c.l.b16 %v2265
    %v2971 = vunpack.c.h.b16 %v2265
    %v2972 = vunpack.c.l.b16 %v2266
    %v2973 = vunpack.c.h.b16 %v2266
    %v2974 = vpack.c.b16 %v2850, %v2846
    %v2975 = vpack.c.b16 %v2851, %v2847
    %v2976 = vpack.c.b16 %v2852, %v2848
    %v2977 = vpack.c.b16 %v2853, %v2849
    %v2978 = vpack.c.b16 %v2858, %v2854
    %v2979 = vpack.c.b16 %v2859, %v2855
    %v2980 = vpack.c.b16 %v2860, %v2856
    %v2981 = vpack.c.b16 %v2861, %v2857
    %v2982 = vpack.c.b16 %v2866, %v2862
    %v2983 = vpack.c.b16 %v2867, %v2863
    %v2984 = vpack.c.b16 %v2868, %v2864
    %v2985 = vpack.c.b16 %v2869, %v2865
    %v2986 = vpack.c.b16 %v2874, %v2870
    %v2987 = vpack.c.b16 %v2875, %v2871
    %v2988 = vpack.c.b16 %v2876, %v2872
    %v2989 = vpack.c.b16 %v2877, %v2873
    %v2990 = vpack.c.b16 %v2882, %v2878
    %v2991 = vpack.c.b16 %v2883, %v2879
    %v2992 = vpack.c.b16 %v2884, %v2880
    %v2993 = vpack.c.b16 %v2885, %v2881
    %v2994 = vpack.c.b16 %v2890, %v2886
    %v2995 = vpack.c.b16 %v2891, %v2887
    %v2996 = vpack.c.b16 %v2892, %v2888
    %v2997 = vpack.c.b16 %v2893, %v2889
    %v2998 = vpack.c.b16 %v2898, %v2894
    %v2999 = vpack.c.b16 %v2899, %v2895
    %v3000 = vpack.c.b16 %v2900, %v2896
    %v3001 = vpack.c.b16 %v2901, %v2897
    %v3002 = vpack.c.b16 %v2906, %v2902
    %v3003 = vpack.c.b16 %v2907, %v2903
    %v3004 = vpack.c.b16 %v2908, %v2904
    %v3005 = vpack.c.b16 %v2909, %v2905
    %v3006 = vpack.c.b16 %v2914, %v2910
    %v3007 = vpack.c.b16 %v2915, %v2911
    %v3008 = vpack.c.b16 %v2916, %v2912
    %v3009 = vpack.c.b16 %v2917, %v2913
    %v3010 = vpack.c.b16 %v2922, %v2918
    %v3011 = vpack.c.b16 %v2923, %v2919
    %v3012 = vpack.c.b16 %v2924, %v2920
    %v3013 = vpack.c.b16 %v2925, %v2921
    %v3014 = vpack.c.b16 %v2930, %v2926
    %v3015 = vpack.c.b16 %v2931, %v2927
    %v3016 = vpack.c.b16 %v2932, %v2928
    %v3017 = vpack.c.b16 %v2933, %v2929
    %v3018 = vpack.c.b16 %v2938, %v2934
    %v3019 = vpack.c.b16 %v2939, %v2935
    %v3020 = vpack.c.b16 %v2940, %v2936
    %v3021 = vpack.c.b16 %v2941, %v2937
    %v3022 = vpack.c.b16 %v2946, %v2942
    %v3023 = vpack.c.b16 %v2947, %v2943
    %v3024 = vpack.c.b16 %v2948, %v2944
    %v3025 = vpack.c.b16 %v2949, %v2945
    %v3026 = vpack.c.b16 %v2954, %v2950
    %v3027 = vpack.c.b16 %v2955, %v2951
    %v3028 = vpack.c.b16 %v2956, %v2952
    %v3029 = vpack.c.b16 %v2957, %v2953
    %v3030 = vpack.c.b16 %v2962, %v2958
    %v3031 = vpack.c.b16 %v2963, %v2959
    %v3032 = vpack.c.b16 %v2964, %v2960
    %v3033 = vpack.c.b16 %v2965, %v2961
    %v3034 = vpack.c.b16 %v2970, %v2966
    %v3035 = vpack.c.b16 %v2971, %v2967
    %v3036 = vpack.c.b16 %v2972, %v2968
    %v3037 = vpack.c.b16 %v2973, %v2969
    %3102 = vmatprep.subr.bf16.mxu0 %v2975
    %3103 = vmatpush1.bf16.msra.mxu0 %v2974
    %3104 = vmatprep.subr.bf16.mxu0 %v2979
    %3105 = vmatpush1.bf16.msra.mxu0 %v2978
    %3106 = vmatprep.subr.bf16.mxu0 %v2983
    %3107 = vmatpush1.bf16.msra.mxu0 %v2982
    %3108 = vmatprep.subr.bf16.mxu0 %v2987
    %3109 = vmatpush1.bf16.msra.mxu0 %v2986
    %3110 = vmatprep.subr.bf16.mxu0 %v2991
    %3111 = vmatpush1.bf16.msra.mxu0 %v2990
    %3112 = vmatprep.subr.bf16.mxu0 %v2995
    %3113 = vmatpush1.bf16.msra.mxu0 %v2994
    %3114 = vmatprep.subr.bf16.mxu0 %v2999
    %3115 = vmatpush1.bf16.msra.mxu0 %v2998
    %3116 = vmatprep.subr.bf16.mxu0 %v3003
    %3117 = vmatpush1.bf16.msra.mxu0 %v3002
    %3118 = vmatprep.subr.bf16.mxu0 %v3007
    %3119 = vmatpush1.bf16.msra.mxu0 %v3006
    %3120 = vmatprep.subr.bf16.mxu0 %v3011
    %3121 = vmatpush1.bf16.msra.mxu0 %v3010
    %3122 = vmatprep.subr.bf16.mxu0 %v3015
    %3123 = vmatpush1.bf16.msra.mxu0 %v3014
    %3124 = vmatprep.subr.bf16.mxu0 %v3019
    %3125 = vmatpush1.bf16.msra.mxu0 %v3018
    %3126 = vmatprep.subr.bf16.mxu0 %v3023
    %3127 = vmatpush1.bf16.msra.mxu0 %v3022
    %3128 = vmatprep.subr.bf16.mxu0 %v3027
    %3129 = vmatpush1.bf16.msra.mxu0 %v3026
    %3130 = vmatprep.subr.bf16.mxu0 %v3031
    %3131 = vmatpush1.bf16.msra.mxu0 %v3030
    %3132 = vmatprep.subr.bf16.mxu0 %v3035
    %3133 = vmatpush1.bf16.msra.mxu0 %v3034
    %3134 = vmatprep.mubr.bf16.mxu0 %v2202
    %3135 = vmatmul.mubr.bf16.gmra.mrb[0].mxu0 %v2201
    %v3136 = vpop.f32.mrb[0].mxu0
    %v3137 = vadd.f32 %v2735, %v3136
    %v3138 = vpop.f32.mrb[0].mxu0
    %v3139 = vadd.f32 %v2737, %v3138
    %v3140 = vpop.f32.mrb[0].mxu0
    %v3141 = vpop.f32.mrb[0].mxu0
    %3142 = vdwg.mxu0
    %3143 = vmatprep.subr.bf16.mxu0 %v2977
    %3144 = vmatpush1.bf16.msra.mxu0 %v2976
    %3145 = vmatprep.subr.bf16.mxu0 %v2981
    %3146 = vmatpush1.bf16.msra.mxu0 %v2980
    %3147 = vmatprep.subr.bf16.mxu0 %v2985
    %3148 = vmatpush1.bf16.msra.mxu0 %v2984
    %3149 = vmatprep.subr.bf16.mxu0 %v2989
    %3150 = vmatpush1.bf16.msra.mxu0 %v2988
    %3151 = vmatprep.subr.bf16.mxu0 %v2993
    %3152 = vmatpush1.bf16.msra.mxu0 %v2992
    %3153 = vmatprep.subr.bf16.mxu0 %v2997
    %3154 = vmatpush1.bf16.msra.mxu0 %v2996
    %3155 = vmatprep.subr.bf16.mxu0 %v3001
    %3156 = vmatpush1.bf16.msra.mxu0 %v3000
    %3157 = vmatprep.subr.bf16.mxu0 %v3005
    %3158 = vmatpush1.bf16.msra.mxu0 %v3004
    %3159 = vmatprep.subr.bf16.mxu0 %v3009
    %3160 = vmatpush1.bf16.msra.mxu0 %v3008
    %3161 = vmatprep.subr.bf16.mxu0 %v3013
    %3162 = vmatpush1.bf16.msra.mxu0 %v3012
    %3163 = vmatprep.subr.bf16.mxu0 %v3017
    %3164 = vmatpush1.bf16.msra.mxu0 %v3016
    %3165 = vmatprep.subr.bf16.mxu0 %v3021
    %3166 = vmatpush1.bf16.msra.mxu0 %v3020
    %3167 = vmatprep.subr.bf16.mxu0 %v3025
    %3168 = vmatpush1.bf16.msra.mxu0 %v3024
    %3169 = vmatprep.subr.bf16.mxu0 %v3029
    %3170 = vmatpush1.bf16.msra.mxu0 %v3028
    %3171 = vmatprep.subr.bf16.mxu0 %v3033
    %3172 = vmatpush1.bf16.msra.mxu0 %v3032
    %3173 = vmatprep.subr.bf16.mxu0 %v3037
    %3174 = vmatpush1.bf16.msra.mxu0 %v3036
    %3175 = vmatprep.mubr.bf16.mxu0 %v2202
    %3176 = vmatmul.mubr.bf16.gmra.mrb[0].mxu0 %v2201
    %v3177 = vpop.f32.mrb[0].mxu0
    %v3178 = vadd.f32 %v2776, %v3177
    %v3179 = vpop.f32.mrb[0].mxu0
    %v3180 = vadd.f32 %v2778, %v3179
    %v3181 = vpop.f32.mrb[0].mxu0
    %v3182 = vpop.f32.mrb[0].mxu0
    %3183 = vdwg.mxu0
    %s3184 = scalar_lea.vmem %s4, 8
    %v3185 = vld [vmem:[%s3184] sm:$0xf]
    %v3187 = vsel %vm2156, %v3185, 0
    %3189 = vmatprep.subr.bf16.mxu0 %v2152
    %3190 = vmatpush1.bf16.msra.mxu0 %v2151
    %3191 = vmatprep.subr.bf16.mxu0 %v2154
    %3192 = vmatpush1.bf16.msra.mxu0 %v2153
    %3193 = vmatprep.subr.bf16.mxu0 0
    %3194 = vmatpush1.bf16.msra.mxu0 0
    %3195 = vmatprep.subr.bf16.mxu0 0
    %3196 = vmatpush1.bf16.msra.mxu0 0
    %3197 = vmatprep.subr.bf16.mxu0 0
    %3198 = vmatpush1.bf16.msra.mxu0 0
    %3199 = vmatprep.subr.bf16.mxu0 0
    %3200 = vmatpush1.bf16.msra.mxu0 0
    %3201 = vmatprep.subr.bf16.mxu0 0
    %3202 = vmatpush1.bf16.msra.mxu0 0
    %3203 = vmatprep.subr.bf16.mxu0 0
    %3204 = vmatpush1.bf16.msra.mxu0 0
    %3205 = vmatprep.subr.bf16.mxu0 0
    %3206 = vmatpush1.bf16.msra.mxu0 0
    %3207 = vmatprep.subr.bf16.mxu0 0
    %3208 = vmatpush1.bf16.msra.mxu0 0
    %3209 = vmatprep.subr.bf16.mxu0 0
    %3210 = vmatpush1.bf16.msra.mxu0 0
    %3211 = vmatprep.subr.bf16.mxu0 0
    %3212 = vmatpush1.bf16.msra.mxu0 0
    %3213 = vmatprep.subr.bf16.mxu0 0
    %3214 = vmatpush1.bf16.msra.mxu0 0
    %3215 = vmatprep.subr.bf16.mxu0 0
    %3216 = vmatpush1.bf16.msra.mxu0 0
    %3217 = vmatprep.subr.bf16.mxu0 0
    %3218 = vmatpush1.bf16.msra.mxu0 0
    %3219 = vmatprep.subr.bf16.mxu0 0
    %3220 = vmatpush1.bf16.msra.mxu0 0
    %3221 = vmatprep.mubr.bf16.mxu0 0
    %3222 = vmatmul.mubr.bf16.gmra.mrb[0].mxu0 %v3187
    %v3223 = vpop.f32.mrb[0].mxu0
    %v3224 = vadd.f32 0.0, %v3223
    %v3225 = vpop.f32.mrb[0].mxu0
    %v3226 = vadd.f32 0.0, %v3225
    %v3227 = vpop.f32.mrb[0].mxu0
    %v3228 = vpop.f32.mrb[0].mxu0
    %3229 = vdwg.mxu0
    %v3230 = vpack.c.bf16 %v3224, %v3224
    %v3231 = vpack.c.bf16 %v3226, %v3226
    %s3232 = scalar_lea.vmem %s5, 1024
    %v3233 = vld [vmem:[%s3232] sm:$0xff]
    %v3234 = vld [vmem:[%s3232 + $0x8] sm:$0xff]
    %v3235 = vld [vmem:[%s3232 + $0x10] sm:$0xff]
    %v3236 = vld [vmem:[%s3232 + $0x18] sm:$0xff]
    %v3237 = vld [vmem:[%s3232 + $0x20] sm:$0xff]
    %v3238 = vld [vmem:[%s3232 + $0x28] sm:$0xff]
    %v3239 = vld [vmem:[%s3232 + $0x30] sm:$0xff]
    %v3240 = vld [vmem:[%s3232 + $0x38] sm:$0xff]
    %v3241 = vld [vmem:[%s3232 + $0x40] sm:$0xff]
    %v3242 = vld [vmem:[%s3232 + $0x48] sm:$0xff]
    %v3243 = vld [vmem:[%s3232 + $0x50] sm:$0xff]
    %v3244 = vld [vmem:[%s3232 + $0x58] sm:$0xff]
    %v3245 = vld [vmem:[%s3232 + $0x60] sm:$0xff]
    %v3246 = vld [vmem:[%s3232 + $0x68] sm:$0xff]
    %v3247 = vld [vmem:[%s3232 + $0x70] sm:$0xff]
    %v3248 = vld [vmem:[%s3232 + $0x78] sm:$0xff]
    %v3249 = vld [vmem:[%s3232 + $0x80] sm:$0xff]
    %v3250 = vld [vmem:[%s3232 + $0x88] sm:$0xff]
    %v3251 = vld [vmem:[%s3232 + $0x90] sm:$0xff]
    %v3252 = vld [vmem:[%s3232 + $0x98] sm:$0xff]
    %v3253 = vld [vmem:[%s3232 + $0xa0] sm:$0xff]
    %v3254 = vld [vmem:[%s3232 + $0xa8] sm:$0xff]
    %v3255 = vld [vmem:[%s3232 + $0xb0] sm:$0xff]
    %v3256 = vld [vmem:[%s3232 + $0xb8] sm:$0xff]
    %v3257 = vld [vmem:[%s3232 + $0xc0] sm:$0xff]
    %v3258 = vld [vmem:[%s3232 + $0xc8] sm:$0xff]
    %v3259 = vld [vmem:[%s3232 + $0xd0] sm:$0xff]
    %v3260 = vld [vmem:[%s3232 + $0xd8] sm:$0xff]
    %v3261 = vld [vmem:[%s3232 + $0xe0] sm:$0xff]
    %v3262 = vld [vmem:[%s3232 + $0xe8] sm:$0xff]
    %v3263 = vld [vmem:[%s3232 + $0xf0] sm:$0xff]
    %v3264 = vld [vmem:[%s3232 + $0xf8] sm:$0xff]
    %v3265 = vld [vmem:[%s3232 + $0x100] sm:$0xff]
    %v3266 = vld [vmem:[%s3232 + $0x108] sm:$0xff]
    %v3267 = vld [vmem:[%s3232 + $0x110] sm:$0xff]
    %v3268 = vld [vmem:[%s3232 + $0x118] sm:$0xff]
    %v3269 = vld [vmem:[%s3232 + $0x120] sm:$0xff]
    %v3270 = vld [vmem:[%s3232 + $0x128] sm:$0xff]
    %v3271 = vld [vmem:[%s3232 + $0x130] sm:$0xff]
    %v3272 = vld [vmem:[%s3232 + $0x138] sm:$0xff]
    %v3273 = vld [vmem:[%s3232 + $0x140] sm:$0xff]
    %v3274 = vld [vmem:[%s3232 + $0x148] sm:$0xff]
    %v3275 = vld [vmem:[%s3232 + $0x150] sm:$0xff]
    %v3276 = vld [vmem:[%s3232 + $0x158] sm:$0xff]
    %v3277 = vld [vmem:[%s3232 + $0x160] sm:$0xff]
    %v3278 = vld [vmem:[%s3232 + $0x168] sm:$0xff]
    %v3279 = vld [vmem:[%s3232 + $0x170] sm:$0xff]
    %v3280 = vld [vmem:[%s3232 + $0x178] sm:$0xff]
    %v3281 = vld [vmem:[%s3232 + $0x180] sm:$0xff]
    %v3282 = vld [vmem:[%s3232 + $0x188] sm:$0xff]
    %v3283 = vld [vmem:[%s3232 + $0x190] sm:$0xff]
    %v3284 = vld [vmem:[%s3232 + $0x198] sm:$0xff]
    %v3285 = vld [vmem:[%s3232 + $0x1a0] sm:$0xff]
    %v3286 = vld [vmem:[%s3232 + $0x1a8] sm:$0xff]
    %v3287 = vld [vmem:[%s3232 + $0x1b0] sm:$0xff]
    %v3288 = vld [vmem:[%s3232 + $0x1b8] sm:$0xff]
    %v3289 = vld [vmem:[%s3232 + $0x1c0] sm:$0xff]
    %v3290 = vld [vmem:[%s3232 + $0x1c8] sm:$0xff]
    %v3291 = vld [vmem:[%s3232 + $0x1d0] sm:$0xff]
    %v3292 = vld [vmem:[%s3232 + $0x1d8] sm:$0xff]
    %v3293 = vld [vmem:[%s3232 + $0x1e0] sm:$0xff]
    %v3294 = vld [vmem:[%s3232 + $0x1e8] sm:$0xff]
    %v3295 = vld [vmem:[%s3232 + $0x1f0] sm:$0xff]
    %v3296 = vld [vmem:[%s3232 + $0x1f8] sm:$0xff]
    %v3361 = vunpack.c.l.b16 %v3233
    %v3362 = vunpack.c.h.b16 %v3233
    %v3363 = vunpack.c.l.b16 %v3234
    %v3364 = vunpack.c.h.b16 %v3234
    %v3365 = vunpack.c.l.b16 %v3235
    %v3366 = vunpack.c.h.b16 %v3235
    %v3367 = vunpack.c.l.b16 %v3236
    %v3368 = vunpack.c.h.b16 %v3236
    %v3369 = vunpack.c.l.b16 %v3237
    %v3370 = vunpack.c.h.b16 %v3237
    %v3371 = vunpack.c.l.b16 %v3238
    %v3372 = vunpack.c.h.b16 %v3238
    %v3373 = vunpack.c.l.b16 %v3239
    %v3374 = vunpack.c.h.b16 %v3239
    %v3375 = vunpack.c.l.b16 %v3240
    %v3376 = vunpack.c.h.b16 %v3240
    %v3377 = vunpack.c.l.b16 %v3241
    %v3378 = vunpack.c.h.b16 %v3241
    %v3379 = vunpack.c.l.b16 %v3242
    %v3380 = vunpack.c.h.b16 %v3242
    %v3381 = vunpack.c.l.b16 %v3243
    %v3382 = vunpack.c.h.b16 %v3243
    %v3383 = vunpack.c.l.b16 %v3244
    %v3384 = vunpack.c.h.b16 %v3244
    %v3385 = vunpack.c.l.b16 %v3245
    %v3386 = vunpack.c.h.b16 %v3245
    %v3387 = vunpack.c.l.b16 %v3246
    %v3388 = vunpack.c.h.b16 %v3246
    %v3389 = vunpack.c.l.b16 %v3247
    %v3390 = vunpack.c.h.b16 %v3247
    %v3391 = vunpack.c.l.b16 %v3248
    %v3392 = vunpack.c.h.b16 %v3248
    %v3393 = vunpack.c.l.b16 %v3249
    %v3394 = vunpack.c.h.b16 %v3249
    %v3395 = vunpack.c.l.b16 %v3250
    %v3396 = vunpack.c.h.b16 %v3250
    %v3397 = vunpack.c.l.b16 %v3251
    %v3398 = vunpack.c.h.b16 %v3251
    %v3399 = vunpack.c.l.b16 %v3252
    %v3400 = vunpack.c.h.b16 %v3252
    %v3401 = vunpack.c.l.b16 %v3253
    %v3402 = vunpack.c.h.b16 %v3253
    %v3403 = vunpack.c.l.b16 %v3254
    %v3404 = vunpack.c.h.b16 %v3254
    %v3405 = vunpack.c.l.b16 %v3255
    %v3406 = vunpack.c.h.b16 %v3255
    %v3407 = vunpack.c.l.b16 %v3256
    %v3408 = vunpack.c.h.b16 %v3256
    %v3409 = vunpack.c.l.b16 %v3257
    %v3410 = vunpack.c.h.b16 %v3257
    %v3411 = vunpack.c.l.b16 %v3258
    %v3412 = vunpack.c.h.b16 %v3258
    %v3413 = vunpack.c.l.b16 %v3259
    %v3414 = vunpack.c.h.b16 %v3259
    %v3415 = vunpack.c.l.b16 %v3260
    %v3416 = vunpack.c.h.b16 %v3260
    %v3417 = vunpack.c.l.b16 %v3261
    %v3418 = vunpack.c.h.b16 %v3261
    %v3419 = vunpack.c.l.b16 %v3262
    %v3420 = vunpack.c.h.b16 %v3262
    %v3421 = vunpack.c.l.b16 %v3263
    %v3422 = vunpack.c.h.b16 %v3263
    %v3423 = vunpack.c.l.b16 %v3264
    %v3424 = vunpack.c.h.b16 %v3264
    %v3425 = vunpack.c.l.b16 %v3265
    %v3426 = vunpack.c.h.b16 %v3265
    %v3427 = vunpack.c.l.b16 %v3266
    %v3428 = vunpack.c.h.b16 %v3266
    %v3429 = vunpack.c.l.b16 %v3267
    %v3430 = vunpack.c.h.b16 %v3267
    %v3431 = vunpack.c.l.b16 %v3268
    %v3432 = vunpack.c.h.b16 %v3268
    %v3433 = vunpack.c.l.b16 %v3269
    %v3434 = vunpack.c.h.b16 %v3269
    %v3435 = vunpack.c.l.b16 %v3270
    %v3436 = vunpack.c.h.b16 %v3270
    %v3437 = vunpack.c.l.b16 %v3271
    %v3438 = vunpack.c.h.b16 %v3271
    %v3439 = vunpack.c.l.b16 %v3272
    %v3440 = vunpack.c.h.b16 %v3272
    %v3441 = vunpack.c.l.b16 %v3273
    %v3442 = vunpack.c.h.b16 %v3273
    %v3443 = vunpack.c.l.b16 %v3274
    %v3444 = vunpack.c.h.b16 %v3274
    %v3445 = vunpack.c.l.b16 %v3275
    %v3446 = vunpack.c.h.b16 %v3275
    %v3447 = vunpack.c.l.b16 %v3276
    %v3448 = vunpack.c.h.b16 %v3276
    %v3449 = vunpack.c.l.b16 %v3277
    %v3450 = vunpack.c.h.b16 %v3277
    %v3451 = vunpack.c.l.b16 %v3278
    %v3452 = vunpack.c.h.b16 %v3278
    %v3453 = vunpack.c.l.b16 %v3279
    %v3454 = vunpack.c.h.b16 %v3279
    %v3455 = vunpack.c.l.b16 %v3280
    %v3456 = vunpack.c.h.b16 %v3280
    %v3457 = vunpack.c.l.b16 %v3281
    %v3458 = vunpack.c.h.b16 %v3281
    %v3459 = vunpack.c.l.b16 %v3282
    %v3460 = vunpack.c.h.b16 %v3282
    %v3461 = vunpack.c.l.b16 %v3283
    %v3462 = vunpack.c.h.b16 %v3283
    %v3463 = vunpack.c.l.b16 %v3284
    %v3464 = vunpack.c.h.b16 %v3284
    %v3465 = vunpack.c.l.b16 %v3285
    %v3466 = vunpack.c.h.b16 %v3285
    %v3467 = vunpack.c.l.b16 %v3286
    %v3468 = vunpack.c.h.b16 %v3286
    %v3469 = vunpack.c.l.b16 %v3287
    %v3470 = vunpack.c.h.b16 %v3287
    %v3471 = vunpack.c.l.b16 %v3288
    %v3472 = vunpack.c.h.b16 %v3288
    %v3473 = vunpack.c.l.b16 %v3289
    %v3474 = vunpack.c.h.b16 %v3289
    %v3475 = vunpack.c.l.b16 %v3290
    %v3476 = vunpack.c.h.b16 %v3290
    %v3477 = vunpack.c.l.b16 %v3291
    %v3478 = vunpack.c.h.b16 %v3291
    %v3479 = vunpack.c.l.b16 %v3292
    %v3480 = vunpack.c.h.b16 %v3292
    %v3481 = vunpack.c.l.b16 %v3293
    %v3482 = vunpack.c.h.b16 %v3293
    %v3483 = vunpack.c.l.b16 %v3294
    %v3484 = vunpack.c.h.b16 %v3294
    %v3485 = vunpack.c.l.b16 %v3295
    %v3486 = vunpack.c.h.b16 %v3295
    %v3487 = vunpack.c.l.b16 %v3296
    %v3488 = vunpack.c.h.b16 %v3296
    %v3489 = vpack.c.b16 %v3365, %v3361
    %v3490 = vpack.c.b16 %v3366, %v3362
    %v3491 = vpack.c.b16 %v3367, %v3363
    %v3492 = vpack.c.b16 %v3368, %v3364
    %v3493 = vpack.c.b16 %v3373, %v3369
    %v3494 = vpack.c.b16 %v3374, %v3370
    %v3495 = vpack.c.b16 %v3375, %v3371
    %v3496 = vpack.c.b16 %v3376, %v3372
    %v3497 = vpack.c.b16 %v3381, %v3377
    %v3498 = vpack.c.b16 %v3382, %v3378
    %v3499 = vpack.c.b16 %v3383, %v3379
    %v3500 = vpack.c.b16 %v3384, %v3380
    %v3501 = vpack.c.b16 %v3389, %v3385
    %v3502 = vpack.c.b16 %v3390, %v3386
    %v3503 = vpack.c.b16 %v3391, %v3387
    %v3504 = vpack.c.b16 %v3392, %v3388
    %v3505 = vpack.c.b16 %v3397, %v3393
    %v3506 = vpack.c.b16 %v3398, %v3394
    %v3507 = vpack.c.b16 %v3399, %v3395
    %v3508 = vpack.c.b16 %v3400, %v3396
    %v3509 = vpack.c.b16 %v3405, %v3401
    %v3510 = vpack.c.b16 %v3406, %v3402
    %v3511 = vpack.c.b16 %v3407, %v3403
    %v3512 = vpack.c.b16 %v3408, %v3404
    %v3513 = vpack.c.b16 %v3413, %v3409
    %v3514 = vpack.c.b16 %v3414, %v3410
    %v3515 = vpack.c.b16 %v3415, %v3411
    %v3516 = vpack.c.b16 %v3416, %v3412
    %v3517 = vpack.c.b16 %v3421, %v3417
    %v3518 = vpack.c.b16 %v3422, %v3418
    %v3519 = vpack.c.b16 %v3423, %v3419
    %v3520 = vpack.c.b16 %v3424, %v3420
    %v3521 = vpack.c.b16 %v3429, %v3425
    %v3522 = vpack.c.b16 %v3430, %v3426
    %v3523 = vpack.c.b16 %v3431, %v3427
    %v3524 = vpack.c.b16 %v3432, %v3428
    %v3525 = vpack.c.b16 %v3437, %v3433
    %v3526 = vpack.c.b16 %v3438, %v3434
    %v3527 = vpack.c.b16 %v3439, %v3435
    %v3528 = vpack.c.b16 %v3440, %v3436
    %v3529 = vpack.c.b16 %v3445, %v3441
    %v3530 = vpack.c.b16 %v3446, %v3442
    %v3531 = vpack.c.b16 %v3447, %v3443
    %v3532 = vpack.c.b16 %v3448, %v3444
    %v3533 = vpack.c.b16 %v3453, %v3449
    %v3534 = vpack.c.b16 %v3454, %v3450
    %v3535 = vpack.c.b16 %v3455, %v3451
    %v3536 = vpack.c.b16 %v3456, %v3452
    %v3537 = vpack.c.b16 %v3461, %v3457
    %v3538 = vpack.c.b16 %v3462, %v3458
    %v3539 = vpack.c.b16 %v3463, %v3459
    %v3540 = vpack.c.b16 %v3464, %v3460
    %v3541 = vpack.c.b16 %v3469, %v3465
    %v3542 = vpack.c.b16 %v3470, %v3466
    %v3543 = vpack.c.b16 %v3471, %v3467
    %v3544 = vpack.c.b16 %v3472, %v3468
    %v3545 = vpack.c.b16 %v3477, %v3473
    %v3546 = vpack.c.b16 %v3478, %v3474
    %v3547 = vpack.c.b16 %v3479, %v3475
    %v3548 = vpack.c.b16 %v3480, %v3476
    %v3549 = vpack.c.b16 %v3485, %v3481
    %v3550 = vpack.c.b16 %v3486, %v3482
    %v3551 = vpack.c.b16 %v3487, %v3483
    %v3552 = vpack.c.b16 %v3488, %v3484
    %3617 = vmatprep.subr.bf16.mxu0 %v3490
    %3618 = vmatpush1.bf16.msra.mxu0 %v3489
    %3619 = vmatprep.subr.bf16.mxu0 %v3494
    %3620 = vmatpush1.bf16.msra.mxu0 %v3493
    %3621 = vmatprep.subr.bf16.mxu0 %v3498
    %3622 = vmatpush1.bf16.msra.mxu0 %v3497
    %3623 = vmatprep.subr.bf16.mxu0 %v3502
    %3624 = vmatpush1.bf16.msra.mxu0 %v3501
    %3625 = vmatprep.subr.bf16.mxu0 %v3506
    %3626 = vmatpush1.bf16.msra.mxu0 %v3505
    %3627 = vmatprep.subr.bf16.mxu0 %v3510
    %3628 = vmatpush1.bf16.msra.mxu0 %v3509
    %3629 = vmatprep.subr.bf16.mxu0 %v3514
    %3630 = vmatpush1.bf16.msra.mxu0 %v3513
    %3631 = vmatprep.subr.bf16.mxu0 %v3518
    %3632 = vmatpush1.bf16.msra.mxu0 %v3517
    %3633 = vmatprep.subr.bf16.mxu0 %v3522
    %3634 = vmatpush1.bf16.msra.mxu0 %v3521
    %3635 = vmatprep.subr.bf16.mxu0 %v3526
    %3636 = vmatpush1.bf16.msra.mxu0 %v3525
    %3637 = vmatprep.subr.bf16.mxu0 %v3530
    %3638 = vmatpush1.bf16.msra.mxu0 %v3529
    %3639 = vmatprep.subr.bf16.mxu0 %v3534
    %3640 = vmatpush1.bf16.msra.mxu0 %v3533
    %3641 = vmatprep.subr.bf16.mxu0 %v3538
    %3642 = vmatpush1.bf16.msra.mxu0 %v3537
    %3643 = vmatprep.subr.bf16.mxu0 %v3542
    %3644 = vmatpush1.bf16.msra.mxu0 %v3541
    %3645 = vmatprep.subr.bf16.mxu0 %v3546
    %3646 = vmatpush1.bf16.msra.mxu0 %v3545
    %3647 = vmatprep.subr.bf16.mxu0 %v3550
    %3648 = vmatpush1.bf16.msra.mxu0 %v3549
    %3649 = vmatprep.mubr.bf16.mxu0 %v3231
    %3650 = vmatmul.mubr.bf16.gmra.mrb[0].mxu0 %v3230
    %v3651 = vpop.f32.mrb[0].mxu0
    %v3652 = vadd.f32 0.0, %v3651
    %v3653 = vpop.f32.mrb[0].mxu0
    %v3654 = vadd.f32 0.0, %v3653
    %v3655 = vpop.f32.mrb[0].mxu0
    %v3656 = vpop.f32.mrb[0].mxu0
    %3657 = vdwg.mxu0
    %3658 = vmatprep.subr.bf16.mxu0 %v3492
    %3659 = vmatpush1.bf16.msra.mxu0 %v3491
    %3660 = vmatprep.subr.bf16.mxu0 %v3496
    %3661 = vmatpush1.bf16.msra.mxu0 %v3495
    %3662 = vmatprep.subr.bf16.mxu0 %v3500
    %3663 = vmatpush1.bf16.msra.mxu0 %v3499
    %3664 = vmatprep.subr.bf16.mxu0 %v3504
    %3665 = vmatpush1.bf16.msra.mxu0 %v3503
    %3666 = vmatprep.subr.bf16.mxu0 %v3508
    %3667 = vmatpush1.bf16.msra.mxu0 %v3507
    %3668 = vmatprep.subr.bf16.mxu0 %v3512
    %3669 = vmatpush1.bf16.msra.mxu0 %v3511
    %3670 = vmatprep.subr.bf16.mxu0 %v3516
    %3671 = vmatpush1.bf16.msra.mxu0 %v3515
    %3672 = vmatprep.subr.bf16.mxu0 %v3520
    %3673 = vmatpush1.bf16.msra.mxu0 %v3519
    %3674 = vmatprep.subr.bf16.mxu0 %v3524
    %3675 = vmatpush1.bf16.msra.mxu0 %v3523
    %3676 = vmatprep.subr.bf16.mxu0 %v3528
    %3677 = vmatpush1.bf16.msra.mxu0 %v3527
    %3678 = vmatprep.subr.bf16.mxu0 %v3532
    %3679 = vmatpush1.bf16.msra.mxu0 %v3531
    %3680 = vmatprep.subr.bf16.mxu0 %v3536
    %3681 = vmatpush1.bf16.msra.mxu0 %v3535
    %3682 = vmatprep.subr.bf16.mxu0 %v3540
    %3683 = vmatpush1.bf16.msra.mxu0 %v3539
    %3684 = vmatprep.subr.bf16.mxu0 %v3544
    %3685 = vmatpush1.bf16.msra.mxu0 %v3543
    %3686 = vmatprep.subr.bf16.mxu0 %v3548
    %3687 = vmatpush1.bf16.msra.mxu0 %v3547
    %3688 = vmatprep.subr.bf16.mxu0 %v3552
    %3689 = vmatpush1.bf16.msra.mxu0 %v3551
    %3690 = vmatprep.mubr.bf16.mxu0 %v3231
    %3691 = vmatmul.mubr.bf16.gmra.mrb[0].mxu0 %v3230
    %v3692 = vpop.f32.mrb[0].mxu0
    %v3693 = vadd.f32 0.0, %v3692
    %v3694 = vpop.f32.mrb[0].mxu0
    %v3695 = vadd.f32 0.0, %v3694
    %v3696 = vpop.f32.mrb[0].mxu0
    %v3697 = vpop.f32.mrb[0].mxu0
    %3698 = vdwg.mxu0
    %v3699 = vadd.f32 %v3137, %v3652
    %v3700 = vadd.f32 %v3139, %v3654
    %v3701 = vadd.f32 %v3178, %v3693
    %v3702 = vadd.f32 %v3180, %v3695
    %s3703 = scalar_lea.vmem %s4, 12
    %v3704 = vld [vmem:[%s3703] sm:$0xf]
    %v3706 = vsel %vm2156, %v3704, 0
    %3708 = vmatprep.subr.bf16.mxu0 %v2152
    %3709 = vmatpush1.bf16.msra.mxu0 %v2151
    %3710 = vmatprep.subr.bf16.mxu0 %v2154
    %3711 = vmatpush1.bf16.msra.mxu0 %v2153
    %3712 = vmatprep.subr.bf16.mxu0 0
    %3713 = vmatpush1.bf16.msra.mxu0 0
    %3714 = vmatprep.subr.bf16.mxu0 0
    %3715 = vmatpush1.bf16.msra.mxu0 0
    %3716 = vmatprep.subr.bf16.mxu0 0
    %3717 = vmatpush1.bf16.msra.mxu0 0
    %3718 = vmatprep.subr.bf16.mxu0 0
    %3719 = vmatpush1.bf16.msra.mxu0 0
    %3720 = vmatprep.subr.bf16.mxu0 0
    %3721 = vmatpush1.bf16.msra.mxu0 0
    %3722 = vmatprep.subr.bf16.mxu0 0
    %3723 = vmatpush1.bf16.msra.mxu0 0
    %3724 = vmatprep.subr.bf16.mxu0 0
    %3725 = vmatpush1.bf16.msra.mxu0 0
    %3726 = vmatprep.subr.bf16.mxu0 0
    %3727 = vmatpush1.bf16.msra.mxu0 0
    %3728 = vmatprep.subr.bf16.mxu0 0
    %3729 = vmatpush1.bf16.msra.mxu0 0
    %3730 = vmatprep.subr.bf16.mxu0 0
    %3731 = vmatpush1.bf16.msra.mxu0 0
    %3732 = vmatprep.subr.bf16.mxu0 0
    %3733 = vmatpush1.bf16.msra.mxu0 0
    %3734 = vmatprep.subr.bf16.mxu0 0
    %3735 = vmatpush1.bf16.msra.mxu0 0
    %3736 = vmatprep.subr.bf16.mxu0 0
    %3737 = vmatpush1.bf16.msra.mxu0 0
    %3738 = vmatprep.subr.bf16.mxu0 0
    %3739 = vmatpush1.bf16.msra.mxu0 0
    %3740 = vmatprep.mubr.bf16.mxu0 0
    %3741 = vmatmul.mubr.bf16.gmra.mrb[0].mxu0 %v3706
    %v3742 = vpop.f32.mrb[0].mxu0
    %v3743 = vadd.f32 0.0, %v3742
    %v3744 = vpop.f32.mrb[0].mxu0
    %v3745 = vadd.f32 0.0, %v3744
    %v3746 = vpop.f32.mrb[0].mxu0
    %v3747 = vpop.f32.mrb[0].mxu0
    %3748 = vdwg.mxu0
    %v3749 = vpack.c.bf16 %v3743, %v3743
    %v3750 = vpack.c.bf16 %v3745, %v3745
    %s3751 = scalar_lea.vmem %s5, 1536
    %v3752 = vld [vmem:[%s3751] sm:$0xff]
    %v3753 = vld [vmem:[%s3751 + $0x8] sm:$0xff]
    %v3754 = vld [vmem:[%s3751 + $0x10] sm:$0xff]
    %v3755 = vld [vmem:[%s3751 + $0x18] sm:$0xff]
    %v3756 = vld [vmem:[%s3751 + $0x20] sm:$0xff]
    %v3757 = vld [vmem:[%s3751 + $0x28] sm:$0xff]
    %v3758 = vld [vmem:[%s3751 + $0x30] sm:$0xff]
    %v3759 = vld [vmem:[%s3751 + $0x38] sm:$0xff]
    %v3760 = vld [vmem:[%s3751 + $0x40] sm:$0xff]
    %v3761 = vld [vmem:[%s3751 + $0x48] sm:$0xff]
    %v3762 = vld [vmem:[%s3751 + $0x50] sm:$0xff]
    %v3763 = vld [vmem:[%s3751 + $0x58] sm:$0xff]
    %v3764 = vld [vmem:[%s3751 + $0x60] sm:$0xff]
    %v3765 = vld [vmem:[%s3751 + $0x68] sm:$0xff]
    %v3766 = vld [vmem:[%s3751 + $0x70] sm:$0xff]
    %v3767 = vld [vmem:[%s3751 + $0x78] sm:$0xff]
    %v3768 = vld [vmem:[%s3751 + $0x80] sm:$0xff]
    %v3769 = vld [vmem:[%s3751 + $0x88] sm:$0xff]
    %v3770 = vld [vmem:[%s3751 + $0x90] sm:$0xff]
    %v3771 = vld [vmem:[%s3751 + $0x98] sm:$0xff]
    %v3772 = vld [vmem:[%s3751 + $0xa0] sm:$0xff]
    %v3773 = vld [vmem:[%s3751 + $0xa8] sm:$0xff]
    %v3774 = vld [vmem:[%s3751 + $0xb0] sm:$0xff]
    %v3775 = vld [vmem:[%s3751 + $0xb8] sm:$0xff]
    %v3776 = vld [vmem:[%s3751 + $0xc0] sm:$0xff]
    %v3777 = vld [vmem:[%s3751 + $0xc8] sm:$0xff]
    %v3778 = vld [vmem:[%s3751 + $0xd0] sm:$0xff]
    %v3779 = vld [vmem:[%s3751 + $0xd8] sm:$0xff]
    %v3780 = vld [vmem:[%s3751 + $0xe0] sm:$0xff]
    %v3781 = vld [vmem:[%s3751 + $0xe8] sm:$0xff]
    %v3782 = vld [vmem:[%s3751 + $0xf0] sm:$0xff]
    %v3783 = vld [vmem:[%s3751 + $0xf8] sm:$0xff]
    %v3784 = vld [vmem:[%s3751 + $0x100] sm:$0xff]
    %v3785 = vld [vmem:[%s3751 + $0x108] sm:$0xff]
    %v3786 = vld [vmem:[%s3751 + $0x110] sm:$0xff]
    %v3787 = vld [vmem:[%s3751 + $0x118] sm:$0xff]
    %v3788 = vld [vmem:[%s3751 + $0x120] sm:$0xff]
    %v3789 = vld [vmem:[%s3751 + $0x128] sm:$0xff]
    %v3790 = vld [vmem:[%s3751 + $0x130] sm:$0xff]
    %v3791 = vld [vmem:[%s3751 + $0x138] sm:$0xff]
    %v3792 = vld [vmem:[%s3751 + $0x140] sm:$0xff]
    %v3793 = vld [vmem:[%s3751 + $0x148] sm:$0xff]
    %v3794 = vld [vmem:[%s3751 + $0x150] sm:$0xff]
    %v3795 = vld [vmem:[%s3751 + $0x158] sm:$0xff]
    %v3796 = vld [vmem:[%s3751 + $0x160] sm:$0xff]
    %v3797 = vld [vmem:[%s3751 + $0x168] sm:$0xff]
    %v3798 = vld [vmem:[%s3751 + $0x170] sm:$0xff]
    %v3799 = vld [vmem:[%s3751 + $0x178] sm:$0xff]
    %v3800 = vld [vmem:[%s3751 + $0x180] sm:$0xff]
    %v3801 = vld [vmem:[%s3751 + $0x188] sm:$0xff]
    %v3802 = vld [vmem:[%s3751 + $0x190] sm:$0xff]
    %v3803 = vld [vmem:[%s3751 + $0x198] sm:$0xff]
    %v3804 = vld [vmem:[%s3751 + $0x1a0] sm:$0xff]
    %v3805 = vld [vmem:[%s3751 + $0x1a8] sm:$0xff]
    %v3806 = vld [vmem:[%s3751 + $0x1b0] sm:$0xff]
    %v3807 = vld [vmem:[%s3751 + $0x1b8] sm:$0xff]
    %v3808 = vld [vmem:[%s3751 + $0x1c0] sm:$0xff]
    %v3809 = vld [vmem:[%s3751 + $0x1c8] sm:$0xff]
    %v3810 = vld [vmem:[%s3751 + $0x1d0] sm:$0xff]
    %v3811 = vld [vmem:[%s3751 + $0x1d8] sm:$0xff]
    %v3812 = vld [vmem:[%s3751 + $0x1e0] sm:$0xff]
    %v3813 = vld [vmem:[%s3751 + $0x1e8] sm:$0xff]
    %v3814 = vld [vmem:[%s3751 + $0x1f0] sm:$0xff]
    %v3815 = vld [vmem:[%s3751 + $0x1f8] sm:$0xff]
    %v3880 = vunpack.c.l.b16 %v3752
    %v3881 = vunpack.c.h.b16 %v3752
    %v3882 = vunpack.c.l.b16 %v3753
    %v3883 = vunpack.c.h.b16 %v3753
    %v3884 = vunpack.c.l.b16 %v3754
    %v3885 = vunpack.c.h.b16 %v3754
    %v3886 = vunpack.c.l.b16 %v3755
    %v3887 = vunpack.c.h.b16 %v3755
    %v3888 = vunpack.c.l.b16 %v3756
    %v3889 = vunpack.c.h.b16 %v3756
    %v3890 = vunpack.c.l.b16 %v3757
    %v3891 = vunpack.c.h.b16 %v3757
    %v3892 = vunpack.c.l.b16 %v3758
    %v3893 = vunpack.c.h.b16 %v3758
    %v3894 = vunpack.c.l.b16 %v3759
    %v3895 = vunpack.c.h.b16 %v3759
    %v3896 = vunpack.c.l.b16 %v3760
    %v3897 = vunpack.c.h.b16 %v3760
    %v3898 = vunpack.c.l.b16 %v3761
    %v3899 = vunpack.c.h.b16 %v3761
    %v3900 = vunpack.c.l.b16 %v3762
    %v3901 = vunpack.c.h.b16 %v3762
    %v3902 = vunpack.c.l.b16 %v3763
    %v3903 = vunpack.c.h.b16 %v3763
    %v3904 = vunpack.c.l.b16 %v3764
    %v3905 = vunpack.c.h.b16 %v3764
    %v3906 = vunpack.c.l.b16 %v3765
    %v3907 = vunpack.c.h.b16 %v3765
    %v3908 = vunpack.c.l.b16 %v3766
    %v3909 = vunpack.c.h.b16 %v3766
    %v3910 = vunpack.c.l.b16 %v3767
    %v3911 = vunpack.c.h.b16 %v3767
    %v3912 = vunpack.c.l.b16 %v3768
    %v3913 = vunpack.c.h.b16 %v3768
    %v3914 = vunpack.c.l.b16 %v3769
    %v3915 = vunpack.c.h.b16 %v3769
    %v3916 = vunpack.c.l.b16 %v3770
    %v3917 = vunpack.c.h.b16 %v3770
    %v3918 = vunpack.c.l.b16 %v3771
    %v3919 = vunpack.c.h.b16 %v3771
    %v3920 = vunpack.c.l.b16 %v3772
    %v3921 = vunpack.c.h.b16 %v3772
    %v3922 = vunpack.c.l.b16 %v3773
    %v3923 = vunpack.c.h.b16 %v3773
    %v3924 = vunpack.c.l.b16 %v3774
    %v3925 = vunpack.c.h.b16 %v3774
    %v3926 = vunpack.c.l.b16 %v3775
    %v3927 = vunpack.c.h.b16 %v3775
    %v3928 = vunpack.c.l.b16 %v3776
    %v3929 = vunpack.c.h.b16 %v3776
    %v3930 = vunpack.c.l.b16 %v3777
    %v3931 = vunpack.c.h.b16 %v3777
    %v3932 = vunpack.c.l.b16 %v3778
    %v3933 = vunpack.c.h.b16 %v3778
    %v3934 = vunpack.c.l.b16 %v3779
    %v3935 = vunpack.c.h.b16 %v3779
    %v3936 = vunpack.c.l.b16 %v3780
    %v3937 = vunpack.c.h.b16 %v3780
    %v3938 = vunpack.c.l.b16 %v3781
    %v3939 = vunpack.c.h.b16 %v3781
    %v3940 = vunpack.c.l.b16 %v3782
    %v3941 = vunpack.c.h.b16 %v3782
    %v3942 = vunpack.c.l.b16 %v3783
    %v3943 = vunpack.c.h.b16 %v3783
    %v3944 = vunpack.c.l.b16 %v3784
    %v3945 = vunpack.c.h.b16 %v3784
    %v3946 = vunpack.c.l.b16 %v3785
    %v3947 = vunpack.c.h.b16 %v3785
    %v3948 = vunpack.c.l.b16 %v3786
    %v3949 = vunpack.c.h.b16 %v3786
    %v3950 = vunpack.c.l.b16 %v3787
    %v3951 = vunpack.c.h.b16 %v3787
    %v3952 = vunpack.c.l.b16 %v3788
    %v3953 = vunpack.c.h.b16 %v3788
    %v3954 = vunpack.c.l.b16 %v3789
    %v3955 = vunpack.c.h.b16 %v3789
    %v3956 = vunpack.c.l.b16 %v3790
    %v3957 = vunpack.c.h.b16 %v3790
    %v3958 = vunpack.c.l.b16 %v3791
    %v3959 = vunpack.c.h.b16 %v3791
    %v3960 = vunpack.c.l.b16 %v3792
    %v3961 = vunpack.c.h.b16 %v3792
    %v3962 = vunpack.c.l.b16 %v3793
    %v3963 = vunpack.c.h.b16 %v3793
    %v3964 = vunpack.c.l.b16 %v3794
    %v3965 = vunpack.c.h.b16 %v3794
    %v3966 = vunpack.c.l.b16 %v3795
    %v3967 = vunpack.c.h.b16 %v3795
    %v3968 = vunpack.c.l.b16 %v3796
    %v3969 = vunpack.c.h.b16 %v3796
    %v3970 = vunpack.c.l.b16 %v3797
    %v3971 = vunpack.c.h.b16 %v3797
    %v3972 = vunpack.c.l.b16 %v3798
    %v3973 = vunpack.c.h.b16 %v3798
    %v3974 = vunpack.c.l.b16 %v3799
    %v3975 = vunpack.c.h.b16 %v3799
    %v3976 = vunpack.c.l.b16 %v3800
    %v3977 = vunpack.c.h.b16 %v3800
    %v3978 = vunpack.c.l.b16 %v3801
    %v3979 = vunpack.c.h.b16 %v3801
    %v3980 = vunpack.c.l.b16 %v3802
    %v3981 = vunpack.c.h.b16 %v3802
    %v3982 = vunpack.c.l.b16 %v3803
    %v3983 = vunpack.c.h.b16 %v3803
    %v3984 = vunpack.c.l.b16 %v3804
    %v3985 = vunpack.c.h.b16 %v3804
    %v3986 = vunpack.c.l.b16 %v3805
    %v3987 = vunpack.c.h.b16 %v3805
    %v3988 = vunpack.c.l.b16 %v3806
    %v3989 = vunpack.c.h.b16 %v3806
    %v3990 = vunpack.c.l.b16 %v3807
    %v3991 = vunpack.c.h.b16 %v3807
    %v3992 = vunpack.c.l.b16 %v3808
    %v3993 = vunpack.c.h.b16 %v3808
    %v3994 = vunpack.c.l.b16 %v3809
    %v3995 = vunpack.c.h.b16 %v3809
    %v3996 = vunpack.c.l.b16 %v3810
    %v3997 = vunpack.c.h.b16 %v3810
    %v3998 = vunpack.c.l.b16 %v3811
    %v3999 = vunpack.c.h.b16 %v3811
    %v4000 = vunpack.c.l.b16 %v3812
    %v4001 = vunpack.c.h.b16 %v3812
    %v4002 = vunpack.c.l.b16 %v3813
    %v4003 = vunpack.c.h.b16 %v3813
    %v4004 = vunpack.c.l.b16 %v3814
    %v4005 = vunpack.c.h.b16 %v3814
    %v4006 = vunpack.c.l.b16 %v3815
    %v4007 = vunpack.c.h.b16 %v3815
    %v4008 = vpack.c.b16 %v3884, %v3880
    %v4009 = vpack.c.b16 %v3885, %v3881
    %v4010 = vpack.c.b16 %v3886, %v3882
    %v4011 = vpack.c.b16 %v3887, %v3883
    %v4012 = vpack.c.b16 %v3892, %v3888
    %v4013 = vpack.c.b16 %v3893, %v3889
    %v4014 = vpack.c.b16 %v3894, %v3890
    %v4015 = vpack.c.b16 %v3895, %v3891
    %v4016 = vpack.c.b16 %v3900, %v3896
    %v4017 = vpack.c.b16 %v3901, %v3897
    %v4018 = vpack.c.b16 %v3902, %v3898
    %v4019 = vpack.c.b16 %v3903, %v3899
    %v4020 = vpack.c.b16 %v3908, %v3904
    %v4021 = vpack.c.b16 %v3909, %v3905
    %v4022 = vpack.c.b16 %v3910, %v3906
    %v4023 = vpack.c.b16 %v3911, %v3907
    %v4024 = vpack.c.b16 %v3916, %v3912
    %v4025 = vpack.c.b16 %v3917, %v3913
    %v4026 = vpack.c.b16 %v3918, %v3914
    %v4027 = vpack.c.b16 %v3919, %v3915
    %v4028 = vpack.c.b16 %v3924, %v3920
    %v4029 = vpack.c.b16 %v3925, %v3921
    %v4030 = vpack.c.b16 %v3926, %v3922
    %v4031 = vpack.c.b16 %v3927, %v3923
    %v4032 = vpack.c.b16 %v3932, %v3928
    %v4033 = vpack.c.b16 %v3933, %v3929
    %v4034 = vpack.c.b16 %v3934, %v3930
    %v4035 = vpack.c.b16 %v3935, %v3931
    %v4036 = vpack.c.b16 %v3940, %v3936
    %v4037 = vpack.c.b16 %v3941, %v3937
    %v4038 = vpack.c.b16 %v3942, %v3938
    %v4039 = vpack.c.b16 %v3943, %v3939
    %v4040 = vpack.c.b16 %v3948, %v3944
    %v4041 = vpack.c.b16 %v3949, %v3945
    %v4042 = vpack.c.b16 %v3950, %v3946
    %v4043 = vpack.c.b16 %v3951, %v3947
    %v4044 = vpack.c.b16 %v3956, %v3952
    %v4045 = vpack.c.b16 %v3957, %v3953
    %v4046 = vpack.c.b16 %v3958, %v3954
    %v4047 = vpack.c.b16 %v3959, %v3955
    %v4048 = vpack.c.b16 %v3964, %v3960
    %v4049 = vpack.c.b16 %v3965, %v3961
    %v4050 = vpack.c.b16 %v3966, %v3962
    %v4051 = vpack.c.b16 %v3967, %v3963
    %v4052 = vpack.c.b16 %v3972, %v3968
    %v4053 = vpack.c.b16 %v3973, %v3969
    %v4054 = vpack.c.b16 %v3974, %v3970
    %v4055 = vpack.c.b16 %v3975, %v3971
    %v4056 = vpack.c.b16 %v3980, %v3976
    %v4057 = vpack.c.b16 %v3981, %v3977
    %v4058 = vpack.c.b16 %v3982, %v3978
    %v4059 = vpack.c.b16 %v3983, %v3979
    %v4060 = vpack.c.b16 %v3988, %v3984
    %v4061 = vpack.c.b16 %v3989, %v3985
    %v4062 = vpack.c.b16 %v3990, %v3986
    %v4063 = vpack.c.b16 %v3991, %v3987
    %v4064 = vpack.c.b16 %v3996, %v3992
    %v4065 = vpack.c.b16 %v3997, %v3993
    %v4066 = vpack.c.b16 %v3998, %v3994
    %v4067 = vpack.c.b16 %v3999, %v3995
    %v4068 = vpack.c.b16 %v4004, %v4000
    %v4069 = vpack.c.b16 %v4005, %v4001
    %v4070 = vpack.c.b16 %v4006, %v4002
    %v4071 = vpack.c.b16 %v4007, %v4003
    %4136 = vmatprep.subr.bf16.mxu0 %v4009
    %4137 = vmatpush1.bf16.msra.mxu0 %v4008
    %4138 = vmatprep.subr.bf16.mxu0 %v4013
    %4139 = vmatpush1.bf16.msra.mxu0 %v4012
    %4140 = vmatprep.subr.bf16.mxu0 %v4017
    %4141 = vmatpush1.bf16.msra.mxu0 %v4016
    %4142 = vmatprep.subr.bf16.mxu0 %v4021
    %4143 = vmatpush1.bf16.msra.mxu0 %v4020
    %4144 = vmatprep.subr.bf16.mxu0 %v4025
    %4145 = vmatpush1.bf16.msra.mxu0 %v4024
    %4146 = vmatprep.subr.bf16.mxu0 %v4029
    %4147 = vmatpush1.bf16.msra.mxu0 %v4028
    %4148 = vmatprep.subr.bf16.mxu0 %v4033
    %4149 = vmatpush1.bf16.msra.mxu0 %v4032
    %4150 = vmatprep.subr.bf16.mxu0 %v4037
    %4151 = vmatpush1.bf16.msra.mxu0 %v4036
    %4152 = vmatprep.subr.bf16.mxu0 %v4041
    %4153 = vmatpush1.bf16.msra.mxu0 %v4040
    %4154 = vmatprep.subr.bf16.mxu0 %v4045
    %4155 = vmatpush1.bf16.msra.mxu0 %v4044
    %4156 = vmatprep.subr.bf16.mxu0 %v4049
    %4157 = vmatpush1.bf16.msra.mxu0 %v4048
    %4158 = vmatprep.subr.bf16.mxu0 %v4053
    %4159 = vmatpush1.bf16.msra.mxu0 %v4052
    %4160 = vmatprep.subr.bf16.mxu0 %v4057
    %4161 = vmatpush1.bf16.msra.mxu0 %v4056
    %4162 = vmatprep.subr.bf16.mxu0 %v4061
    %4163 = vmatpush1.bf16.msra.mxu0 %v4060
    %4164 = vmatprep.subr.bf16.mxu0 %v4065
    %4165 = vmatpush1.bf16.msra.mxu0 %v4064
    %4166 = vmatprep.subr.bf16.mxu0 %v4069
    %4167 = vmatpush1.bf16.msra.mxu0 %v4068
    %4168 = vmatprep.mubr.bf16.mxu0 %v3750
    %4169 = vmatmul.mubr.bf16.gmra.mrb[0].mxu0 %v3749
    %v4170 = vpop.f32.mrb[0].mxu0
    %v4171 = vadd.f32 0.0, %v4170
    %v4172 = vpop.f32.mrb[0].mxu0
    %v4173 = vadd.f32 0.0, %v4172
    %v4174 = vpop.f32.mrb[0].mxu0
    %v4175 = vpop.f32.mrb[0].mxu0
    %4176 = vdwg.mxu0
    %4177 = vmatprep.subr.bf16.mxu0 %v4011
    %4178 = vmatpush1.bf16.msra.mxu0 %v4010
    %4179 = vmatprep.subr.bf16.mxu0 %v4015
    %4180 = vmatpush1.bf16.msra.mxu0 %v4014
    %4181 = vmatprep.subr.bf16.mxu0 %v4019
    %4182 = vmatpush1.bf16.msra.mxu0 %v4018
    %4183 = vmatprep.subr.bf16.mxu0 %v4023
    %4184 = vmatpush1.bf16.msra.mxu0 %v4022
    %4185 = vmatprep.subr.bf16.mxu0 %v4027
    %4186 = vmatpush1.bf16.msra.mxu0 %v4026
    %4187 = vmatprep.subr.bf16.mxu0 %v4031
    %4188 = vmatpush1.bf16.msra.mxu0 %v4030
    %4189 = vmatprep.subr.bf16.mxu0 %v4035
    %4190 = vmatpush1.bf16.msra.mxu0 %v4034
    %4191 = vmatprep.subr.bf16.mxu0 %v4039
    %4192 = vmatpush1.bf16.msra.mxu0 %v4038
    %4193 = vmatprep.subr.bf16.mxu0 %v4043
    %4194 = vmatpush1.bf16.msra.mxu0 %v4042
    %4195 = vmatprep.subr.bf16.mxu0 %v4047
    %4196 = vmatpush1.bf16.msra.mxu0 %v4046
    %4197 = vmatprep.subr.bf16.mxu0 %v4051
    %4198 = vmatpush1.bf16.msra.mxu0 %v4050
    %4199 = vmatprep.subr.bf16.mxu0 %v4055
    %4200 = vmatpush1.bf16.msra.mxu0 %v4054
    %4201 = vmatprep.subr.bf16.mxu0 %v4059
    %4202 = vmatpush1.bf16.msra.mxu0 %v4058
    %4203 = vmatprep.subr.bf16.mxu0 %v4063
    %4204 = vmatpush1.bf16.msra.mxu0 %v4062
    %4205 = vmatprep.subr.bf16.mxu0 %v4067
    %4206 = vmatpush1.bf16.msra.mxu0 %v4066
    %4207 = vmatprep.subr.bf16.mxu0 %v4071
    %4208 = vmatpush1.bf16.msra.mxu0 %v4070
    %4209 = vmatprep.mubr.bf16.mxu0 %v3750
    %4210 = vmatmul.mubr.bf16.gmra.mrb[0].mxu0 %v3749
    %v4211 = vpop.f32.mrb[0].mxu0
    %v4212 = vadd.f32 0.0, %v4211
    %v4213 = vpop.f32.mrb[0].mxu0
    %v4214 = vadd.f32 0.0, %v4213
    %v4215 = vpop.f32.mrb[0].mxu0
    %v4216 = vpop.f32.mrb[0].mxu0
    %4217 = vdwg.mxu0
    %v4218 = vadd.f32 %v3699, %v4171
    %v4219 = vadd.f32 %v3700, %v4173
    %v4220 = vadd.f32 %v3701, %v4212
    %v4221 = vadd.f32 %v3702, %v4214
    %s4222 = scalar_lea.vmem %s4, 16
    %v4223 = vld [vmem:[%s4222] sm:$0xf]
    %v4225 = vsel %vm2156, %v4223, 0
    %4227 = vmatprep.subr.bf16.mxu0 %v2152
    %4228 = vmatpush1.bf16.msra.mxu0 %v2151
    %4229 = vmatprep.subr.bf16.mxu0 %v2154
    %4230 = vmatpush1.bf16.msra.mxu0 %v2153
    %4231 = vmatprep.subr.bf16.mxu0 0
    %4232 = vmatpush1.bf16.msra.mxu0 0
    %4233 = vmatprep.subr.bf16.mxu0 0
    %4234 = vmatpush1.bf16.msra.mxu0 0
    %4235 = vmatprep.subr.bf16.mxu0 0
    %4236 = vmatpush1.bf16.msra.mxu0 0
    %4237 = vmatprep.subr.bf16.mxu0 0
    %4238 = vmatpush1.bf16.msra.mxu0 0
    %4239 = vmatprep.subr.bf16.mxu0 0
    %4240 = vmatpush1.bf16.msra.mxu0 0
    %4241 = vmatprep.subr.bf16.mxu0 0
    %4242 = vmatpush1.bf16.msra.mxu0 0
    %4243 = vmatprep.subr.bf16.mxu0 0
    %4244 = vmatpush1.bf16.msra.mxu0 0
    %4245 = vmatprep.subr.bf16.mxu0 0
    %4246 = vmatpush1.bf16.msra.mxu0 0
    %4247 = vmatprep.subr.bf16.mxu0 0
    %4248 = vmatpush1.bf16.msra.mxu0 0
    %4249 = vmatprep.subr.bf16.mxu0 0
    %4250 = vmatpush1.bf16.msra.mxu0 0
    %4251 = vmatprep.subr.bf16.mxu0 0
    %4252 = vmatpush1.bf16.msra.mxu0 0
    %4253 = vmatprep.subr.bf16.mxu0 0
    %4254 = vmatpush1.bf16.msra.mxu0 0
    %4255 = vmatprep.subr.bf16.mxu0 0
    %4256 = vmatpush1.bf16.msra.mxu0 0
    %4257 = vmatprep.subr.bf16.mxu0 0
    %4258 = vmatpush1.bf16.msra.mxu0 0
    %4259 = vmatprep.mubr.bf16.mxu0 0
    %4260 = vmatmul.mubr.bf16.gmra.mrb[0].mxu0 %v4225
    %v4261 = vpop.f32.mrb[0].mxu0
    %v4262 = vadd.f32 0.0, %v4261
    %v4263 = vpop.f32.mrb[0].mxu0
    %v4264 = vadd.f32 0.0, %v4263
    %v4265 = vpop.f32.mrb[0].mxu0
    %v4266 = vpop.f32.mrb[0].mxu0
    %4267 = vdwg.mxu0
    %v4268 = vpack.c.bf16 %v4262, %v4262
    %v4269 = vpack.c.bf16 %v4264, %v4264
    %s4270 = scalar_lea.vmem %s5, 2048
    %v4271 = vld [vmem:[%s4270] sm:$0xff]
    %v4272 = vld [vmem:[%s4270 + $0x8] sm:$0xff]
    %v4273 = vld [vmem:[%s4270 + $0x10] sm:$0xff]
    %v4274 = vld [vmem:[%s4270 + $0x18] sm:$0xff]
    %v4275 = vld [vmem:[%s4270 + $0x20] sm:$0xff]
    %v4276 = vld [vmem:[%s4270 + $0x28] sm:$0xff]
    %v4277 = vld [vmem:[%s4270 + $0x30] sm:$0xff]
    %v4278 = vld [vmem:[%s4270 + $0x38] sm:$0xff]
    %v4279 = vld [vmem:[%s4270 + $0x40] sm:$0xff]
    %v4280 = vld [vmem:[%s4270 + $0x48] sm:$0xff]
    %v4281 = vld [vmem:[%s4270 + $0x50] sm:$0xff]
    %v4282 = vld [vmem:[%s4270 + $0x58] sm:$0xff]
    %v4283 = vld [vmem:[%s4270 + $0x60] sm:$0xff]
    %v4284 = vld [vmem:[%s4270 + $0x68] sm:$0xff]
    %v4285 = vld [vmem:[%s4270 + $0x70] sm:$0xff]
    %v4286 = vld [vmem:[%s4270 + $0x78] sm:$0xff]
    %v4287 = vld [vmem:[%s4270 + $0x80] sm:$0xff]
    %v4288 = vld [vmem:[%s4270 + $0x88] sm:$0xff]
    %v4289 = vld [vmem:[%s4270 + $0x90] sm:$0xff]
    %v4290 = vld [vmem:[%s4270 + $0x98] sm:$0xff]
    %v4291 = vld [vmem:[%s4270 + $0xa0] sm:$0xff]
    %v4292 = vld [vmem:[%s4270 + $0xa8] sm:$0xff]
    %v4293 = vld [vmem:[%s4270 + $0xb0] sm:$0xff]
    %v4294 = vld [vmem:[%s4270 + $0xb8] sm:$0xff]
    %v4295 = vld [vmem:[%s4270 + $0xc0] sm:$0xff]
    %v4296 = vld [vmem:[%s4270 + $0xc8] sm:$0xff]
    %v4297 = vld [vmem:[%s4270 + $0xd0] sm:$0xff]
    %v4298 = vld [vmem:[%s4270 + $0xd8] sm:$0xff]
    %v4299 = vld [vmem:[%s4270 + $0xe0] sm:$0xff]
    %v4300 = vld [vmem:[%s4270 + $0xe8] sm:$0xff]
    %v4301 = vld [vmem:[%s4270 + $0xf0] sm:$0xff]
    %v4302 = vld [vmem:[%s4270 + $0xf8] sm:$0xff]
    %v4303 = vld [vmem:[%s4270 + $0x100] sm:$0xff]
    %v4304 = vld [vmem:[%s4270 + $0x108] sm:$0xff]
    %v4305 = vld [vmem:[%s4270 + $0x110] sm:$0xff]
    %v4306 = vld [vmem:[%s4270 + $0x118] sm:$0xff]
    %v4307 = vld [vmem:[%s4270 + $0x120] sm:$0xff]
    %v4308 = vld [vmem:[%s4270 + $0x128] sm:$0xff]
    %v4309 = vld [vmem:[%s4270 + $0x130] sm:$0xff]
    %v4310 = vld [vmem:[%s4270 + $0x138] sm:$0xff]
    %v4311 = vld [vmem:[%s4270 + $0x140] sm:$0xff]
    %v4312 = vld [vmem:[%s4270 + $0x148] sm:$0xff]
    %v4313 = vld [vmem:[%s4270 + $0x150] sm:$0xff]
    %v4314 = vld [vmem:[%s4270 + $0x158] sm:$0xff]
    %v4315 = vld [vmem:[%s4270 + $0x160] sm:$0xff]
    %v4316 = vld [vmem:[%s4270 + $0x168] sm:$0xff]
    %v4317 = vld [vmem:[%s4270 + $0x170] sm:$0xff]
    %v4318 = vld [vmem:[%s4270 + $0x178] sm:$0xff]
    %v4319 = vld [vmem:[%s4270 + $0x180] sm:$0xff]
    %v4320 = vld [vmem:[%s4270 + $0x188] sm:$0xff]
    %v4321 = vld [vmem:[%s4270 + $0x190] sm:$0xff]
    %v4322 = vld [vmem:[%s4270 + $0x198] sm:$0xff]
    %v4323 = vld [vmem:[%s4270 + $0x1a0] sm:$0xff]
    %v4324 = vld [vmem:[%s4270 + $0x1a8] sm:$0xff]
    %v4325 = vld [vmem:[%s4270 + $0x1b0] sm:$0xff]
    %v4326 = vld [vmem:[%s4270 + $0x1b8] sm:$0xff]
    %v4327 = vld [vmem:[%s4270 + $0x1c0] sm:$0xff]
    %v4328 = vld [vmem:[%s4270 + $0x1c8] sm:$0xff]
    %v4329 = vld [vmem:[%s4270 + $0x1d0] sm:$0xff]
    %v4330 = vld [vmem:[%s4270 + $0x1d8] sm:$0xff]
    %v4331 = vld [vmem:[%s4270 + $0x1e0] sm:$0xff]
    %v4332 = vld [vmem:[%s4270 + $0x1e8] sm:$0xff]
    %v4333 = vld [vmem:[%s4270 + $0x1f0] sm:$0xff]
    %v4334 = vld [vmem:[%s4270 + $0x1f8] sm:$0xff]
    %v4399 = vunpack.c.l.b16 %v4271
    %v4400 = vunpack.c.h.b16 %v4271
    %v4401 = vunpack.c.l.b16 %v4272
    %v4402 = vunpack.c.h.b16 %v4272
    %v4403 = vunpack.c.l.b16 %v4273
    %v4404 = vunpack.c.h.b16 %v4273
    %v4405 = vunpack.c.l.b16 %v4274
    %v4406 = vunpack.c.h.b16 %v4274
    %v4407 = vunpack.c.l.b16 %v4275
    %v4408 = vunpack.c.h.b16 %v4275
    %v4409 = vunpack.c.l.b16 %v4276
    %v4410 = vunpack.c.h.b16 %v4276
    %v4411 = vunpack.c.l.b16 %v4277
    %v4412 = vunpack.c.h.b16 %v4277
    %v4413 = vunpack.c.l.b16 %v4278
    %v4414 = vunpack.c.h.b16 %v4278
    %v4415 = vunpack.c.l.b16 %v4279
    %v4416 = vunpack.c.h.b16 %v4279
    %v4417 = vunpack.c.l.b16 %v4280
    %v4418 = vunpack.c.h.b16 %v4280
    %v4419 = vunpack.c.l.b16 %v4281
    %v4420 = vunpack.c.h.b16 %v4281
    %v4421 = vunpack.c.l.b16 %v4282
    %v4422 = vunpack.c.h.b16 %v4282
    %v4423 = vunpack.c.l.b16 %v4283
    %v4424 = vunpack.c.h.b16 %v4283
    %v4425 = vunpack.c.l.b16 %v4284
    %v4426 = vunpack.c.h.b16 %v4284
    %v4427 = vunpack.c.l.b16 %v4285
    %v4428 = vunpack.c.h.b16 %v4285
    %v4429 = vunpack.c.l.b16 %v4286
    %v4430 = vunpack.c.h.b16 %v4286
    %v4431 = vunpack.c.l.b16 %v4287
    %v4432 = vunpack.c.h.b16 %v4287
    %v4433 = vunpack.c.l.b16 %v4288
    %v4434 = vunpack.c.h.b16 %v4288
    %v4435 = vunpack.c.l.b16 %v4289
    %v4436 = vunpack.c.h.b16 %v4289
    %v4437 = vunpack.c.l.b16 %v4290
    %v4438 = vunpack.c.h.b16 %v4290
    %v4439 = vunpack.c.l.b16 %v4291
    %v4440 = vunpack.c.h.b16 %v4291
    %v4441 = vunpack.c.l.b16 %v4292
    %v4442 = vunpack.c.h.b16 %v4292
    %v4443 = vunpack.c.l.b16 %v4293
    %v4444 = vunpack.c.h.b16 %v4293
    %v4445 = vunpack.c.l.b16 %v4294
    %v4446 = vunpack.c.h.b16 %v4294
    %v4447 = vunpack.c.l.b16 %v4295
    %v4448 = vunpack.c.h.b16 %v4295
    %v4449 = vunpack.c.l.b16 %v4296
    %v4450 = vunpack.c.h.b16 %v4296
    %v4451 = vunpack.c.l.b16 %v4297
    %v4452 = vunpack.c.h.b16 %v4297
    %v4453 = vunpack.c.l.b16 %v4298
    %v4454 = vunpack.c.h.b16 %v4298
    %v4455 = vunpack.c.l.b16 %v4299
    %v4456 = vunpack.c.h.b16 %v4299
    %v4457 = vunpack.c.l.b16 %v4300
    %v4458 = vunpack.c.h.b16 %v4300
    %v4459 = vunpack.c.l.b16 %v4301
    %v4460 = vunpack.c.h.b16 %v4301
    %v4461 = vunpack.c.l.b16 %v4302
    %v4462 = vunpack.c.h.b16 %v4302
    %v4463 = vunpack.c.l.b16 %v4303
    %v4464 = vunpack.c.h.b16 %v4303
    %v4465 = vunpack.c.l.b16 %v4304
    %v4466 = vunpack.c.h.b16 %v4304
    %v4467 = vunpack.c.l.b16 %v4305
    %v4468 = vunpack.c.h.b16 %v4305
    %v4469 = vunpack.c.l.b16 %v4306
    %v4470 = vunpack.c.h.b16 %v4306
    %v4471 = vunpack.c.l.b16 %v4307
    %v4472 = vunpack.c.h.b16 %v4307
    %v4473 = vunpack.c.l.b16 %v4308
    %v4474 = vunpack.c.h.b16 %v4308
    %v4475 = vunpack.c.l.b16 %v4309
    %v4476 = vunpack.c.h.b16 %v4309
    %v4477 = vunpack.c.l.b16 %v4310
    %v4478 = vunpack.c.h.b16 %v4310
    %v4479 = vunpack.c.l.b16 %v4311
    %v4480 = vunpack.c.h.b16 %v4311
    %v4481 = vunpack.c.l.b16 %v4312
    %v4482 = vunpack.c.h.b16 %v4312
    %v4483 = vunpack.c.l.b16 %v4313
    %v4484 = vunpack.c.h.b16 %v4313
    %v4485 = vunpack.c.l.b16 %v4314
    %v4486 = vunpack.c.h.b16 %v4314
    %v4487 = vunpack.c.l.b16 %v4315
    %v4488 = vunpack.c.h.b16 %v4315
    %v4489 = vunpack.c.l.b16 %v4316
    %v4490 = vunpack.c.h.b16 %v4316
    %v4491 = vunpack.c.l.b16 %v4317
    %v4492 = vunpack.c.h.b16 %v4317
    %v4493 = vunpack.c.l.b16 %v4318
    %v4494 = vunpack.c.h.b16 %v4318
    %v4495 = vunpack.c.l.b16 %v4319
    %v4496 = vunpack.c.h.b16 %v4319
    %v4497 = vunpack.c.l.b16 %v4320
    %v4498 = vunpack.c.h.b16 %v4320
    %v4499 = vunpack.c.l.b16 %v4321
    %v4500 = vunpack.c.h.b16 %v4321
    %v4501 = vunpack.c.l.b16 %v4322
    %v4502 = vunpack.c.h.b16 %v4322
    %v4503 = vunpack.c.l.b16 %v4323
    %v4504 = vunpack.c.h.b16 %v4323
    %v4505 = vunpack.c.l.b16 %v4324
    %v4506 = vunpack.c.h.b16 %v4324
    %v4507 = vunpack.c.l.b16 %v4325
    %v4508 = vunpack.c.h.b16 %v4325
    %v4509 = vunpack.c.l.b16 %v4326
    %v4510 = vunpack.c.h.b16 %v4326
    %v4511 = vunpack.c.l.b16 %v4327
    %v4512 = vunpack.c.h.b16 %v4327
    %v4513 = vunpack.c.l.b16 %v4328
    %v4514 = vunpack.c.h.b16 %v4328
    %v4515 = vunpack.c.l.b16 %v4329
    %v4516 = vunpack.c.h.b16 %v4329
    %v4517 = vunpack.c.l.b16 %v4330
    %v4518 = vunpack.c.h.b16 %v4330
    %v4519 = vunpack.c.l.b16 %v4331
    %v4520 = vunpack.c.h.b16 %v4331
    %v4521 = vunpack.c.l.b16 %v4332
    %v4522 = vunpack.c.h.b16 %v4332
    %v4523 = vunpack.c.l.b16 %v4333
    %v4524 = vunpack.c.h.b16 %v4333
    %v4525 = vunpack.c.l.b16 %v4334
    %v4526 = vunpack.c.h.b16 %v4334
    %v4527 = vpack.c.b16 %v4403, %v4399
    %v4528 = vpack.c.b16 %v4404, %v4400
    %v4529 = vpack.c.b16 %v4405, %v4401
    %v4530 = vpack.c.b16 %v4406, %v4402
    %v4531 = vpack.c.b16 %v4411, %v4407
    %v4532 = vpack.c.b16 %v4412, %v4408
    %v4533 = vpack.c.b16 %v4413, %v4409
    %v4534 = vpack.c.b16 %v4414, %v4410
    %v4535 = vpack.c.b16 %v4419, %v4415
    %v4536 = vpack.c.b16 %v4420, %v4416
    %v4537 = vpack.c.b16 %v4421, %v4417
    %v4538 = vpack.c.b16 %v4422, %v4418
    %v4539 = vpack.c.b16 %v4427, %v4423
    %v4540 = vpack.c.b16 %v4428, %v4424
    %v4541 = vpack.c.b16 %v4429, %v4425
    %v4542 = vpack.c.b16 %v4430, %v4426
    %v4543 = vpack.c.b16 %v4435, %v4431
    %v4544 = vpack.c.b16 %v4436, %v4432
    %v4545 = vpack.c.b16 %v4437, %v4433
    %v4546 = vpack.c.b16 %v4438, %v4434
    %v4547 = vpack.c.b16 %v4443, %v4439
    %v4548 = vpack.c.b16 %v4444, %v4440
    %v4549 = vpack.c.b16 %v4445, %v4441
    %v4550 = vpack.c.b16 %v4446, %v4442
    %v4551 = vpack.c.b16 %v4451, %v4447
    %v4552 = vpack.c.b16 %v4452, %v4448
    %v4553 = vpack.c.b16 %v4453, %v4449
    %v4554 = vpack.c.b16 %v4454, %v4450
    %v4555 = vpack.c.b16 %v4459, %v4455
    %v4556 = vpack.c.b16 %v4460, %v4456
    %v4557 = vpack.c.b16 %v4461, %v4457
    %v4558 = vpack.c.b16 %v4462, %v4458
    %v4559 = vpack.c.b16 %v4467, %v4463
    %v4560 = vpack.c.b16 %v4468, %v4464
    %v4561 = vpack.c.b16 %v4469, %v4465
    %v4562 = vpack.c.b16 %v4470, %v4466
    %v4563 = vpack.c.b16 %v4475, %v4471
    %v4564 = vpack.c.b16 %v4476, %v4472
    %v4565 = vpack.c.b16 %v4477, %v4473
    %v4566 = vpack.c.b16 %v4478, %v4474
    %v4567 = vpack.c.b16 %v4483, %v4479
    %v4568 = vpack.c.b16 %v4484, %v4480
    %v4569 = vpack.c.b16 %v4485, %v4481
    %v4570 = vpack.c.b16 %v4486, %v4482
    %v4571 = vpack.c.b16 %v4491, %v4487
    %v4572 = vpack.c.b16 %v4492, %v4488
    %v4573 = vpack.c.b16 %v4493, %v4489
    %v4574 = vpack.c.b16 %v4494, %v4490
    %v4575 = vpack.c.b16 %v4499, %v4495
    %v4576 = vpack.c.b16 %v4500, %v4496
    %v4577 = vpack.c.b16 %v4501, %v4497
    %v4578 = vpack.c.b16 %v4502, %v4498
    %v4579 = vpack.c.b16 %v4507, %v4503
    %v4580 = vpack.c.b16 %v4508, %v4504
    %v4581 = vpack.c.b16 %v4509, %v4505
    %v4582 = vpack.c.b16 %v4510, %v4506
    %v4583 = vpack.c.b16 %v4515, %v4511
    %v4584 = vpack.c.b16 %v4516, %v4512
    %v4585 = vpack.c.b16 %v4517, %v4513
    %v4586 = vpack.c.b16 %v4518, %v4514
    %v4587 = vpack.c.b16 %v4523, %v4519
    %v4588 = vpack.c.b16 %v4524, %v4520
    %v4589 = vpack.c.b16 %v4525, %v4521
    %v4590 = vpack.c.b16 %v4526, %v4522
    %4655 = vmatprep.subr.bf16.mxu0 %v4528
    %4656 = vmatpush1.bf16.msra.mxu0 %v4527
    %4657 = vmatprep.subr.bf16.mxu0 %v4532
    %4658 = vmatpush1.bf16.msra.mxu0 %v4531
    %4659 = vmatprep.subr.bf16.mxu0 %v4536
    %4660 = vmatpush1.bf16.msra.mxu0 %v4535
    %4661 = vmatprep.subr.bf16.mxu0 %v4540
    %4662 = vmatpush1.bf16.msra.mxu0 %v4539
    %4663 = vmatprep.subr.bf16.mxu0 %v4544
    %4664 = vmatpush1.bf16.msra.mxu0 %v4543
    %4665 = vmatprep.subr.bf16.mxu0 %v4548
    %4666 = vmatpush1.bf16.msra.mxu0 %v4547
    %4667 = vmatprep.subr.bf16.mxu0 %v4552
    %4668 = vmatpush1.bf16.msra.mxu0 %v4551
    %4669 = vmatprep.subr.bf16.mxu0 %v4556
    %4670 = vmatpush1.bf16.msra.mxu0 %v4555
    %4671 = vmatprep.subr.bf16.mxu0 %v4560
    %4672 = vmatpush1.bf16.msra.mxu0 %v4559
    %4673 = vmatprep.subr.bf16.mxu0 %v4564
    %4674 = vmatpush1.bf16.msra.mxu0 %v4563
    %4675 = vmatprep.subr.bf16.mxu0 %v4568
    %4676 = vmatpush1.bf16.msra.mxu0 %v4567
    %4677 = vmatprep.subr.bf16.mxu0 %v4572
    %4678 = vmatpush1.bf16.msra.mxu0 %v4571
    %4679 = vmatprep.subr.bf16.mxu0 %v4576
    %4680 = vmatpush1.bf16.msra.mxu0 %v4575
    %4681 = vmatprep.subr.bf16.mxu0 %v4580
    %4682 = vmatpush1.bf16.msra.mxu0 %v4579
    %4683 = vmatprep.subr.bf16.mxu0 %v4584
    %4684 = vmatpush1.bf16.msra.mxu0 %v4583
    %4685 = vmatprep.subr.bf16.mxu0 %v4588
    %4686 = vmatpush1.bf16.msra.mxu0 %v4587
    %4687 = vmatprep.mubr.bf16.mxu0 %v4269
    %4688 = vmatmul.mubr.bf16.gmra.mrb[0].mxu0 %v4268
    %v4689 = vpop.f32.mrb[0].mxu0
    %v4690 = vadd.f32 0.0, %v4689
    %v4691 = vpop.f32.mrb[0].mxu0
    %v4692 = vadd.f32 0.0, %v4691
    %v4693 = vpop.f32.mrb[0].mxu0
    %v4694 = vpop.f32.mrb[0].mxu0
    %4695 = vdwg.mxu0
    %4696 = vmatprep.subr.bf16.mxu0 %v4530
    %4697 = vmatpush1.bf16.msra.mxu0 %v4529
    %4698 = vmatprep.subr.bf16.mxu0 %v4534
    %4699 = vmatpush1.bf16.msra.mxu0 %v4533
    %4700 = vmatprep.subr.bf16.mxu0 %v4538
    %4701 = vmatpush1.bf16.msra.mxu0 %v4537
    %4702 = vmatprep.subr.bf16.mxu0 %v4542
    %4703 = vmatpush1.bf16.msra.mxu0 %v4541
    %4704 = vmatprep.subr.bf16.mxu0 %v4546
    %4705 = vmatpush1.bf16.msra.mxu0 %v4545
    %4706 = vmatprep.subr.bf16.mxu0 %v4550
    %4707 = vmatpush1.bf16.msra.mxu0 %v4549
    %4708 = vmatprep.subr.bf16.mxu0 %v4554
    %4709 = vmatpush1.bf16.msra.mxu0 %v4553
    %4710 = vmatprep.subr.bf16.mxu0 %v4558
    %4711 = vmatpush1.bf16.msra.mxu0 %v4557
    %4712 = vmatprep.subr.bf16.mxu0 %v4562
    %4713 = vmatpush1.bf16.msra.mxu0 %v4561
    %4714 = vmatprep.subr.bf16.mxu0 %v4566
    %4715 = vmatpush1.bf16.msra.mxu0 %v4565
    %4716 = vmatprep.subr.bf16.mxu0 %v4570
    %4717 = vmatpush1.bf16.msra.mxu0 %v4569
    %4718 = vmatprep.subr.bf16.mxu0 %v4574
    %4719 = vmatpush1.bf16.msra.mxu0 %v4573
    %4720 = vmatprep.subr.bf16.mxu0 %v4578
    %4721 = vmatpush1.bf16.msra.mxu0 %v4577
    %4722 = vmatprep.subr.bf16.mxu0 %v4582
    %4723 = vmatpush1.bf16.msra.mxu0 %v4581
    %4724 = vmatprep.subr.bf16.mxu0 %v4586
    %4725 = vmatpush1.bf16.msra.mxu0 %v4585
    %4726 = vmatprep.subr.bf16.mxu0 %v4590
    %4727 = vmatpush1.bf16.msra.mxu0 %v4589
    %4728 = vmatprep.mubr.bf16.mxu0 %v4269
    %4729 = vmatmul.mubr.bf16.gmra.mrb[0].mxu0 %v4268
    %v4730 = vpop.f32.mrb[0].mxu0
    %v4731 = vadd.f32 0.0, %v4730
    %v4732 = vpop.f32.mrb[0].mxu0
    %v4733 = vadd.f32 0.0, %v4732
    %v4734 = vpop.f32.mrb[0].mxu0
    %v4735 = vpop.f32.mrb[0].mxu0
    %4736 = vdwg.mxu0
    %v4737 = vadd.f32 %v4218, %v4690
    %v4738 = vadd.f32 %v4219, %v4692
    %v4739 = vadd.f32 %v4220, %v4731
    %v4740 = vadd.f32 %v4221, %v4733
    %s4741 = scalar_lea.vmem %s4, 20
    %v4742 = vld [vmem:[%s4741] sm:$0xf]
    %v4744 = vsel %vm2156, %v4742, 0
    %4746 = vmatprep.subr.bf16.mxu0 %v2152
    %4747 = vmatpush1.bf16.msra.mxu0 %v2151
    %4748 = vmatprep.subr.bf16.mxu0 %v2154
    %4749 = vmatpush1.bf16.msra.mxu0 %v2153
    %4750 = vmatprep.subr.bf16.mxu0 0
    %4751 = vmatpush1.bf16.msra.mxu0 0
    %4752 = vmatprep.subr.bf16.mxu0 0
    %4753 = vmatpush1.bf16.msra.mxu0 0
    %4754 = vmatprep.subr.bf16.mxu0 0
    %4755 = vmatpush1.bf16.msra.mxu0 0
    %4756 = vmatprep.subr.bf16.mxu0 0
    %4757 = vmatpush1.bf16.msra.mxu0 0
    %4758 = vmatprep.subr.bf16.mxu0 0
    %4759 = vmatpush1.bf16.msra.mxu0 0
    %4760 = vmatprep.subr.bf16.mxu0 0
    %4761 = vmatpush1.bf16.msra.mxu0 0
    %4762 = vmatprep.subr.bf16.mxu0 0
    %4763 = vmatpush1.bf16.msra.mxu0 0
    %4764 = vmatprep.subr.bf16.mxu0 0
    %4765 = vmatpush1.bf16.msra.mxu0 0
    %4766 = vmatprep.subr.bf16.mxu0 0
    %4767 = vmatpush1.bf16.msra.mxu0 0
    %4768 = vmatprep.subr.bf16.mxu0 0
    %4769 = vmatpush1.bf16.msra.mxu0 0
    %4770 = vmatprep.subr.bf16.mxu0 0
    %4771 = vmatpush1.bf16.msra.mxu0 0
    %4772 = vmatprep.subr.bf16.mxu0 0
    %4773 = vmatpush1.bf16.msra.mxu0 0
    %4774 = vmatprep.subr.bf16.mxu0 0
    %4775 = vmatpush1.bf16.msra.mxu0 0
    %4776 = vmatprep.subr.bf16.mxu0 0
    %4777 = vmatpush1.bf16.msra.mxu0 0
    %4778 = vmatprep.mubr.bf16.mxu0 0
    %4779 = vmatmul.mubr.bf16.gmra.mrb[0].mxu0 %v4744
    %v4780 = vpop.f32.mrb[0].mxu0
    %v4781 = vadd.f32 0.0, %v4780
    %v4782 = vpop.f32.mrb[0].mxu0
    %v4783 = vadd.f32 0.0, %v4782
    %v4784 = vpop.f32.mrb[0].mxu0
    %v4785 = vpop.f32.mrb[0].mxu0
    %4786 = vdwg.mxu0
    %v4787 = vpack.c.bf16 %v4781, %v4781
    %v4788 = vpack.c.bf16 %v4783, %v4783
    %s4789 = scalar_lea.vmem %s5, 2560
    %v4790 = vld [vmem:[%s4789] sm:$0xff]
    %v4791 = vld [vmem:[%s4789 + $0x8] sm:$0xff]
    %v4792 = vld [vmem:[%s4789 + $0x10] sm:$0xff]
    %v4793 = vld [vmem:[%s4789 + $0x18] sm:$0xff]
    %v4794 = vld [vmem:[%s4789 + $0x20] sm:$0xff]
    %v4795 = vld [vmem:[%s4789 + $0x28] sm:$0xff]
    %v4796 = vld [vmem:[%s4789 + $0x30] sm:$0xff]
    %v4797 = vld [vmem:[%s4789 + $0x38] sm:$0xff]
    %v4798 = vld [vmem:[%s4789 + $0x40] sm:$0xff]
    %v4799 = vld [vmem:[%s4789 + $0x48] sm:$0xff]
    %v4800 = vld [vmem:[%s4789 + $0x50] sm:$0xff]
    %v4801 = vld [vmem:[%s4789 + $0x58] sm:$0xff]
    %v4802 = vld [vmem:[%s4789 + $0x60] sm:$0xff]
    %v4803 = vld [vmem:[%s4789 + $0x68] sm:$0xff]
    %v4804 = vld [vmem:[%s4789 + $0x70] sm:$0xff]
    %v4805 = vld [vmem:[%s4789 + $0x78] sm:$0xff]
    %v4806 = vld [vmem:[%s4789 + $0x80] sm:$0xff]
    %v4807 = vld [vmem:[%s4789 + $0x88] sm:$0xff]
    %v4808 = vld [vmem:[%s4789 + $0x90] sm:$0xff]
    %v4809 = vld [vmem:[%s4789 + $0x98] sm:$0xff]
    %v4810 = vld [vmem:[%s4789 + $0xa0] sm:$0xff]
    %v4811 = vld [vmem:[%s4789 + $0xa8] sm:$0xff]
    %v4812 = vld [vmem:[%s4789 + $0xb0] sm:$0xff]
    %v4813 = vld [vmem:[%s4789 + $0xb8] sm:$0xff]
    %v4814 = vld [vmem:[%s4789 + $0xc0] sm:$0xff]
    %v4815 = vld [vmem:[%s4789 + $0xc8] sm:$0xff]
    %v4816 = vld [vmem:[%s4789 + $0xd0] sm:$0xff]
    %v4817 = vld [vmem:[%s4789 + $0xd8] sm:$0xff]
    %v4818 = vld [vmem:[%s4789 + $0xe0] sm:$0xff]
    %v4819 = vld [vmem:[%s4789 + $0xe8] sm:$0xff]
    %v4820 = vld [vmem:[%s4789 + $0xf0] sm:$0xff]
    %v4821 = vld [vmem:[%s4789 + $0xf8] sm:$0xff]
    %v4822 = vld [vmem:[%s4789 + $0x100] sm:$0xff]
    %v4823 = vld [vmem:[%s4789 + $0x108] sm:$0xff]
    %v4824 = vld [vmem:[%s4789 + $0x110] sm:$0xff]
    %v4825 = vld [vmem:[%s4789 + $0x118] sm:$0xff]
    %v4826 = vld [vmem:[%s4789 + $0x120] sm:$0xff]
    %v4827 = vld [vmem:[%s4789 + $0x128] sm:$0xff]
    %v4828 = vld [vmem:[%s4789 + $0x130] sm:$0xff]
    %v4829 = vld [vmem:[%s4789 + $0x138] sm:$0xff]
    %v4830 = vld [vmem:[%s4789 + $0x140] sm:$0xff]
    %v4831 = vld [vmem:[%s4789 + $0x148] sm:$0xff]
    %v4832 = vld [vmem:[%s4789 + $0x150] sm:$0xff]
    %v4833 = vld [vmem:[%s4789 + $0x158] sm:$0xff]
    %v4834 = vld [vmem:[%s4789 + $0x160] sm:$0xff]
    %v4835 = vld [vmem:[%s4789 + $0x168] sm:$0xff]
    %v4836 = vld [vmem:[%s4789 + $0x170] sm:$0xff]
    %v4837 = vld [vmem:[%s4789 + $0x178] sm:$0xff]
    %v4838 = vld [vmem:[%s4789 + $0x180] sm:$0xff]
    %v4839 = vld [vmem:[%s4789 + $0x188] sm:$0xff]
    %v4840 = vld [vmem:[%s4789 + $0x190] sm:$0xff]
    %v4841 = vld [vmem:[%s4789 + $0x198] sm:$0xff]
    %v4842 = vld [vmem:[%s4789 + $0x1a0] sm:$0xff]
    %v4843 = vld [vmem:[%s4789 + $0x1a8] sm:$0xff]
    %v4844 = vld [vmem:[%s4789 + $0x1b0] sm:$0xff]
    %v4845 = vld [vmem:[%s4789 + $0x1b8] sm:$0xff]
    %v4846 = vld [vmem:[%s4789 + $0x1c0] sm:$0xff]
    %v4847 = vld [vmem:[%s4789 + $0x1c8] sm:$0xff]
    %v4848 = vld [vmem:[%s4789 + $0x1d0] sm:$0xff]
    %v4849 = vld [vmem:[%s4789 + $0x1d8] sm:$0xff]
    %v4850 = vld [vmem:[%s4789 + $0x1e0] sm:$0xff]
    %v4851 = vld [vmem:[%s4789 + $0x1e8] sm:$0xff]
    %v4852 = vld [vmem:[%s4789 + $0x1f0] sm:$0xff]
    %v4853 = vld [vmem:[%s4789 + $0x1f8] sm:$0xff]
    %v4918 = vunpack.c.l.b16 %v4790
    %v4919 = vunpack.c.h.b16 %v4790
    %v4920 = vunpack.c.l.b16 %v4791
    %v4921 = vunpack.c.h.b16 %v4791
    %v4922 = vunpack.c.l.b16 %v4792
    %v4923 = vunpack.c.h.b16 %v4792
    %v4924 = vunpack.c.l.b16 %v4793
    %v4925 = vunpack.c.h.b16 %v4793
    %v4926 = vunpack.c.l.b16 %v4794
    %v4927 = vunpack.c.h.b16 %v4794
    %v4928 = vunpack.c.l.b16 %v4795
    %v4929 = vunpack.c.h.b16 %v4795
    %v4930 = vunpack.c.l.b16 %v4796
    %v4931 = vunpack.c.h.b16 %v4796
    %v4932 = vunpack.c.l.b16 %v4797
    %v4933 = vunpack.c.h.b16 %v4797
    %v4934 = vunpack.c.l.b16 %v4798
    %v4935 = vunpack.c.h.b16 %v4798
    %v4936 = vunpack.c.l.b16 %v4799
    %v4937 = vunpack.c.h.b16 %v4799
    %v4938 = vunpack.c.l.b16 %v4800
    %v4939 = vunpack.c.h.b16 %v4800
    %v4940 = vunpack.c.l.b16 %v4801
    %v4941 = vunpack.c.h.b16 %v4801
    %v4942 = vunpack.c.l.b16 %v4802
    %v4943 = vunpack.c.h.b16 %v4802
    %v4944 = vunpack.c.l.b16 %v4803
    %v4945 = vunpack.c.h.b16 %v4803
    %v4946 = vunpack.c.l.b16 %v4804
    %v4947 = vunpack.c.h.b16 %v4804
    %v4948 = vunpack.c.l.b16 %v4805
    %v4949 = vunpack.c.h.b16 %v4805
    %v4950 = vunpack.c.l.b16 %v4806
    %v4951 = vunpack.c.h.b16 %v4806
    %v4952 = vunpack.c.l.b16 %v4807
    %v4953 = vunpack.c.h.b16 %v4807
    %v4954 = vunpack.c.l.b16 %v4808
    %v4955 = vunpack.c.h.b16 %v4808
    %v4956 = vunpack.c.l.b16 %v4809
    %v4957 = vunpack.c.h.b16 %v4809
    %v4958 = vunpack.c.l.b16 %v4810
    %v4959 = vunpack.c.h.b16 %v4810
    %v4960 = vunpack.c.l.b16 %v4811
    %v4961 = vunpack.c.h.b16 %v4811
    %v4962 = vunpack.c.l.b16 %v4812
    %v4963 = vunpack.c.h.b16 %v4812
    %v4964 = vunpack.c.l.b16 %v4813
    %v4965 = vunpack.c.h.b16 %v4813
    %v4966 = vunpack.c.l.b16 %v4814
    %v4967 = vunpack.c.h.b16 %v4814
    %v4968 = vunpack.c.l.b16 %v4815
    %v4969 = vunpack.c.h.b16 %v4815
    %v4970 = vunpack.c.l.b16 %v4816
    %v4971 = vunpack.c.h.b16 %v4816
    %v4972 = vunpack.c.l.b16 %v4817
    %v4973 = vunpack.c.h.b16 %v4817
    %v4974 = vunpack.c.l.b16 %v4818
    %v4975 = vunpack.c.h.b16 %v4818
    %v4976 = vunpack.c.l.b16 %v4819
    %v4977 = vunpack.c.h.b16 %v4819
    %v4978 = vunpack.c.l.b16 %v4820
    %v4979 = vunpack.c.h.b16 %v4820
    %v4980 = vunpack.c.l.b16 %v4821
    %v4981 = vunpack.c.h.b16 %v4821
    %v4982 = vunpack.c.l.b16 %v4822
    %v4983 = vunpack.c.h.b16 %v4822
    %v4984 = vunpack.c.l.b16 %v4823
    %v4985 = vunpack.c.h.b16 %v4823
    %v4986 = vunpack.c.l.b16 %v4824
    %v4987 = vunpack.c.h.b16 %v4824
    %v4988 = vunpack.c.l.b16 %v4825
    %v4989 = vunpack.c.h.b16 %v4825
    %v4990 = vunpack.c.l.b16 %v4826
    %v4991 = vunpack.c.h.b16 %v4826
    %v4992 = vunpack.c.l.b16 %v4827
    %v4993 = vunpack.c.h.b16 %v4827
    %v4994 = vunpack.c.l.b16 %v4828
    %v4995 = vunpack.c.h.b16 %v4828
    %v4996 = vunpack.c.l.b16 %v4829
    %v4997 = vunpack.c.h.b16 %v4829
    %v4998 = vunpack.c.l.b16 %v4830
    %v4999 = vunpack.c.h.b16 %v4830
    %v5000 = vunpack.c.l.b16 %v4831
    %v5001 = vunpack.c.h.b16 %v4831
    %v5002 = vunpack.c.l.b16 %v4832
    %v5003 = vunpack.c.h.b16 %v4832
    %v5004 = vunpack.c.l.b16 %v4833
    %v5005 = vunpack.c.h.b16 %v4833
    %v5006 = vunpack.c.l.b16 %v4834
    %v5007 = vunpack.c.h.b16 %v4834
    %v5008 = vunpack.c.l.b16 %v4835
    %v5009 = vunpack.c.h.b16 %v4835
    %v5010 = vunpack.c.l.b16 %v4836
    %v5011 = vunpack.c.h.b16 %v4836
    %v5012 = vunpack.c.l.b16 %v4837
    %v5013 = vunpack.c.h.b16 %v4837
    %v5014 = vunpack.c.l.b16 %v4838
    %v5015 = vunpack.c.h.b16 %v4838
    %v5016 = vunpack.c.l.b16 %v4839
    %v5017 = vunpack.c.h.b16 %v4839
    %v5018 = vunpack.c.l.b16 %v4840
    %v5019 = vunpack.c.h.b16 %v4840
    %v5020 = vunpack.c.l.b16 %v4841
    %v5021 = vunpack.c.h.b16 %v4841
    %v5022 = vunpack.c.l.b16 %v4842
    %v5023 = vunpack.c.h.b16 %v4842
    %v5024 = vunpack.c.l.b16 %v4843
    %v5025 = vunpack.c.h.b16 %v4843
    %v5026 = vunpack.c.l.b16 %v4844
    %v5027 = vunpack.c.h.b16 %v4844
    %v5028 = vunpack.c.l.b16 %v4845
    %v5029 = vunpack.c.h.b16 %v4845
    %v5030 = vunpack.c.l.b16 %v4846
    %v5031 = vunpack.c.h.b16 %v4846
    %v5032 = vunpack.c.l.b16 %v4847
    %v5033 = vunpack.c.h.b16 %v4847
    %v5034 = vunpack.c.l.b16 %v4848
    %v5035 = vunpack.c.h.b16 %v4848
    %v5036 = vunpack.c.l.b16 %v4849
    %v5037 = vunpack.c.h.b16 %v4849
    %v5038 = vunpack.c.l.b16 %v4850
    %v5039 = vunpack.c.h.b16 %v4850
    %v5040 = vunpack.c.l.b16 %v4851
    %v5041 = vunpack.c.h.b16 %v4851
    %v5042 = vunpack.c.l.b16 %v4852
    %v5043 = vunpack.c.h.b16 %v4852
    %v5044 = vunpack.c.l.b16 %v4853
    %v5045 = vunpack.c.h.b16 %v4853
    %v5046 = vpack.c.b16 %v4922, %v4918
    %v5047 = vpack.c.b16 %v4923, %v4919
    %v5048 = vpack.c.b16 %v4924, %v4920
    %v5049 = vpack.c.b16 %v4925, %v4921
    %v5050 = vpack.c.b16 %v4930, %v4926
    %v5051 = vpack.c.b16 %v4931, %v4927
    %v5052 = vpack.c.b16 %v4932, %v4928
    %v5053 = vpack.c.b16 %v4933, %v4929
    %v5054 = vpack.c.b16 %v4938, %v4934
    %v5055 = vpack.c.b16 %v4939, %v4935
    %v5056 = vpack.c.b16 %v4940, %v4936
    %v5057 = vpack.c.b16 %v4941, %v4937
    %v5058 = vpack.c.b16 %v4946, %v4942
    %v5059 = vpack.c.b16 %v4947, %v4943
    %v5060 = vpack.c.b16 %v4948, %v4944
    %v5061 = vpack.c.b16 %v4949, %v4945
    %v5062 = vpack.c.b16 %v4954, %v4950
    %v5063 = vpack.c.b16 %v4955, %v4951
    %v5064 = vpack.c.b16 %v4956, %v4952
    %v5065 = vpack.c.b16 %v4957, %v4953
    %v5066 = vpack.c.b16 %v4962, %v4958
    %v5067 = vpack.c.b16 %v4963, %v4959
    %v5068 = vpack.c.b16 %v4964, %v4960
    %v5069 = vpack.c.b16 %v4965, %v4961
    %v5070 = vpack.c.b16 %v4970, %v4966
    %v5071 = vpack.c.b16 %v4971, %v4967
    %v5072 = vpack.c.b16 %v4972, %v4968
    %v5073 = vpack.c.b16 %v4973, %v4969
    %v5074 = vpack.c.b16 %v4978, %v4974
    %v5075 = vpack.c.b16 %v4979, %v4975
    %v5076 = vpack.c.b16 %v4980, %v4976
    %v5077 = vpack.c.b16 %v4981, %v4977
    %v5078 = vpack.c.b16 %v4986, %v4982
    %v5079 = vpack.c.b16 %v4987, %v4983
    %v5080 = vpack.c.b16 %v4988, %v4984
    %v5081 = vpack.c.b16 %v4989, %v4985
    %v5082 = vpack.c.b16 %v4994, %v4990
    %v5083 = vpack.c.b16 %v4995, %v4991
    %v5084 = vpack.c.b16 %v4996, %v4992
    %v5085 = vpack.c.b16 %v4997, %v4993
    %v5086 = vpack.c.b16 %v5002, %v4998
    %v5087 = vpack.c.b16 %v5003, %v4999
    %v5088 = vpack.c.b16 %v5004, %v5000
    %v5089 = vpack.c.b16 %v5005, %v5001
    %v5090 = vpack.c.b16 %v5010, %v5006
    %v5091 = vpack.c.b16 %v5011, %v5007
    %v5092 = vpack.c.b16 %v5012, %v5008
    %v5093 = vpack.c.b16 %v5013, %v5009
    %v5094 = vpack.c.b16 %v5018, %v5014
    %v5095 = vpack.c.b16 %v5019, %v5015
    %v5096 = vpack.c.b16 %v5020, %v5016
    %v5097 = vpack.c.b16 %v5021, %v5017
    %v5098 = vpack.c.b16 %v5026, %v5022
    %v5099 = vpack.c.b16 %v5027, %v5023
    %v5100 = vpack.c.b16 %v5028, %v5024
    %v5101 = vpack.c.b16 %v5029, %v5025
    %v5102 = vpack.c.b16 %v5034, %v5030
    %v5103 = vpack.c.b16 %v5035, %v5031
    %v5104 = vpack.c.b16 %v5036, %v5032
    %v5105 = vpack.c.b16 %v5037, %v5033
    %v5106 = vpack.c.b16 %v5042, %v5038
    %v5107 = vpack.c.b16 %v5043, %v5039
    %v5108 = vpack.c.b16 %v5044, %v5040
    %v5109 = vpack.c.b16 %v5045, %v5041
    %5174 = vmatprep.subr.bf16.mxu0 %v5047
    %5175 = vmatpush1.bf16.msra.mxu0 %v5046
    %5176 = vmatprep.subr.bf16.mxu0 %v5051
    %5177 = vmatpush1.bf16.msra.mxu0 %v5050
    %5178 = vmatprep.subr.bf16.mxu0 %v5055
    %5179 = vmatpush1.bf16.msra.mxu0 %v5054
    %5180 = vmatprep.subr.bf16.mxu0 %v5059
    %5181 = vmatpush1.bf16.msra.mxu0 %v5058
    %5182 = vmatprep.subr.bf16.mxu0 %v5063
    %5183 = vmatpush1.bf16.msra.mxu0 %v5062
    %5184 = vmatprep.subr.bf16.mxu0 %v5067
    %5185 = vmatpush1.bf16.msra.mxu0 %v5066
    %5186 = vmatprep.subr.bf16.mxu0 %v5071
    %5187 = vmatpush1.bf16.msra.mxu0 %v5070
    %5188 = vmatprep.subr.bf16.mxu0 %v5075
    %5189 = vmatpush1.bf16.msra.mxu0 %v5074
    %5190 = vmatprep.subr.bf16.mxu0 %v5079
    %5191 = vmatpush1.bf16.msra.mxu0 %v5078
    %5192 = vmatprep.subr.bf16.mxu0 %v5083
    %5193 = vmatpush1.bf16.msra.mxu0 %v5082
    %5194 = vmatprep.subr.bf16.mxu0 %v5087
    %5195 = vmatpush1.bf16.msra.mxu0 %v5086
    %5196 = vmatprep.subr.bf16.mxu0 %v5091
    %5197 = vmatpush1.bf16.msra.mxu0 %v5090
    %5198 = vmatprep.subr.bf16.mxu0 %v5095
    %5199 = vmatpush1.bf16.msra.mxu0 %v5094
    %5200 = vmatprep.subr.bf16.mxu0 %v5099
    %5201 = vmatpush1.bf16.msra.mxu0 %v5098
    %5202 = vmatprep.subr.bf16.mxu0 %v5103
    %5203 = vmatpush1.bf16.msra.mxu0 %v5102
    %5204 = vmatprep.subr.bf16.mxu0 %v5107
    %5205 = vmatpush1.bf16.msra.mxu0 %v5106
    %5206 = vmatprep.mubr.bf16.mxu0 %v4788
    %5207 = vmatmul.mubr.bf16.gmra.mrb[0].mxu0 %v4787
    %v5208 = vpop.f32.mrb[0].mxu0
    %v5209 = vadd.f32 0.0, %v5208
    %v5210 = vpop.f32.mrb[0].mxu0
    %v5211 = vadd.f32 0.0, %v5210
    %v5212 = vpop.f32.mrb[0].mxu0
    %v5213 = vpop.f32.mrb[0].mxu0
    %5214 = vdwg.mxu0
    %5215 = vmatprep.subr.bf16.mxu0 %v5049
    %5216 = vmatpush1.bf16.msra.mxu0 %v5048
    %5217 = vmatprep.subr.bf16.mxu0 %v5053
    %5218 = vmatpush1.bf16.msra.mxu0 %v5052
    %5219 = vmatprep.subr.bf16.mxu0 %v5057
    %5220 = vmatpush1.bf16.msra.mxu0 %v5056
    %5221 = vmatprep.subr.bf16.mxu0 %v5061
    %5222 = vmatpush1.bf16.msra.mxu0 %v5060
    %5223 = vmatprep.subr.bf16.mxu0 %v5065
    %5224 = vmatpush1.bf16.msra.mxu0 %v5064
    %5225 = vmatprep.subr.bf16.mxu0 %v5069
    %5226 = vmatpush1.bf16.msra.mxu0 %v5068
    %5227 = vmatprep.subr.bf16.mxu0 %v5073
    %5228 = vmatpush1.bf16.msra.mxu0 %v5072
    %5229 = vmatprep.subr.bf16.mxu0 %v5077
    %5230 = vmatpush1.bf16.msra.mxu0 %v5076
    %5231 = vmatprep.subr.bf16.mxu0 %v5081
    %5232 = vmatpush1.bf16.msra.mxu0 %v5080
    %5233 = vmatprep.subr.bf16.mxu0 %v5085
    %5234 = vmatpush1.bf16.msra.mxu0 %v5084
    %5235 = vmatprep.subr.bf16.mxu0 %v5089
    %5236 = vmatpush1.bf16.msra.mxu0 %v5088
    %5237 = vmatprep.subr.bf16.mxu0 %v5093
    %5238 = vmatpush1.bf16.msra.mxu0 %v5092
    %5239 = vmatprep.subr.bf16.mxu0 %v5097
    %5240 = vmatpush1.bf16.msra.mxu0 %v5096
    %5241 = vmatprep.subr.bf16.mxu0 %v5101
    %5242 = vmatpush1.bf16.msra.mxu0 %v5100
    %5243 = vmatprep.subr.bf16.mxu0 %v5105
    %5244 = vmatpush1.bf16.msra.mxu0 %v5104
    %5245 = vmatprep.subr.bf16.mxu0 %v5109
    %5246 = vmatpush1.bf16.msra.mxu0 %v5108
    %5247 = vmatprep.mubr.bf16.mxu0 %v4788
    %5248 = vmatmul.mubr.bf16.gmra.mrb[0].mxu0 %v4787
    %v5249 = vpop.f32.mrb[0].mxu0
    %v5250 = vadd.f32 0.0, %v5249
    %v5251 = vpop.f32.mrb[0].mxu0
    %v5252 = vadd.f32 0.0, %v5251
    %v5253 = vpop.f32.mrb[0].mxu0
    %v5254 = vpop.f32.mrb[0].mxu0
    %5255 = vdwg.mxu0
    %v5256 = vadd.f32 %v4737, %v5209
    %v5257 = vadd.f32 %v4738, %v5211
    %v5258 = vadd.f32 %v4739, %v5250
    %v5259 = vadd.f32 %v4740, %v5252
    %s5260 = scalar_lea.vmem %s4, 24
    %v5261 = vld [vmem:[%s5260] sm:$0xf]
    %v5263 = vsel %vm2156, %v5261, 0
    %5265 = vmatprep.subr.bf16.mxu0 %v2152
    %5266 = vmatpush1.bf16.msra.mxu0 %v2151
    %5267 = vmatprep.subr.bf16.mxu0 %v2154
    %5268 = vmatpush1.bf16.msra.mxu0 %v2153
    %5269 = vmatprep.subr.bf16.mxu0 0
    %5270 = vmatpush1.bf16.msra.mxu0 0
    %5271 = vmatprep.subr.bf16.mxu0 0
    %5272 = vmatpush1.bf16.msra.mxu0 0
    %5273 = vmatprep.subr.bf16.mxu0 0
    %5274 = vmatpush1.bf16.msra.mxu0 0
    %5275 = vmatprep.subr.bf16.mxu0 0
    %5276 = vmatpush1.bf16.msra.mxu0 0
    %5277 = vmatprep.subr.bf16.mxu0 0
    %5278 = vmatpush1.bf16.msra.mxu0 0
    %5279 = vmatprep.subr.bf16.mxu0 0
    %5280 = vmatpush1.bf16.msra.mxu0 0
    %5281 = vmatprep.subr.bf16.mxu0 0
    %5282 = vmatpush1.bf16.msra.mxu0 0
    %5283 = vmatprep.subr.bf16.mxu0 0
    %5284 = vmatpush1.bf16.msra.mxu0 0
    %5285 = vmatprep.subr.bf16.mxu0 0
    %5286 = vmatpush1.bf16.msra.mxu0 0
    %5287 = vmatprep.subr.bf16.mxu0 0
    %5288 = vmatpush1.bf16.msra.mxu0 0
    %5289 = vmatprep.subr.bf16.mxu0 0
    %5290 = vmatpush1.bf16.msra.mxu0 0
    %5291 = vmatprep.subr.bf16.mxu0 0
    %5292 = vmatpush1.bf16.msra.mxu0 0
    %5293 = vmatprep.subr.bf16.mxu0 0
    %5294 = vmatpush1.bf16.msra.mxu0 0
    %5295 = vmatprep.subr.bf16.mxu0 0
    %5296 = vmatpush1.bf16.msra.mxu0 0
    %5297 = vmatprep.mubr.bf16.mxu0 0
    %5298 = vmatmul.mubr.bf16.gmra.mrb[0].mxu0 %v5263
    %v5299 = vpop.f32.mrb[0].mxu0
    %v5300 = vadd.f32 0.0, %v5299
    %v5301 = vpop.f32.mrb[0].mxu0
    %v5302 = vadd.f32 0.0, %v5301
    %v5303 = vpop.f32.mrb[0].mxu0
    %v5304 = vpop.f32.mrb[0].mxu0
    %5305 = vdwg.mxu0
    %v5306 = vpack.c.bf16 %v5300, %v5300
    %v5307 = vpack.c.bf16 %v5302, %v5302
    %s5308 = scalar_lea.vmem %s5, 3072
    %v5309 = vld [vmem:[%s5308] sm:$0xff]
    %v5310 = vld [vmem:[%s5308 + $0x8] sm:$0xff]
    %v5311 = vld [vmem:[%s5308 + $0x10] sm:$0xff]
    %v5312 = vld [vmem:[%s5308 + $0x18] sm:$0xff]
    %v5313 = vld [vmem:[%s5308 + $0x20] sm:$0xff]
    %v5314 = vld [vmem:[%s5308 + $0x28] sm:$0xff]
    %v5315 = vld [vmem:[%s5308 + $0x30] sm:$0xff]
    %v5316 = vld [vmem:[%s5308 + $0x38] sm:$0xff]
    %v5317 = vld [vmem:[%s5308 + $0x40] sm:$0xff]
    %v5318 = vld [vmem:[%s5308 + $0x48] sm:$0xff]
    %v5319 = vld [vmem:[%s5308 + $0x50] sm:$0xff]
    %v5320 = vld [vmem:[%s5308 + $0x58] sm:$0xff]
    %v5321 = vld [vmem:[%s5308 + $0x60] sm:$0xff]
    %v5322 = vld [vmem:[%s5308 + $0x68] sm:$0xff]
    %v5323 = vld [vmem:[%s5308 + $0x70] sm:$0xff]
    %v5324 = vld [vmem:[%s5308 + $0x78] sm:$0xff]
    %v5325 = vld [vmem:[%s5308 + $0x80] sm:$0xff]
    %v5326 = vld [vmem:[%s5308 + $0x88] sm:$0xff]
    %v5327 = vld [vmem:[%s5308 + $0x90] sm:$0xff]
    %v5328 = vld [vmem:[%s5308 + $0x98] sm:$0xff]
    %v5329 = vld [vmem:[%s5308 + $0xa0] sm:$0xff]
    %v5330 = vld [vmem:[%s5308 + $0xa8] sm:$0xff]
    %v5331 = vld [vmem:[%s5308 + $0xb0] sm:$0xff]
    %v5332 = vld [vmem:[%s5308 + $0xb8] sm:$0xff]
    %v5333 = vld [vmem:[%s5308 + $0xc0] sm:$0xff]
    %v5334 = vld [vmem:[%s5308 + $0xc8] sm:$0xff]
    %v5335 = vld [vmem:[%s5308 + $0xd0] sm:$0xff]
    %v5336 = vld [vmem:[%s5308 + $0xd8] sm:$0xff]
    %v5337 = vld [vmem:[%s5308 + $0xe0] sm:$0xff]
    %v5338 = vld [vmem:[%s5308 + $0xe8] sm:$0xff]
    %v5339 = vld [vmem:[%s5308 + $0xf0] sm:$0xff]
    %v5340 = vld [vmem:[%s5308 + $0xf8] sm:$0xff]
    %v5341 = vld [vmem:[%s5308 + $0x100] sm:$0xff]
    %v5342 = vld [vmem:[%s5308 + $0x108] sm:$0xff]
    %v5343 = vld [vmem:[%s5308 + $0x110] sm:$0xff]
    %v5344 = vld [vmem:[%s5308 + $0x118] sm:$0xff]
    %v5345 = vld [vmem:[%s5308 + $0x120] sm:$0xff]
    %v5346 = vld [vmem:[%s5308 + $0x128] sm:$0xff]
    %v5347 = vld [vmem:[%s5308 + $0x130] sm:$0xff]
    %v5348 = vld [vmem:[%s5308 + $0x138] sm:$0xff]
    %v5349 = vld [vmem:[%s5308 + $0x140] sm:$0xff]
    %v5350 = vld [vmem:[%s5308 + $0x148] sm:$0xff]
    %v5351 = vld [vmem:[%s5308 + $0x150] sm:$0xff]
    %v5352 = vld [vmem:[%s5308 + $0x158] sm:$0xff]
    %v5353 = vld [vmem:[%s5308 + $0x160] sm:$0xff]
    %v5354 = vld [vmem:[%s5308 + $0x168] sm:$0xff]
    %v5355 = vld [vmem:[%s5308 + $0x170] sm:$0xff]
    %v5356 = vld [vmem:[%s5308 + $0x178] sm:$0xff]
    %v5357 = vld [vmem:[%s5308 + $0x180] sm:$0xff]
    %v5358 = vld [vmem:[%s5308 + $0x188] sm:$0xff]
    %v5359 = vld [vmem:[%s5308 + $0x190] sm:$0xff]
    %v5360 = vld [vmem:[%s5308 + $0x198] sm:$0xff]
    %v5361 = vld [vmem:[%s5308 + $0x1a0] sm:$0xff]
    %v5362 = vld [vmem:[%s5308 + $0x1a8] sm:$0xff]
    %v5363 = vld [vmem:[%s5308 + $0x1b0] sm:$0xff]
    %v5364 = vld [vmem:[%s5308 + $0x1b8] sm:$0xff]
    %v5365 = vld [vmem:[%s5308 + $0x1c0] sm:$0xff]
    %v5366 = vld [vmem:[%s5308 + $0x1c8] sm:$0xff]
    %v5367 = vld [vmem:[%s5308 + $0x1d0] sm:$0xff]
    %v5368 = vld [vmem:[%s5308 + $0x1d8] sm:$0xff]
    %v5369 = vld [vmem:[%s5308 + $0x1e0] sm:$0xff]
    %v5370 = vld [vmem:[%s5308 + $0x1e8] sm:$0xff]
    %v5371 = vld [vmem:[%s5308 + $0x1f0] sm:$0xff]
    %v5372 = vld [vmem:[%s5308 + $0x1f8] sm:$0xff]
    %v5437 = vunpack.c.l.b16 %v5309
    %v5438 = vunpack.c.h.b16 %v5309
    %v5439 = vunpack.c.l.b16 %v5310
    %v5440 = vunpack.c.h.b16 %v5310
    %v5441 = vunpack.c.l.b16 %v5311
    %v5442 = vunpack.c.h.b16 %v5311
    %v5443 = vunpack.c.l.b16 %v5312
    %v5444 = vunpack.c.h.b16 %v5312
    %v5445 = vunpack.c.l.b16 %v5313
    %v5446 = vunpack.c.h.b16 %v5313
    %v5447 = vunpack.c.l.b16 %v5314
    %v5448 = vunpack.c.h.b16 %v5314
    %v5449 = vunpack.c.l.b16 %v5315
    %v5450 = vunpack.c.h.b16 %v5315
    %v5451 = vunpack.c.l.b16 %v5316
    %v5452 = vunpack.c.h.b16 %v5316
    %v5453 = vunpack.c.l.b16 %v5317
    %v5454 = vunpack.c.h.b16 %v5317
    %v5455 = vunpack.c.l.b16 %v5318
    %v5456 = vunpack.c.h.b16 %v5318
    %v5457 = vunpack.c.l.b16 %v5319
    %v5458 = vunpack.c.h.b16 %v5319
    %v5459 = vunpack.c.l.b16 %v5320
    %v5460 = vunpack.c.h.b16 %v5320
    %v5461 = vunpack.c.l.b16 %v5321
    %v5462 = vunpack.c.h.b16 %v5321
    %v5463 = vunpack.c.l.b16 %v5322
    %v5464 = vunpack.c.h.b16 %v5322
    %v5465 = vunpack.c.l.b16 %v5323
    %v5466 = vunpack.c.h.b16 %v5323
    %v5467 = vunpack.c.l.b16 %v5324
    %v5468 = vunpack.c.h.b16 %v5324
    %v5469 = vunpack.c.l.b16 %v5325
    %v5470 = vunpack.c.h.b16 %v5325
    %v5471 = vunpack.c.l.b16 %v5326
    %v5472 = vunpack.c.h.b16 %v5326
    %v5473 = vunpack.c.l.b16 %v5327
    %v5474 = vunpack.c.h.b16 %v5327
    %v5475 = vunpack.c.l.b16 %v5328
    %v5476 = vunpack.c.h.b16 %v5328
    %v5477 = vunpack.c.l.b16 %v5329
    %v5478 = vunpack.c.h.b16 %v5329
    %v5479 = vunpack.c.l.b16 %v5330
    %v5480 = vunpack.c.h.b16 %v5330
    %v5481 = vunpack.c.l.b16 %v5331
    %v5482 = vunpack.c.h.b16 %v5331
    %v5483 = vunpack.c.l.b16 %v5332
    %v5484 = vunpack.c.h.b16 %v5332
    %v5485 = vunpack.c.l.b16 %v5333
    %v5486 = vunpack.c.h.b16 %v5333
    %v5487 = vunpack.c.l.b16 %v5334
    %v5488 = vunpack.c.h.b16 %v5334
    %v5489 = vunpack.c.l.b16 %v5335
    %v5490 = vunpack.c.h.b16 %v5335
    %v5491 = vunpack.c.l.b16 %v5336
    %v5492 = vunpack.c.h.b16 %v5336
    %v5493 = vunpack.c.l.b16 %v5337
    %v5494 = vunpack.c.h.b16 %v5337
    %v5495 = vunpack.c.l.b16 %v5338
    %v5496 = vunpack.c.h.b16 %v5338
    %v5497 = vunpack.c.l.b16 %v5339
    %v5498 = vunpack.c.h.b16 %v5339
    %v5499 = vunpack.c.l.b16 %v5340
    %v5500 = vunpack.c.h.b16 %v5340
    %v5501 = vunpack.c.l.b16 %v5341
    %v5502 = vunpack.c.h.b16 %v5341
    %v5503 = vunpack.c.l.b16 %v5342
    %v5504 = vunpack.c.h.b16 %v5342
    %v5505 = vunpack.c.l.b16 %v5343
    %v5506 = vunpack.c.h.b16 %v5343
    %v5507 = vunpack.c.l.b16 %v5344
    %v5508 = vunpack.c.h.b16 %v5344
    %v5509 = vunpack.c.l.b16 %v5345
    %v5510 = vunpack.c.h.b16 %v5345
    %v5511 = vunpack.c.l.b16 %v5346
    %v5512 = vunpack.c.h.b16 %v5346
    %v5513 = vunpack.c.l.b16 %v5347
    %v5514 = vunpack.c.h.b16 %v5347
    %v5515 = vunpack.c.l.b16 %v5348
    %v5516 = vunpack.c.h.b16 %v5348
    %v5517 = vunpack.c.l.b16 %v5349
    %v5518 = vunpack.c.h.b16 %v5349
    %v5519 = vunpack.c.l.b16 %v5350
    %v5520 = vunpack.c.h.b16 %v5350
    %v5521 = vunpack.c.l.b16 %v5351
    %v5522 = vunpack.c.h.b16 %v5351
    %v5523 = vunpack.c.l.b16 %v5352
    %v5524 = vunpack.c.h.b16 %v5352
    %v5525 = vunpack.c.l.b16 %v5353
    %v5526 = vunpack.c.h.b16 %v5353
    %v5527 = vunpack.c.l.b16 %v5354
    %v5528 = vunpack.c.h.b16 %v5354
    %v5529 = vunpack.c.l.b16 %v5355
    %v5530 = vunpack.c.h.b16 %v5355
    %v5531 = vunpack.c.l.b16 %v5356
    %v5532 = vunpack.c.h.b16 %v5356
    %v5533 = vunpack.c.l.b16 %v5357
    %v5534 = vunpack.c.h.b16 %v5357
    %v5535 = vunpack.c.l.b16 %v5358
    %v5536 = vunpack.c.h.b16 %v5358
    %v5537 = vunpack.c.l.b16 %v5359
    %v5538 = vunpack.c.h.b16 %v5359
    %v5539 = vunpack.c.l.b16 %v5360
    %v5540 = vunpack.c.h.b16 %v5360
    %v5541 = vunpack.c.l.b16 %v5361
    %v5542 = vunpack.c.h.b16 %v5361
    %v5543 = vunpack.c.l.b16 %v5362
    %v5544 = vunpack.c.h.b16 %v5362
    %v5545 = vunpack.c.l.b16 %v5363
    %v5546 = vunpack.c.h.b16 %v5363
    %v5547 = vunpack.c.l.b16 %v5364
    %v5548 = vunpack.c.h.b16 %v5364
    %v5549 = vunpack.c.l.b16 %v5365
    %v5550 = vunpack.c.h.b16 %v5365
    %v5551 = vunpack.c.l.b16 %v5366
    %v5552 = vunpack.c.h.b16 %v5366
    %v5553 = vunpack.c.l.b16 %v5367
    %v5554 = vunpack.c.h.b16 %v5367
    %v5555 = vunpack.c.l.b16 %v5368
    %v5556 = vunpack.c.h.b16 %v5368
    %v5557 = vunpack.c.l.b16 %v5369
    %v5558 = vunpack.c.h.b16 %v5369
    %v5559 = vunpack.c.l.b16 %v5370
    %v5560 = vunpack.c.h.b16 %v5370
    %v5561 = vunpack.c.l.b16 %v5371
    %v5562 = vunpack.c.h.b16 %v5371
    %v5563 = vunpack.c.l.b16 %v5372
    %v5564 = vunpack.c.h.b16 %v5372
    %v5565 = vpack.c.b16 %v5441, %v5437
    %v5566 = vpack.c.b16 %v5442, %v5438
    %v5567 = vpack.c.b16 %v5443, %v5439
    %v5568 = vpack.c.b16 %v5444, %v5440
    %v5569 = vpack.c.b16 %v5449, %v5445
    %v5570 = vpack.c.b16 %v5450, %v5446
    %v5571 = vpack.c.b16 %v5451, %v5447
    %v5572 = vpack.c.b16 %v5452, %v5448
    %v5573 = vpack.c.b16 %v5457, %v5453
    %v5574 = vpack.c.b16 %v5458, %v5454
    %v5575 = vpack.c.b16 %v5459, %v5455
    %v5576 = vpack.c.b16 %v5460, %v5456
    %v5577 = vpack.c.b16 %v5465, %v5461
    %v5578 = vpack.c.b16 %v5466, %v5462
    %v5579 = vpack.c.b16 %v5467, %v5463
    %v5580 = vpack.c.b16 %v5468, %v5464
    %v5581 = vpack.c.b16 %v5473, %v5469
    %v5582 = vpack.c.b16 %v5474, %v5470
    %v5583 = vpack.c.b16 %v5475, %v5471
    %v5584 = vpack.c.b16 %v5476, %v5472
    %v5585 = vpack.c.b16 %v5481, %v5477
    %v5586 = vpack.c.b16 %v5482, %v5478
    %v5587 = vpack.c.b16 %v5483, %v5479
    %v5588 = vpack.c.b16 %v5484, %v5480
    %v5589 = vpack.c.b16 %v5489, %v5485
    %v5590 = vpack.c.b16 %v5490, %v5486
    %v5591 = vpack.c.b16 %v5491, %v5487
    %v5592 = vpack.c.b16 %v5492, %v5488
    %v5593 = vpack.c.b16 %v5497, %v5493
    %v5594 = vpack.c.b16 %v5498, %v5494
    %v5595 = vpack.c.b16 %v5499, %v5495
    %v5596 = vpack.c.b16 %v5500, %v5496
    %v5597 = vpack.c.b16 %v5505, %v5501
    %v5598 = vpack.c.b16 %v5506, %v5502
    %v5599 = vpack.c.b16 %v5507, %v5503
    %v5600 = vpack.c.b16 %v5508, %v5504
    %v5601 = vpack.c.b16 %v5513, %v5509
    %v5602 = vpack.c.b16 %v5514, %v5510
    %v5603 = vpack.c.b16 %v5515, %v5511
    %v5604 = vpack.c.b16 %v5516, %v5512
    %v5605 = vpack.c.b16 %v5521, %v5517
    %v5606 = vpack.c.b16 %v5522, %v5518
    %v5607 = vpack.c.b16 %v5523, %v5519
    %v5608 = vpack.c.b16 %v5524, %v5520
    %v5609 = vpack.c.b16 %v5529, %v5525
    %v5610 = vpack.c.b16 %v5530, %v5526
    %v5611 = vpack.c.b16 %v5531, %v5527
    %v5612 = vpack.c.b16 %v5532, %v5528
    %v5613 = vpack.c.b16 %v5537, %v5533
    %v5614 = vpack.c.b16 %v5538, %v5534
    %v5615 = vpack.c.b16 %v5539, %v5535
    %v5616 = vpack.c.b16 %v5540, %v5536
    %v5617 = vpack.c.b16 %v5545, %v5541
    %v5618 = vpack.c.b16 %v5546, %v5542
    %v5619 = vpack.c.b16 %v5547, %v5543
    %v5620 = vpack.c.b16 %v5548, %v5544
    %v5621 = vpack.c.b16 %v5553, %v5549
    %v5622 = vpack.c.b16 %v5554, %v5550
    %v5623 = vpack.c.b16 %v5555, %v5551
    %v5624 = vpack.c.b16 %v5556, %v5552
    %v5625 = vpack.c.b16 %v5561, %v5557
    %v5626 = vpack.c.b16 %v5562, %v5558
    %v5627 = vpack.c.b16 %v5563, %v5559
    %v5628 = vpack.c.b16 %v5564, %v5560
    %5693 = vmatprep.subr.bf16.mxu0 %v5566
    %5694 = vmatpush1.bf16.msra.mxu0 %v5565
    %5695 = vmatprep.subr.bf16.mxu0 %v5570
    %5696 = vmatpush1.bf16.msra.mxu0 %v5569
    %5697 = vmatprep.subr.bf16.mxu0 %v5574
    %5698 = vmatpush1.bf16.msra.mxu0 %v5573
    %5699 = vmatprep.subr.bf16.mxu0 %v5578
    %5700 = vmatpush1.bf16.msra.mxu0 %v5577
    %5701 = vmatprep.subr.bf16.mxu0 %v5582
    %5702 = vmatpush1.bf16.msra.mxu0 %v5581
    %5703 = vmatprep.subr.bf16.mxu0 %v5586
    %5704 = vmatpush1.bf16.msra.mxu0 %v5585
    %5705 = vmatprep.subr.bf16.mxu0 %v5590
    %5706 = vmatpush1.bf16.msra.mxu0 %v5589
    %5707 = vmatprep.subr.bf16.mxu0 %v5594
    %5708 = vmatpush1.bf16.msra.mxu0 %v5593
    %5709 = vmatprep.subr.bf16.mxu0 %v5598
    %5710 = vmatpush1.bf16.msra.mxu0 %v5597
    %5711 = vmatprep.subr.bf16.mxu0 %v5602
    %5712 = vmatpush1.bf16.msra.mxu0 %v5601
    %5713 = vmatprep.subr.bf16.mxu0 %v5606
    %5714 = vmatpush1.bf16.msra.mxu0 %v5605
    %5715 = vmatprep.subr.bf16.mxu0 %v5610
    %5716 = vmatpush1.bf16.msra.mxu0 %v5609
    %5717 = vmatprep.subr.bf16.mxu0 %v5614
    %5718 = vmatpush1.bf16.msra.mxu0 %v5613
    %5719 = vmatprep.subr.bf16.mxu0 %v5618
    %5720 = vmatpush1.bf16.msra.mxu0 %v5617
    %5721 = vmatprep.subr.bf16.mxu0 %v5622
    %5722 = vmatpush1.bf16.msra.mxu0 %v5621
    %5723 = vmatprep.subr.bf16.mxu0 %v5626
    %5724 = vmatpush1.bf16.msra.mxu0 %v5625
    %5725 = vmatprep.mubr.bf16.mxu0 %v5307
    %5726 = vmatmul.mubr.bf16.gmra.mrb[0].mxu0 %v5306
    %v5727 = vpop.f32.mrb[0].mxu0
    %v5728 = vadd.f32 0.0, %v5727
    %v5729 = vpop.f32.mrb[0].mxu0
    %v5730 = vadd.f32 0.0, %v5729
    %v5731 = vpop.f32.mrb[0].mxu0
    %v5732 = vpop.f32.mrb[0].mxu0
    %5733 = vdwg.mxu0
    %5734 = vmatprep.subr.bf16.mxu0 %v5568
    %5735 = vmatpush1.bf16.msra.mxu0 %v5567
    %5736 = vmatprep.subr.bf16.mxu0 %v5572
    %5737 = vmatpush1.bf16.msra.mxu0 %v5571
    %5738 = vmatprep.subr.bf16.mxu0 %v5576
    %5739 = vmatpush1.bf16.msra.mxu0 %v5575
    %5740 = vmatprep.subr.bf16.mxu0 %v5580
    %5741 = vmatpush1.bf16.msra.mxu0 %v5579
    %5742 = vmatprep.subr.bf16.mxu0 %v5584
    %5743 = vmatpush1.bf16.msra.mxu0 %v5583
    %5744 = vmatprep.subr.bf16.mxu0 %v5588
    %5745 = vmatpush1.bf16.msra.mxu0 %v5587
    %5746 = vmatprep.subr.bf16.mxu0 %v5592
    %5747 = vmatpush1.bf16.msra.mxu0 %v5591
    %5748 = vmatprep.subr.bf16.mxu0 %v5596
    %5749 = vmatpush1.bf16.msra.mxu0 %v5595
    %5750 = vmatprep.subr.bf16.mxu0 %v5600
    %5751 = vmatpush1.bf16.msra.mxu0 %v5599
    %5752 = vmatprep.subr.bf16.mxu0 %v5604
    %5753 = vmatpush1.bf16.msra.mxu0 %v5603
    %5754 = vmatprep.subr.bf16.mxu0 %v5608
    %5755 = vmatpush1.bf16.msra.mxu0 %v5607
    %5756 = vmatprep.subr.bf16.mxu0 %v5612
    %5757 = vmatpush1.bf16.msra.mxu0 %v5611
    %5758 = vmatprep.subr.bf16.mxu0 %v5616
    %5759 = vmatpush1.bf16.msra.mxu0 %v5615
    %5760 = vmatprep.subr.bf16.mxu0 %v5620
    %5761 = vmatpush1.bf16.msra.mxu0 %v5619
    %5762 = vmatprep.subr.bf16.mxu0 %v5624
    %5763 = vmatpush1.bf16.msra.mxu0 %v5623
    %5764 = vmatprep.subr.bf16.mxu0 %v5628
    %5765 = vmatpush1.bf16.msra.mxu0 %v5627
    %5766 = vmatprep.mubr.bf16.mxu0 %v5307
    %5767 = vmatmul.mubr.bf16.gmra.mrb[0].mxu0 %v5306
    %v5768 = vpop.f32.mrb[0].mxu0
    %v5769 = vadd.f32 0.0, %v5768
    %v5770 = vpop.f32.mrb[0].mxu0
    %v5771 = vadd.f32 0.0, %v5770
    %v5772 = vpop.f32.mrb[0].mxu0
    %v5773 = vpop.f32.mrb[0].mxu0
    %5774 = vdwg.mxu0
    %v5775 = vadd.f32 %v5256, %v5728
    %v5776 = vadd.f32 %v5257, %v5730
    %v5777 = vadd.f32 %v5258, %v5769
    %v5778 = vadd.f32 %v5259, %v5771
    %s5779 = scalar_lea.vmem %s4, 28
    %v5780 = vld [vmem:[%s5779] sm:$0xf]
    %v5782 = vsel %vm2156, %v5780, 0
    %5784 = vmatprep.subr.bf16.mxu0 %v2152
    %5785 = vmatpush1.bf16.msra.mxu0 %v2151
    %5786 = vmatprep.subr.bf16.mxu0 %v2154
    %5787 = vmatpush1.bf16.msra.mxu0 %v2153
    %5788 = vmatprep.subr.bf16.mxu0 0
    %5789 = vmatpush1.bf16.msra.mxu0 0
    %5790 = vmatprep.subr.bf16.mxu0 0
    %5791 = vmatpush1.bf16.msra.mxu0 0
    %5792 = vmatprep.subr.bf16.mxu0 0
    %5793 = vmatpush1.bf16.msra.mxu0 0
    %5794 = vmatprep.subr.bf16.mxu0 0
    %5795 = vmatpush1.bf16.msra.mxu0 0
    %5796 = vmatprep.subr.bf16.mxu0 0
    %5797 = vmatpush1.bf16.msra.mxu0 0
    %5798 = vmatprep.subr.bf16.mxu0 0
    %5799 = vmatpush1.bf16.msra.mxu0 0
    %5800 = vmatprep.subr.bf16.mxu0 0
    %5801 = vmatpush1.bf16.msra.mxu0 0
    %5802 = vmatprep.subr.bf16.mxu0 0
    %5803 = vmatpush1.bf16.msra.mxu0 0
    %5804 = vmatprep.subr.bf16.mxu0 0
    %5805 = vmatpush1.bf16.msra.mxu0 0
    %5806 = vmatprep.subr.bf16.mxu0 0
    %5807 = vmatpush1.bf16.msra.mxu0 0
    %5808 = vmatprep.subr.bf16.mxu0 0
    %5809 = vmatpush1.bf16.msra.mxu0 0
    %5810 = vmatprep.subr.bf16.mxu0 0
    %5811 = vmatpush1.bf16.msra.mxu0 0
    %5812 = vmatprep.subr.bf16.mxu0 0
    %5813 = vmatpush1.bf16.msra.mxu0 0
    %5814 = vmatprep.subr.bf16.mxu0 0
    %5815 = vmatpush1.bf16.msra.mxu0 0
    %5816 = vmatprep.mubr.bf16.mxu0 0
    %5817 = vmatmul.mubr.bf16.gmra.mrb[0].mxu0 %v5782
    %v5818 = vpop.f32.mrb[0].mxu0
    %v5819 = vadd.f32 0.0, %v5818
    %v5820 = vpop.f32.mrb[0].mxu0
    %v5821 = vadd.f32 0.0, %v5820
    %v5822 = vpop.f32.mrb[0].mxu0
    %v5823 = vpop.f32.mrb[0].mxu0
    %5824 = vdwg.mxu0
    %v5825 = vpack.c.bf16 %v5819, %v5819
    %v5826 = vpack.c.bf16 %v5821, %v5821
    %s5827 = scalar_lea.vmem %s5, 3584
    %v5828 = vld [vmem:[%s5827] sm:$0xff]
    %v5829 = vld [vmem:[%s5827 + $0x8] sm:$0xff]
    %v5830 = vld [vmem:[%s5827 + $0x10] sm:$0xff]
    %v5831 = vld [vmem:[%s5827 + $0x18] sm:$0xff]
    %v5832 = vld [vmem:[%s5827 + $0x20] sm:$0xff]
    %v5833 = vld [vmem:[%s5827 + $0x28] sm:$0xff]
    %v5834 = vld [vmem:[%s5827 + $0x30] sm:$0xff]
    %v5835 = vld [vmem:[%s5827 + $0x38] sm:$0xff]
    %v5836 = vld [vmem:[%s5827 + $0x40] sm:$0xff]
    %v5837 = vld [vmem:[%s5827 + $0x48] sm:$0xff]
    %v5838 = vld [vmem:[%s5827 + $0x50] sm:$0xff]
    %v5839 = vld [vmem:[%s5827 + $0x58] sm:$0xff]
    %v5840 = vld [vmem:[%s5827 + $0x60] sm:$0xff]
    %v5841 = vld [vmem:[%s5827 + $0x68] sm:$0xff]
    %v5842 = vld [vmem:[%s5827 + $0x70] sm:$0xff]
    %v5843 = vld [vmem:[%s5827 + $0x78] sm:$0xff]
    %v5844 = vld [vmem:[%s5827 + $0x80] sm:$0xff]
    %v5845 = vld [vmem:[%s5827 + $0x88] sm:$0xff]
    %v5846 = vld [vmem:[%s5827 + $0x90] sm:$0xff]
    %v5847 = vld [vmem:[%s5827 + $0x98] sm:$0xff]
    %v5848 = vld [vmem:[%s5827 + $0xa0] sm:$0xff]
    %v5849 = vld [vmem:[%s5827 + $0xa8] sm:$0xff]
    %v5850 = vld [vmem:[%s5827 + $0xb0] sm:$0xff]
    %v5851 = vld [vmem:[%s5827 + $0xb8] sm:$0xff]
    %v5852 = vld [vmem:[%s5827 + $0xc0] sm:$0xff]
    %v5853 = vld [vmem:[%s5827 + $0xc8] sm:$0xff]
    %v5854 = vld [vmem:[%s5827 + $0xd0] sm:$0xff]
    %v5855 = vld [vmem:[%s5827 + $0xd8] sm:$0xff]
    %v5856 = vld [vmem:[%s5827 + $0xe0] sm:$0xff]
    %v5857 = vld [vmem:[%s5827 + $0xe8] sm:$0xff]
    %v5858 = vld [vmem:[%s5827 + $0xf0] sm:$0xff]
    %v5859 = vld [vmem:[%s5827 + $0xf8] sm:$0xff]
    %v5860 = vld [vmem:[%s5827 + $0x100] sm:$0xff]
    %v5861 = vld [vmem:[%s5827 + $0x108] sm:$0xff]
    %v5862 = vld [vmem:[%s5827 + $0x110] sm:$0xff]
    %v5863 = vld [vmem:[%s5827 + $0x118] sm:$0xff]
    %v5864 = vld [vmem:[%s5827 + $0x120] sm:$0xff]
    %v5865 = vld [vmem:[%s5827 + $0x128] sm:$0xff]
    %v5866 = vld [vmem:[%s5827 + $0x130] sm:$0xff]
    %v5867 = vld [vmem:[%s5827 + $0x138] sm:$0xff]
    %v5868 = vld [vmem:[%s5827 + $0x140] sm:$0xff]
    %v5869 = vld [vmem:[%s5827 + $0x148] sm:$0xff]
    %v5870 = vld [vmem:[%s5827 + $0x150] sm:$0xff]
    %v5871 = vld [vmem:[%s5827 + $0x158] sm:$0xff]
    %v5872 = vld [vmem:[%s5827 + $0x160] sm:$0xff]
    %v5873 = vld [vmem:[%s5827 + $0x168] sm:$0xff]
    %v5874 = vld [vmem:[%s5827 + $0x170] sm:$0xff]
    %v5875 = vld [vmem:[%s5827 + $0x178] sm:$0xff]
    %v5876 = vld [vmem:[%s5827 + $0x180] sm:$0xff]
    %v5877 = vld [vmem:[%s5827 + $0x188] sm:$0xff]
    %v5878 = vld [vmem:[%s5827 + $0x190] sm:$0xff]
    %v5879 = vld [vmem:[%s5827 + $0x198] sm:$0xff]
    %v5880 = vld [vmem:[%s5827 + $0x1a0] sm:$0xff]
    %v5881 = vld [vmem:[%s5827 + $0x1a8] sm:$0xff]
    %v5882 = vld [vmem:[%s5827 + $0x1b0] sm:$0xff]
    %v5883 = vld [vmem:[%s5827 + $0x1b8] sm:$0xff]
    %v5884 = vld [vmem:[%s5827 + $0x1c0] sm:$0xff]
    %v5885 = vld [vmem:[%s5827 + $0x1c8] sm:$0xff]
    %v5886 = vld [vmem:[%s5827 + $0x1d0] sm:$0xff]
    %v5887 = vld [vmem:[%s5827 + $0x1d8] sm:$0xff]
    %v5888 = vld [vmem:[%s5827 + $0x1e0] sm:$0xff]
    %v5889 = vld [vmem:[%s5827 + $0x1e8] sm:$0xff]
    %v5890 = vld [vmem:[%s5827 + $0x1f0] sm:$0xff]
    %v5891 = vld [vmem:[%s5827 + $0x1f8] sm:$0xff]
    %v5956 = vunpack.c.l.b16 %v5828
    %v5957 = vunpack.c.h.b16 %v5828
    %v5958 = vunpack.c.l.b16 %v5829
    %v5959 = vunpack.c.h.b16 %v5829
    %v5960 = vunpack.c.l.b16 %v5830
    %v5961 = vunpack.c.h.b16 %v5830
    %v5962 = vunpack.c.l.b16 %v5831
    %v5963 = vunpack.c.h.b16 %v5831
    %v5964 = vunpack.c.l.b16 %v5832
    %v5965 = vunpack.c.h.b16 %v5832
    %v5966 = vunpack.c.l.b16 %v5833
    %v5967 = vunpack.c.h.b16 %v5833
    %v5968 = vunpack.c.l.b16 %v5834
    %v5969 = vunpack.c.h.b16 %v5834
    %v5970 = vunpack.c.l.b16 %v5835
    %v5971 = vunpack.c.h.b16 %v5835
    %v5972 = vunpack.c.l.b16 %v5836
    %v5973 = vunpack.c.h.b16 %v5836
    %v5974 = vunpack.c.l.b16 %v5837
    %v5975 = vunpack.c.h.b16 %v5837
    %v5976 = vunpack.c.l.b16 %v5838
    %v5977 = vunpack.c.h.b16 %v5838
    %v5978 = vunpack.c.l.b16 %v5839
    %v5979 = vunpack.c.h.b16 %v5839
    %v5980 = vunpack.c.l.b16 %v5840
    %v5981 = vunpack.c.h.b16 %v5840
    %v5982 = vunpack.c.l.b16 %v5841
    %v5983 = vunpack.c.h.b16 %v5841
    %v5984 = vunpack.c.l.b16 %v5842
    %v5985 = vunpack.c.h.b16 %v5842
    %v5986 = vunpack.c.l.b16 %v5843
    %v5987 = vunpack.c.h.b16 %v5843
    %v5988 = vunpack.c.l.b16 %v5844
    %v5989 = vunpack.c.h.b16 %v5844
    %v5990 = vunpack.c.l.b16 %v5845
    %v5991 = vunpack.c.h.b16 %v5845
    %v5992 = vunpack.c.l.b16 %v5846
    %v5993 = vunpack.c.h.b16 %v5846
    %v5994 = vunpack.c.l.b16 %v5847
    %v5995 = vunpack.c.h.b16 %v5847
    %v5996 = vunpack.c.l.b16 %v5848
    %v5997 = vunpack.c.h.b16 %v5848
    %v5998 = vunpack.c.l.b16 %v5849
    %v5999 = vunpack.c.h.b16 %v5849
    %v6000 = vunpack.c.l.b16 %v5850
    %v6001 = vunpack.c.h.b16 %v5850
    %v6002 = vunpack.c.l.b16 %v5851
    %v6003 = vunpack.c.h.b16 %v5851
    %v6004 = vunpack.c.l.b16 %v5852
    %v6005 = vunpack.c.h.b16 %v5852
    %v6006 = vunpack.c.l.b16 %v5853
    %v6007 = vunpack.c.h.b16 %v5853
    %v6008 = vunpack.c.l.b16 %v5854
    %v6009 = vunpack.c.h.b16 %v5854
    %v6010 = vunpack.c.l.b16 %v5855
    %v6011 = vunpack.c.h.b16 %v5855
    %v6012 = vunpack.c.l.b16 %v5856
    %v6013 = vunpack.c.h.b16 %v5856
    %v6014 = vunpack.c.l.b16 %v5857
    %v6015 = vunpack.c.h.b16 %v5857
    %v6016 = vunpack.c.l.b16 %v5858
    %v6017 = vunpack.c.h.b16 %v5858
    %v6018 = vunpack.c.l.b16 %v5859
    %v6019 = vunpack.c.h.b16 %v5859
    %v6020 = vunpack.c.l.b16 %v5860
    %v6021 = vunpack.c.h.b16 %v5860
    %v6022 = vunpack.c.l.b16 %v5861
    %v6023 = vunpack.c.h.b16 %v5861
    %v6024 = vunpack.c.l.b16 %v5862
    %v6025 = vunpack.c.h.b16 %v5862
    %v6026 = vunpack.c.l.b16 %v5863
    %v6027 = vunpack.c.h.b16 %v5863
    %v6028 = vunpack.c.l.b16 %v5864
    %v6029 = vunpack.c.h.b16 %v5864
    %v6030 = vunpack.c.l.b16 %v5865
    %v6031 = vunpack.c.h.b16 %v5865
    %v6032 = vunpack.c.l.b16 %v5866
    %v6033 = vunpack.c.h.b16 %v5866
    %v6034 = vunpack.c.l.b16 %v5867
    %v6035 = vunpack.c.h.b16 %v5867
    %v6036 = vunpack.c.l.b16 %v5868
    %v6037 = vunpack.c.h.b16 %v5868
    %v6038 = vunpack.c.l.b16 %v5869
    %v6039 = vunpack.c.h.b16 %v5869
    %v6040 = vunpack.c.l.b16 %v5870
    %v6041 = vunpack.c.h.b16 %v5870
    %v6042 = vunpack.c.l.b16 %v5871
    %v6043 = vunpack.c.h.b16 %v5871
    %v6044 = vunpack.c.l.b16 %v5872
    %v6045 = vunpack.c.h.b16 %v5872
    %v6046 = vunpack.c.l.b16 %v5873
    %v6047 = vunpack.c.h.b16 %v5873
    %v6048 = vunpack.c.l.b16 %v5874
    %v6049 = vunpack.c.h.b16 %v5874
    %v6050 = vunpack.c.l.b16 %v5875
    %v6051 = vunpack.c.h.b16 %v5875
    %v6052 = vunpack.c.l.b16 %v5876
    %v6053 = vunpack.c.h.b16 %v5876
    %v6054 = vunpack.c.l.b16 %v5877
    %v6055 = vunpack.c.h.b16 %v5877
    %v6056 = vunpack.c.l.b16 %v5878
    %v6057 = vunpack.c.h.b16 %v5878
    %v6058 = vunpack.c.l.b16 %v5879
    %v6059 = vunpack.c.h.b16 %v5879
    %v6060 = vunpack.c.l.b16 %v5880
    %v6061 = vunpack.c.h.b16 %v5880
    %v6062 = vunpack.c.l.b16 %v5881
    %v6063 = vunpack.c.h.b16 %v5881
    %v6064 = vunpack.c.l.b16 %v5882
    %v6065 = vunpack.c.h.b16 %v5882
    %v6066 = vunpack.c.l.b16 %v5883
    %v6067 = vunpack.c.h.b16 %v5883
    %v6068 = vunpack.c.l.b16 %v5884
    %v6069 = vunpack.c.h.b16 %v5884
    %v6070 = vunpack.c.l.b16 %v5885
    %v6071 = vunpack.c.h.b16 %v5885
    %v6072 = vunpack.c.l.b16 %v5886
    %v6073 = vunpack.c.h.b16 %v5886
    %v6074 = vunpack.c.l.b16 %v5887
    %v6075 = vunpack.c.h.b16 %v5887
    %v6076 = vunpack.c.l.b16 %v5888
    %v6077 = vunpack.c.h.b16 %v5888
    %v6078 = vunpack.c.l.b16 %v5889
    %v6079 = vunpack.c.h.b16 %v5889
    %v6080 = vunpack.c.l.b16 %v5890
    %v6081 = vunpack.c.h.b16 %v5890
    %v6082 = vunpack.c.l.b16 %v5891
    %v6083 = vunpack.c.h.b16 %v5891
    %v6084 = vpack.c.b16 %v5960, %v5956
    %v6085 = vpack.c.b16 %v5961, %v5957
    %v6086 = vpack.c.b16 %v5962, %v5958
    %v6087 = vpack.c.b16 %v5963, %v5959
    %v6088 = vpack.c.b16 %v5968, %v5964
    %v6089 = vpack.c.b16 %v5969, %v5965
    %v6090 = vpack.c.b16 %v5970, %v5966
    %v6091 = vpack.c.b16 %v5971, %v5967
    %v6092 = vpack.c.b16 %v5976, %v5972
    %v6093 = vpack.c.b16 %v5977, %v5973
    %v6094 = vpack.c.b16 %v5978, %v5974
    %v6095 = vpack.c.b16 %v5979, %v5975
    %v6096 = vpack.c.b16 %v5984, %v5980
    %v6097 = vpack.c.b16 %v5985, %v5981
    %v6098 = vpack.c.b16 %v5986, %v5982
    %v6099 = vpack.c.b16 %v5987, %v5983
    %v6100 = vpack.c.b16 %v5992, %v5988
    %v6101 = vpack.c.b16 %v5993, %v5989
    %v6102 = vpack.c.b16 %v5994, %v5990
    %v6103 = vpack.c.b16 %v5995, %v5991
    %v6104 = vpack.c.b16 %v6000, %v5996
    %v6105 = vpack.c.b16 %v6001, %v5997
    %v6106 = vpack.c.b16 %v6002, %v5998
    %v6107 = vpack.c.b16 %v6003, %v5999
    %v6108 = vpack.c.b16 %v6008, %v6004
    %v6109 = vpack.c.b16 %v6009, %v6005
    %v6110 = vpack.c.b16 %v6010, %v6006
    %v6111 = vpack.c.b16 %v6011, %v6007
    %v6112 = vpack.c.b16 %v6016, %v6012
    %v6113 = vpack.c.b16 %v6017, %v6013
    %v6114 = vpack.c.b16 %v6018, %v6014
    %v6115 = vpack.c.b16 %v6019, %v6015
    %v6116 = vpack.c.b16 %v6024, %v6020
    %v6117 = vpack.c.b16 %v6025, %v6021
    %v6118 = vpack.c.b16 %v6026, %v6022
    %v6119 = vpack.c.b16 %v6027, %v6023
    %v6120 = vpack.c.b16 %v6032, %v6028
    %v6121 = vpack.c.b16 %v6033, %v6029
    %v6122 = vpack.c.b16 %v6034, %v6030
    %v6123 = vpack.c.b16 %v6035, %v6031
    %v6124 = vpack.c.b16 %v6040, %v6036
    %v6125 = vpack.c.b16 %v6041, %v6037
    %v6126 = vpack.c.b16 %v6042, %v6038
    %v6127 = vpack.c.b16 %v6043, %v6039
    %v6128 = vpack.c.b16 %v6048, %v6044
    %v6129 = vpack.c.b16 %v6049, %v6045
    %v6130 = vpack.c.b16 %v6050, %v6046
    %v6131 = vpack.c.b16 %v6051, %v6047
    %v6132 = vpack.c.b16 %v6056, %v6052
    %v6133 = vpack.c.b16 %v6057, %v6053
    %v6134 = vpack.c.b16 %v6058, %v6054
    %v6135 = vpack.c.b16 %v6059, %v6055
    %v6136 = vpack.c.b16 %v6064, %v6060
    %v6137 = vpack.c.b16 %v6065, %v6061
    %v6138 = vpack.c.b16 %v6066, %v6062
    %v6139 = vpack.c.b16 %v6067, %v6063
    %v6140 = vpack.c.b16 %v6072, %v6068
    %v6141 = vpack.c.b16 %v6073, %v6069
    %v6142 = vpack.c.b16 %v6074, %v6070
    %v6143 = vpack.c.b16 %v6075, %v6071
    %v6144 = vpack.c.b16 %v6080, %v6076
    %v6145 = vpack.c.b16 %v6081, %v6077
    %v6146 = vpack.c.b16 %v6082, %v6078
    %v6147 = vpack.c.b16 %v6083, %v6079
    %6212 = vmatprep.subr.bf16.mxu0 %v6085
    %6213 = vmatpush1.bf16.msra.mxu0 %v6084
    %6214 = vmatprep.subr.bf16.mxu0 %v6089
    %6215 = vmatpush1.bf16.msra.mxu0 %v6088
    %6216 = vmatprep.subr.bf16.mxu0 %v6093
    %6217 = vmatpush1.bf16.msra.mxu0 %v6092
    %6218 = vmatprep.subr.bf16.mxu0 %v6097
    %6219 = vmatpush1.bf16.msra.mxu0 %v6096
    %6220 = vmatprep.subr.bf16.mxu0 %v6101
    %6221 = vmatpush1.bf16.msra.mxu0 %v6100
    %6222 = vmatprep.subr.bf16.mxu0 %v6105
    %6223 = vmatpush1.bf16.msra.mxu0 %v6104
    %6224 = vmatprep.subr.bf16.mxu0 %v6109
    %6225 = vmatpush1.bf16.msra.mxu0 %v6108
    %6226 = vmatprep.subr.bf16.mxu0 %v6113
    %6227 = vmatpush1.bf16.msra.mxu0 %v6112
    %6228 = vmatprep.subr.bf16.mxu0 %v6117
    %6229 = vmatpush1.bf16.msra.mxu0 %v6116
    %6230 = vmatprep.subr.bf16.mxu0 %v6121
    %6231 = vmatpush1.bf16.msra.mxu0 %v6120
    %6232 = vmatprep.subr.bf16.mxu0 %v6125
    %6233 = vmatpush1.bf16.msra.mxu0 %v6124
    %6234 = vmatprep.subr.bf16.mxu0 %v6129
    %6235 = vmatpush1.bf16.msra.mxu0 %v6128
    %6236 = vmatprep.subr.bf16.mxu0 %v6133
    %6237 = vmatpush1.bf16.msra.mxu0 %v6132
    %6238 = vmatprep.subr.bf16.mxu0 %v6137
    %6239 = vmatpush1.bf16.msra.mxu0 %v6136
    %6240 = vmatprep.subr.bf16.mxu0 %v6141
    %6241 = vmatpush1.bf16.msra.mxu0 %v6140
    %6242 = vmatprep.subr.bf16.mxu0 %v6145
    %6243 = vmatpush1.bf16.msra.mxu0 %v6144
    %6244 = vmatprep.mubr.bf16.mxu0 %v5826
    %6245 = vmatmul.mubr.bf16.gmra.mrb[0].mxu0 %v5825
    %v6246 = vpop.f32.mrb[0].mxu0
    %v6247 = vadd.f32 0.0, %v6246
    %v6248 = vpop.f32.mrb[0].mxu0
    %v6249 = vadd.f32 0.0, %v6248
    %v6250 = vpop.f32.mrb[0].mxu0
    %v6251 = vpop.f32.mrb[0].mxu0
    %6252 = vdwg.mxu0
    %6253 = vmatprep.subr.bf16.mxu0 %v6087
    %6254 = vmatpush1.bf16.msra.mxu0 %v6086
    %6255 = vmatprep.subr.bf16.mxu0 %v6091
    %6256 = vmatpush1.bf16.msra.mxu0 %v6090
    %6257 = vmatprep.subr.bf16.mxu0 %v6095
    %6258 = vmatpush1.bf16.msra.mxu0 %v6094
    %6259 = vmatprep.subr.bf16.mxu0 %v6099
    %6260 = vmatpush1.bf16.msra.mxu0 %v6098
    %6261 = vmatprep.subr.bf16.mxu0 %v6103
    %6262 = vmatpush1.bf16.msra.mxu0 %v6102
    %6263 = vmatprep.subr.bf16.mxu0 %v6107
    %6264 = vmatpush1.bf16.msra.mxu0 %v6106
    %6265 = vmatprep.subr.bf16.mxu0 %v6111
    %6266 = vmatpush1.bf16.msra.mxu0 %v6110
    %6267 = vmatprep.subr.bf16.mxu0 %v6115
    %6268 = vmatpush1.bf16.msra.mxu0 %v6114
    %6269 = vmatprep.subr.bf16.mxu0 %v6119
    %6270 = vmatpush1.bf16.msra.mxu0 %v6118
    %6271 = vmatprep.subr.bf16.mxu0 %v6123
    %6272 = vmatpush1.bf16.msra.mxu0 %v6122
    %6273 = vmatprep.subr.bf16.mxu0 %v6127
    %6274 = vmatpush1.bf16.msra.mxu0 %v6126
    %6275 = vmatprep.subr.bf16.mxu0 %v6131
    %6276 = vmatpush1.bf16.msra.mxu0 %v6130
    %6277 = vmatprep.subr.bf16.mxu0 %v6135
    %6278 = vmatpush1.bf16.msra.mxu0 %v6134
    %6279 = vmatprep.subr.bf16.mxu0 %v6139
    %6280 = vmatpush1.bf16.msra.mxu0 %v6138
    %6281 = vmatprep.subr.bf16.mxu0 %v6143
    %6282 = vmatpush1.bf16.msra.mxu0 %v6142
    %6283 = vmatprep.subr.bf16.mxu0 %v6147
    %6284 = vmatpush1.bf16.msra.mxu0 %v6146
    %6285 = vmatprep.mubr.bf16.mxu0 %v5826
    %6286 = vmatmul.mubr.bf16.gmra.mrb[0].mxu0 %v5825
    %v6287 = vpop.f32.mrb[0].mxu0
    %v6288 = vadd.f32 0.0, %v6287
    %v6289 = vpop.f32.mrb[0].mxu0
    %v6290 = vadd.f32 0.0, %v6289
    %v6291 = vpop.f32.mrb[0].mxu0
    %v6292 = vpop.f32.mrb[0].mxu0
    %6293 = vdwg.mxu0
    %v6294 = vadd.f32 %v5775, %v6247
    %v6295 = vadd.f32 %v5776, %v6249
    %v6296 = vadd.f32 %v5777, %v6288
    %v6297 = vadd.f32 %v5778, %v6290
    %s6298 = scalar_lea.vmem %s4, 32
    %v6299 = vld [vmem:[%s6298] sm:$0xf]
    %v6301 = vsel %vm2156, %v6299, 0
    %6303 = vmatprep.subr.bf16.mxu0 %v2152
    %6304 = vmatpush1.bf16.msra.mxu0 %v2151
    %6305 = vmatprep.subr.bf16.mxu0 %v2154
    %6306 = vmatpush1.bf16.msra.mxu0 %v2153
    %6307 = vmatprep.subr.bf16.mxu0 0
    %6308 = vmatpush1.bf16.msra.mxu0 0
    %6309 = vmatprep.subr.bf16.mxu0 0
    %6310 = vmatpush1.bf16.msra.mxu0 0
    %6311 = vmatprep.subr.bf16.mxu0 0
    %6312 = vmatpush1.bf16.msra.mxu0 0
    %6313 = vmatprep.subr.bf16.mxu0 0
    %6314 = vmatpush1.bf16.msra.mxu0 0
    %6315 = vmatprep.subr.bf16.mxu0 0
    %6316 = vmatpush1.bf16.msra.mxu0 0
    %6317 = vmatprep.subr.bf16.mxu0 0
    %6318 = vmatpush1.bf16.msra.mxu0 0
    %6319 = vmatprep.subr.bf16.mxu0 0
    %6320 = vmatpush1.bf16.msra.mxu0 0
    %6321 = vmatprep.subr.bf16.mxu0 0
    %6322 = vmatpush1.bf16.msra.mxu0 0
    %6323 = vmatprep.subr.bf16.mxu0 0
    %6324 = vmatpush1.bf16.msra.mxu0 0
    %6325 = vmatprep.subr.bf16.mxu0 0
    %6326 = vmatpush1.bf16.msra.mxu0 0
    %6327 = vmatprep.subr.bf16.mxu0 0
    %6328 = vmatpush1.bf16.msra.mxu0 0
    %6329 = vmatprep.subr.bf16.mxu0 0
    %6330 = vmatpush1.bf16.msra.mxu0 0
    %6331 = vmatprep.subr.bf16.mxu0 0
    %6332 = vmatpush1.bf16.msra.mxu0 0
    %6333 = vmatprep.subr.bf16.mxu0 0
    %6334 = vmatpush1.bf16.msra.mxu0 0
    %6335 = vmatprep.mubr.bf16.mxu0 0
    %6336 = vmatmul.mubr.bf16.gmra.mrb[0].mxu0 %v6301
    %v6337 = vpop.f32.mrb[0].mxu0
    %v6338 = vadd.f32 0.0, %v6337
    %v6339 = vpop.f32.mrb[0].mxu0
    %v6340 = vadd.f32 0.0, %v6339
    %v6341 = vpop.f32.mrb[0].mxu0
    %v6342 = vpop.f32.mrb[0].mxu0
    %6343 = vdwg.mxu0
    %v6344 = vpack.c.bf16 %v6338, %v6338
    %v6345 = vpack.c.bf16 %v6340, %v6340
    %s6346 = scalar_lea.vmem %s5, 4096
    %v6347 = vld [vmem:[%s6346] sm:$0xff]
    %v6348 = vld [vmem:[%s6346 + $0x8] sm:$0xff]
    %v6349 = vld [vmem:[%s6346 + $0x10] sm:$0xff]
    %v6350 = vld [vmem:[%s6346 + $0x18] sm:$0xff]
    %v6351 = vld [vmem:[%s6346 + $0x20] sm:$0xff]
    %v6352 = vld [vmem:[%s6346 + $0x28] sm:$0xff]
    %v6353 = vld [vmem:[%s6346 + $0x30] sm:$0xff]
    %v6354 = vld [vmem:[%s6346 + $0x38] sm:$0xff]
    %v6355 = vld [vmem:[%s6346 + $0x40] sm:$0xff]
    %v6356 = vld [vmem:[%s6346 + $0x48] sm:$0xff]
    %v6357 = vld [vmem:[%s6346 + $0x50] sm:$0xff]
    %v6358 = vld [vmem:[%s6346 + $0x58] sm:$0xff]
    %v6359 = vld [vmem:[%s6346 + $0x60] sm:$0xff]
    %v6360 = vld [vmem:[%s6346 + $0x68] sm:$0xff]
    %v6361 = vld [vmem:[%s6346 + $0x70] sm:$0xff]
    %v6362 = vld [vmem:[%s6346 + $0x78] sm:$0xff]
    %v6363 = vld [vmem:[%s6346 + $0x80] sm:$0xff]
    %v6364 = vld [vmem:[%s6346 + $0x88] sm:$0xff]
    %v6365 = vld [vmem:[%s6346 + $0x90] sm:$0xff]
    %v6366 = vld [vmem:[%s6346 + $0x98] sm:$0xff]
    %v6367 = vld [vmem:[%s6346 + $0xa0] sm:$0xff]
    %v6368 = vld [vmem:[%s6346 + $0xa8] sm:$0xff]
    %v6369 = vld [vmem:[%s6346 + $0xb0] sm:$0xff]
    %v6370 = vld [vmem:[%s6346 + $0xb8] sm:$0xff]
    %v6371 = vld [vmem:[%s6346 + $0xc0] sm:$0xff]
    %v6372 = vld [vmem:[%s6346 + $0xc8] sm:$0xff]
    %v6373 = vld [vmem:[%s6346 + $0xd0] sm:$0xff]
    %v6374 = vld [vmem:[%s6346 + $0xd8] sm:$0xff]
    %v6375 = vld [vmem:[%s6346 + $0xe0] sm:$0xff]
    %v6376 = vld [vmem:[%s6346 + $0xe8] sm:$0xff]
    %v6377 = vld [vmem:[%s6346 + $0xf0] sm:$0xff]
    %v6378 = vld [vmem:[%s6346 + $0xf8] sm:$0xff]
    %v6379 = vld [vmem:[%s6346 + $0x100] sm:$0xff]
    %v6380 = vld [vmem:[%s6346 + $0x108] sm:$0xff]
    %v6381 = vld [vmem:[%s6346 + $0x110] sm:$0xff]
    %v6382 = vld [vmem:[%s6346 + $0x118] sm:$0xff]
    %v6383 = vld [vmem:[%s6346 + $0x120] sm:$0xff]
    %v6384 = vld [vmem:[%s6346 + $0x128] sm:$0xff]
    %v6385 = vld [vmem:[%s6346 + $0x130] sm:$0xff]
    %v6386 = vld [vmem:[%s6346 + $0x138] sm:$0xff]
    %v6387 = vld [vmem:[%s6346 + $0x140] sm:$0xff]
    %v6388 = vld [vmem:[%s6346 + $0x148] sm:$0xff]
    %v6389 = vld [vmem:[%s6346 + $0x150] sm:$0xff]
    %v6390 = vld [vmem:[%s6346 + $0x158] sm:$0xff]
    %v6391 = vld [vmem:[%s6346 + $0x160] sm:$0xff]
    %v6392 = vld [vmem:[%s6346 + $0x168] sm:$0xff]
    %v6393 = vld [vmem:[%s6346 + $0x170] sm:$0xff]
    %v6394 = vld [vmem:[%s6346 + $0x178] sm:$0xff]
    %v6395 = vld [vmem:[%s6346 + $0x180] sm:$0xff]
    %v6396 = vld [vmem:[%s6346 + $0x188] sm:$0xff]
    %v6397 = vld [vmem:[%s6346 + $0x190] sm:$0xff]
    %v6398 = vld [vmem:[%s6346 + $0x198] sm:$0xff]
    %v6399 = vld [vmem:[%s6346 + $0x1a0] sm:$0xff]
    %v6400 = vld [vmem:[%s6346 + $0x1a8] sm:$0xff]
    %v6401 = vld [vmem:[%s6346 + $0x1b0] sm:$0xff]
    %v6402 = vld [vmem:[%s6346 + $0x1b8] sm:$0xff]
    %v6403 = vld [vmem:[%s6346 + $0x1c0] sm:$0xff]
    %v6404 = vld [vmem:[%s6346 + $0x1c8] sm:$0xff]
    %v6405 = vld [vmem:[%s6346 + $0x1d0] sm:$0xff]
    %v6406 = vld [vmem:[%s6346 + $0x1d8] sm:$0xff]
    %v6407 = vld [vmem:[%s6346 + $0x1e0] sm:$0xff]
    %v6408 = vld [vmem:[%s6346 + $0x1e8] sm:$0xff]
    %v6409 = vld [vmem:[%s6346 + $0x1f0] sm:$0xff]
    %v6410 = vld [vmem:[%s6346 + $0x1f8] sm:$0xff]
    %v6475 = vunpack.c.l.b16 %v6347
    %v6476 = vunpack.c.h.b16 %v6347
    %v6477 = vunpack.c.l.b16 %v6348
    %v6478 = vunpack.c.h.b16 %v6348
    %v6479 = vunpack.c.l.b16 %v6349
    %v6480 = vunpack.c.h.b16 %v6349
    %v6481 = vunpack.c.l.b16 %v6350
    %v6482 = vunpack.c.h.b16 %v6350
    %v6483 = vunpack.c.l.b16 %v6351
    %v6484 = vunpack.c.h.b16 %v6351
    %v6485 = vunpack.c.l.b16 %v6352
    %v6486 = vunpack.c.h.b16 %v6352
    %v6487 = vunpack.c.l.b16 %v6353
    %v6488 = vunpack.c.h.b16 %v6353
    %v6489 = vunpack.c.l.b16 %v6354
    %v6490 = vunpack.c.h.b16 %v6354
    %v6491 = vunpack.c.l.b16 %v6355
    %v6492 = vunpack.c.h.b16 %v6355
    %v6493 = vunpack.c.l.b16 %v6356
    %v6494 = vunpack.c.h.b16 %v6356
    %v6495 = vunpack.c.l.b16 %v6357
    %v6496 = vunpack.c.h.b16 %v6357
    %v6497 = vunpack.c.l.b16 %v6358
    %v6498 = vunpack.c.h.b16 %v6358
    %v6499 = vunpack.c.l.b16 %v6359
    %v6500 = vunpack.c.h.b16 %v6359
    %v6501 = vunpack.c.l.b16 %v6360
    %v6502 = vunpack.c.h.b16 %v6360
    %v6503 = vunpack.c.l.b16 %v6361
    %v6504 = vunpack.c.h.b16 %v6361
    %v6505 = vunpack.c.l.b16 %v6362
    %v6506 = vunpack.c.h.b16 %v6362
    %v6507 = vunpack.c.l.b16 %v6363
    %v6508 = vunpack.c.h.b16 %v6363
    %v6509 = vunpack.c.l.b16 %v6364
    %v6510 = vunpack.c.h.b16 %v6364
    %v6511 = vunpack.c.l.b16 %v6365
    %v6512 = vunpack.c.h.b16 %v6365
    %v6513 = vunpack.c.l.b16 %v6366
    %v6514 = vunpack.c.h.b16 %v6366
    %v6515 = vunpack.c.l.b16 %v6367
    %v6516 = vunpack.c.h.b16 %v6367
    %v6517 = vunpack.c.l.b16 %v6368
    %v6518 = vunpack.c.h.b16 %v6368
    %v6519 = vunpack.c.l.b16 %v6369
    %v6520 = vunpack.c.h.b16 %v6369
    %v6521 = vunpack.c.l.b16 %v6370
    %v6522 = vunpack.c.h.b16 %v6370
    %v6523 = vunpack.c.l.b16 %v6371
    %v6524 = vunpack.c.h.b16 %v6371
    %v6525 = vunpack.c.l.b16 %v6372
    %v6526 = vunpack.c.h.b16 %v6372
    %v6527 = vunpack.c.l.b16 %v6373
    %v6528 = vunpack.c.h.b16 %v6373
    %v6529 = vunpack.c.l.b16 %v6374
    %v6530 = vunpack.c.h.b16 %v6374
    %v6531 = vunpack.c.l.b16 %v6375
    %v6532 = vunpack.c.h.b16 %v6375
    %v6533 = vunpack.c.l.b16 %v6376
    %v6534 = vunpack.c.h.b16 %v6376
    %v6535 = vunpack.c.l.b16 %v6377
    %v6536 = vunpack.c.h.b16 %v6377
    %v6537 = vunpack.c.l.b16 %v6378
    %v6538 = vunpack.c.h.b16 %v6378
    %v6539 = vunpack.c.l.b16 %v6379
    %v6540 = vunpack.c.h.b16 %v6379
    %v6541 = vunpack.c.l.b16 %v6380
    %v6542 = vunpack.c.h.b16 %v6380
    %v6543 = vunpack.c.l.b16 %v6381
    %v6544 = vunpack.c.h.b16 %v6381
    %v6545 = vunpack.c.l.b16 %v6382
    %v6546 = vunpack.c.h.b16 %v6382
    %v6547 = vunpack.c.l.b16 %v6383
    %v6548 = vunpack.c.h.b16 %v6383
    %v6549 = vunpack.c.l.b16 %v6384
    %v6550 = vunpack.c.h.b16 %v6384
    %v6551 = vunpack.c.l.b16 %v6385
    %v6552 = vunpack.c.h.b16 %v6385
    %v6553 = vunpack.c.l.b16 %v6386
    %v6554 = vunpack.c.h.b16 %v6386
    %v6555 = vunpack.c.l.b16 %v6387
    %v6556 = vunpack.c.h.b16 %v6387
    %v6557 = vunpack.c.l.b16 %v6388
    %v6558 = vunpack.c.h.b16 %v6388
    %v6559 = vunpack.c.l.b16 %v6389
    %v6560 = vunpack.c.h.b16 %v6389
    %v6561 = vunpack.c.l.b16 %v6390
    %v6562 = vunpack.c.h.b16 %v6390
    %v6563 = vunpack.c.l.b16 %v6391
    %v6564 = vunpack.c.h.b16 %v6391
    %v6565 = vunpack.c.l.b16 %v6392
    %v6566 = vunpack.c.h.b16 %v6392
    %v6567 = vunpack.c.l.b16 %v6393
    %v6568 = vunpack.c.h.b16 %v6393
    %v6569 = vunpack.c.l.b16 %v6394
    %v6570 = vunpack.c.h.b16 %v6394
    %v6571 = vunpack.c.l.b16 %v6395
    %v6572 = vunpack.c.h.b16 %v6395
    %v6573 = vunpack.c.l.b16 %v6396
    %v6574 = vunpack.c.h.b16 %v6396
    %v6575 = vunpack.c.l.b16 %v6397
    %v6576 = vunpack.c.h.b16 %v6397
    %v6577 = vunpack.c.l.b16 %v6398
    %v6578 = vunpack.c.h.b16 %v6398
    %v6579 = vunpack.c.l.b16 %v6399
    %v6580 = vunpack.c.h.b16 %v6399
    %v6581 = vunpack.c.l.b16 %v6400
    %v6582 = vunpack.c.h.b16 %v6400
    %v6583 = vunpack.c.l.b16 %v6401
    %v6584 = vunpack.c.h.b16 %v6401
    %v6585 = vunpack.c.l.b16 %v6402
    %v6586 = vunpack.c.h.b16 %v6402
    %v6587 = vunpack.c.l.b16 %v6403
    %v6588 = vunpack.c.h.b16 %v6403
    %v6589 = vunpack.c.l.b16 %v6404
    %v6590 = vunpack.c.h.b16 %v6404
    %v6591 = vunpack.c.l.b16 %v6405
    %v6592 = vunpack.c.h.b16 %v6405
    %v6593 = vunpack.c.l.b16 %v6406
    %v6594 = vunpack.c.h.b16 %v6406
    %v6595 = vunpack.c.l.b16 %v6407
    %v6596 = vunpack.c.h.b16 %v6407
    %v6597 = vunpack.c.l.b16 %v6408
    %v6598 = vunpack.c.h.b16 %v6408
    %v6599 = vunpack.c.l.b16 %v6409
    %v6600 = vunpack.c.h.b16 %v6409
    %v6601 = vunpack.c.l.b16 %v6410
    %v6602 = vunpack.c.h.b16 %v6410
    %v6603 = vpack.c.b16 %v6479, %v6475
    %v6604 = vpack.c.b16 %v6480, %v6476
    %v6605 = vpack.c.b16 %v6481, %v6477
    %v6606 = vpack.c.b16 %v6482, %v6478
    %v6607 = vpack.c.b16 %v6487, %v6483
    %v6608 = vpack.c.b16 %v6488, %v6484
    %v6609 = vpack.c.b16 %v6489, %v6485
    %v6610 = vpack.c.b16 %v6490, %v6486
    %v6611 = vpack.c.b16 %v6495, %v6491
    %v6612 = vpack.c.b16 %v6496, %v6492
    %v6613 = vpack.c.b16 %v6497, %v6493
    %v6614 = vpack.c.b16 %v6498, %v6494
    %v6615 = vpack.c.b16 %v6503, %v6499
    %v6616 = vpack.c.b16 %v6504, %v6500
    %v6617 = vpack.c.b16 %v6505, %v6501
    %v6618 = vpack.c.b16 %v6506, %v6502
    %v6619 = vpack.c.b16 %v6511, %v6507
    %v6620 = vpack.c.b16 %v6512, %v6508
    %v6621 = vpack.c.b16 %v6513, %v6509
    %v6622 = vpack.c.b16 %v6514, %v6510
    %v6623 = vpack.c.b16 %v6519, %v6515
    %v6624 = vpack.c.b16 %v6520, %v6516
    %v6625 = vpack.c.b16 %v6521, %v6517
    %v6626 = vpack.c.b16 %v6522, %v6518
    %v6627 = vpack.c.b16 %v6527, %v6523
    %v6628 = vpack.c.b16 %v6528, %v6524
    %v6629 = vpack.c.b16 %v6529, %v6525
    %v6630 = vpack.c.b16 %v6530, %v6526
    %v6631 = vpack.c.b16 %v6535, %v6531
    %v6632 = vpack.c.b16 %v6536, %v6532
    %v6633 = vpack.c.b16 %v6537, %v6533
    %v6634 = vpack.c.b16 %v6538, %v6534
    %v6635 = vpack.c.b16 %v6543, %v6539
    %v6636 = vpack.c.b16 %v6544, %v6540
    %v6637 = vpack.c.b16 %v6545, %v6541
    %v6638 = vpack.c.b16 %v6546, %v6542
    %v6639 = vpack.c.b16 %v6551, %v6547
    %v6640 = vpack.c.b16 %v6552, %v6548
    %v6641 = vpack.c.b16 %v6553, %v6549
    %v6642 = vpack.c.b16 %v6554, %v6550
    %v6643 = vpack.c.b16 %v6559, %v6555
    %v6644 = vpack.c.b16 %v6560, %v6556
    %v6645 = vpack.c.b16 %v6561, %v6557
    %v6646 = vpack.c.b16 %v6562, %v6558
    %v6647 = vpack.c.b16 %v6567, %v6563
    %v6648 = vpack.c.b16 %v6568, %v6564
    %v6649 = vpack.c.b16 %v6569, %v6565
    %v6650 = vpack.c.b16 %v6570, %v6566
    %v6651 = vpack.c.b16 %v6575, %v6571
    %v6652 = vpack.c.b16 %v6576, %v6572
    %v6653 = vpack.c.b16 %v6577, %v6573
    %v6654 = vpack.c.b16 %v6578, %v6574
    %v6655 = vpack.c.b16 %v6583, %v6579
    %v6656 = vpack.c.b16 %v6584, %v6580
    %v6657 = vpack.c.b16 %v6585, %v6581
    %v6658 = vpack.c.b16 %v6586, %v6582
    %v6659 = vpack.c.b16 %v6591, %v6587
    %v6660 = vpack.c.b16 %v6592, %v6588
    %v6661 = vpack.c.b16 %v6593, %v6589
    %v6662 = vpack.c.b16 %v6594, %v6590
    %v6663 = vpack.c.b16 %v6599, %v6595
    %v6664 = vpack.c.b16 %v6600, %v6596
    %v6665 = vpack.c.b16 %v6601, %v6597
    %v6666 = vpack.c.b16 %v6602, %v6598
    %6731 = vmatprep.subr.bf16.mxu0 %v6604
    %6732 = vmatpush1.bf16.msra.mxu0 %v6603
    %6733 = vmatprep.subr.bf16.mxu0 %v6608
    %6734 = vmatpush1.bf16.msra.mxu0 %v6607
    %6735 = vmatprep.subr.bf16.mxu0 %v6612
    %6736 = vmatpush1.bf16.msra.mxu0 %v6611
    %6737 = vmatprep.subr.bf16.mxu0 %v6616
    %6738 = vmatpush1.bf16.msra.mxu0 %v6615
    %6739 = vmatprep.subr.bf16.mxu0 %v6620
    %6740 = vmatpush1.bf16.msra.mxu0 %v6619
    %6741 = vmatprep.subr.bf16.mxu0 %v6624
    %6742 = vmatpush1.bf16.msra.mxu0 %v6623
    %6743 = vmatprep.subr.bf16.mxu0 %v6628
    %6744 = vmatpush1.bf16.msra.mxu0 %v6627
    %6745 = vmatprep.subr.bf16.mxu0 %v6632
    %6746 = vmatpush1.bf16.msra.mxu0 %v6631
    %6747 = vmatprep.subr.bf16.mxu0 %v6636
    %6748 = vmatpush1.bf16.msra.mxu0 %v6635
    %6749 = vmatprep.subr.bf16.mxu0 %v6640
    %6750 = vmatpush1.bf16.msra.mxu0 %v6639
    %6751 = vmatprep.subr.bf16.mxu0 %v6644
    %6752 = vmatpush1.bf16.msra.mxu0 %v6643
    %6753 = vmatprep.subr.bf16.mxu0 %v6648
    %6754 = vmatpush1.bf16.msra.mxu0 %v6647
    %6755 = vmatprep.subr.bf16.mxu0 %v6652
    %6756 = vmatpush1.bf16.msra.mxu0 %v6651
    %6757 = vmatprep.subr.bf16.mxu0 %v6656
    %6758 = vmatpush1.bf16.msra.mxu0 %v6655
    %6759 = vmatprep.subr.bf16.mxu0 %v6660
    %6760 = vmatpush1.bf16.msra.mxu0 %v6659
    %6761 = vmatprep.subr.bf16.mxu0 %v6664
    %6762 = vmatpush1.bf16.msra.mxu0 %v6663
    %6763 = vmatprep.mubr.bf16.mxu0 %v6345
    %6764 = vmatmul.mubr.bf16.gmra.mrb[0].mxu0 %v6344
    %v6765 = vpop.f32.mrb[0].mxu0
    %v6766 = vadd.f32 0.0, %v6765
    %v6767 = vpop.f32.mrb[0].mxu0
    %v6768 = vadd.f32 0.0, %v6767
    %v6769 = vpop.f32.mrb[0].mxu0
    %v6770 = vpop.f32.mrb[0].mxu0
    %6771 = vdwg.mxu0
    %6772 = vmatprep.subr.bf16.mxu0 %v6606
    %6773 = vmatpush1.bf16.msra.mxu0 %v6605
    %6774 = vmatprep.subr.bf16.mxu0 %v6610
    %6775 = vmatpush1.bf16.msra.mxu0 %v6609
    %6776 = vmatprep.subr.bf16.mxu0 %v6614
    %6777 = vmatpush1.bf16.msra.mxu0 %v6613
    %6778 = vmatprep.subr.bf16.mxu0 %v6618
    %6779 = vmatpush1.bf16.msra.mxu0 %v6617
    %6780 = vmatprep.subr.bf16.mxu0 %v6622
    %6781 = vmatpush1.bf16.msra.mxu0 %v6621
    %6782 = vmatprep.subr.bf16.mxu0 %v6626
    %6783 = vmatpush1.bf16.msra.mxu0 %v6625
    %6784 = vmatprep.subr.bf16.mxu0 %v6630
    %6785 = vmatpush1.bf16.msra.mxu0 %v6629
    %6786 = vmatprep.subr.bf16.mxu0 %v6634
    %6787 = vmatpush1.bf16.msra.mxu0 %v6633
    %6788 = vmatprep.subr.bf16.mxu0 %v6638
    %6789 = vmatpush1.bf16.msra.mxu0 %v6637
    %6790 = vmatprep.subr.bf16.mxu0 %v6642
    %6791 = vmatpush1.bf16.msra.mxu0 %v6641
    %6792 = vmatprep.subr.bf16.mxu0 %v6646
    %6793 = vmatpush1.bf16.msra.mxu0 %v6645
    %6794 = vmatprep.subr.bf16.mxu0 %v6650
    %6795 = vmatpush1.bf16.msra.mxu0 %v6649
    %6796 = vmatprep.subr.bf16.mxu0 %v6654
    %6797 = vmatpush1.bf16.msra.mxu0 %v6653
    %6798 = vmatprep.subr.bf16.mxu0 %v6658
    %6799 = vmatpush1.bf16.msra.mxu0 %v6657
    %6800 = vmatprep.subr.bf16.mxu0 %v6662
    %6801 = vmatpush1.bf16.msra.mxu0 %v6661
    %6802 = vmatprep.subr.bf16.mxu0 %v6666
    %6803 = vmatpush1.bf16.msra.mxu0 %v6665
    %6804 = vmatprep.mubr.bf16.mxu0 %v6345
    %6805 = vmatmul.mubr.bf16.gmra.mrb[0].mxu0 %v6344
    %v6806 = vpop.f32.mrb[0].mxu0
    %v6807 = vadd.f32 0.0, %v6806
    %v6808 = vpop.f32.mrb[0].mxu0
    %v6809 = vadd.f32 0.0, %v6808
    %v6810 = vpop.f32.mrb[0].mxu0
    %v6811 = vpop.f32.mrb[0].mxu0
    %6812 = vdwg.mxu0
    %v6813 = vadd.f32 %v6294, %v6766
    %v6814 = vadd.f32 %v6295, %v6768
    %v6815 = vadd.f32 %v6296, %v6807
    %v6816 = vadd.f32 %v6297, %v6809
    %v6817 = vld [vmem:[%s6] sm:$0xf]
    %v6819 = vlaneseq
    %v6820 = vshrl.u32 %v6819, 7
    %v6821 = vsub.s32 0, %v6820
    %v6822 = vrot.slane %v6817, %v6821
    %v6823 = vlaneseq
    %v6824 = vshrl.u32 %v6823, 7
    %v6825 = vsub.s32 1, %v6824
    %v6826 = vrot.slane %v6817, %v6825
    %v6827 = vlaneseq
    %v6828 = vshrl.u32 %v6827, 7
    %v6829 = vsub.s32 2, %v6828
    %v6830 = vrot.slane %v6817, %v6829
    %v6831 = vlaneseq
    %v6832 = vshrl.u32 %v6831, 7
    %v6833 = vsub.s32 3, %v6832
    %v6834 = vrot.slane %v6817, %v6833
    %v6839 = vadd.f32 %v6813, %v6822
    %v6840 = vadd.f32 %v6814, %v6826
    %v6841 = vadd.f32 %v6815, %v6830
    %v6842 = vadd.f32 %v6816, %v6834
    %v6843 = vmax.f32 %v6839, 0.0
    %v6844 = vmax.f32 %v6840, 0.0
    %v6845 = vmax.f32 %v6841, 0.0
    %v6846 = vmax.f32 %v6842, 0.0
    %v6847 = vpack.c.bf16 %v6843, %v6843
    %v6848 = vpack.c.bf16 %v6844, %v6844
    %v6849 = vpack.c.bf16 %v6845, %v6845
    %v6850 = vpack.c.bf16 %v6846, %v6846
    %v6851 = vld [vmem:[%s7] sm:$0x1]
    %vm6852 = vcmask 64512
    %v6854 = vsel %vm6852, %v6851, 0
    %vm6856 = vcmask 1043456
    %v6858 = vsel %vm6856, %v6847, 0
    %v6861 = vsel %vm6856, %v6848, 0
    %v6864 = vsel %vm6856, %v6849, 0
    %v6867 = vsel %vm6856, %v6850, 0
    %6869 = vmatprep.subr.bf16.mxu0 %v6861
    %6870 = vmatpush1.bf16.msra.mxu0 %v6858
    %6871 = vmatprep.subr.bf16.mxu0 0
    %6872 = vmatpush1.bf16.msra.mxu0 0
    %6873 = vmatprep.subr.bf16.mxu0 0
    %6874 = vmatpush1.bf16.msra.mxu0 0
    %6875 = vmatprep.subr.bf16.mxu0 0
    %6876 = vmatpush1.bf16.msra.mxu0 0
    %6877 = vmatprep.subr.bf16.mxu0 0
    %6878 = vmatpush1.bf16.msra.mxu0 0
    %6879 = vmatprep.subr.bf16.mxu0 0
    %6880 = vmatpush1.bf16.msra.mxu0 0
    %6881 = vmatprep.subr.bf16.mxu0 0
    %6882 = vmatpush1.bf16.msra.mxu0 0
    %6883 = vmatprep.subr.bf16.mxu0 0
    %6884 = vmatpush1.bf16.msra.mxu0 0
    %6885 = vmatprep.subr.bf16.mxu0 0
    %6886 = vmatpush1.bf16.msra.mxu0 0
    %6887 = vmatprep.subr.bf16.mxu0 0
    %6888 = vmatpush1.bf16.msra.mxu0 0
    %6889 = vmatprep.subr.bf16.mxu0 0
    %6890 = vmatpush1.bf16.msra.mxu0 0
    %6891 = vmatprep.subr.bf16.mxu0 0
    %6892 = vmatpush1.bf16.msra.mxu0 0
    %6893 = vmatprep.subr.bf16.mxu0 0
    %6894 = vmatpush1.bf16.msra.mxu0 0
    %6895 = vmatprep.subr.bf16.mxu0 0
    %6896 = vmatpush1.bf16.msra.mxu0 0
    %6897 = vmatprep.subr.bf16.mxu0 0
    %6898 = vmatpush1.bf16.msra.mxu0 0
    %6899 = vmatprep.subr.bf16.mxu0 0
    %6900 = vmatpush1.bf16.msra.mxu0 0
    %6901 = vmatprep.mubr.bf16.mxu0 0
    %6902 = vmatmul.mubr.bf16.gmra.mrb[0].mxu0 %v6854
    %v6903 = vpop.f32.mrb[0].mxu0
    %v6904 = vadd.f32 0.0, %v6903
    %v6905 = vpop.f32.mrb[0].mxu0
    %v6906 = vadd.f32 0.0, %v6905
    %v6907 = vpop.f32.mrb[0].mxu0
    %v6908 = vpop.f32.mrb[0].mxu0
    %6909 = vdwg.mxu0
    %6910 = vmatprep.subr.bf16.mxu0 %v6867
    %6911 = vmatpush1.bf16.msra.mxu0 %v6864
    %6912 = vmatprep.subr.bf16.mxu0 0
    %6913 = vmatpush1.bf16.msra.mxu0 0
    %6914 = vmatprep.subr.bf16.mxu0 0
    %6915 = vmatpush1.bf16.msra.mxu0 0
    %6916 = vmatprep.subr.bf16.mxu0 0
    %6917 = vmatpush1.bf16.msra.mxu0 0
    %6918 = vmatprep.subr.bf16.mxu0 0
    %6919 = vmatpush1.bf16.msra.mxu0 0
    %6920 = vmatprep.subr.bf16.mxu0 0
    %6921 = vmatpush1.bf16.msra.mxu0 0
    %6922 = vmatprep.subr.bf16.mxu0 0
    %6923 = vmatpush1.bf16.msra.mxu0 0
    %6924 = vmatprep.subr.bf16.mxu0 0
    %6925 = vmatpush1.bf16.msra.mxu0 0
    %6926 = vmatprep.subr.bf16.mxu0 0
    %6927 = vmatpush1.bf16.msra.mxu0 0
    %6928 = vmatprep.subr.bf16.mxu0 0
    %6929 = vmatpush1.bf16.msra.mxu0 0
    %6930 = vmatprep.subr.bf16.mxu0 0
    %6931 = vmatpush1.bf16.msra.mxu0 0
    %6932 = vmatprep.subr.bf16.mxu0 0
    %6933 = vmatpush1.bf16.msra.mxu0 0
    %6934 = vmatprep.subr.bf16.mxu0 0
    %6935 = vmatpush1.bf16.msra.mxu0 0
    %6936 = vmatprep.subr.bf16.mxu0 0
    %6937 = vmatpush1.bf16.msra.mxu0 0
    %6938 = vmatprep.subr.bf16.mxu0 0
    %6939 = vmatpush1.bf16.msra.mxu0 0
    %6940 = vmatprep.subr.bf16.mxu0 0
    %6941 = vmatpush1.bf16.msra.mxu0 0
    %6942 = vmatprep.mubr.bf16.mxu0 0
    %6943 = vmatmul.mubr.bf16.gmra.mrb[0].mxu0 %v6854
    %v6944 = vpop.f32.mrb[0].mxu0
    %v6945 = vadd.f32 0.0, %v6944
    %v6946 = vpop.f32.mrb[0].mxu0
    %v6947 = vadd.f32 0.0, %v6946
    %v6948 = vpop.f32.mrb[0].mxu0
    %v6949 = vpop.f32.mrb[0].mxu0
    %6950 = vdwg.mxu0
    %v6951 = vpack.c.bf16 %v6904, %v6904
    %v6952 = vpack.c.bf16 %v6906, %v6906
    %v6953 = vpack.c.bf16 %v6945, %v6945
    %v6954 = vpack.c.bf16 %v6947, %v6947
    %v6955 = vld [vmem:[%s8] sm:$0xf]
    %v6956 = vld [vmem:[%s8 + $0x4] sm:$0xf]
    %v6957 = vld [vmem:[%s8 + $0x8] sm:$0xf]
    %v6958 = vld [vmem:[%s8 + $0xc] sm:$0xf]
    %v6959 = vld [vmem:[%s8 + $0x10] sm:$0xf]
    %v6960 = vld [vmem:[%s8 + $0x14] sm:$0xf]
    %v6961 = vld [vmem:[%s8 + $0x18] sm:$0xf]
    %v6962 = vld [vmem:[%s8 + $0x1c] sm:$0xf]
    %v6963 = vld [vmem:[%s8 + $0x20] sm:$0xf]
    %v6964 = vld [vmem:[%s8 + $0x24] sm:$0xf]
    %v6965 = vld [vmem:[%s8 + $0x28] sm:$0xf]
    %v6966 = vld [vmem:[%s8 + $0x2c] sm:$0xf]
    %v6967 = vld [vmem:[%s8 + $0x30] sm:$0xf]
    %v6968 = vld [vmem:[%s8 + $0x34] sm:$0xf]
    %v6969 = vld [vmem:[%s8 + $0x38] sm:$0xf]
    %v6970 = vld [vmem:[%s8 + $0x3c] sm:$0xf]
    %v6971 = vld [vmem:[%s8 + $0x40] sm:$0xf]
    %v6972 = vld [vmem:[%s8 + $0x44] sm:$0xf]
    %v6973 = vld [vmem:[%s8 + $0x48] sm:$0xf]
    %v6974 = vld [vmem:[%s8 + $0x4c] sm:$0xf]
    %v6975 = vld [vmem:[%s8 + $0x50] sm:$0xf]
    %v6976 = vld [vmem:[%s8 + $0x54] sm:$0xf]
    %v6977 = vld [vmem:[%s8 + $0x58] sm:$0xf]
    %v6978 = vld [vmem:[%s8 + $0x5c] sm:$0xf]
    %v6979 = vld [vmem:[%s8 + $0x60] sm:$0xf]
    %v6980 = vld [vmem:[%s8 + $0x64] sm:$0xf]
    %v6981 = vld [vmem:[%s8 + $0x68] sm:$0xf]
    %v6982 = vld [vmem:[%s8 + $0x6c] sm:$0xf]
    %v6983 = vld [vmem:[%s8 + $0x70] sm:$0xf]
    %v6984 = vld [vmem:[%s8 + $0x74] sm:$0xf]
    %v6985 = vld [vmem:[%s8 + $0x78] sm:$0xf]
    %v6986 = vld [vmem:[%s8 + $0x7c] sm:$0xf]
    %v6987 = vld [vmem:[%s8 + $0x80] sm:$0xf]
    %v6988 = vld [vmem:[%s8 + $0x84] sm:$0xf]
    %v6989 = vld [vmem:[%s8 + $0x88] sm:$0xf]
    %v6990 = vld [vmem:[%s8 + $0x8c] sm:$0xf]
    %v6991 = vld [vmem:[%s8 + $0x90] sm:$0xf]
    %v6992 = vld [vmem:[%s8 + $0x94] sm:$0xf]
    %v6993 = vld [vmem:[%s8 + $0x98] sm:$0xf]
    %v6994 = vld [vmem:[%s8 + $0x9c] sm:$0xf]
    %v6995 = vld [vmem:[%s8 + $0xa0] sm:$0xf]
    %v6996 = vld [vmem:[%s8 + $0xa4] sm:$0xf]
    %v6997 = vld [vmem:[%s8 + $0xa8] sm:$0xf]
    %v6998 = vld [vmem:[%s8 + $0xac] sm:$0xf]
    %v6999 = vld [vmem:[%s8 + $0xb0] sm:$0xf]
    %v7000 = vld [vmem:[%s8 + $0xb4] sm:$0xf]
    %v7001 = vld [vmem:[%s8 + $0xb8] sm:$0xf]
    %v7002 = vld [vmem:[%s8 + $0xbc] sm:$0xf]
    %v7003 = vld [vmem:[%s8 + $0xc0] sm:$0xf]
    %v7004 = vld [vmem:[%s8 + $0xc4] sm:$0xf]
    %v7005 = vld [vmem:[%s8 + $0xc8] sm:$0xf]
    %v7006 = vld [vmem:[%s8 + $0xcc] sm:$0xf]
    %v7007 = vld [vmem:[%s8 + $0xd0] sm:$0xf]
    %v7008 = vld [vmem:[%s8 + $0xd4] sm:$0xf]
    %v7009 = vld [vmem:[%s8 + $0xd8] sm:$0xf]
    %v7010 = vld [vmem:[%s8 + $0xdc] sm:$0xf]
    %v7011 = vld [vmem:[%s8 + $0xe0] sm:$0xf]
    %v7012 = vld [vmem:[%s8 + $0xe4] sm:$0xf]
    %v7013 = vld [vmem:[%s8 + $0xe8] sm:$0xf]
    %v7014 = vld [vmem:[%s8 + $0xec] sm:$0xf]
    %v7015 = vld [vmem:[%s8 + $0xf0] sm:$0xf]
    %v7016 = vld [vmem:[%s8 + $0xf4] sm:$0xf]
    %v7017 = vld [vmem:[%s8 + $0xf8] sm:$0xf]
    %v7018 = vld [vmem:[%s8 + $0xfc] sm:$0xf]
    %v7019 = vld [vmem:[%s9] sm:$0x1]
    %v7021 = vlaneseq
    %v7022 = vshrl.u32 %v7021, 7
    %v7023 = vsub.s32 0, %v7022
    %v7024 = vrot.slane %v7019, %v7023
    %v7090 = vunpack.c.l.b16 %v6955
    %v7091 = vunpack.c.l.b16 %v6956
    %v7092 = vunpack.c.l.b16 %v6957
    %v7093 = vunpack.c.l.b16 %v6958
    %v7094 = vunpack.c.l.b16 %v6959
    %v7095 = vunpack.c.l.b16 %v6960
    %v7096 = vunpack.c.l.b16 %v6961
    %v7097 = vunpack.c.l.b16 %v6962
    %v7098 = vunpack.c.l.b16 %v6963
    %v7099 = vunpack.c.l.b16 %v6964
    %v7100 = vunpack.c.l.b16 %v6965
    %v7101 = vunpack.c.l.b16 %v6966
    %v7102 = vunpack.c.l.b16 %v6967
    %v7103 = vunpack.c.l.b16 %v6968
    %v7104 = vunpack.c.l.b16 %v6969
    %v7105 = vunpack.c.l.b16 %v6970
    %v7106 = vunpack.c.l.b16 %v6971
    %v7107 = vunpack.c.l.b16 %v6972
    %v7108 = vunpack.c.l.b16 %v6973
    %v7109 = vunpack.c.l.b16 %v6974
    %v7110 = vunpack.c.l.b16 %v6975
    %v7111 = vunpack.c.l.b16 %v6976
    %v7112 = vunpack.c.l.b16 %v6977
    %v7113 = vunpack.c.l.b16 %v6978
    %v7114 = vunpack.c.l.b16 %v6979
    %v7115 = vunpack.c.l.b16 %v6980
    %v7116 = vunpack.c.l.b16 %v6981
    %v7117 = vunpack.c.l.b16 %v6982
    %v7118 = vunpack.c.l.b16 %v6983
    %v7119 = vunpack.c.l.b16 %v6984
    %v7120 = vunpack.c.l.b16 %v6985
    %v7121 = vunpack.c.l.b16 %v6986
    %v7122 = vunpack.c.l.b16 %v6987
    %v7123 = vunpack.c.l.b16 %v6988
    %v7124 = vunpack.c.l.b16 %v6989
    %v7125 = vunpack.c.l.b16 %v6990
    %v7126 = vunpack.c.l.b16 %v6991
    %v7127 = vunpack.c.l.b16 %v6992
    %v7128 = vunpack.c.l.b16 %v6993
    %v7129 = vunpack.c.l.b16 %v6994
    %v7130 = vunpack.c.l.b16 %v6995
    %v7131 = vunpack.c.l.b16 %v6996
    %v7132 = vunpack.c.l.b16 %v6997
    %v7133 = vunpack.c.l.b16 %v6998
    %v7134 = vunpack.c.l.b16 %v6999
    %v7135 = vunpack.c.l.b16 %v7000
    %v7136 = vunpack.c.l.b16 %v7001
    %v7137 = vunpack.c.l.b16 %v7002
    %v7138 = vunpack.c.l.b16 %v7003
    %v7139 = vunpack.c.l.b16 %v7004
    %v7140 = vunpack.c.l.b16 %v7005
    %v7141 = vunpack.c.l.b16 %v7006
    %v7142 = vunpack.c.l.b16 %v7007
    %v7143 = vunpack.c.l.b16 %v7008
    %v7144 = vunpack.c.l.b16 %v7009
    %v7145 = vunpack.c.l.b16 %v7010
    %v7146 = vunpack.c.l.b16 %v7011
    %v7147 = vunpack.c.l.b16 %v7012
    %v7148 = vunpack.c.l.b16 %v7013
    %v7149 = vunpack.c.l.b16 %v7014
    %v7150 = vunpack.c.l.b16 %v7015
    %v7151 = vunpack.c.l.b16 %v7016
    %v7152 = vunpack.c.l.b16 %v7017
    %v7153 = vunpack.c.l.b16 %v7018
    %v7154 = vpack.c.b16 %v7091, %v7090
    %v7155 = vpack.c.b16 %v7093, %v7092
    %v7156 = vpack.c.b16 %v7095, %v7094
    %v7157 = vpack.c.b16 %v7097, %v7096
    %v7158 = vpack.c.b16 %v7099, %v7098
    %v7159 = vpack.c.b16 %v7101, %v7100
    %v7160 = vpack.c.b16 %v7103, %v7102
    %v7161 = vpack.c.b16 %v7105, %v7104
    %v7162 = vpack.c.b16 %v7107, %v7106
    %v7163 = vpack.c.b16 %v7109, %v7108
    %v7164 = vpack.c.b16 %v7111, %v7110
    %v7165 = vpack.c.b16 %v7113, %v7112
    %v7166 = vpack.c.b16 %v7115, %v7114
    %v7167 = vpack.c.b16 %v7117, %v7116
    %v7168 = vpack.c.b16 %v7119, %v7118
    %v7169 = vpack.c.b16 %v7121, %v7120
    %v7170 = vpack.c.b16 %v7123, %v7122
    %v7171 = vpack.c.b16 %v7125, %v7124
    %v7172 = vpack.c.b16 %v7127, %v7126
    %v7173 = vpack.c.b16 %v7129, %v7128
    %v7174 = vpack.c.b16 %v7131, %v7130
    %v7175 = vpack.c.b16 %v7133, %v7132
    %v7176 = vpack.c.b16 %v7135, %v7134
    %v7177 = vpack.c.b16 %v7137, %v7136
    %v7178 = vpack.c.b16 %v7139, %v7138
    %v7179 = vpack.c.b16 %v7141, %v7140
    %v7180 = vpack.c.b16 %v7143, %v7142
    %v7181 = vpack.c.b16 %v7145, %v7144
    %v7182 = vpack.c.b16 %v7147, %v7146
    %v7183 = vpack.c.b16 %v7149, %v7148
    %v7184 = vpack.c.b16 %v7151, %v7150
    %v7185 = vpack.c.b16 %v7153, %v7152
    %7218 = vmatprep.subr.bf16.mxu0 0
    %7219 = vmatpush1.bf16.msra.mxu0 %v7154
    %7220 = vmatprep.subr.bf16.mxu0 0
    %7221 = vmatpush1.bf16.msra.mxu0 %v7155
    %7222 = vmatprep.subr.bf16.mxu0 0
    %7223 = vmatpush1.bf16.msra.mxu0 %v7156
    %7224 = vmatprep.subr.bf16.mxu0 0
    %7225 = vmatpush1.bf16.msra.mxu0 %v7157
    %7226 = vmatprep.subr.bf16.mxu0 0
    %7227 = vmatpush1.bf16.msra.mxu0 %v7158
    %7228 = vmatprep.subr.bf16.mxu0 0
    %7229 = vmatpush1.bf16.msra.mxu0 %v7159
    %7230 = vmatprep.subr.bf16.mxu0 0
    %7231 = vmatpush1.bf16.msra.mxu0 %v7160
    %7232 = vmatprep.subr.bf16.mxu0 0
    %7233 = vmatpush1.bf16.msra.mxu0 %v7161
    %7234 = vmatprep.subr.bf16.mxu0 0
    %7235 = vmatpush1.bf16.msra.mxu0 %v7162
    %7236 = vmatprep.subr.bf16.mxu0 0
    %7237 = vmatpush1.bf16.msra.mxu0 %v7163
    %7238 = vmatprep.subr.bf16.mxu0 0
    %7239 = vmatpush1.bf16.msra.mxu0 %v7164
    %7240 = vmatprep.subr.bf16.mxu0 0
    %7241 = vmatpush1.bf16.msra.mxu0 %v7165
    %7242 = vmatprep.subr.bf16.mxu0 0
    %7243 = vmatpush1.bf16.msra.mxu0 %v7166
    %7244 = vmatprep.subr.bf16.mxu0 0
    %7245 = vmatpush1.bf16.msra.mxu0 %v7167
    %7246 = vmatprep.subr.bf16.mxu0 0
    %7247 = vmatpush1.bf16.msra.mxu0 %v7168
    %7248 = vmatprep.subr.bf16.mxu0 0
    %7249 = vmatpush1.bf16.msra.mxu0 %v7169
    %7250 = vmatprep.mubr.bf16.mxu0 %v6952
    %7251 = vmatmul.mubr.bf16.gmra.mrb[0].mxu0 %v6951
    %v7252 = vpop.f32.mrb[0].mxu0
    %v7253 = vadd.f32 %v7024, %v7252
    %v7254 = vpop.f32.mrb[0].mxu0
    %v7255 = vpop.f32.mrb[0].mxu0
    %v7256 = vpop.f32.mrb[0].mxu0
    %7257 = vdwg.mxu0
    %7258 = vmatprep.subr.bf16.mxu0 0
    %7259 = vmatpush1.bf16.msra.mxu0 %v7170
    %7260 = vmatprep.subr.bf16.mxu0 0
    %7261 = vmatpush1.bf16.msra.mxu0 %v7171
    %7262 = vmatprep.subr.bf16.mxu0 0
    %7263 = vmatpush1.bf16.msra.mxu0 %v7172
    %7264 = vmatprep.subr.bf16.mxu0 0
    %7265 = vmatpush1.bf16.msra.mxu0 %v7173
    %7266 = vmatprep.subr.bf16.mxu0 0
    %7267 = vmatpush1.bf16.msra.mxu0 %v7174
    %7268 = vmatprep.subr.bf16.mxu0 0
    %7269 = vmatpush1.bf16.msra.mxu0 %v7175
    %7270 = vmatprep.subr.bf16.mxu0 0
    %7271 = vmatpush1.bf16.msra.mxu0 %v7176
    %7272 = vmatprep.subr.bf16.mxu0 0
    %7273 = vmatpush1.bf16.msra.mxu0 %v7177
    %7274 = vmatprep.subr.bf16.mxu0 0
    %7275 = vmatpush1.bf16.msra.mxu0 %v7178
    %7276 = vmatprep.subr.bf16.mxu0 0
    %7277 = vmatpush1.bf16.msra.mxu0 %v7179
    %7278 = vmatprep.subr.bf16.mxu0 0
    %7279 = vmatpush1.bf16.msra.mxu0 %v7180
    %7280 = vmatprep.subr.bf16.mxu0 0
    %7281 = vmatpush1.bf16.msra.mxu0 %v7181
    %7282 = vmatprep.subr.bf16.mxu0 0
    %7283 = vmatpush1.bf16.msra.mxu0 %v7182
    %7284 = vmatprep.subr.bf16.mxu0 0
    %7285 = vmatpush1.bf16.msra.mxu0 %v7183
    %7286 = vmatprep.subr.bf16.mxu0 0
    %7287 = vmatpush1.bf16.msra.mxu0 %v7184
    %7288 = vmatprep.subr.bf16.mxu0 0
    %7289 = vmatpush1.bf16.msra.mxu0 %v7185
    %7290 = vmatprep.mubr.bf16.mxu0 %v6954
    %7291 = vmatmul.mubr.bf16.gmra.mrb[0].mxu0 %v6953
    %v7292 = vpop.f32.mrb[0].mxu0
    %v7293 = vadd.f32 %v7253, %v7292
    %v7294 = vpop.f32.mrb[0].mxu0
    %v7295 = vpop.f32.mrb[0].mxu0
    %v7296 = vpop.f32.mrb[0].mxu0
    %7297 = vdwg.mxu0
    %v7298 = vmax.f32 %v7293, 0.0
    %v7299 = vpack.c.bf16 %v7298, %v7298
    %v7300 = vld [vmem:[%s10] sm:$0xf]
    %v7301 = vld [vmem:[%s10 + $0x4] sm:$0xf]
    %v7302 = vld [vmem:[%s10 + $0x8] sm:$0xf]
    %v7303 = vld [vmem:[%s10 + $0xc] sm:$0xf]
    %v7304 = vld [vmem:[%s10 + $0x10] sm:$0xf]
    %v7305 = vld [vmem:[%s10 + $0x14] sm:$0xf]
    %v7306 = vld [vmem:[%s10 + $0x18] sm:$0xf]
    %v7307 = vld [vmem:[%s10 + $0x1c] sm:$0xf]
    %v7308 = vld [vmem:[%s10 + $0x20] sm:$0xf]
    %v7309 = vld [vmem:[%s10 + $0x24] sm:$0xf]
    %v7310 = vld [vmem:[%s10 + $0x28] sm:$0xf]
    %v7311 = vld [vmem:[%s10 + $0x2c] sm:$0xf]
    %v7312 = vld [vmem:[%s10 + $0x30] sm:$0xf]
    %v7313 = vld [vmem:[%s10 + $0x34] sm:$0xf]
    %v7314 = vld [vmem:[%s10 + $0x38] sm:$0xf]
    %v7315 = vld [vmem:[%s10 + $0x3c] sm:$0xf]
    %v7316 = vld [vmem:[%s11] sm:$0x1]
    %v7318 = vlaneseq
    %v7319 = vshrl.u32 %v7318, 7
    %v7320 = vsub.s32 0, %v7319
    %v7321 = vrot.slane %v7316, %v7320
    %v7339 = vunpack.c.l.b16 %v7300
    %v7340 = vunpack.c.l.b16 %v7301
    %v7341 = vunpack.c.l.b16 %v7302
    %v7342 = vunpack.c.l.b16 %v7303
    %v7343 = vunpack.c.l.b16 %v7304
    %v7344 = vunpack.c.l.b16 %v7305
    %v7345 = vunpack.c.l.b16 %v7306
    %v7346 = vunpack.c.l.b16 %v7307
    %v7347 = vunpack.c.l.b16 %v7308
    %v7348 = vunpack.c.l.b16 %v7309
    %v7349 = vunpack.c.l.b16 %v7310
    %v7350 = vunpack.c.l.b16 %v7311
    %v7351 = vunpack.c.l.b16 %v7312
    %v7352 = vunpack.c.l.b16 %v7313
    %v7353 = vunpack.c.l.b16 %v7314
    %v7354 = vunpack.c.l.b16 %v7315
    %v7355 = vpack.c.b16 %v7340, %v7339
    %v7356 = vpack.c.b16 %v7342, %v7341
    %v7357 = vpack.c.b16 %v7344, %v7343
    %v7358 = vpack.c.b16 %v7346, %v7345
    %v7359 = vpack.c.b16 %v7348, %v7347
    %v7360 = vpack.c.b16 %v7350, %v7349
    %v7361 = vpack.c.b16 %v7352, %v7351
    %v7362 = vpack.c.b16 %v7354, %v7353
    %7371 = vmatprep.subr.bf16.mxu0 0
    %7372 = vmatpush1.bf16.msra.mxu0 %v7355
    %7373 = vmatprep.subr.bf16.mxu0 0
    %7374 = vmatpush1.bf16.msra.mxu0 %v7356
    %7375 = vmatprep.subr.bf16.mxu0 0
    %7376 = vmatpush1.bf16.msra.mxu0 %v7357
    %7377 = vmatprep.subr.bf16.mxu0 0
    %7378 = vmatpush1.bf16.msra.mxu0 %v7358
    %7379 = vmatprep.subr.bf16.mxu0 0
    %7380 = vmatpush1.bf16.msra.mxu0 %v7359
    %7381 = vmatprep.subr.bf16.mxu0 0
    %7382 = vmatpush1.bf16.msra.mxu0 %v7360
    %7383 = vmatprep.subr.bf16.mxu0 0
    %7384 = vmatpush1.bf16.msra.mxu0 %v7361
    %7385 = vmatprep.subr.bf16.mxu0 0
    %7386 = vmatpush1.bf16.msra.mxu0 %v7362
    %7387 = vmatprep.subr.bf16.mxu0 0
    %7388 = vmatpush1.bf16.msra.mxu0 0
    %7389 = vmatprep.subr.bf16.mxu0 0
    %7390 = vmatpush1.bf16.msra.mxu0 0
    %7391 = vmatprep.subr.bf16.mxu0 0
    %7392 = vmatpush1.bf16.msra.mxu0 0
    %7393 = vmatprep.subr.bf16.mxu0 0
    %7394 = vmatpush1.bf16.msra.mxu0 0
    %7395 = vmatprep.subr.bf16.mxu0 0
    %7396 = vmatpush1.bf16.msra.mxu0 0
    %7397 = vmatprep.subr.bf16.mxu0 0
    %7398 = vmatpush1.bf16.msra.mxu0 0
    %7399 = vmatprep.subr.bf16.mxu0 0
    %7400 = vmatpush1.bf16.msra.mxu0 0
    %7401 = vmatprep.subr.bf16.mxu0 0
    %7402 = vmatpush1.bf16.msra.mxu0 0
    %7403 = vmatprep.mubr.bf16.mxu0 0
    %7404 = vmatmul.mubr.bf16.gmra.mrb[0].mxu0 %v7299
    %v7405 = vpop.f32.mrb[0].mxu0
    %v7406 = vadd.f32 %v7321, %v7405
    %v7407 = vpop.f32.mrb[0].mxu0
    %v7408 = vpop.f32.mrb[0].mxu0
    %v7409 = vpop.f32.mrb[0].mxu0
    %7410 = vdwg.mxu0
    %7411 = vst [vmem:[#allocation2] sm:$0x3] %v7406
    // Predicated region
    $region50: #{mobilefacenet_forward.5} parent=1 // pred_check
      _
    $region51: #{mobilefacenet_forward.5} parent=1 // pred_check_branch
      %7413 = sbr.rel (0) target = $region53
    $region52: #{mobilefacenet_forward.5} parent=1 // pred_region
      %s7415 = ssub.s32 32, 32
      %7416 = vsyncadd [#allocation3], %s7415
      %s7418 = sshll.u32 [#allocation2], 4
      %s7419 = int_to_ptr.vmem [resolvable:$true] %s7418
      %7421 = dma.vmem_to_hbm [thread:$0]  %s7419, 32, %s12, [#allocation3]
    $region53: #{mobilefacenet_forward.5} parent=1 // pred_fallthru
      _
    // Predicated region
    $region54: #{mobilefacenet_forward.5} parent=1 // pred_check
      _
    $region55: #{mobilefacenet_forward.5} parent=1 // pred_check_branch
      %7423 = sbr.rel (0) target = $region57
    $region56: #{mobilefacenet_forward.5} parent=1 // pred_region
      %7424 = dma.done [#allocation3], 32
    $region57: #{mobilefacenet_forward.5} parent=1 // pred_fallthru
      _
    %7425 = vsyncpa [#allocation3], 1

</llo_original>
